<compile_context>
chip_gen: v5e
topology: v5e:2x2
jax: 0.10.0
libtpu: 0.0.40
codegen_flags: <defaults>
</compile_context>

<pallas_src>
import functools
import inspect

import jax
import jax.numpy as jnp
from jax import lax
from jax.experimental import pallas as pl
from jax.experimental.pallas import tpu as pltpu

IN_PLANES = 2048        # self.in_planes in the PyTorch module
GEM_EPS = 1e-6          # GeM eps
BN_EPS = 1e-5           # nn.BatchNorm1d default eps
STEM_VPU_MAX_CIN = 4    # cin <= 4 -> VPU broadcast-FMA stem; cin > 4 -> MXU


def _round_up(x, m):
    return -(-x // m) * m


# ---------------------------------------------------------------------------
# Hardware-aware sizing / feature probes
# ---------------------------------------------------------------------------
@functools.lru_cache(maxsize=None)
def _hw_budget():
    """Generation-aware tile / VMEM budget (v5e/v6e: 128 MiB VMEM, v7x: 64)."""
    try:
        vmem = int(pltpu.get_tpu_info().vmem_capacity_bytes)
    except Exception:
        vmem = 64 * 1024 * 1024
    if vmem >= 100 * 1024 * 1024:          # v5e / v6e class parts (128 MiB)
        return {"max_s_tile": 1024, "max_n_tile": 1024,
                "vmem_limit": 64 * 1024 * 1024, "x_buffers": 3}
    # v7x-class parts: keep the Stage-1 working set well under 64 MiB.
    return {"max_s_tile": 512, "max_n_tile": 512,
            "vmem_limit": 48 * 1024 * 1024, "x_buffers": None}


@functools.lru_cache(maxsize=None)
def _buffered_supported():
    """Probe pipeline_mode=pl.Buffered (single-buffer constant operands)."""
    try:
        if not hasattr(pl, "Buffered"):
            return False
        if "pipeline_mode" not in inspect.signature(pl.BlockSpec).parameters:
            return False

        def _k(x_ref, o_ref):
            o_ref[...] = x_ref[...] + 1.0

        out = pl.pallas_call(
            _k,
            out_shape=jax.ShapeDtypeStruct((8, 128), jnp.float32),
            grid=(2,),
            in_specs=[pl.BlockSpec((8, 128), lambda i: (0, 0),
                                   pipeline_mode=pl.Buffered(1))],
            out_specs=pl.BlockSpec((8, 128), lambda i: (0, 0)),
        )(jnp.zeros((8, 128), jnp.float32))
        jax.block_until_ready(out)
        return True
    except Exception:
        return False


def _spec(shape, index_map, buffers=None):
    """BlockSpec helper: optional explicit buffer count when supported."""
    if buffers is not None and _buffered_supported():
        return pl.BlockSpec(shape, index_map, pipeline_mode=pl.Buffered(buffers))
    return pl.BlockSpec(shape, index_map)


# ---------------------------------------------------------------------------
# Stage 1: pointwise stem (stand-in backbone) + streamed GeM pooling
# ---------------------------------------------------------------------------
def _stem_gem_kernel(x_ref, w_ref, gfeat_ref, acc_ref, *,
                     p, s_total, s_tile, cin, has_tail):
    # Zero the per-batch-row accumulator at the first spatial tile.
    @pl.when(pl.program_id(1) == 0)
    def _():
        acc_ref[...] = jnp.zeros_like(acc_ref)

    # TODO(synk): the ResNet/Bottleneck backbone classes are not provided in
    # the module source; a deterministic pointwise (1x1-conv) stem mapping
    # Cin -> 2048 channels stands in for `self.base` (mid_fea).
    x = x_ref[0]                                          # [s_tile, cin]
    if cin <= STEM_VPU_MAX_CIN:
        # Tiny K: cin VPU broadcast-FMAs beat a K=cin MXU matmul.
        w = w_ref[...]                                    # f32 [cin, 2048]
        xf = x.astype(jnp.float32)
        stem = xf[:, 0:1] * w[0:1, :]
        for c in range(1, cin):
            stem = stem + xf[:, c:c + 1] * w[c:c + 1, :]  # [s_tile, 2048]
    else:
        # MXU path: x and w arrive pre-cast to bf16 (wrapper / prepare_params)
        # so no in-kernel f32 load + cast and half the x DMA traffic.
        stem = jnp.dot(x, w_ref[...], preferred_element_type=jnp.float32)

    # GeM numerator: clamp(.)^p for this spatial tile.
    xc = jnp.maximum(stem, GEM_EPS)
    p_int = int(round(p))
    if abs(p - p_int) < 1e-12 and 1 <= p_int <= 16:
        # Integer p (module default p=3): pure VPU multiplies, no EUP exp/log.
        xp = xc
        for _ in range(p_int - 1):
            xp = xp * xc
    else:
        xp = jnp.exp(p * jnp.log(xc))

    def _accum(v):
        if s_tile % 8 == 0:
            # Keep the per-tile reduce a plain VPU add into an [8, 2048]
            # accumulator; the 8->1 cross-sublane XLU reduce runs only once,
            # in the finalize branch.
            acc_ref[...] += jnp.sum(v.reshape(s_tile // 8, 8, IN_PLANES), axis=0)
        else:
            acc_ref[0:1, :] += jnp.sum(v, axis=0, keepdims=True)

    if has_tail:
        # Only the last spatial tile can read past S (no wrapper-side pad);
        # the mask runs on that one tile only.
        is_last = pl.program_id(1) == pl.num_programs(1) - 1

        @pl.when(is_last)
        def _():
            pos = (pl.program_id(1) * s_tile
                   + lax.broadcasted_iota(jnp.int32, xp.shape, 0))
            _accum(jnp.where(pos < s_total, xp, 0.0))

        @pl.when(jnp.logical_not(is_last))
        def _():
            _accum(xp)
    else:
        _accum(xp)

    # Finalize: global_feat = (mean_S clamp(.)^p) ^ (1/p)  (only [1, 2048]).
    @pl.when(pl.program_id(1) == pl.num_programs(1) - 1)
    def _():
        pooled = jnp.sum(acc_ref[...], axis=0, keepdims=True) * (1.0 / s_total)
        gfeat_ref[0] = jnp.exp(jnp.log(pooled) * (1.0 / p))


def _stem_gem(x_bsc, w_stem, p):
    B, S, cin = x_bsc.shape
    budget = _hw_budget()
    max_s_tile = budget["max_s_tile"]
    if S <= max_s_tile:
        s_tile = S                       # full-extent block: no pad, no mask
    else:
        s_tile = max_s_tile              # multiple of 8; tail masked in-kernel
    n_s = pl.cdiv(S, s_tile)
    has_tail = (S % s_tile) != 0

    # TODO(synk): for B == 1 on v7x (2 TCs), a second parallel grid axis
    # splitting the 2048 output channels would keep both cores busy.
    kernel = functools.partial(_stem_gem_kernel, p=p, s_total=S,
                               s_tile=s_tile, cin=cin, has_tail=has_tail)
    gfeat = pl.pallas_call(
        kernel,
        out_shape=jax.ShapeDtypeStruct((B, 1, IN_PLANES), jnp.float32),
        grid_spec=pltpu.PrefetchScalarGridSpec(
            num_scalar_prefetch=0,
            grid=(B, n_s),
            in_specs=[
                # On 128-MiB parts (v5e/v6e) triple-buffer the streamed x tile
                # to hide its HBM DMA behind the cheap-K compute.
                _spec((1, s_tile, cin), lambda b, s: (b, s, 0),
                      buffers=budget["x_buffers"]),
                # Constant index_map -> single buffer: don't waste VMEM
                # double-buffering a weight that never changes.
                _spec((cin, IN_PLANES), lambda b, s: (0, 0), buffers=1),
            ],
            out_specs=pl.BlockSpec((1, 1, IN_PLANES), lambda b, s: (b, 0, 0)),
            scratch_shapes=[pltpu.VMEM((8, IN_PLANES), jnp.float32)],
        ),
        compiler_params=pltpu.CompilerParams(
            dimension_semantics=("parallel", "arbitrary"),
            vmem_limit_bytes=budget["vmem_limit"]),
    )(x_bsc, w_stem)
    return gfeat.reshape(B, IN_PLANES)


# ---------------------------------------------------------------------------
# Stage 2: bnneck (BatchNorm1d, training-mode batch stats) + classifier
# ---------------------------------------------------------------------------
def _bn_cls_kernel(gfeat_ref, gamma_ref, beta_ref, w_ref, cls_ref, feat_ref,
                   *, b_valid):
    # BN(batch stats) + affine + bf16 cast computed once (first class tile),
    # cached in VMEM, reused by every subsequent class tile.
    @pl.when(pl.program_id(0) == 0)
    def _():
        g = gfeat_ref[...]                                 # [b_pad, 2048] f32
        gv = g[:b_valid]                                   # real batch rows
        mu = jnp.mean(gv, axis=0, keepdims=True)           # training-mode stats
        var = jnp.mean((gv - mu) ** 2, axis=0, keepdims=True)
        feat = (g - mu) * lax.rsqrt(var + BN_EPS)
        feat = feat * gamma_ref[...] + beta_ref[...]       # gamma=1, beta=0
        feat_ref[...] = feat.astype(jnp.bfloat16)

    cls_ref[...] = jnp.dot(feat_ref[...], w_ref[...],
                           preferred_element_type=jnp.float32)


def _cls_tiles(nc, max_n_tile):
    if nc <= max_n_tile:
        n_tile = _round_up(nc, 128)                        # lane-dense output
        return n_tile, n_tile
    return max_n_tile, _round_up(nc, max_n_tile)


def _bn_classifier(gfeat, gamma, beta, w_cls, nc):
    B, D = gfeat.shape
    budget = _hw_budget()
    n_tile, nc_pad = _cls_tiles(nc, budget["max_n_tile"])
    b_pad = _round_up(B, 8)                                # sublane-dense batch

    gfeat_p = gfeat if b_pad == B else jnp.pad(gfeat, ((0, b_pad - B), (0, 0)))
    # w_cls normally arrives pre-padded/pre-cast from prepare_params; these
    # are no-ops in that case and only fire for raw parameter dicts.
    if w_cls.shape[1] != nc_pad:
        w_cls = jnp.pad(w_cls, ((0, 0), (0, nc_pad - w_cls.shape[1])))
    if w_cls.dtype != jnp.bfloat16:
        w_cls = w_cls.astype(jnp.bfloat16)

    cls = pl.pallas_call(
        functools.partial(_bn_cls_kernel, b_valid=B),
        out_shape=jax.ShapeDtypeStruct((b_pad, nc_pad), jnp.float32),
        grid_spec=pltpu.PrefetchScalarGridSpec(
            num_scalar_prefetch=0,
            grid=(nc_pad // n_tile,),
            in_specs=[
                _spec((b_pad, D), lambda n: (0, 0), buffers=1),
                _spec((1, D), lambda n: (0, 0), buffers=1),
                _spec((1, D), lambda n: (0, 0), buffers=1),
                pl.BlockSpec((D, n_tile), lambda n: (0, n)),
            ],
            out_specs=pl.BlockSpec((b_pad, n_tile), lambda n: (0, n)),
            scratch_shapes=[pltpu.VMEM((b_pad, D), jnp.bfloat16)],
        ),
        compiler_params=pltpu.CompilerParams(
            # "arbitrary": the BN feat cached in VMEM scratch at n == 0 must be
            # visible to all later class tiles (sequential grid).
            dimension_semantics=("arbitrary",),
            vmem_limit_bytes=budget["vmem_limit"]),
    )(gfeat_p, gamma, beta, w_cls)
    return cls[:B, :nc]


# ---------------------------------------------------------------------------
# Parameter prep (one-time) + top-level forward
# ---------------------------------------------------------------------------
def prepare_params(params):
    """One-time parameter prep: bf16 casts / class padding hoisted out of the
    per-call forward, and GeM's exponent p read as a Python float (outside any
    jit) so the integer-p (default p=3) VPU fast path is selected statically.
    # TODO(synk): if p must stay a traced learnable tensor, route it through
    # the in-kernel exp/log path instead of baking it at prep time.
    """
    if params.get("_prepared", False):
        return params
    p_param = params["p"]
    if isinstance(p_param, (int, float)):
        p = float(p_param)
    else:
        p = float(jax.device_get(jnp.asarray(p_param)).reshape(-1)[0])

    w_stem = jnp.asarray(params["w_stem"])
    cin = w_stem.shape[0]
    if cin > STEM_VPU_MAX_CIN:
        w_stem = w_stem.astype(jnp.bfloat16)               # MXU stem path

    w_cls = jnp.asarray(params["w_cls"])
    nc = w_cls.shape[1]
    _, nc_pad = _cls_tiles(nc, _hw_budget()["max_n_tile"])
    if nc_pad != nc:
        w_cls = jnp.pad(w_cls, ((0, 0), (0, nc_pad - nc)))
    w_cls = w_cls.astype(jnp.bfloat16)

    return {
        "_prepared": True,
        "p": p,
        "num_classes": nc,
        "w_stem": w_stem,
        "gamma": jnp.asarray(params["gamma"]),
        "beta": jnp.asarray(params["beta"]),
        "w_cls": w_cls,
    }


def build_resnet_forward(x_nchw, params):
    """Training-mode forward (NECK='bnneck', TRANS_USE=0):
    returns (cls_score, global_feat)."""
    params = prepare_params(params)
    B, cin, H, W = x_nchw.shape
    x_bsc = jnp.transpose(x_nchw, (0, 2, 3, 1)).reshape(B, H * W, cin)
    if cin > STEM_VPU_MAX_CIN:
        # MXU stem path: ship bf16 activations (halves the dominant x DMA);
        # XLA fuses the cast into the NCHW->BSC transpose pass.
        x_bsc = x_bsc.astype(jnp.bfloat16)

    gfeat = _stem_gem(x_bsc, params["w_stem"], params["p"])
    cls = _bn_classifier(gfeat, params["gamma"], params["beta"],
                         params["w_cls"], params["num_classes"])
    return cls, gfeat


def init_params(key, c_in, num_classes):
    k_stem, k_cls = jax.random.split(key)
    # stem: kaiming_normal fan_in (Conv init in weights_init_kaiming)
    w_stem = jax.random.normal(k_stem, (c_in, IN_PLANES), jnp.float32) * jnp.sqrt(2.0 / c_in)
    # classifier: normal(std=0.001), bias=False  (weights_init_classifier)
    w_cls = jax.random.normal(k_cls, (IN_PLANES, num_classes), jnp.float32) * 0.001
    return {
        'p': jnp.ones((1,), jnp.float32) * 3.0,              # GeM p
        'w_stem': w_stem,
        'gamma': jnp.ones((1, IN_PLANES), jnp.float32),      # BN weight = 1
        'beta': jnp.zeros((1, IN_PLANES), jnp.float32),      # BN bias = 0 (frozen)
        'w_cls': w_cls,
    }


def _reference(x_nchw, params):
    """Pure-JAX reference of the same forward pass."""
    B, cin, H, W = x_nchw.shape
    x_bsc = jnp.transpose(x_nchw, (0, 2, 3, 1)).reshape(B, H * W, cin)
    mid = jnp.einsum('bsc,cd->bsd', x_bsc, params['w_stem'],
                     precision=lax.Precision.HIGHEST)
    p = params['p'][0]
    gfeat = jnp.mean(jnp.clip(mid, GEM_EPS, None) ** p, axis=1) ** (1.0 / p)
    mu = jnp.mean(gfeat, axis=0, keepdims=True)
    var = jnp.mean((gfeat - mu) ** 2, axis=0, keepdims=True)
    feat = (gfeat - mu) / jnp.sqrt(var + BN_EPS)
    feat = feat * params['gamma'] + params['beta']
    cls = jnp.dot(feat, params['w_cls'], precision=lax.Precision.HIGHEST)
    return cls, gfeat


if __name__ == "__main__":
    key = jax.random.PRNGKey(0)
    k_x, k_p = jax.random.split(key)

    B, C_in, H, W = 2, 4, 16, 16
    num_classes = 128

    x = jax.random.normal(k_x, (B, C_in, H, W), jnp.float32)
    raw_params = init_params(k_p, C_in, num_classes)
    params = prepare_params(raw_params)        # one-time bf16 / pad prep

    cls_score, global_feat = jax.block_until_ready(
        build_resnet_forward(x, params))

    ref_cls, ref_gfeat = _reference(x, raw_params)
    assert cls_score.shape == (B, num_classes)
    assert global_feat.shape == (B, IN_PLANES)
    assert jnp.allclose(global_feat, ref_gfeat, rtol=1e-2, atol=1e-2)
    assert jnp.allclose(cls_score, ref_cls, rtol=1e-2, atol=1e-2)

    print("KERNEL_OK")
</pallas_src>

<mosaic_0001>
module attributes {stable_mosaic.version = 11 : i64} {
  func.func @_k(%arg0: i32, %arg1: memref<8x128xf32, #tpu.memory_space<vmem>>, %arg2: memref<8x128xf32, #tpu.memory_space<vmem>>) attributes {dimension_semantics = [#tpu.dimension_semantics<arbitrary>], iteration_bounds = array<i64: 2>, scalar_prefetch = 0 : i64, scratch_operands = 0 : i64, tpu.core_type = #tpu.core_type<tc>, window_params = [{pipeline_mode = #tpu.pipeline_mode<synchronous>, transform_indices = @transform_0, window_bounds = array<i64: 8, 128>}, {pipeline_mode = #tpu.pipeline_mode<synchronous>, transform_indices = @transform_1, window_bounds = array<i64: 8, 128>}]} {
    %c0 = arith.constant 0 : index
    %c0_0 = arith.constant 0 : index
    %0 = vector.load %arg1[%c0, %c0_0] : memref<8x128xf32, #tpu.memory_space<vmem>>, vector<8x128xf32>
    %cst = arith.constant 1.000000e+00 : f32
    %1 = vector.broadcast %cst : f32 to vector<8x128xf32>
    %2 = arith.addf %0, %1 : vector<8x128xf32>
    %c0_1 = arith.constant 0 : index
    %c0_2 = arith.constant 0 : index
    %3 = vector.load %arg2[%c0_1, %c0_2] : memref<8x128xf32, #tpu.memory_space<vmem>>, vector<8x128xf32>
    tpu.vector_store %arg2[%c0_1, %c0_2], %2 {strides = array<i32>} : memref<8x128xf32, #tpu.memory_space<vmem>>, vector<8x128xf32>,
    return
  }
  func.func @transform_0(%arg0: i32) -> (i32, i32) {
    %c0_i32 = arith.constant 0 : i32
    %c0_i32_0 = arith.constant 0 : i32
    %c0_i32_1 = arith.constant 0 : i32
    return %c0_i32, %c0_i32_0 : i32, i32
  }
  func.func @transform_1(%arg0: i32) -> (i32, i32) {
    %c0_i32 = arith.constant 0 : i32
    %c0_i32_0 = arith.constant 0 : i32
    %c0_i32_1 = arith.constant 0 : i32
    return %c0_i32, %c0_i32_0 : i32, i32
  }
}

module attributes {stable_mosaic.version = 11 : i64} {
  func.func @_stem_gem_kernel(%arg0: i32, %arg1: i32, %arg2: memref<1x256x4xf32, #tpu.memory_space<vmem>>, %arg3: memref<4x2048xf32, #tpu.memory_space<vmem>>, %arg4: memref<1x1x2048xf32, #tpu.memory_space<vmem>>, %arg5: memref<8x2048xf32, #tpu.memory_space<vmem>>) attributes {dimension_semantics = [#tpu.dimension_semantics<parallel>, #tpu.dimension_semantics<arbitrary>], iteration_bounds = array<i64: 2, 1>, scalar_prefetch = 0 : i64, scratch_operands = 1 : i64, tpu.core_type = #tpu.core_type<tc>, window_params = [{transform_indices = @transform_0, window_bounds = array<i64: 1, 256, 4>}, {pipeline_mode = #tpu.pipeline_mode<synchronous>, transform_indices = @transform_1, window_bounds = array<i64: 4, 2048>}, {transform_indices = @transform_2, window_bounds = array<i64: 1, 1, 2048>}]} {
    %c0_i32 = arith.constant 0 : i32
    %0 = arith.cmpi eq, %arg1, %c0_i32 : i32
    %1 = arith.extui %0 : i1 to i32
    %c0_i32_0 = arith.constant 0 : i32
    %2 = arith.cmpi ne, %1, %c0_i32_0 : i32
    scf.if %2 {
      %cst_12 = arith.constant 0.000000e+00 : f32
      %41 = vector.broadcast %cst_12 : f32 to vector<8x2048xf32>
      %c0_13 = arith.constant 0 : index
      %c0_14 = arith.constant 0 : index
      %42 = vector.load %arg5[%c0_13, %c0_14] : memref<8x2048xf32, #tpu.memory_space<vmem>>, vector<8x2048xf32>
      tpu.vector_store %arg5[%c0_13, %c0_14], %41 {strides = array<i32>} : memref<8x2048xf32, #tpu.memory_space<vmem>>, vector<8x2048xf32>,
    } else {
    }
    %c0 = arith.constant 0 : index
    %c0_1 = arith.constant 0 : index
    %c0_2 = arith.constant 0 : index
    %3 = vector.load %arg2[%c0, %c0_1, %c0_2] : memref<1x256x4xf32, #tpu.memory_space<vmem>>, vector<1x256x4xf32>
    %4 = vector.shape_cast %3 : vector<1x256x4xf32> to vector<256x4xf32>
    %c0_3 = arith.constant 0 : index
    %c0_4 = arith.constant 0 : index
    %5 = vector.load %arg3[%c0_3, %c0_4] : memref<4x2048xf32, #tpu.memory_space<vmem>>, vector<4x2048xf32>
    %6 = vector.extract_strided_slice %4 {offsets = [0, 0], sizes = [256, 1], strides = [1, 1]} : vector<256x4xf32> to vector<256x1xf32>
    %7 = vector.extract_strided_slice %5 {offsets = [0, 0], sizes = [1, 2048], strides = [1, 1]} : vector<4x2048xf32> to vector<1x2048xf32>
    %8 = vector.broadcast %6 : vector<256x1xf32> to vector<256x2048xf32>
    %9 = vector.broadcast %7 : vector<1x2048xf32> to vector<256x2048xf32>
    %10 = arith.mulf %8, %9 : vector<256x2048xf32>
    %11 = vector.extract_strided_slice %4 {offsets = [0, 1], sizes = [256, 1], strides = [1, 1]} : vector<256x4xf32> to vector<256x1xf32>
    %12 = vector.extract_strided_slice %5 {offsets = [1, 0], sizes = [1, 2048], strides = [1, 1]} : vector<4x2048xf32> to vector<1x2048xf32>
    %13 = vector.broadcast %11 : vector<256x1xf32> to vector<256x2048xf32>
    %14 = vector.broadcast %12 : vector<1x2048xf32> to vector<256x2048xf32>
    %15 = arith.mulf %13, %14 : vector<256x2048xf32>
    %16 = arith.addf %10, %15 : vector<256x2048xf32>
    %17 = vector.extract_strided_slice %4 {offsets = [0, 2], sizes = [256, 1], strides = [1, 1]} : vector<256x4xf32> to vector<256x1xf32>
    %18 = vector.extract_strided_slice %5 {offsets = [2, 0], sizes = [1, 2048], strides = [1, 1]} : vector<4x2048xf32> to vector<1x2048xf32>
    %19 = vector.broadcast %17 : vector<256x1xf32> to vector<256x2048xf32>
    %20 = vector.broadcast %18 : vector<1x2048xf32> to vector<256x2048xf32>
    %21 = arith.mulf %19, %20 : vector<256x2048xf32>
    %22 = arith.addf %16, %21 : vector<256x2048xf32>
    %23 = vector.extract_strided_slice %4 {offsets = [0, 3], sizes = [256, 1], strides = [1, 1]} : vector<256x4xf32> to vector<256x1xf32>
    %24 = vector.extract_strided_slice %5 {offsets = [3, 0], sizes = [1, 2048], strides = [1, 1]} : vector<4x2048xf32> to vector<1x2048xf32>
    %25 = vector.broadcast %23 : vector<256x1xf32> to vector<256x2048xf32>
    %26 = vector.broadcast %24 : vector<1x2048xf32> to vector<256x2048xf32>
    %27 = arith.mulf %25, %26 : vector<256x2048xf32>
    %28 = arith.addf %22, %27 : vector<256x2048xf32>
    %cst = arith.constant 9.99999997E-7 : f32
    %29 = vector.broadcast %cst : f32 to vector<256x2048xf32>
    %30 = arith.maximumf %28, %29 : vector<256x2048xf32>
    %31 = arith.mulf %30, %30 : vector<256x2048xf32>
    %32 = arith.mulf %31, %30 : vector<256x2048xf32>
    %c0_5 = arith.constant 0 : index
    %c0_6 = arith.constant 0 : index
    %33 = vector.load %arg5[%c0_5, %c0_6] : memref<8x2048xf32, #tpu.memory_space<vmem>>, vector<8x2048xf32>
    %34 = vector.shape_cast %32 : vector<256x2048xf32> to vector<32x8x2048xf32>
    %cst_7 = arith.constant dense<0.000000e+00> : vector<8x2048xf32>
    %35 = vector.multi_reduction <add>, %34, %cst_7 [0] : vector<32x8x2048xf32> to vector<8x2048xf32>
    %36 = arith.addf %33, %35 : vector<8x2048xf32>
    %c0_8 = arith.constant 0 : index
    %c0_9 = arith.constant 0 : index
    %37 = vector.load %arg5[%c0_8, %c0_9] : memref<8x2048xf32, #tpu.memory_space<vmem>>, vector<8x2048xf32>
    tpu.vector_store %arg5[%c0_8, %c0_9], %36 {strides = array<i32>} : memref<8x2048xf32, #tpu.memory_space<vmem>>, vector<8x2048xf32>,
    %c0_i32_10 = arith.constant 0 : i32
    %38 = arith.cmpi eq, %arg1, %c0_i32_10 : i32
    %39 = arith.extui %38 : i1 to i32
    %c0_i32_11 = arith.constant 0 : i32
    %40 = arith.cmpi ne, %39, %c0_i32_11 : i32
    scf.if %40 {
      %c0_12 = arith.constant 0 : index
      %c0_13 = arith.constant 0 : index
      %41 = vector.load %arg5[%c0_12, %c0_13] : memref<8x2048xf32, #tpu.memory_space<vmem>>, vector<8x2048xf32>
      %cst_14 = arith.constant dense<0.000000e+00> : vector<2048xf32>
      %42 = vector.multi_reduction <add>, %41, %cst_14 [0] : vector<8x2048xf32> to vector<2048xf32>
      %43 = vector.shape_cast %42 : vector<2048xf32> to vector<1x2048xf32>
      %cst_15 = arith.constant 3.906250e-03 : f32
      %44 = vector.broadcast %cst_15 : f32 to vector<1x2048xf32>
      %45 = arith.mulf %43, %44 : vector<1x2048xf32>
      %46 = math.log %45 : vector<1x2048xf32>
      %cst_16 = arith.constant 0.333333343 : f32
      %47 = vector.broadcast %cst_16 : f32 to vector<1x2048xf32>
      %48 = arith.mulf %46, %47 : vector<1x2048xf32>
      %49 = math.exp %48 : vector<1x2048xf32>
      %c0_17 = arith.constant 0 : index
      %c0_18 = arith.constant 0 : index
      %c0_19 = arith.constant 0 : index
      %50 = vector.load %arg4[%c0_17, %c0_18, %c0_19] : memref<1x1x2048xf32, #tpu.memory_space<vmem>>, vector<1x1x2048xf32>
      %51 = vector.shape_cast %50 : vector<1x1x2048xf32> to vector<1x2048xf32>
      %52 = vector.shape_cast %49 : vector<1x2048xf32> to vector<1x1x2048xf32>
      tpu.vector_store %arg4[%c0_17, %c0_18, %c0_19], %52 {strides = array<i32>} : memref<1x1x2048xf32, #tpu.memory_space<vmem>>, vector<1x1x2048xf32>,
    } else {
    }
    return
  }
  func.func @transform_0(%arg0: i32, %arg1: i32) -> (i32, i32, i32) {
    %c0_i32 = arith.constant 0 : i32
    %c0_i32_0 = arith.constant 0 : i32
    return %arg0, %arg1, %c0_i32 : i32, i32, i32
  }
  func.func @transform_1(%arg0: i32, %arg1: i32) -> (i32, i32) {
    %c0_i32 = arith.constant 0 : i32
    %c0_i32_0 = arith.constant 0 : i32
    %c0_i32_1 = arith.constant 0 : i32
    return %c0_i32, %c0_i32_0 : i32, i32
  }
  func.func @transform_2(%arg0: i32, %arg1: i32) -> (i32, i32, i32) {
    %c0_i32 = arith.constant 0 : i32
    %c0_i32_0 = arith.constant 0 : i32
    %c0_i32_1 = arith.constant 0 : i32
    return %arg0, %c0_i32, %c0_i32_0 : i32, i32, i32
  }
}

</mosaic_0001>

<llo_original>
// kernel: tpu_custom_call.1
$region0: #{tpu_custom_call.1}
  #allocation0 [shape = 'u32[]', space=smem, size = 0x4, offset = 0x4, fixed_abs, tag = 'smem constant byte address 0x4 - core index']
  #allocation1 [shape = 'u32[72,128]{1,0:T(1,128)}', space=vmem, size = 0x9000, scoped, tag = 'internal scratch']
  %s0 = inlined_call_operand.hbm [shape: f32[8,128], index: 0, kind: input, shape index: {}]
  %s1 = inlined_call_operand.hbm [shape: f32[8,128], index: 1, kind: output, shape index: {}]
  %s2 = sld [smem:[#allocation0]]
  $region41: #{tpu_custom_call.1} parent=0
    _
  %s4 = ssub.s32 1, %s2
  %s5 = scalar_select 0, %s4, %s2
  $region1: #{tpu_custom_call.1} parent=0
    #allocation2 [shape = 'u8[4096]{0}', space=vmem, size = 0x1000, scoped, tag = 'input window, operand 0, single buffered']
    #allocation3 [shape = 's32[2]{0}', space=sflag, size = 0x8, scoped, tag = 'scoped memory for tpu_custom_call.1']
    #allocation4 [shape = 's32[2]{0}', space=sflag, size = 0x8, scoped, tag = 'scoped memory for tpu_custom_call.1']
    #allocation5 [shape = 'u8[4096]{0}', space=vmem, size = 0x1000, scoped, tag = 'output window, operand 0, single buffered']
    %6 = vsyncpa [#allocation3], 0
    %7 = vsyncpa [#allocation4], 0
    loop: start=0, step=1, limit=4
    $region2: #{tpu_custom_call.1} parent=1 // loop_pre_header
      _
    $region3: #{tpu_custom_call.1} parent=1 // loop_header
      %s9 = sphi 0, %s13
      %p10 = scmp.ge.s32.totalorder %s9, 4
      %s17 = sphi 0, %s17
      %s19 = sphi 0, %s17
      %s20 = sphi 0, %s19
      %s34 = sphi 0, %s20
      %s38 = sphi 0, %s38
      %s40 = sphi 0, %s38
      %s41 = sphi 0, %s40
      %s55 = sphi 0, %s41
    $region4: #{tpu_custom_call.1} parent=1 // loop_header_branch
      %12 = sbr.rel (%p10) target = $region8
    $region5: #{tpu_custom_call.1} parent=1 // loop_body
      %s14 = ssub.s32 %s9, 1
      %s15 = ssub.s32 %s9, 2
      %s16 = sadd.s32 %s9, 1
      %s18 = sadd.s32 %s17, 1
      %p21 = scmp.eq.s32.totalorder %s9, 1
      %p22 = scmp.ne.s32.totalorder %s17, %s19
      %p23 = scmp.eq.s32.totalorder %s9, 0
      %p24 = por %p22, %p23
      %p25 = scmp.ne.s32.totalorder %s17, %s19
      %p26 = scmp.eq.s32.totalorder %s14, 1
      %p27 = por %p25, %p26
      %p28 = scmp.ne.s32.totalorder %s19, %s20
      %p29 = scmp.eq.s32.totalorder %s14, 0
      %p30 = por %p28, %p29
      %p31 = scmp.ne.s32.totalorder %s19, %s20
      %p32 = scmp.eq.s32.totalorder %s15, 1
      %p33 = por %p31, %p32
      %p35 = scmp.ne.s32.totalorder %s20, %s34
      %p36 = scmp.eq.s32.totalorder %s15, 0
      %p37 = por %p35, %p36
      %s39 = sadd.s32 %s38, 1
      %p42 = scmp.eq.s32.totalorder %s9, 1
      %p43 = scmp.ne.s32.totalorder %s38, %s40
      %p44 = scmp.eq.s32.totalorder %s9, 0
      %p45 = por %p43, %p44
      %p46 = scmp.ne.s32.totalorder %s38, %s40
      %p47 = scmp.eq.s32.totalorder %s14, 1
      %p48 = por %p46, %p47
      %p49 = scmp.ne.s32.totalorder %s40, %s41
      %p50 = scmp.eq.s32.totalorder %s14, 0
      %p51 = por %p49, %p50
      %p52 = scmp.ne.s32.totalorder %s40, %s41
      %p53 = scmp.eq.s32.totalorder %s15, 1
      %p54 = por %p52, %p53
      %p56 = scmp.ne.s32.totalorder %s41, %s55
      %p57 = scmp.eq.s32.totalorder %s15, 0
      %p58 = por %p56, %p57
      %p59 = scmp.le.s32.totalorder 1, %s9
      %p60 = scmp.lt.s32.totalorder %s9, 3
      %p61 = pnand %p59, %p60
      %p62 = pneg %p61
      // Predicated region
      $region9: #{tpu_custom_call.1} parent=5 // pred_check
        _
      $region10: #{tpu_custom_call.1} parent=5 // pred_check_branch
        %64 = sbr.rel (%p61) target = $region12
      $region11: #{tpu_custom_call.1} parent=5 // pred_region
        %s65 = ssub.s32 %s9, 1
        // Predicated region
        $region13: #{tpu_custom_call.1} parent=11 // pred_check
          %p66 = pneg %p30
        $region14: #{tpu_custom_call.1} parent=11 // pred_check_branch
          %68 = sbr.rel (%p66) target = $region16
        $region15: #{tpu_custom_call.1} parent=11 // pred_region
          %70 = vsyncadd [#allocation3], 0
          %s72 = sshll.u32 %s0, 4
          %s73 = int_to_ptr.hbm [resolvable:$true] %s72
          %s74 = sshll.u32 [#allocation2], 4
          %s75 = int_to_ptr.vmem [resolvable:$true] %s74
          %77 = dma.hbm_to_vmem [thread:$0]  %s73, 128, %s75, [#allocation3]
        $region16: #{tpu_custom_call.1} parent=11 // pred_fallthru
          _
      $region12: #{tpu_custom_call.1} parent=5 // pred_fallthru
        _
      %p78 = scmp.lt.s32.totalorder %s9, 2
      // Predicated region
      $region17: #{tpu_custom_call.1} parent=5 // pred_check
        %p79 = pneg %p78
      $region18: #{tpu_custom_call.1} parent=5 // pred_check_branch
        %81 = sbr.rel (%p79) target = $region20
      $region19: #{tpu_custom_call.1} parent=5 // pred_region
        _
      $region20: #{tpu_custom_call.1} parent=5 // pred_fallthru
        _
      %p82 = scmp.le.s32.totalorder 1, %s9
      %p83 = scmp.lt.s32.totalorder %s9, 3
      %p84 = pnand %p82, %p83
      %p85 = pneg %p84
      // Predicated region
      $region21: #{tpu_custom_call.1} parent=5 // pred_check
        _
      $region22: #{tpu_custom_call.1} parent=5 // pred_check_branch
        %87 = sbr.rel (%p84) target = $region24
      $region23: #{tpu_custom_call.1} parent=5 // pred_region
        %s88 = ssub.s32 %s9, 1
        // Predicated region
        $region25: #{tpu_custom_call.1} parent=23 // pred_check
          %p89 = pneg %p30
        $region26: #{tpu_custom_call.1} parent=23 // pred_check_branch
          %91 = sbr.rel (%p89) target = $region28
        $region27: #{tpu_custom_call.1} parent=23 // pred_region
          %93 = dma.done [#allocation3], 128
        $region28: #{tpu_custom_call.1} parent=23 // pred_fallthru
          _
        %p94 = pneg %p30
        %p95 = pneg %p27
        %p96 = pneg %p51
        %p97 = pneg %p48
        %v98 = vld [vmem:[#allocation2] sm:$0xff]
        %v99 = vadd.f32 %v98, 1.0
        %100 = vst [vmem:[#allocation5] sm:$0xff] %v99
        // Predicated region
        $region29: #{tpu_custom_call.1} parent=23 // pred_check
          %p101 = pneg %p48
        $region30: #{tpu_custom_call.1} parent=23 // pred_check_branch
          %103 = sbr.rel (%p101) target = $region32
        $region31: #{tpu_custom_call.1} parent=23 // pred_region
          %105 = vsyncadd [#allocation4], 0
          %s107 = sshll.u32 [#allocation5], 4
          %s108 = int_to_ptr.vmem [resolvable:$true] %s107
          %s109 = sshll.u32 %s1, 4
          %s110 = int_to_ptr.hbm [resolvable:$true] %s109
          %112 = dma.vmem_to_hbm [thread:$0]  %s108, 128, %s110, [#allocation4]
        $region32: #{tpu_custom_call.1} parent=23 // pred_fallthru
          _
        // Predicated region
        $region33: #{tpu_custom_call.1} parent=23 // pred_check
          %p113 = pneg %p48
        $region34: #{tpu_custom_call.1} parent=23 // pred_check_branch
          %115 = sbr.rel (%p113) target = $region36
        $region35: #{tpu_custom_call.1} parent=23 // pred_region
          %117 = dma.done [#allocation4], 128
        $region36: #{tpu_custom_call.1} parent=23 // pred_fallthru
          _
      $region24: #{tpu_custom_call.1} parent=5 // pred_fallthru
        _
      %p118 = scmp.le.s32.totalorder 2, %s9
      // Predicated region
      $region37: #{tpu_custom_call.1} parent=5 // pred_check
        %p119 = pneg %p118
      $region38: #{tpu_custom_call.1} parent=5 // pred_check_branch
        %121 = sbr.rel (%p119) target = $region40
      $region39: #{tpu_custom_call.1} parent=5 // pred_region
        %s122 = ssub.s32 %s9, 2
      $region40: #{tpu_custom_call.1} parent=5 // pred_fallthru
        _
    $region6: #{tpu_custom_call.1} parent=1 // loop_footer
      %s13 = sadd.s32 1, %s9
    $region7: #{tpu_custom_call.1} parent=1 // loop_footer_branch
      %8 = sbr.rel target = $region3
    $region8: #{tpu_custom_call.1} parent=1 // loop_exit
      _
    %123 = vsyncpa [#allocation3], 1
    %s124 = scalar_lea.sflag [#allocation3], 1
    %125 = vsyncpa %s124, 1
    %126 = vsyncpa [#allocation4], 1
    %s127 = scalar_lea.sflag [#allocation4], 1
    %128 = vsyncpa %s127, 1

// kernel: tpu_custom_call.1
$region0: #{tpu_custom_call.1}
  #allocation0 [shape = 'u32[]', space=smem, size = 0x4, offset = 0x4, fixed_abs, tag = 'smem constant byte address 0x4 - core index']
  #allocation1 [shape = 'u32[72,128]{1,0:T(1,128)}', space=vmem, size = 0x9000, scoped, tag = 'internal scratch']
  #allocation2 [shape = 'f32[8,2048]{1,0:T(8,128)}', space=vmem, size = 0x10000, scoped, tag = 'scratch operand']
  %s0 = inlined_call_operand.vmem [shape: f32[2,256,4], index: 0, kind: input, shape index: {}]
  %s1 = inlined_call_operand.vmem [shape: f32[4,2048], index: 1, kind: input, shape index: {}]
  %s2 = inlined_call_operand.hbm [shape: f32[2,1,2048], index: 2, kind: output, shape index: {}]
  %s3 = sld [smem:[#allocation0]]
  $region49: #{tpu_custom_call.1} parent=0
    _
  %s5 = ssub.s32 1, %s3
  %s6 = scalar_select 0, %s5, %s3
  $region1: #{tpu_custom_call.1} parent=0
    #allocation3 [shape = 'u8[16384]{0}', space=vmem, size = 0x4000, scoped, tag = 'output window, operand 0']
    #allocation4 [shape = 's32[2]{0}', space=sflag, size = 0x8, scoped, tag = 'scoped memory for tpu_custom_call.1']
    %7 = vsyncpa [#allocation4], 0
    %s8 = scalar_lea.sflag [#allocation4], 1
    %9 = vsyncpa %s8, 0
    loop: start=0, step=1, limit=4
    $region2: #{tpu_custom_call.1} parent=1 // loop_pre_header
      _
    $region3: #{tpu_custom_call.1} parent=1 // loop_header
      %s11 = sphi 0, %s15
      %p12 = scmp.ge.s32.totalorder %s11, 4
      %s18 = sphi 0, %s30
      %s19 = sphi 0, %s26
      %s20 = sphi 0, %s18
      %s21 = sphi 0, %s19
      %s22 = sphi 0, %s20
      %s23 = sphi 0, %s21
      %s35 = sphi 0, %s37
      %s38 = sphi 0, %s35
      %s39 = sphi 0, %s38
      %s55 = sphi 0, %s39
      %s59 = sphi 0, %s59
      %s61 = sphi 0, %s59
      %s62 = sphi 0, %s61
      %s76 = sphi 0, %s62
      %s82 = sphi 0, %s84
      %s85 = sphi 0, %s82
      %s86 = sphi 0, %s85
      %s102 = sphi 0, %s86
    $region4: #{tpu_custom_call.1} parent=1 // loop_header_branch
      %14 = sbr.rel (%p12) target = $region8
    $region5: #{tpu_custom_call.1} parent=1 // loop_body
      %s16 = ssub.s32 %s11, 1
      %s17 = ssub.s32 %s11, 2
      %s24 = sadd.s32 1, %s19
      %p25 = scmp.ge.s32.totalorder %s24, 1
      %s26 = scalar_select %p25, 0, %s24
      %s27 = sadd.s32 1, %s18
      %s28 = scalar_select %p25, %s27, %s18
      %p29 = scmp.ge.s32.totalorder %s28, 2
      %s30 = scalar_select %p29, 0, %s28
      %s31 = ssub.s32 %s18, %s30
      %s32 = ssub.s32 %s19, %s26
      %s33 = sor.u32 %s31, %s32
      %p34 = scmp.eq.s32.totalorder %s33, 0
      %s36 = sadd.s32 %s35, 1
      %s37 = scalar_select %p34, %s35, %s36
      %p40 = pneg %p34
      %p41 = scmp.eq.s32.totalorder %s11, 1
      %p42 = por %p40, %p41
      %p43 = scmp.ne.s32.totalorder %s35, %s38
      %p44 = scmp.eq.s32.totalorder %s11, 0
      %p45 = por %p43, %p44
      %p46 = scmp.ne.s32.totalorder %s35, %s38
      %p47 = scmp.eq.s32.totalorder %s16, 1
      %p48 = por %p46, %p47
      %p49 = scmp.ne.s32.totalorder %s38, %s39
      %p50 = scmp.eq.s32.totalorder %s16, 0
      %p51 = por %p49, %p50
      %p52 = scmp.ne.s32.totalorder %s38, %s39
      %p53 = scmp.eq.s32.totalorder %s17, 1
      %p54 = por %p52, %p53
      %p56 = scmp.ne.s32.totalorder %s39, %s55
      %p57 = scmp.eq.s32.totalorder %s17, 0
      %p58 = por %p56, %p57
      %s60 = sadd.s32 %s59, 1
      %p63 = scmp.eq.s32.totalorder %s11, 1
      %p64 = scmp.ne.s32.totalorder %s59, %s61
      %p65 = scmp.eq.s32.totalorder %s11, 0
      %p66 = por %p64, %p65
      %p67 = scmp.ne.s32.totalorder %s59, %s61
      %p68 = scmp.eq.s32.totalorder %s16, 1
      %p69 = por %p67, %p68
      %p70 = scmp.ne.s32.totalorder %s61, %s62
      %p71 = scmp.eq.s32.totalorder %s16, 0
      %p72 = por %p70, %p71
      %p73 = scmp.ne.s32.totalorder %s61, %s62
      %p74 = scmp.eq.s32.totalorder %s17, 1
      %p75 = por %p73, %p74
      %p77 = scmp.ne.s32.totalorder %s62, %s76
      %p78 = scmp.eq.s32.totalorder %s17, 0
      %p79 = por %p77, %p78
      %s80 = ssub.s32 %s18, %s30
      %p81 = scmp.eq.s32.totalorder %s80, 0
      %s83 = sadd.s32 %s82, 1
      %s84 = scalar_select %p81, %s82, %s83
      %p87 = pneg %p81
      %p88 = scmp.eq.s32.totalorder %s11, 1
      %p89 = por %p87, %p88
      %p90 = scmp.ne.s32.totalorder %s82, %s85
      %p91 = scmp.eq.s32.totalorder %s11, 0
      %p92 = por %p90, %p91
      %p93 = scmp.ne.s32.totalorder %s82, %s85
      %p94 = scmp.eq.s32.totalorder %s16, 1
      %p95 = por %p93, %p94
      %p96 = scmp.ne.s32.totalorder %s85, %s86
      %p97 = scmp.eq.s32.totalorder %s16, 0
      %p98 = por %p96, %p97
      %p99 = scmp.ne.s32.totalorder %s85, %s86
      %p100 = scmp.eq.s32.totalorder %s17, 1
      %p101 = por %p99, %p100
      %p103 = scmp.ne.s32.totalorder %s86, %s102
      %p104 = scmp.eq.s32.totalorder %s17, 0
      %p105 = por %p103, %p104
      %p106 = scmp.le.s32.totalorder 1, %s11
      %p107 = scmp.lt.s32.totalorder %s11, 3
      %p108 = pnand %p106, %p107
      %p109 = pneg %p108
      // Predicated region
      $region9: #{tpu_custom_call.1} parent=5 // pred_check
        _
      $region10: #{tpu_custom_call.1} parent=5 // pred_check_branch
        %111 = sbr.rel (%p108) target = $region12
      $region11: #{tpu_custom_call.1} parent=5 // pred_region
        %s112 = ssub.s32 %s11, 1
        // Predicated region
        $region13: #{tpu_custom_call.1} parent=11 // pred_check
          %p113 = pneg %p72
        $region14: #{tpu_custom_call.1} parent=11 // pred_check_branch
          %115 = sbr.rel (%p113) target = $region16
        $region15: #{tpu_custom_call.1} parent=11 // pred_region
          _
        $region16: #{tpu_custom_call.1} parent=11 // pred_fallthru
          _
      $region12: #{tpu_custom_call.1} parent=5 // pred_fallthru
        _
      %p116 = scmp.lt.s32.totalorder %s11, 2
      // Predicated region
      $region17: #{tpu_custom_call.1} parent=5 // pred_check
        %p117 = pneg %p116
      $region18: #{tpu_custom_call.1} parent=5 // pred_check_branch
        %119 = sbr.rel (%p117) target = $region20
      $region19: #{tpu_custom_call.1} parent=5 // pred_region
        // Predicated region
        $region21: #{tpu_custom_call.1} parent=19 // pred_check
          %p120 = pneg %p45
        $region22: #{tpu_custom_call.1} parent=19 // pred_check_branch
          %122 = sbr.rel (%p120) target = $region24
        $region23: #{tpu_custom_call.1} parent=19 // pred_region
          %s123 = smul.u32 32, %s19
          %p124 = scmp.lt.s32.totalorder %s18, 1
          %s125 = scalar_select %p124, %s18, 1
          %p126 = scmp.lt.s32.totalorder %s123, 31
          %s127 = scalar_select %p126, %s123, 31
          %s128 = smul.addr %s125, 32
          %s129 = sadd.s32 %s127, %s128
          %s130 = smul.addr %s129, 8
          %s131 = scalar_lea.vmem %s0, %s130
          %s132 = smul.u32 32, %s19
        $region24: #{tpu_custom_call.1} parent=19 // pred_fallthru
          _
      $region20: #{tpu_custom_call.1} parent=5 // pred_fallthru
        _
      %p133 = scmp.le.s32.totalorder 1, %s11
      %p134 = scmp.lt.s32.totalorder %s11, 3
      %p135 = pnand %p133, %p134
      %p136 = pneg %p135
      // Predicated region
      $region25: #{tpu_custom_call.1} parent=5 // pred_check
        _
      $region26: #{tpu_custom_call.1} parent=5 // pred_check_branch
        %138 = sbr.rel (%p135) target = $region28
      $region27: #{tpu_custom_call.1} parent=5 // pred_region
        %s139 = ssub.s32 %s11, 1
        %s140 = smul.u32 32, %s21
        %p141 = scmp.lt.s32.totalorder %s20, 1
        %s142 = scalar_select %p141, %s20, 1
        %p143 = scmp.lt.s32.totalorder %s140, 31
        %s144 = scalar_select %p143, %s140, 31
        %s145 = smul.addr %s142, 32
        %s146 = sadd.s32 %s144, %s145
        %s147 = smul.addr %s146, 8
        %s148 = scalar_lea.vmem %s0, %s147
        %p149 = pneg %p51
        %p150 = pneg %p48
        %p151 = pneg %p72
        %p152 = pneg %p69
        %p153 = pneg %p98
        %p154 = pneg %p95
        %s155 = sand.u32 %s85, 1
        %s156 = scalar_lea.sflag [#allocation4], %s155
        %s157 = sand.u32 %s85, 1
        %s158 = smul.addr %s157, 16
        %s159 = scalar_lea.vmem [#allocation3], %s158
        %s160 = smul.u32 32, %s21
        %p161 = scmp.lt.s32.totalorder %s20, 1
        %s162 = scalar_select %p161, %s20, 1
        %p163 = scmp.lt.s32.totalorder %s160, 31
        %s164 = scalar_select %p163, %s160, 31
        %s165 = smul.addr %s162, 32
        %s166 = sadd.s32 %s164, %s165
        %s167 = smul.addr %s166, 8
        %s168 = scalar_lea.vmem %s0, %s167
        %s169 = smul.u32 32, %s21
        %p170 = scmp.eq.s32.totalorder %s21, 0
        // Predicated region
        $region29: #{tpu_custom_call.1} parent=27 // pred_check
          %p171 = pneg %p170
        $region30: #{tpu_custom_call.1} parent=27 // pred_check_branch
          %173 = sbr.rel (%p171) target = $region32
        $region31: #{tpu_custom_call.1} parent=27 // pred_region
          %174 = vst [vmem:[#allocation2] sm:$0xff] 0.0
          %175 = vst [vmem:[#allocation2 + $0x8] sm:$0xff] 0.0
          %176 = vst [vmem:[#allocation2 + $0x10] sm:$0xff] 0.0
          %177 = vst [vmem:[#allocation2 + $0x18] sm:$0xff] 0.0
          %178 = vst [vmem:[#allocation2 + $0x20] sm:$0xff] 0.0
          %179 = vst [vmem:[#allocation2 + $0x28] sm:$0xff] 0.0
          %180 = vst [vmem:[#allocation2 + $0x30] sm:$0xff] 0.0
          %181 = vst [vmem:[#allocation2 + $0x38] sm:$0xff] 0.0
          %182 = vst [vmem:[#allocation2 + $0x40] sm:$0xff] 0.0
          %183 = vst [vmem:[#allocation2 + $0x48] sm:$0xff] 0.0
          %184 = vst [vmem:[#allocation2 + $0x50] sm:$0xff] 0.0
          %185 = vst [vmem:[#allocation2 + $0x58] sm:$0xff] 0.0
          %186 = vst [vmem:[#allocation2 + $0x60] sm:$0xff] 0.0
          %187 = vst [vmem:[#allocation2 + $0x68] sm:$0xff] 0.0
          %188 = vst [vmem:[#allocation2 + $0x70] sm:$0xff] 0.0
          %189 = vst [vmem:[#allocation2 + $0x78] sm:$0xff] 0.0
        $region32: #{tpu_custom_call.1} parent=27 // pred_fallthru
          _
        %v190 = vld [vmem:[%s168] sm:$0xff]
        %v191 = vld [vmem:[%s168 + $0x8] sm:$0xff]
        %v192 = vld [vmem:[%s168 + $0x10] sm:$0xff]
        %v193 = vld [vmem:[%s168 + $0x18] sm:$0xff]
        %v194 = vld [vmem:[%s168 + $0x20] sm:$0xff]
        %v195 = vld [vmem:[%s168 + $0x28] sm:$0xff]
        %v196 = vld [vmem:[%s168 + $0x30] sm:$0xff]
        %v197 = vld [vmem:[%s168 + $0x38] sm:$0xff]
        %v198 = vld [vmem:[%s168 + $0x40] sm:$0xff]
        %v199 = vld [vmem:[%s168 + $0x48] sm:$0xff]
        %v200 = vld [vmem:[%s168 + $0x50] sm:$0xff]
        %v201 = vld [vmem:[%s168 + $0x58] sm:$0xff]
        %v202 = vld [vmem:[%s168 + $0x60] sm:$0xff]
        %v203 = vld [vmem:[%s168 + $0x68] sm:$0xff]
        %v204 = vld [vmem:[%s168 + $0x70] sm:$0xff]
        %v205 = vld [vmem:[%s168 + $0x78] sm:$0xff]
        %v206 = vld [vmem:[%s168 + $0x80] sm:$0xff]
        %v207 = vld [vmem:[%s168 + $0x88] sm:$0xff]
        %v208 = vld [vmem:[%s168 + $0x90] sm:$0xff]
        %v209 = vld [vmem:[%s168 + $0x98] sm:$0xff]
        %v210 = vld [vmem:[%s168 + $0xa0] sm:$0xff]
        %v211 = vld [vmem:[%s168 + $0xa8] sm:$0xff]
        %v212 = vld [vmem:[%s168 + $0xb0] sm:$0xff]
        %v213 = vld [vmem:[%s168 + $0xb8] sm:$0xff]
        %v214 = vld [vmem:[%s168 + $0xc0] sm:$0xff]
        %v215 = vld [vmem:[%s168 + $0xc8] sm:$0xff]
        %v216 = vld [vmem:[%s168 + $0xd0] sm:$0xff]
        %v217 = vld [vmem:[%s168 + $0xd8] sm:$0xff]
        %v218 = vld [vmem:[%s168 + $0xe0] sm:$0xff]
        %v219 = vld [vmem:[%s168 + $0xe8] sm:$0xff]
        %v220 = vld [vmem:[%s168 + $0xf0] sm:$0xff]
        %v221 = vld [vmem:[%s168 + $0xf8] sm:$0xff]
        %v222 = vld [vmem:[%s1] sm:$0xff]
        %v223 = vld [vmem:[%s1 + $0x8] sm:$0xff]
        %v224 = vld [vmem:[%s1 + $0x10] sm:$0xff]
        %v225 = vld [vmem:[%s1 + $0x18] sm:$0xff]
        %v226 = vld [vmem:[%s1 + $0x20] sm:$0xff]
        %v227 = vld [vmem:[%s1 + $0x28] sm:$0xff]
        %v228 = vld [vmem:[%s1 + $0x30] sm:$0xff]
        %v229 = vld [vmem:[%s1 + $0x38] sm:$0xff]
        %231 = vset.pattern.permute.xlu0 0
        %232 = vperm.xlu0 %231, %v190
        %v233 = vpop.permute.xlu0 %232
        %236 = vset.pattern.permute.xlu0 0
        %237 = vperm.xlu0 %236, %v191
        %v238 = vpop.permute.xlu0 %237
        %241 = vset.pattern.permute.xlu0 0
        %242 = vperm.xlu0 %241, %v192
        %v243 = vpop.permute.xlu0 %242
        %246 = vset.pattern.permute.xlu0 0
        %247 = vperm.xlu0 %246, %v193
        %v248 = vpop.permute.xlu0 %247
        %251 = vset.pattern.permute.xlu0 0
        %252 = vperm.xlu0 %251, %v194
        %v253 = vpop.permute.xlu0 %252
        %256 = vset.pattern.permute.xlu0 0
        %257 = vperm.xlu0 %256, %v195
        %v258 = vpop.permute.xlu0 %257
        %261 = vset.pattern.permute.xlu0 0
        %262 = vperm.xlu0 %261, %v196
        %v263 = vpop.permute.xlu0 %262
        %266 = vset.pattern.permute.xlu0 0
        %267 = vperm.xlu0 %266, %v197
        %v268 = vpop.permute.xlu0 %267
        %271 = vset.pattern.permute.xlu0 0
        %272 = vperm.xlu0 %271, %v198
        %v273 = vpop.permute.xlu0 %272
        %276 = vset.pattern.permute.xlu0 0
        %277 = vperm.xlu0 %276, %v199
        %v278 = vpop.permute.xlu0 %277
        %281 = vset.pattern.permute.xlu0 0
        %282 = vperm.xlu0 %281, %v200
        %v283 = vpop.permute.xlu0 %282
        %286 = vset.pattern.permute.xlu0 0
        %287 = vperm.xlu0 %286, %v201
        %v288 = vpop.permute.xlu0 %287
        %291 = vset.pattern.permute.xlu0 0
        %292 = vperm.xlu0 %291, %v202
        %v293 = vpop.permute.xlu0 %292
        %296 = vset.pattern.permute.xlu0 0
        %297 = vperm.xlu0 %296, %v203
        %v298 = vpop.permute.xlu0 %297
        %301 = vset.pattern.permute.xlu0 0
        %302 = vperm.xlu0 %301, %v204
        %v303 = vpop.permute.xlu0 %302
        %306 = vset.pattern.permute.xlu0 0
        %307 = vperm.xlu0 %306, %v205
        %v308 = vpop.permute.xlu0 %307
        %311 = vset.pattern.permute.xlu0 0
        %312 = vperm.xlu0 %311, %v206
        %v313 = vpop.permute.xlu0 %312
        %316 = vset.pattern.permute.xlu0 0
        %317 = vperm.xlu0 %316, %v207
        %v318 = vpop.permute.xlu0 %317
        %321 = vset.pattern.permute.xlu0 0
        %322 = vperm.xlu0 %321, %v208
        %v323 = vpop.permute.xlu0 %322
        %326 = vset.pattern.permute.xlu0 0
        %327 = vperm.xlu0 %326, %v209
        %v328 = vpop.permute.xlu0 %327
        %331 = vset.pattern.permute.xlu0 0
        %332 = vperm.xlu0 %331, %v210
        %v333 = vpop.permute.xlu0 %332
        %336 = vset.pattern.permute.xlu0 0
        %337 = vperm.xlu0 %336, %v211
        %v338 = vpop.permute.xlu0 %337
        %341 = vset.pattern.permute.xlu0 0
        %342 = vperm.xlu0 %341, %v212
        %v343 = vpop.permute.xlu0 %342
        %346 = vset.pattern.permute.xlu0 0
        %347 = vperm.xlu0 %346, %v213
        %v348 = vpop.permute.xlu0 %347
        %351 = vset.pattern.permute.xlu0 0
        %352 = vperm.xlu0 %351, %v214
        %v353 = vpop.permute.xlu0 %352
        %356 = vset.pattern.permute.xlu0 0
        %357 = vperm.xlu0 %356, %v215
        %v358 = vpop.permute.xlu0 %357
        %361 = vset.pattern.permute.xlu0 0
        %362 = vperm.xlu0 %361, %v216
        %v363 = vpop.permute.xlu0 %362
        %366 = vset.pattern.permute.xlu0 0
        %367 = vperm.xlu0 %366, %v217
        %v368 = vpop.permute.xlu0 %367
        %371 = vset.pattern.permute.xlu0 0
        %372 = vperm.xlu0 %371, %v218
        %v373 = vpop.permute.xlu0 %372
        %376 = vset.pattern.permute.xlu0 0
        %377 = vperm.xlu0 %376, %v219
        %v378 = vpop.permute.xlu0 %377
        %381 = vset.pattern.permute.xlu0 0
        %382 = vperm.xlu0 %381, %v220
        %v383 = vpop.permute.xlu0 %382
        %386 = vset.pattern.permute.xlu0 0
        %387 = vperm.xlu0 %386, %v221
        %v388 = vpop.permute.xlu0 %387
        %v398 = vperm.slane %v222, 0
        %v399 = vperm.slane %v222, 4
        %v400 = vperm.slane %v223, 0
        %v401 = vperm.slane %v223, 4
        %v402 = vperm.slane %v224, 0
        %v403 = vperm.slane %v224, 4
        %v404 = vperm.slane %v225, 0
        %v405 = vperm.slane %v225, 4
        %v406 = vperm.slane %v226, 0
        %v407 = vperm.slane %v226, 4
        %v408 = vperm.slane %v227, 0
        %v409 = vperm.slane %v227, 4
        %v410 = vperm.slane %v228, 0
        %v411 = vperm.slane %v228, 4
        %v412 = vperm.slane %v229, 0
        %v413 = vperm.slane %v229, 4
        %v430 = vperm.slane %v398, 0
        %v431 = vperm.slane %v399, 0
        %v432 = vperm.slane %v400, 0
        %v433 = vperm.slane %v401, 0
        %v434 = vperm.slane %v402, 0
        %v435 = vperm.slane %v403, 0
        %v436 = vperm.slane %v404, 0
        %v437 = vperm.slane %v405, 0
        %v438 = vperm.slane %v406, 0
        %v439 = vperm.slane %v407, 0
        %v440 = vperm.slane %v408, 0
        %v441 = vperm.slane %v409, 0
        %v442 = vperm.slane %v410, 0
        %v443 = vperm.slane %v411, 0
        %v444 = vperm.slane %v412, 0
        %v445 = vperm.slane %v413, 0
        %v446 = vmul.f32 %v233, %v430
        %v447 = vmul.f32 %v233, %v431
        %v448 = vmul.f32 %v233, %v432
        %v449 = vmul.f32 %v233, %v433
        %v450 = vmul.f32 %v233, %v434
        %v451 = vmul.f32 %v233, %v435
        %v452 = vmul.f32 %v233, %v436
        %v453 = vmul.f32 %v233, %v437
        %v454 = vmul.f32 %v233, %v438
        %v455 = vmul.f32 %v233, %v439
        %v456 = vmul.f32 %v233, %v440
        %v457 = vmul.f32 %v233, %v441
        %v458 = vmul.f32 %v233, %v442
        %v459 = vmul.f32 %v233, %v443
        %v460 = vmul.f32 %v233, %v444
        %v461 = vmul.f32 %v233, %v445
        %v462 = vmul.f32 %v238, %v430
        %v463 = vmul.f32 %v238, %v431
        %v464 = vmul.f32 %v238, %v432
        %v465 = vmul.f32 %v238, %v433
        %v466 = vmul.f32 %v238, %v434
        %v467 = vmul.f32 %v238, %v435
        %v468 = vmul.f32 %v238, %v436
        %v469 = vmul.f32 %v238, %v437
        %v470 = vmul.f32 %v238, %v438
        %v471 = vmul.f32 %v238, %v439
        %v472 = vmul.f32 %v238, %v440
        %v473 = vmul.f32 %v238, %v441
        %v474 = vmul.f32 %v238, %v442
        %v475 = vmul.f32 %v238, %v443
        %v476 = vmul.f32 %v238, %v444
        %v477 = vmul.f32 %v238, %v445
        %v478 = vmul.f32 %v243, %v430
        %v479 = vmul.f32 %v243, %v431
        %v480 = vmul.f32 %v243, %v432
        %v481 = vmul.f32 %v243, %v433
        %v482 = vmul.f32 %v243, %v434
        %v483 = vmul.f32 %v243, %v435
        %v484 = vmul.f32 %v243, %v436
        %v485 = vmul.f32 %v243, %v437
        %v486 = vmul.f32 %v243, %v438
        %v487 = vmul.f32 %v243, %v439
        %v488 = vmul.f32 %v243, %v440
        %v489 = vmul.f32 %v243, %v441
        %v490 = vmul.f32 %v243, %v442
        %v491 = vmul.f32 %v243, %v443
        %v492 = vmul.f32 %v243, %v444
        %v493 = vmul.f32 %v243, %v445
        %v494 = vmul.f32 %v248, %v430
        %v495 = vmul.f32 %v248, %v431
        %v496 = vmul.f32 %v248, %v432
        %v497 = vmul.f32 %v248, %v433
        %v498 = vmul.f32 %v248, %v434
        %v499 = vmul.f32 %v248, %v435
        %v500 = vmul.f32 %v248, %v436
        %v501 = vmul.f32 %v248, %v437
        %v502 = vmul.f32 %v248, %v438
        %v503 = vmul.f32 %v248, %v439
        %v504 = vmul.f32 %v248, %v440
        %v505 = vmul.f32 %v248, %v441
        %v506 = vmul.f32 %v248, %v442
        %v507 = vmul.f32 %v248, %v443
        %v508 = vmul.f32 %v248, %v444
        %v509 = vmul.f32 %v248, %v445
        %v510 = vmul.f32 %v253, %v430
        %v511 = vmul.f32 %v253, %v431
        %v512 = vmul.f32 %v253, %v432
        %v513 = vmul.f32 %v253, %v433
        %v514 = vmul.f32 %v253, %v434
        %v515 = vmul.f32 %v253, %v435
        %v516 = vmul.f32 %v253, %v436
        %v517 = vmul.f32 %v253, %v437
        %v518 = vmul.f32 %v253, %v438
        %v519 = vmul.f32 %v253, %v439
        %v520 = vmul.f32 %v253, %v440
        %v521 = vmul.f32 %v253, %v441
        %v522 = vmul.f32 %v253, %v442
        %v523 = vmul.f32 %v253, %v443
        %v524 = vmul.f32 %v253, %v444
        %v525 = vmul.f32 %v253, %v445
        %v526 = vmul.f32 %v258, %v430
        %v527 = vmul.f32 %v258, %v431
        %v528 = vmul.f32 %v258, %v432
        %v529 = vmul.f32 %v258, %v433
        %v530 = vmul.f32 %v258, %v434
        %v531 = vmul.f32 %v258, %v435
        %v532 = vmul.f32 %v258, %v436
        %v533 = vmul.f32 %v258, %v437
        %v534 = vmul.f32 %v258, %v438
        %v535 = vmul.f32 %v258, %v439
        %v536 = vmul.f32 %v258, %v440
        %v537 = vmul.f32 %v258, %v441
        %v538 = vmul.f32 %v258, %v442
        %v539 = vmul.f32 %v258, %v443
        %v540 = vmul.f32 %v258, %v444
        %v541 = vmul.f32 %v258, %v445
        %v542 = vmul.f32 %v263, %v430
        %v543 = vmul.f32 %v263, %v431
        %v544 = vmul.f32 %v263, %v432
        %v545 = vmul.f32 %v263, %v433
        %v546 = vmul.f32 %v263, %v434
        %v547 = vmul.f32 %v263, %v435
        %v548 = vmul.f32 %v263, %v436
        %v549 = vmul.f32 %v263, %v437
        %v550 = vmul.f32 %v263, %v438
        %v551 = vmul.f32 %v263, %v439
        %v552 = vmul.f32 %v263, %v440
        %v553 = vmul.f32 %v263, %v441
        %v554 = vmul.f32 %v263, %v442
        %v555 = vmul.f32 %v263, %v443
        %v556 = vmul.f32 %v263, %v444
        %v557 = vmul.f32 %v263, %v445
        %v558 = vmul.f32 %v268, %v430
        %v559 = vmul.f32 %v268, %v431
        %v560 = vmul.f32 %v268, %v432
        %v561 = vmul.f32 %v268, %v433
        %v562 = vmul.f32 %v268, %v434
        %v563 = vmul.f32 %v268, %v435
        %v564 = vmul.f32 %v268, %v436
        %v565 = vmul.f32 %v268, %v437
        %v566 = vmul.f32 %v268, %v438
        %v567 = vmul.f32 %v268, %v439
        %v568 = vmul.f32 %v268, %v440
        %v569 = vmul.f32 %v268, %v441
        %v570 = vmul.f32 %v268, %v442
        %v571 = vmul.f32 %v268, %v443
        %v572 = vmul.f32 %v268, %v444
        %v573 = vmul.f32 %v268, %v445
        %v574 = vmul.f32 %v273, %v430
        %v575 = vmul.f32 %v273, %v431
        %v576 = vmul.f32 %v273, %v432
        %v577 = vmul.f32 %v273, %v433
        %v578 = vmul.f32 %v273, %v434
        %v579 = vmul.f32 %v273, %v435
        %v580 = vmul.f32 %v273, %v436
        %v581 = vmul.f32 %v273, %v437
        %v582 = vmul.f32 %v273, %v438
        %v583 = vmul.f32 %v273, %v439
        %v584 = vmul.f32 %v273, %v440
        %v585 = vmul.f32 %v273, %v441
        %v586 = vmul.f32 %v273, %v442
        %v587 = vmul.f32 %v273, %v443
        %v588 = vmul.f32 %v273, %v444
        %v589 = vmul.f32 %v273, %v445
        %v590 = vmul.f32 %v278, %v430
        %v591 = vmul.f32 %v278, %v431
        %v592 = vmul.f32 %v278, %v432
        %v593 = vmul.f32 %v278, %v433
        %v594 = vmul.f32 %v278, %v434
        %v595 = vmul.f32 %v278, %v435
        %v596 = vmul.f32 %v278, %v436
        %v597 = vmul.f32 %v278, %v437
        %v598 = vmul.f32 %v278, %v438
        %v599 = vmul.f32 %v278, %v439
        %v600 = vmul.f32 %v278, %v440
        %v601 = vmul.f32 %v278, %v441
        %v602 = vmul.f32 %v278, %v442
        %v603 = vmul.f32 %v278, %v443
        %v604 = vmul.f32 %v278, %v444
        %v605 = vmul.f32 %v278, %v445
        %v606 = vmul.f32 %v283, %v430
        %v607 = vmul.f32 %v283, %v431
        %v608 = vmul.f32 %v283, %v432
        %v609 = vmul.f32 %v283, %v433
        %v610 = vmul.f32 %v283, %v434
        %v611 = vmul.f32 %v283, %v435
        %v612 = vmul.f32 %v283, %v436
        %v613 = vmul.f32 %v283, %v437
        %v614 = vmul.f32 %v283, %v438
        %v615 = vmul.f32 %v283, %v439
        %v616 = vmul.f32 %v283, %v440
        %v617 = vmul.f32 %v283, %v441
        %v618 = vmul.f32 %v283, %v442
        %v619 = vmul.f32 %v283, %v443
        %v620 = vmul.f32 %v283, %v444
        %v621 = vmul.f32 %v283, %v445
        %v622 = vmul.f32 %v288, %v430
        %v623 = vmul.f32 %v288, %v431
        %v624 = vmul.f32 %v288, %v432
        %v625 = vmul.f32 %v288, %v433
        %v626 = vmul.f32 %v288, %v434
        %v627 = vmul.f32 %v288, %v435
        %v628 = vmul.f32 %v288, %v436
        %v629 = vmul.f32 %v288, %v437
        %v630 = vmul.f32 %v288, %v438
        %v631 = vmul.f32 %v288, %v439
        %v632 = vmul.f32 %v288, %v440
        %v633 = vmul.f32 %v288, %v441
        %v634 = vmul.f32 %v288, %v442
        %v635 = vmul.f32 %v288, %v443
        %v636 = vmul.f32 %v288, %v444
        %v637 = vmul.f32 %v288, %v445
        %v638 = vmul.f32 %v293, %v430
        %v639 = vmul.f32 %v293, %v431
        %v640 = vmul.f32 %v293, %v432
        %v641 = vmul.f32 %v293, %v433
        %v642 = vmul.f32 %v293, %v434
        %v643 = vmul.f32 %v293, %v435
        %v644 = vmul.f32 %v293, %v436
        %v645 = vmul.f32 %v293, %v437
        %v646 = vmul.f32 %v293, %v438
        %v647 = vmul.f32 %v293, %v439
        %v648 = vmul.f32 %v293, %v440
        %v649 = vmul.f32 %v293, %v441
        %v650 = vmul.f32 %v293, %v442
        %v651 = vmul.f32 %v293, %v443
        %v652 = vmul.f32 %v293, %v444
        %v653 = vmul.f32 %v293, %v445
        %v654 = vmul.f32 %v298, %v430
        %v655 = vmul.f32 %v298, %v431
        %v656 = vmul.f32 %v298, %v432
        %v657 = vmul.f32 %v298, %v433
        %v658 = vmul.f32 %v298, %v434
        %v659 = vmul.f32 %v298, %v435
        %v660 = vmul.f32 %v298, %v436
        %v661 = vmul.f32 %v298, %v437
        %v662 = vmul.f32 %v298, %v438
        %v663 = vmul.f32 %v298, %v439
        %v664 = vmul.f32 %v298, %v440
        %v665 = vmul.f32 %v298, %v441
        %v666 = vmul.f32 %v298, %v442
        %v667 = vmul.f32 %v298, %v443
        %v668 = vmul.f32 %v298, %v444
        %v669 = vmul.f32 %v298, %v445
        %v670 = vmul.f32 %v303, %v430
        %v671 = vmul.f32 %v303, %v431
        %v672 = vmul.f32 %v303, %v432
        %v673 = vmul.f32 %v303, %v433
        %v674 = vmul.f32 %v303, %v434
        %v675 = vmul.f32 %v303, %v435
        %v676 = vmul.f32 %v303, %v436
        %v677 = vmul.f32 %v303, %v437
        %v678 = vmul.f32 %v303, %v438
        %v679 = vmul.f32 %v303, %v439
        %v680 = vmul.f32 %v303, %v440
        %v681 = vmul.f32 %v303, %v441
        %v682 = vmul.f32 %v303, %v442
        %v683 = vmul.f32 %v303, %v443
        %v684 = vmul.f32 %v303, %v444
        %v685 = vmul.f32 %v303, %v445
        %v686 = vmul.f32 %v308, %v430
        %v687 = vmul.f32 %v308, %v431
        %v688 = vmul.f32 %v308, %v432
        %v689 = vmul.f32 %v308, %v433
        %v690 = vmul.f32 %v308, %v434
        %v691 = vmul.f32 %v308, %v435
        %v692 = vmul.f32 %v308, %v436
        %v693 = vmul.f32 %v308, %v437
        %v694 = vmul.f32 %v308, %v438
        %v695 = vmul.f32 %v308, %v439
        %v696 = vmul.f32 %v308, %v440
        %v697 = vmul.f32 %v308, %v441
        %v698 = vmul.f32 %v308, %v442
        %v699 = vmul.f32 %v308, %v443
        %v700 = vmul.f32 %v308, %v444
        %v701 = vmul.f32 %v308, %v445
        %v702 = vmul.f32 %v313, %v430
        %v703 = vmul.f32 %v313, %v431
        %v704 = vmul.f32 %v313, %v432
        %v705 = vmul.f32 %v313, %v433
        %v706 = vmul.f32 %v313, %v434
        %v707 = vmul.f32 %v313, %v435
        %v708 = vmul.f32 %v313, %v436
        %v709 = vmul.f32 %v313, %v437
        %v710 = vmul.f32 %v313, %v438
        %v711 = vmul.f32 %v313, %v439
        %v712 = vmul.f32 %v313, %v440
        %v713 = vmul.f32 %v313, %v441
        %v714 = vmul.f32 %v313, %v442
        %v715 = vmul.f32 %v313, %v443
        %v716 = vmul.f32 %v313, %v444
        %v717 = vmul.f32 %v313, %v445
        %v718 = vmul.f32 %v318, %v430
        %v719 = vmul.f32 %v318, %v431
        %v720 = vmul.f32 %v318, %v432
        %v721 = vmul.f32 %v318, %v433
        %v722 = vmul.f32 %v318, %v434
        %v723 = vmul.f32 %v318, %v435
        %v724 = vmul.f32 %v318, %v436
        %v725 = vmul.f32 %v318, %v437
        %v726 = vmul.f32 %v318, %v438
        %v727 = vmul.f32 %v318, %v439
        %v728 = vmul.f32 %v318, %v440
        %v729 = vmul.f32 %v318, %v441
        %v730 = vmul.f32 %v318, %v442
        %v731 = vmul.f32 %v318, %v443
        %v732 = vmul.f32 %v318, %v444
        %v733 = vmul.f32 %v318, %v445
        %v734 = vmul.f32 %v323, %v430
        %v735 = vmul.f32 %v323, %v431
        %v736 = vmul.f32 %v323, %v432
        %v737 = vmul.f32 %v323, %v433
        %v738 = vmul.f32 %v323, %v434
        %v739 = vmul.f32 %v323, %v435
        %v740 = vmul.f32 %v323, %v436
        %v741 = vmul.f32 %v323, %v437
        %v742 = vmul.f32 %v323, %v438
        %v743 = vmul.f32 %v323, %v439
        %v744 = vmul.f32 %v323, %v440
        %v745 = vmul.f32 %v323, %v441
        %v746 = vmul.f32 %v323, %v442
        %v747 = vmul.f32 %v323, %v443
        %v748 = vmul.f32 %v323, %v444
        %v749 = vmul.f32 %v323, %v445
        %v750 = vmul.f32 %v328, %v430
        %v751 = vmul.f32 %v328, %v431
        %v752 = vmul.f32 %v328, %v432
        %v753 = vmul.f32 %v328, %v433
        %v754 = vmul.f32 %v328, %v434
        %v755 = vmul.f32 %v328, %v435
        %v756 = vmul.f32 %v328, %v436
        %v757 = vmul.f32 %v328, %v437
        %v758 = vmul.f32 %v328, %v438
        %v759 = vmul.f32 %v328, %v439
        %v760 = vmul.f32 %v328, %v440
        %v761 = vmul.f32 %v328, %v441
        %v762 = vmul.f32 %v328, %v442
        %v763 = vmul.f32 %v328, %v443
        %v764 = vmul.f32 %v328, %v444
        %v765 = vmul.f32 %v328, %v445
        %v766 = vmul.f32 %v333, %v430
        %v767 = vmul.f32 %v333, %v431
        %v768 = vmul.f32 %v333, %v432
        %v769 = vmul.f32 %v333, %v433
        %v770 = vmul.f32 %v333, %v434
        %v771 = vmul.f32 %v333, %v435
        %v772 = vmul.f32 %v333, %v436
        %v773 = vmul.f32 %v333, %v437
        %v774 = vmul.f32 %v333, %v438
        %v775 = vmul.f32 %v333, %v439
        %v776 = vmul.f32 %v333, %v440
        %v777 = vmul.f32 %v333, %v441
        %v778 = vmul.f32 %v333, %v442
        %v779 = vmul.f32 %v333, %v443
        %v780 = vmul.f32 %v333, %v444
        %v781 = vmul.f32 %v333, %v445
        %v782 = vmul.f32 %v338, %v430
        %v783 = vmul.f32 %v338, %v431
        %v784 = vmul.f32 %v338, %v432
        %v785 = vmul.f32 %v338, %v433
        %v786 = vmul.f32 %v338, %v434
        %v787 = vmul.f32 %v338, %v435
        %v788 = vmul.f32 %v338, %v436
        %v789 = vmul.f32 %v338, %v437
        %v790 = vmul.f32 %v338, %v438
        %v791 = vmul.f32 %v338, %v439
        %v792 = vmul.f32 %v338, %v440
        %v793 = vmul.f32 %v338, %v441
        %v794 = vmul.f32 %v338, %v442
        %v795 = vmul.f32 %v338, %v443
        %v796 = vmul.f32 %v338, %v444
        %v797 = vmul.f32 %v338, %v445
        %v798 = vmul.f32 %v343, %v430
        %v799 = vmul.f32 %v343, %v431
        %v800 = vmul.f32 %v343, %v432
        %v801 = vmul.f32 %v343, %v433
        %v802 = vmul.f32 %v343, %v434
        %v803 = vmul.f32 %v343, %v435
        %v804 = vmul.f32 %v343, %v436
        %v805 = vmul.f32 %v343, %v437
        %v806 = vmul.f32 %v343, %v438
        %v807 = vmul.f32 %v343, %v439
        %v808 = vmul.f32 %v343, %v440
        %v809 = vmul.f32 %v343, %v441
        %v810 = vmul.f32 %v343, %v442
        %v811 = vmul.f32 %v343, %v443
        %v812 = vmul.f32 %v343, %v444
        %v813 = vmul.f32 %v343, %v445
        %v814 = vmul.f32 %v348, %v430
        %v815 = vmul.f32 %v348, %v431
        %v816 = vmul.f32 %v348, %v432
        %v817 = vmul.f32 %v348, %v433
        %v818 = vmul.f32 %v348, %v434
        %v819 = vmul.f32 %v348, %v435
        %v820 = vmul.f32 %v348, %v436
        %v821 = vmul.f32 %v348, %v437
        %v822 = vmul.f32 %v348, %v438
        %v823 = vmul.f32 %v348, %v439
        %v824 = vmul.f32 %v348, %v440
        %v825 = vmul.f32 %v348, %v441
        %v826 = vmul.f32 %v348, %v442
        %v827 = vmul.f32 %v348, %v443
        %v828 = vmul.f32 %v348, %v444
        %v829 = vmul.f32 %v348, %v445
        %v830 = vmul.f32 %v353, %v430
        %v831 = vmul.f32 %v353, %v431
        %v832 = vmul.f32 %v353, %v432
        %v833 = vmul.f32 %v353, %v433
        %v834 = vmul.f32 %v353, %v434
        %v835 = vmul.f32 %v353, %v435
        %v836 = vmul.f32 %v353, %v436
        %v837 = vmul.f32 %v353, %v437
        %v838 = vmul.f32 %v353, %v438
        %v839 = vmul.f32 %v353, %v439
        %v840 = vmul.f32 %v353, %v440
        %v841 = vmul.f32 %v353, %v441
        %v842 = vmul.f32 %v353, %v442
        %v843 = vmul.f32 %v353, %v443
        %v844 = vmul.f32 %v353, %v444
        %v845 = vmul.f32 %v353, %v445
        %v846 = vmul.f32 %v358, %v430
        %v847 = vmul.f32 %v358, %v431
        %v848 = vmul.f32 %v358, %v432
        %v849 = vmul.f32 %v358, %v433
        %v850 = vmul.f32 %v358, %v434
        %v851 = vmul.f32 %v358, %v435
        %v852 = vmul.f32 %v358, %v436
        %v853 = vmul.f32 %v358, %v437
        %v854 = vmul.f32 %v358, %v438
        %v855 = vmul.f32 %v358, %v439
        %v856 = vmul.f32 %v358, %v440
        %v857 = vmul.f32 %v358, %v441
        %v858 = vmul.f32 %v358, %v442
        %v859 = vmul.f32 %v358, %v443
        %v860 = vmul.f32 %v358, %v444
        %v861 = vmul.f32 %v358, %v445
        %v862 = vmul.f32 %v363, %v430
        %v863 = vmul.f32 %v363, %v431
        %v864 = vmul.f32 %v363, %v432
        %v865 = vmul.f32 %v363, %v433
        %v866 = vmul.f32 %v363, %v434
        %v867 = vmul.f32 %v363, %v435
        %v868 = vmul.f32 %v363, %v436
        %v869 = vmul.f32 %v363, %v437
        %v870 = vmul.f32 %v363, %v438
        %v871 = vmul.f32 %v363, %v439
        %v872 = vmul.f32 %v363, %v440
        %v873 = vmul.f32 %v363, %v441
        %v874 = vmul.f32 %v363, %v442
        %v875 = vmul.f32 %v363, %v443
        %v876 = vmul.f32 %v363, %v444
        %v877 = vmul.f32 %v363, %v445
        %v878 = vmul.f32 %v368, %v430
        %v879 = vmul.f32 %v368, %v431
        %v880 = vmul.f32 %v368, %v432
        %v881 = vmul.f32 %v368, %v433
        %v882 = vmul.f32 %v368, %v434
        %v883 = vmul.f32 %v368, %v435
        %v884 = vmul.f32 %v368, %v436
        %v885 = vmul.f32 %v368, %v437
        %v886 = vmul.f32 %v368, %v438
        %v887 = vmul.f32 %v368, %v439
        %v888 = vmul.f32 %v368, %v440
        %v889 = vmul.f32 %v368, %v441
        %v890 = vmul.f32 %v368, %v442
        %v891 = vmul.f32 %v368, %v443
        %v892 = vmul.f32 %v368, %v444
        %v893 = vmul.f32 %v368, %v445
        %v894 = vmul.f32 %v373, %v430
        %v895 = vmul.f32 %v373, %v431
        %v896 = vmul.f32 %v373, %v432
        %v897 = vmul.f32 %v373, %v433
        %v898 = vmul.f32 %v373, %v434
        %v899 = vmul.f32 %v373, %v435
        %v900 = vmul.f32 %v373, %v436
        %v901 = vmul.f32 %v373, %v437
        %v902 = vmul.f32 %v373, %v438
        %v903 = vmul.f32 %v373, %v439
        %v904 = vmul.f32 %v373, %v440
        %v905 = vmul.f32 %v373, %v441
        %v906 = vmul.f32 %v373, %v442
        %v907 = vmul.f32 %v373, %v443
        %v908 = vmul.f32 %v373, %v444
        %v909 = vmul.f32 %v373, %v445
        %v910 = vmul.f32 %v378, %v430
        %v911 = vmul.f32 %v378, %v431
        %v912 = vmul.f32 %v378, %v432
        %v913 = vmul.f32 %v378, %v433
        %v914 = vmul.f32 %v378, %v434
        %v915 = vmul.f32 %v378, %v435
        %v916 = vmul.f32 %v378, %v436
        %v917 = vmul.f32 %v378, %v437
        %v918 = vmul.f32 %v378, %v438
        %v919 = vmul.f32 %v378, %v439
        %v920 = vmul.f32 %v378, %v440
        %v921 = vmul.f32 %v378, %v441
        %v922 = vmul.f32 %v378, %v442
        %v923 = vmul.f32 %v378, %v443
        %v924 = vmul.f32 %v378, %v444
        %v925 = vmul.f32 %v378, %v445
        %v926 = vmul.f32 %v383, %v430
        %v927 = vmul.f32 %v383, %v431
        %v928 = vmul.f32 %v383, %v432
        %v929 = vmul.f32 %v383, %v433
        %v930 = vmul.f32 %v383, %v434
        %v931 = vmul.f32 %v383, %v435
        %v932 = vmul.f32 %v383, %v436
        %v933 = vmul.f32 %v383, %v437
        %v934 = vmul.f32 %v383, %v438
        %v935 = vmul.f32 %v383, %v439
        %v936 = vmul.f32 %v383, %v440
        %v937 = vmul.f32 %v383, %v441
        %v938 = vmul.f32 %v383, %v442
        %v939 = vmul.f32 %v383, %v443
        %v940 = vmul.f32 %v383, %v444
        %v941 = vmul.f32 %v383, %v445
        %v942 = vmul.f32 %v388, %v430
        %v943 = vmul.f32 %v388, %v431
        %v944 = vmul.f32 %v388, %v432
        %v945 = vmul.f32 %v388, %v433
        %v946 = vmul.f32 %v388, %v434
        %v947 = vmul.f32 %v388, %v435
        %v948 = vmul.f32 %v388, %v436
        %v949 = vmul.f32 %v388, %v437
        %v950 = vmul.f32 %v388, %v438
        %v951 = vmul.f32 %v388, %v439
        %v952 = vmul.f32 %v388, %v440
        %v953 = vmul.f32 %v388, %v441
        %v954 = vmul.f32 %v388, %v442
        %v955 = vmul.f32 %v388, %v443
        %v956 = vmul.f32 %v388, %v444
        %v957 = vmul.f32 %v388, %v445
        %958 = vset.pattern.permute.xlu0 1
        %959 = vperm.xlu0 %958, %v190
        %v960 = vpop.permute.xlu0 %959
        %962 = vset.pattern.permute.xlu0 1
        %963 = vperm.xlu0 %962, %v191
        %v964 = vpop.permute.xlu0 %963
        %966 = vset.pattern.permute.xlu0 1
        %967 = vperm.xlu0 %966, %v192
        %v968 = vpop.permute.xlu0 %967
        %970 = vset.pattern.permute.xlu0 1
        %971 = vperm.xlu0 %970, %v193
        %v972 = vpop.permute.xlu0 %971
        %974 = vset.pattern.permute.xlu0 1
        %975 = vperm.xlu0 %974, %v194
        %v976 = vpop.permute.xlu0 %975
        %978 = vset.pattern.permute.xlu0 1
        %979 = vperm.xlu0 %978, %v195
        %v980 = vpop.permute.xlu0 %979
        %982 = vset.pattern.permute.xlu0 1
        %983 = vperm.xlu0 %982, %v196
        %v984 = vpop.permute.xlu0 %983
        %986 = vset.pattern.permute.xlu0 1
        %987 = vperm.xlu0 %986, %v197
        %v988 = vpop.permute.xlu0 %987
        %990 = vset.pattern.permute.xlu0 1
        %991 = vperm.xlu0 %990, %v198
        %v992 = vpop.permute.xlu0 %991
        %994 = vset.pattern.permute.xlu0 1
        %995 = vperm.xlu0 %994, %v199
        %v996 = vpop.permute.xlu0 %995
        %998 = vset.pattern.permute.xlu0 1
        %999 = vperm.xlu0 %998, %v200
        %v1000 = vpop.permute.xlu0 %999
        %1002 = vset.pattern.permute.xlu0 1
        %1003 = vperm.xlu0 %1002, %v201
        %v1004 = vpop.permute.xlu0 %1003
        %1006 = vset.pattern.permute.xlu0 1
        %1007 = vperm.xlu0 %1006, %v202
        %v1008 = vpop.permute.xlu0 %1007
        %1010 = vset.pattern.permute.xlu0 1
        %1011 = vperm.xlu0 %1010, %v203
        %v1012 = vpop.permute.xlu0 %1011
        %1014 = vset.pattern.permute.xlu0 1
        %1015 = vperm.xlu0 %1014, %v204
        %v1016 = vpop.permute.xlu0 %1015
        %1018 = vset.pattern.permute.xlu0 1
        %1019 = vperm.xlu0 %1018, %v205
        %v1020 = vpop.permute.xlu0 %1019
        %1022 = vset.pattern.permute.xlu0 1
        %1023 = vperm.xlu0 %1022, %v206
        %v1024 = vpop.permute.xlu0 %1023
        %1026 = vset.pattern.permute.xlu0 1
        %1027 = vperm.xlu0 %1026, %v207
        %v1028 = vpop.permute.xlu0 %1027
        %1030 = vset.pattern.permute.xlu0 1
        %1031 = vperm.xlu0 %1030, %v208
        %v1032 = vpop.permute.xlu0 %1031
        %1034 = vset.pattern.permute.xlu0 1
        %1035 = vperm.xlu0 %1034, %v209
        %v1036 = vpop.permute.xlu0 %1035
        %1038 = vset.pattern.permute.xlu0 1
        %1039 = vperm.xlu0 %1038, %v210
        %v1040 = vpop.permute.xlu0 %1039
        %1042 = vset.pattern.permute.xlu0 1
        %1043 = vperm.xlu0 %1042, %v211
        %v1044 = vpop.permute.xlu0 %1043
        %1046 = vset.pattern.permute.xlu0 1
        %1047 = vperm.xlu0 %1046, %v212
        %v1048 = vpop.permute.xlu0 %1047
        %1050 = vset.pattern.permute.xlu0 1
        %1051 = vperm.xlu0 %1050, %v213
        %v1052 = vpop.permute.xlu0 %1051
        %1054 = vset.pattern.permute.xlu0 1
        %1055 = vperm.xlu0 %1054, %v214
        %v1056 = vpop.permute.xlu0 %1055
        %1058 = vset.pattern.permute.xlu0 1
        %1059 = vperm.xlu0 %1058, %v215
        %v1060 = vpop.permute.xlu0 %1059
        %1062 = vset.pattern.permute.xlu0 1
        %1063 = vperm.xlu0 %1062, %v216
        %v1064 = vpop.permute.xlu0 %1063
        %1066 = vset.pattern.permute.xlu0 1
        %1067 = vperm.xlu0 %1066, %v217
        %v1068 = vpop.permute.xlu0 %1067
        %1070 = vset.pattern.permute.xlu0 1
        %1071 = vperm.xlu0 %1070, %v218
        %v1072 = vpop.permute.xlu0 %1071
        %1074 = vset.pattern.permute.xlu0 1
        %1075 = vperm.xlu0 %1074, %v219
        %v1076 = vpop.permute.xlu0 %1075
        %1078 = vset.pattern.permute.xlu0 1
        %1079 = vperm.xlu0 %1078, %v220
        %v1080 = vpop.permute.xlu0 %1079
        %1082 = vset.pattern.permute.xlu0 1
        %1083 = vperm.xlu0 %1082, %v221
        %v1084 = vpop.permute.xlu0 %1083
        %v1086 = vperm.slane %v222, 1
        %v1087 = vperm.slane %v222, 5
        %v1088 = vperm.slane %v223, 1
        %v1089 = vperm.slane %v223, 5
        %v1090 = vperm.slane %v224, 1
        %v1091 = vperm.slane %v224, 5
        %v1092 = vperm.slane %v225, 1
        %v1093 = vperm.slane %v225, 5
        %v1094 = vperm.slane %v226, 1
        %v1095 = vperm.slane %v226, 5
        %v1096 = vperm.slane %v227, 1
        %v1097 = vperm.slane %v227, 5
        %v1098 = vperm.slane %v228, 1
        %v1099 = vperm.slane %v228, 5
        %v1100 = vperm.slane %v229, 1
        %v1101 = vperm.slane %v229, 5
        %v1118 = vperm.slane %v1086, 1
        %v1119 = vperm.slane %v1087, 1
        %v1120 = vperm.slane %v1088, 1
        %v1121 = vperm.slane %v1089, 1
        %v1122 = vperm.slane %v1090, 1
        %v1123 = vperm.slane %v1091, 1
        %v1124 = vperm.slane %v1092, 1
        %v1125 = vperm.slane %v1093, 1
        %v1126 = vperm.slane %v1094, 1
        %v1127 = vperm.slane %v1095, 1
        %v1128 = vperm.slane %v1096, 1
        %v1129 = vperm.slane %v1097, 1
        %v1130 = vperm.slane %v1098, 1
        %v1131 = vperm.slane %v1099, 1
        %v1132 = vperm.slane %v1100, 1
        %v1133 = vperm.slane %v1101, 1
        %v1134 = vmul.f32 %v960, %v1118
        %v1135 = vmul.f32 %v960, %v1119
        %v1136 = vmul.f32 %v960, %v1120
        %v1137 = vmul.f32 %v960, %v1121
        %v1138 = vmul.f32 %v960, %v1122
        %v1139 = vmul.f32 %v960, %v1123
        %v1140 = vmul.f32 %v960, %v1124
        %v1141 = vmul.f32 %v960, %v1125
        %v1142 = vmul.f32 %v960, %v1126
        %v1143 = vmul.f32 %v960, %v1127
        %v1144 = vmul.f32 %v960, %v1128
        %v1145 = vmul.f32 %v960, %v1129
        %v1146 = vmul.f32 %v960, %v1130
        %v1147 = vmul.f32 %v960, %v1131
        %v1148 = vmul.f32 %v960, %v1132
        %v1149 = vmul.f32 %v960, %v1133
        %v1150 = vmul.f32 %v964, %v1118
        %v1151 = vmul.f32 %v964, %v1119
        %v1152 = vmul.f32 %v964, %v1120
        %v1153 = vmul.f32 %v964, %v1121
        %v1154 = vmul.f32 %v964, %v1122
        %v1155 = vmul.f32 %v964, %v1123
        %v1156 = vmul.f32 %v964, %v1124
        %v1157 = vmul.f32 %v964, %v1125
        %v1158 = vmul.f32 %v964, %v1126
        %v1159 = vmul.f32 %v964, %v1127
        %v1160 = vmul.f32 %v964, %v1128
        %v1161 = vmul.f32 %v964, %v1129
        %v1162 = vmul.f32 %v964, %v1130
        %v1163 = vmul.f32 %v964, %v1131
        %v1164 = vmul.f32 %v964, %v1132
        %v1165 = vmul.f32 %v964, %v1133
        %v1166 = vmul.f32 %v968, %v1118
        %v1167 = vmul.f32 %v968, %v1119
        %v1168 = vmul.f32 %v968, %v1120
        %v1169 = vmul.f32 %v968, %v1121
        %v1170 = vmul.f32 %v968, %v1122
        %v1171 = vmul.f32 %v968, %v1123
        %v1172 = vmul.f32 %v968, %v1124
        %v1173 = vmul.f32 %v968, %v1125
        %v1174 = vmul.f32 %v968, %v1126
        %v1175 = vmul.f32 %v968, %v1127
        %v1176 = vmul.f32 %v968, %v1128
        %v1177 = vmul.f32 %v968, %v1129
        %v1178 = vmul.f32 %v968, %v1130
        %v1179 = vmul.f32 %v968, %v1131
        %v1180 = vmul.f32 %v968, %v1132
        %v1181 = vmul.f32 %v968, %v1133
        %v1182 = vmul.f32 %v972, %v1118
        %v1183 = vmul.f32 %v972, %v1119
        %v1184 = vmul.f32 %v972, %v1120
        %v1185 = vmul.f32 %v972, %v1121
        %v1186 = vmul.f32 %v972, %v1122
        %v1187 = vmul.f32 %v972, %v1123
        %v1188 = vmul.f32 %v972, %v1124
        %v1189 = vmul.f32 %v972, %v1125
        %v1190 = vmul.f32 %v972, %v1126
        %v1191 = vmul.f32 %v972, %v1127
        %v1192 = vmul.f32 %v972, %v1128
        %v1193 = vmul.f32 %v972, %v1129
        %v1194 = vmul.f32 %v972, %v1130
        %v1195 = vmul.f32 %v972, %v1131
        %v1196 = vmul.f32 %v972, %v1132
        %v1197 = vmul.f32 %v972, %v1133
        %v1198 = vmul.f32 %v976, %v1118
        %v1199 = vmul.f32 %v976, %v1119
        %v1200 = vmul.f32 %v976, %v1120
        %v1201 = vmul.f32 %v976, %v1121
        %v1202 = vmul.f32 %v976, %v1122
        %v1203 = vmul.f32 %v976, %v1123
        %v1204 = vmul.f32 %v976, %v1124
        %v1205 = vmul.f32 %v976, %v1125
        %v1206 = vmul.f32 %v976, %v1126
        %v1207 = vmul.f32 %v976, %v1127
        %v1208 = vmul.f32 %v976, %v1128
        %v1209 = vmul.f32 %v976, %v1129
        %v1210 = vmul.f32 %v976, %v1130
        %v1211 = vmul.f32 %v976, %v1131
        %v1212 = vmul.f32 %v976, %v1132
        %v1213 = vmul.f32 %v976, %v1133
        %v1214 = vmul.f32 %v980, %v1118
        %v1215 = vmul.f32 %v980, %v1119
        %v1216 = vmul.f32 %v980, %v1120
        %v1217 = vmul.f32 %v980, %v1121
        %v1218 = vmul.f32 %v980, %v1122
        %v1219 = vmul.f32 %v980, %v1123
        %v1220 = vmul.f32 %v980, %v1124
        %v1221 = vmul.f32 %v980, %v1125
        %v1222 = vmul.f32 %v980, %v1126
        %v1223 = vmul.f32 %v980, %v1127
        %v1224 = vmul.f32 %v980, %v1128
        %v1225 = vmul.f32 %v980, %v1129
        %v1226 = vmul.f32 %v980, %v1130
        %v1227 = vmul.f32 %v980, %v1131
        %v1228 = vmul.f32 %v980, %v1132
        %v1229 = vmul.f32 %v980, %v1133
        %v1230 = vmul.f32 %v984, %v1118
        %v1231 = vmul.f32 %v984, %v1119
        %v1232 = vmul.f32 %v984, %v1120
        %v1233 = vmul.f32 %v984, %v1121
        %v1234 = vmul.f32 %v984, %v1122
        %v1235 = vmul.f32 %v984, %v1123
        %v1236 = vmul.f32 %v984, %v1124
        %v1237 = vmul.f32 %v984, %v1125
        %v1238 = vmul.f32 %v984, %v1126
        %v1239 = vmul.f32 %v984, %v1127
        %v1240 = vmul.f32 %v984, %v1128
        %v1241 = vmul.f32 %v984, %v1129
        %v1242 = vmul.f32 %v984, %v1130
        %v1243 = vmul.f32 %v984, %v1131
        %v1244 = vmul.f32 %v984, %v1132
        %v1245 = vmul.f32 %v984, %v1133
        %v1246 = vmul.f32 %v988, %v1118
        %v1247 = vmul.f32 %v988, %v1119
        %v1248 = vmul.f32 %v988, %v1120
        %v1249 = vmul.f32 %v988, %v1121
        %v1250 = vmul.f32 %v988, %v1122
        %v1251 = vmul.f32 %v988, %v1123
        %v1252 = vmul.f32 %v988, %v1124
        %v1253 = vmul.f32 %v988, %v1125
        %v1254 = vmul.f32 %v988, %v1126
        %v1255 = vmul.f32 %v988, %v1127
        %v1256 = vmul.f32 %v988, %v1128
        %v1257 = vmul.f32 %v988, %v1129
        %v1258 = vmul.f32 %v988, %v1130
        %v1259 = vmul.f32 %v988, %v1131
        %v1260 = vmul.f32 %v988, %v1132
        %v1261 = vmul.f32 %v988, %v1133
        %v1262 = vmul.f32 %v992, %v1118
        %v1263 = vmul.f32 %v992, %v1119
        %v1264 = vmul.f32 %v992, %v1120
        %v1265 = vmul.f32 %v992, %v1121
        %v1266 = vmul.f32 %v992, %v1122
        %v1267 = vmul.f32 %v992, %v1123
        %v1268 = vmul.f32 %v992, %v1124
        %v1269 = vmul.f32 %v992, %v1125
        %v1270 = vmul.f32 %v992, %v1126
        %v1271 = vmul.f32 %v992, %v1127
        %v1272 = vmul.f32 %v992, %v1128
        %v1273 = vmul.f32 %v992, %v1129
        %v1274 = vmul.f32 %v992, %v1130
        %v1275 = vmul.f32 %v992, %v1131
        %v1276 = vmul.f32 %v992, %v1132
        %v1277 = vmul.f32 %v992, %v1133
        %v1278 = vmul.f32 %v996, %v1118
        %v1279 = vmul.f32 %v996, %v1119
        %v1280 = vmul.f32 %v996, %v1120
        %v1281 = vmul.f32 %v996, %v1121
        %v1282 = vmul.f32 %v996, %v1122
        %v1283 = vmul.f32 %v996, %v1123
        %v1284 = vmul.f32 %v996, %v1124
        %v1285 = vmul.f32 %v996, %v1125
        %v1286 = vmul.f32 %v996, %v1126
        %v1287 = vmul.f32 %v996, %v1127
        %v1288 = vmul.f32 %v996, %v1128
        %v1289 = vmul.f32 %v996, %v1129
        %v1290 = vmul.f32 %v996, %v1130
        %v1291 = vmul.f32 %v996, %v1131
        %v1292 = vmul.f32 %v996, %v1132
        %v1293 = vmul.f32 %v996, %v1133
        %v1294 = vmul.f32 %v1000, %v1118
        %v1295 = vmul.f32 %v1000, %v1119
        %v1296 = vmul.f32 %v1000, %v1120
        %v1297 = vmul.f32 %v1000, %v1121
        %v1298 = vmul.f32 %v1000, %v1122
        %v1299 = vmul.f32 %v1000, %v1123
        %v1300 = vmul.f32 %v1000, %v1124
        %v1301 = vmul.f32 %v1000, %v1125
        %v1302 = vmul.f32 %v1000, %v1126
        %v1303 = vmul.f32 %v1000, %v1127
        %v1304 = vmul.f32 %v1000, %v1128
        %v1305 = vmul.f32 %v1000, %v1129
        %v1306 = vmul.f32 %v1000, %v1130
        %v1307 = vmul.f32 %v1000, %v1131
        %v1308 = vmul.f32 %v1000, %v1132
        %v1309 = vmul.f32 %v1000, %v1133
        %v1310 = vmul.f32 %v1004, %v1118
        %v1311 = vmul.f32 %v1004, %v1119
        %v1312 = vmul.f32 %v1004, %v1120
        %v1313 = vmul.f32 %v1004, %v1121
        %v1314 = vmul.f32 %v1004, %v1122
        %v1315 = vmul.f32 %v1004, %v1123
        %v1316 = vmul.f32 %v1004, %v1124
        %v1317 = vmul.f32 %v1004, %v1125
        %v1318 = vmul.f32 %v1004, %v1126
        %v1319 = vmul.f32 %v1004, %v1127
        %v1320 = vmul.f32 %v1004, %v1128
        %v1321 = vmul.f32 %v1004, %v1129
        %v1322 = vmul.f32 %v1004, %v1130
        %v1323 = vmul.f32 %v1004, %v1131
        %v1324 = vmul.f32 %v1004, %v1132
        %v1325 = vmul.f32 %v1004, %v1133
        %v1326 = vmul.f32 %v1008, %v1118
        %v1327 = vmul.f32 %v1008, %v1119
        %v1328 = vmul.f32 %v1008, %v1120
        %v1329 = vmul.f32 %v1008, %v1121
        %v1330 = vmul.f32 %v1008, %v1122
        %v1331 = vmul.f32 %v1008, %v1123
        %v1332 = vmul.f32 %v1008, %v1124
        %v1333 = vmul.f32 %v1008, %v1125
        %v1334 = vmul.f32 %v1008, %v1126
        %v1335 = vmul.f32 %v1008, %v1127
        %v1336 = vmul.f32 %v1008, %v1128
        %v1337 = vmul.f32 %v1008, %v1129
        %v1338 = vmul.f32 %v1008, %v1130
        %v1339 = vmul.f32 %v1008, %v1131
        %v1340 = vmul.f32 %v1008, %v1132
        %v1341 = vmul.f32 %v1008, %v1133
        %v1342 = vmul.f32 %v1012, %v1118
        %v1343 = vmul.f32 %v1012, %v1119
        %v1344 = vmul.f32 %v1012, %v1120
        %v1345 = vmul.f32 %v1012, %v1121
        %v1346 = vmul.f32 %v1012, %v1122
        %v1347 = vmul.f32 %v1012, %v1123
        %v1348 = vmul.f32 %v1012, %v1124
        %v1349 = vmul.f32 %v1012, %v1125
        %v1350 = vmul.f32 %v1012, %v1126
        %v1351 = vmul.f32 %v1012, %v1127
        %v1352 = vmul.f32 %v1012, %v1128
        %v1353 = vmul.f32 %v1012, %v1129
        %v1354 = vmul.f32 %v1012, %v1130
        %v1355 = vmul.f32 %v1012, %v1131
        %v1356 = vmul.f32 %v1012, %v1132
        %v1357 = vmul.f32 %v1012, %v1133
        %v1358 = vmul.f32 %v1016, %v1118
        %v1359 = vmul.f32 %v1016, %v1119
        %v1360 = vmul.f32 %v1016, %v1120
        %v1361 = vmul.f32 %v1016, %v1121
        %v1362 = vmul.f32 %v1016, %v1122
        %v1363 = vmul.f32 %v1016, %v1123
        %v1364 = vmul.f32 %v1016, %v1124
        %v1365 = vmul.f32 %v1016, %v1125
        %v1366 = vmul.f32 %v1016, %v1126
        %v1367 = vmul.f32 %v1016, %v1127
        %v1368 = vmul.f32 %v1016, %v1128
        %v1369 = vmul.f32 %v1016, %v1129
        %v1370 = vmul.f32 %v1016, %v1130
        %v1371 = vmul.f32 %v1016, %v1131
        %v1372 = vmul.f32 %v1016, %v1132
        %v1373 = vmul.f32 %v1016, %v1133
        %v1374 = vmul.f32 %v1020, %v1118
        %v1375 = vmul.f32 %v1020, %v1119
        %v1376 = vmul.f32 %v1020, %v1120
        %v1377 = vmul.f32 %v1020, %v1121
        %v1378 = vmul.f32 %v1020, %v1122
        %v1379 = vmul.f32 %v1020, %v1123
        %v1380 = vmul.f32 %v1020, %v1124
        %v1381 = vmul.f32 %v1020, %v1125
        %v1382 = vmul.f32 %v1020, %v1126
        %v1383 = vmul.f32 %v1020, %v1127
        %v1384 = vmul.f32 %v1020, %v1128
        %v1385 = vmul.f32 %v1020, %v1129
        %v1386 = vmul.f32 %v1020, %v1130
        %v1387 = vmul.f32 %v1020, %v1131
        %v1388 = vmul.f32 %v1020, %v1132
        %v1389 = vmul.f32 %v1020, %v1133
        %v1390 = vmul.f32 %v1024, %v1118
        %v1391 = vmul.f32 %v1024, %v1119
        %v1392 = vmul.f32 %v1024, %v1120
        %v1393 = vmul.f32 %v1024, %v1121
        %v1394 = vmul.f32 %v1024, %v1122
        %v1395 = vmul.f32 %v1024, %v1123
        %v1396 = vmul.f32 %v1024, %v1124
        %v1397 = vmul.f32 %v1024, %v1125
        %v1398 = vmul.f32 %v1024, %v1126
        %v1399 = vmul.f32 %v1024, %v1127
        %v1400 = vmul.f32 %v1024, %v1128
        %v1401 = vmul.f32 %v1024, %v1129
        %v1402 = vmul.f32 %v1024, %v1130
        %v1403 = vmul.f32 %v1024, %v1131
        %v1404 = vmul.f32 %v1024, %v1132
        %v1405 = vmul.f32 %v1024, %v1133
        %v1406 = vmul.f32 %v1028, %v1118
        %v1407 = vmul.f32 %v1028, %v1119
        %v1408 = vmul.f32 %v1028, %v1120
        %v1409 = vmul.f32 %v1028, %v1121
        %v1410 = vmul.f32 %v1028, %v1122
        %v1411 = vmul.f32 %v1028, %v1123
        %v1412 = vmul.f32 %v1028, %v1124
        %v1413 = vmul.f32 %v1028, %v1125
        %v1414 = vmul.f32 %v1028, %v1126
        %v1415 = vmul.f32 %v1028, %v1127
        %v1416 = vmul.f32 %v1028, %v1128
        %v1417 = vmul.f32 %v1028, %v1129
        %v1418 = vmul.f32 %v1028, %v1130
        %v1419 = vmul.f32 %v1028, %v1131
        %v1420 = vmul.f32 %v1028, %v1132
        %v1421 = vmul.f32 %v1028, %v1133
        %v1422 = vmul.f32 %v1032, %v1118
        %v1423 = vmul.f32 %v1032, %v1119
        %v1424 = vmul.f32 %v1032, %v1120
        %v1425 = vmul.f32 %v1032, %v1121
        %v1426 = vmul.f32 %v1032, %v1122
        %v1427 = vmul.f32 %v1032, %v1123
        %v1428 = vmul.f32 %v1032, %v1124
        %v1429 = vmul.f32 %v1032, %v1125
        %v1430 = vmul.f32 %v1032, %v1126
        %v1431 = vmul.f32 %v1032, %v1127
        %v1432 = vmul.f32 %v1032, %v1128
        %v1433 = vmul.f32 %v1032, %v1129
        %v1434 = vmul.f32 %v1032, %v1130
        %v1435 = vmul.f32 %v1032, %v1131
        %v1436 = vmul.f32 %v1032, %v1132
        %v1437 = vmul.f32 %v1032, %v1133
        %v1438 = vmul.f32 %v1036, %v1118
        %v1439 = vmul.f32 %v1036, %v1119
        %v1440 = vmul.f32 %v1036, %v1120
        %v1441 = vmul.f32 %v1036, %v1121
        %v1442 = vmul.f32 %v1036, %v1122
        %v1443 = vmul.f32 %v1036, %v1123
        %v1444 = vmul.f32 %v1036, %v1124
        %v1445 = vmul.f32 %v1036, %v1125
        %v1446 = vmul.f32 %v1036, %v1126
        %v1447 = vmul.f32 %v1036, %v1127
        %v1448 = vmul.f32 %v1036, %v1128
        %v1449 = vmul.f32 %v1036, %v1129
        %v1450 = vmul.f32 %v1036, %v1130
        %v1451 = vmul.f32 %v1036, %v1131
        %v1452 = vmul.f32 %v1036, %v1132
        %v1453 = vmul.f32 %v1036, %v1133
        %v1454 = vmul.f32 %v1040, %v1118
        %v1455 = vmul.f32 %v1040, %v1119
        %v1456 = vmul.f32 %v1040, %v1120
        %v1457 = vmul.f32 %v1040, %v1121
        %v1458 = vmul.f32 %v1040, %v1122
        %v1459 = vmul.f32 %v1040, %v1123
        %v1460 = vmul.f32 %v1040, %v1124
        %v1461 = vmul.f32 %v1040, %v1125
        %v1462 = vmul.f32 %v1040, %v1126
        %v1463 = vmul.f32 %v1040, %v1127
        %v1464 = vmul.f32 %v1040, %v1128
        %v1465 = vmul.f32 %v1040, %v1129
        %v1466 = vmul.f32 %v1040, %v1130
        %v1467 = vmul.f32 %v1040, %v1131
        %v1468 = vmul.f32 %v1040, %v1132
        %v1469 = vmul.f32 %v1040, %v1133
        %v1470 = vmul.f32 %v1044, %v1118
        %v1471 = vmul.f32 %v1044, %v1119
        %v1472 = vmul.f32 %v1044, %v1120
        %v1473 = vmul.f32 %v1044, %v1121
        %v1474 = vmul.f32 %v1044, %v1122
        %v1475 = vmul.f32 %v1044, %v1123
        %v1476 = vmul.f32 %v1044, %v1124
        %v1477 = vmul.f32 %v1044, %v1125
        %v1478 = vmul.f32 %v1044, %v1126
        %v1479 = vmul.f32 %v1044, %v1127
        %v1480 = vmul.f32 %v1044, %v1128
        %v1481 = vmul.f32 %v1044, %v1129
        %v1482 = vmul.f32 %v1044, %v1130
        %v1483 = vmul.f32 %v1044, %v1131
        %v1484 = vmul.f32 %v1044, %v1132
        %v1485 = vmul.f32 %v1044, %v1133
        %v1486 = vmul.f32 %v1048, %v1118
        %v1487 = vmul.f32 %v1048, %v1119
        %v1488 = vmul.f32 %v1048, %v1120
        %v1489 = vmul.f32 %v1048, %v1121
        %v1490 = vmul.f32 %v1048, %v1122
        %v1491 = vmul.f32 %v1048, %v1123
        %v1492 = vmul.f32 %v1048, %v1124
        %v1493 = vmul.f32 %v1048, %v1125
        %v1494 = vmul.f32 %v1048, %v1126
        %v1495 = vmul.f32 %v1048, %v1127
        %v1496 = vmul.f32 %v1048, %v1128
        %v1497 = vmul.f32 %v1048, %v1129
        %v1498 = vmul.f32 %v1048, %v1130
        %v1499 = vmul.f32 %v1048, %v1131
        %v1500 = vmul.f32 %v1048, %v1132
        %v1501 = vmul.f32 %v1048, %v1133
        %v1502 = vmul.f32 %v1052, %v1118
        %v1503 = vmul.f32 %v1052, %v1119
        %v1504 = vmul.f32 %v1052, %v1120
        %v1505 = vmul.f32 %v1052, %v1121
        %v1506 = vmul.f32 %v1052, %v1122
        %v1507 = vmul.f32 %v1052, %v1123
        %v1508 = vmul.f32 %v1052, %v1124
        %v1509 = vmul.f32 %v1052, %v1125
        %v1510 = vmul.f32 %v1052, %v1126
        %v1511 = vmul.f32 %v1052, %v1127
        %v1512 = vmul.f32 %v1052, %v1128
        %v1513 = vmul.f32 %v1052, %v1129
        %v1514 = vmul.f32 %v1052, %v1130
        %v1515 = vmul.f32 %v1052, %v1131
        %v1516 = vmul.f32 %v1052, %v1132
        %v1517 = vmul.f32 %v1052, %v1133
        %v1518 = vmul.f32 %v1056, %v1118
        %v1519 = vmul.f32 %v1056, %v1119
        %v1520 = vmul.f32 %v1056, %v1120
        %v1521 = vmul.f32 %v1056, %v1121
        %v1522 = vmul.f32 %v1056, %v1122
        %v1523 = vmul.f32 %v1056, %v1123
        %v1524 = vmul.f32 %v1056, %v1124
        %v1525 = vmul.f32 %v1056, %v1125
        %v1526 = vmul.f32 %v1056, %v1126
        %v1527 = vmul.f32 %v1056, %v1127
        %v1528 = vmul.f32 %v1056, %v1128
        %v1529 = vmul.f32 %v1056, %v1129
        %v1530 = vmul.f32 %v1056, %v1130
        %v1531 = vmul.f32 %v1056, %v1131
        %v1532 = vmul.f32 %v1056, %v1132
        %v1533 = vmul.f32 %v1056, %v1133
        %v1534 = vmul.f32 %v1060, %v1118
        %v1535 = vmul.f32 %v1060, %v1119
        %v1536 = vmul.f32 %v1060, %v1120
        %v1537 = vmul.f32 %v1060, %v1121
        %v1538 = vmul.f32 %v1060, %v1122
        %v1539 = vmul.f32 %v1060, %v1123
        %v1540 = vmul.f32 %v1060, %v1124
        %v1541 = vmul.f32 %v1060, %v1125
        %v1542 = vmul.f32 %v1060, %v1126
        %v1543 = vmul.f32 %v1060, %v1127
        %v1544 = vmul.f32 %v1060, %v1128
        %v1545 = vmul.f32 %v1060, %v1129
        %v1546 = vmul.f32 %v1060, %v1130
        %v1547 = vmul.f32 %v1060, %v1131
        %v1548 = vmul.f32 %v1060, %v1132
        %v1549 = vmul.f32 %v1060, %v1133
        %v1550 = vmul.f32 %v1064, %v1118
        %v1551 = vmul.f32 %v1064, %v1119
        %v1552 = vmul.f32 %v1064, %v1120
        %v1553 = vmul.f32 %v1064, %v1121
        %v1554 = vmul.f32 %v1064, %v1122
        %v1555 = vmul.f32 %v1064, %v1123
        %v1556 = vmul.f32 %v1064, %v1124
        %v1557 = vmul.f32 %v1064, %v1125
        %v1558 = vmul.f32 %v1064, %v1126
        %v1559 = vmul.f32 %v1064, %v1127
        %v1560 = vmul.f32 %v1064, %v1128
        %v1561 = vmul.f32 %v1064, %v1129
        %v1562 = vmul.f32 %v1064, %v1130
        %v1563 = vmul.f32 %v1064, %v1131
        %v1564 = vmul.f32 %v1064, %v1132
        %v1565 = vmul.f32 %v1064, %v1133
        %v1566 = vmul.f32 %v1068, %v1118
        %v1567 = vmul.f32 %v1068, %v1119
        %v1568 = vmul.f32 %v1068, %v1120
        %v1569 = vmul.f32 %v1068, %v1121
        %v1570 = vmul.f32 %v1068, %v1122
        %v1571 = vmul.f32 %v1068, %v1123
        %v1572 = vmul.f32 %v1068, %v1124
        %v1573 = vmul.f32 %v1068, %v1125
        %v1574 = vmul.f32 %v1068, %v1126
        %v1575 = vmul.f32 %v1068, %v1127
        %v1576 = vmul.f32 %v1068, %v1128
        %v1577 = vmul.f32 %v1068, %v1129
        %v1578 = vmul.f32 %v1068, %v1130
        %v1579 = vmul.f32 %v1068, %v1131
        %v1580 = vmul.f32 %v1068, %v1132
        %v1581 = vmul.f32 %v1068, %v1133
        %v1582 = vmul.f32 %v1072, %v1118
        %v1583 = vmul.f32 %v1072, %v1119
        %v1584 = vmul.f32 %v1072, %v1120
        %v1585 = vmul.f32 %v1072, %v1121
        %v1586 = vmul.f32 %v1072, %v1122
        %v1587 = vmul.f32 %v1072, %v1123
        %v1588 = vmul.f32 %v1072, %v1124
        %v1589 = vmul.f32 %v1072, %v1125
        %v1590 = vmul.f32 %v1072, %v1126
        %v1591 = vmul.f32 %v1072, %v1127
        %v1592 = vmul.f32 %v1072, %v1128
        %v1593 = vmul.f32 %v1072, %v1129
        %v1594 = vmul.f32 %v1072, %v1130
        %v1595 = vmul.f32 %v1072, %v1131
        %v1596 = vmul.f32 %v1072, %v1132
        %v1597 = vmul.f32 %v1072, %v1133
        %v1598 = vmul.f32 %v1076, %v1118
        %v1599 = vmul.f32 %v1076, %v1119
        %v1600 = vmul.f32 %v1076, %v1120
        %v1601 = vmul.f32 %v1076, %v1121
        %v1602 = vmul.f32 %v1076, %v1122
        %v1603 = vmul.f32 %v1076, %v1123
        %v1604 = vmul.f32 %v1076, %v1124
        %v1605 = vmul.f32 %v1076, %v1125
        %v1606 = vmul.f32 %v1076, %v1126
        %v1607 = vmul.f32 %v1076, %v1127
        %v1608 = vmul.f32 %v1076, %v1128
        %v1609 = vmul.f32 %v1076, %v1129
        %v1610 = vmul.f32 %v1076, %v1130
        %v1611 = vmul.f32 %v1076, %v1131
        %v1612 = vmul.f32 %v1076, %v1132
        %v1613 = vmul.f32 %v1076, %v1133
        %v1614 = vmul.f32 %v1080, %v1118
        %v1615 = vmul.f32 %v1080, %v1119
        %v1616 = vmul.f32 %v1080, %v1120
        %v1617 = vmul.f32 %v1080, %v1121
        %v1618 = vmul.f32 %v1080, %v1122
        %v1619 = vmul.f32 %v1080, %v1123
        %v1620 = vmul.f32 %v1080, %v1124
        %v1621 = vmul.f32 %v1080, %v1125
        %v1622 = vmul.f32 %v1080, %v1126
        %v1623 = vmul.f32 %v1080, %v1127
        %v1624 = vmul.f32 %v1080, %v1128
        %v1625 = vmul.f32 %v1080, %v1129
        %v1626 = vmul.f32 %v1080, %v1130
        %v1627 = vmul.f32 %v1080, %v1131
        %v1628 = vmul.f32 %v1080, %v1132
        %v1629 = vmul.f32 %v1080, %v1133
        %v1630 = vmul.f32 %v1084, %v1118
        %v1631 = vmul.f32 %v1084, %v1119
        %v1632 = vmul.f32 %v1084, %v1120
        %v1633 = vmul.f32 %v1084, %v1121
        %v1634 = vmul.f32 %v1084, %v1122
        %v1635 = vmul.f32 %v1084, %v1123
        %v1636 = vmul.f32 %v1084, %v1124
        %v1637 = vmul.f32 %v1084, %v1125
        %v1638 = vmul.f32 %v1084, %v1126
        %v1639 = vmul.f32 %v1084, %v1127
        %v1640 = vmul.f32 %v1084, %v1128
        %v1641 = vmul.f32 %v1084, %v1129
        %v1642 = vmul.f32 %v1084, %v1130
        %v1643 = vmul.f32 %v1084, %v1131
        %v1644 = vmul.f32 %v1084, %v1132
        %v1645 = vmul.f32 %v1084, %v1133
        %v1646 = vadd.f32 %v446, %v1134
        %v1647 = vadd.f32 %v447, %v1135
        %v1648 = vadd.f32 %v448, %v1136
        %v1649 = vadd.f32 %v449, %v1137
        %v1650 = vadd.f32 %v450, %v1138
        %v1651 = vadd.f32 %v451, %v1139
        %v1652 = vadd.f32 %v452, %v1140
        %v1653 = vadd.f32 %v453, %v1141
        %v1654 = vadd.f32 %v454, %v1142
        %v1655 = vadd.f32 %v455, %v1143
        %v1656 = vadd.f32 %v456, %v1144
        %v1657 = vadd.f32 %v457, %v1145
        %v1658 = vadd.f32 %v458, %v1146
        %v1659 = vadd.f32 %v459, %v1147
        %v1660 = vadd.f32 %v460, %v1148
        %v1661 = vadd.f32 %v461, %v1149
        %v1662 = vadd.f32 %v462, %v1150
        %v1663 = vadd.f32 %v463, %v1151
        %v1664 = vadd.f32 %v464, %v1152
        %v1665 = vadd.f32 %v465, %v1153
        %v1666 = vadd.f32 %v466, %v1154
        %v1667 = vadd.f32 %v467, %v1155
        %v1668 = vadd.f32 %v468, %v1156
        %v1669 = vadd.f32 %v469, %v1157
        %v1670 = vadd.f32 %v470, %v1158
        %v1671 = vadd.f32 %v471, %v1159
        %v1672 = vadd.f32 %v472, %v1160
        %v1673 = vadd.f32 %v473, %v1161
        %v1674 = vadd.f32 %v474, %v1162
        %v1675 = vadd.f32 %v475, %v1163
        %v1676 = vadd.f32 %v476, %v1164
        %v1677 = vadd.f32 %v477, %v1165
        %v1678 = vadd.f32 %v478, %v1166
        %v1679 = vadd.f32 %v479, %v1167
        %v1680 = vadd.f32 %v480, %v1168
        %v1681 = vadd.f32 %v481, %v1169
        %v1682 = vadd.f32 %v482, %v1170
        %v1683 = vadd.f32 %v483, %v1171
        %v1684 = vadd.f32 %v484, %v1172
        %v1685 = vadd.f32 %v485, %v1173
        %v1686 = vadd.f32 %v486, %v1174
        %v1687 = vadd.f32 %v487, %v1175
        %v1688 = vadd.f32 %v488, %v1176
        %v1689 = vadd.f32 %v489, %v1177
        %v1690 = vadd.f32 %v490, %v1178
        %v1691 = vadd.f32 %v491, %v1179
        %v1692 = vadd.f32 %v492, %v1180
        %v1693 = vadd.f32 %v493, %v1181
        %v1694 = vadd.f32 %v494, %v1182
        %v1695 = vadd.f32 %v495, %v1183
        %v1696 = vadd.f32 %v496, %v1184
        %v1697 = vadd.f32 %v497, %v1185
        %v1698 = vadd.f32 %v498, %v1186
        %v1699 = vadd.f32 %v499, %v1187
        %v1700 = vadd.f32 %v500, %v1188
        %v1701 = vadd.f32 %v501, %v1189
        %v1702 = vadd.f32 %v502, %v1190
        %v1703 = vadd.f32 %v503, %v1191
        %v1704 = vadd.f32 %v504, %v1192
        %v1705 = vadd.f32 %v505, %v1193
        %v1706 = vadd.f32 %v506, %v1194
        %v1707 = vadd.f32 %v507, %v1195
        %v1708 = vadd.f32 %v508, %v1196
        %v1709 = vadd.f32 %v509, %v1197
        %v1710 = vadd.f32 %v510, %v1198
        %v1711 = vadd.f32 %v511, %v1199
        %v1712 = vadd.f32 %v512, %v1200
        %v1713 = vadd.f32 %v513, %v1201
        %v1714 = vadd.f32 %v514, %v1202
        %v1715 = vadd.f32 %v515, %v1203
        %v1716 = vadd.f32 %v516, %v1204
        %v1717 = vadd.f32 %v517, %v1205
        %v1718 = vadd.f32 %v518, %v1206
        %v1719 = vadd.f32 %v519, %v1207
        %v1720 = vadd.f32 %v520, %v1208
        %v1721 = vadd.f32 %v521, %v1209
        %v1722 = vadd.f32 %v522, %v1210
        %v1723 = vadd.f32 %v523, %v1211
        %v1724 = vadd.f32 %v524, %v1212
        %v1725 = vadd.f32 %v525, %v1213
        %v1726 = vadd.f32 %v526, %v1214
        %v1727 = vadd.f32 %v527, %v1215
        %v1728 = vadd.f32 %v528, %v1216
        %v1729 = vadd.f32 %v529, %v1217
        %v1730 = vadd.f32 %v530, %v1218
        %v1731 = vadd.f32 %v531, %v1219
        %v1732 = vadd.f32 %v532, %v1220
        %v1733 = vadd.f32 %v533, %v1221
        %v1734 = vadd.f32 %v534, %v1222
        %v1735 = vadd.f32 %v535, %v1223
        %v1736 = vadd.f32 %v536, %v1224
        %v1737 = vadd.f32 %v537, %v1225
        %v1738 = vadd.f32 %v538, %v1226
        %v1739 = vadd.f32 %v539, %v1227
        %v1740 = vadd.f32 %v540, %v1228
        %v1741 = vadd.f32 %v541, %v1229
        %v1742 = vadd.f32 %v542, %v1230
        %v1743 = vadd.f32 %v543, %v1231
        %v1744 = vadd.f32 %v544, %v1232
        %v1745 = vadd.f32 %v545, %v1233
        %v1746 = vadd.f32 %v546, %v1234
        %v1747 = vadd.f32 %v547, %v1235
        %v1748 = vadd.f32 %v548, %v1236
        %v1749 = vadd.f32 %v549, %v1237
        %v1750 = vadd.f32 %v550, %v1238
        %v1751 = vadd.f32 %v551, %v1239
        %v1752 = vadd.f32 %v552, %v1240
        %v1753 = vadd.f32 %v553, %v1241
        %v1754 = vadd.f32 %v554, %v1242
        %v1755 = vadd.f32 %v555, %v1243
        %v1756 = vadd.f32 %v556, %v1244
        %v1757 = vadd.f32 %v557, %v1245
        %v1758 = vadd.f32 %v558, %v1246
        %v1759 = vadd.f32 %v559, %v1247
        %v1760 = vadd.f32 %v560, %v1248
        %v1761 = vadd.f32 %v561, %v1249
        %v1762 = vadd.f32 %v562, %v1250
        %v1763 = vadd.f32 %v563, %v1251
        %v1764 = vadd.f32 %v564, %v1252
        %v1765 = vadd.f32 %v565, %v1253
        %v1766 = vadd.f32 %v566, %v1254
        %v1767 = vadd.f32 %v567, %v1255
        %v1768 = vadd.f32 %v568, %v1256
        %v1769 = vadd.f32 %v569, %v1257
        %v1770 = vadd.f32 %v570, %v1258
        %v1771 = vadd.f32 %v571, %v1259
        %v1772 = vadd.f32 %v572, %v1260
        %v1773 = vadd.f32 %v573, %v1261
        %v1774 = vadd.f32 %v574, %v1262
        %v1775 = vadd.f32 %v575, %v1263
        %v1776 = vadd.f32 %v576, %v1264
        %v1777 = vadd.f32 %v577, %v1265
        %v1778 = vadd.f32 %v578, %v1266
        %v1779 = vadd.f32 %v579, %v1267
        %v1780 = vadd.f32 %v580, %v1268
        %v1781 = vadd.f32 %v581, %v1269
        %v1782 = vadd.f32 %v582, %v1270
        %v1783 = vadd.f32 %v583, %v1271
        %v1784 = vadd.f32 %v584, %v1272
        %v1785 = vadd.f32 %v585, %v1273
        %v1786 = vadd.f32 %v586, %v1274
        %v1787 = vadd.f32 %v587, %v1275
        %v1788 = vadd.f32 %v588, %v1276
        %v1789 = vadd.f32 %v589, %v1277
        %v1790 = vadd.f32 %v590, %v1278
        %v1791 = vadd.f32 %v591, %v1279
        %v1792 = vadd.f32 %v592, %v1280
        %v1793 = vadd.f32 %v593, %v1281
        %v1794 = vadd.f32 %v594, %v1282
        %v1795 = vadd.f32 %v595, %v1283
        %v1796 = vadd.f32 %v596, %v1284
        %v1797 = vadd.f32 %v597, %v1285
        %v1798 = vadd.f32 %v598, %v1286
        %v1799 = vadd.f32 %v599, %v1287
        %v1800 = vadd.f32 %v600, %v1288
        %v1801 = vadd.f32 %v601, %v1289
        %v1802 = vadd.f32 %v602, %v1290
        %v1803 = vadd.f32 %v603, %v1291
        %v1804 = vadd.f32 %v604, %v1292
        %v1805 = vadd.f32 %v605, %v1293
        %v1806 = vadd.f32 %v606, %v1294
        %v1807 = vadd.f32 %v607, %v1295
        %v1808 = vadd.f32 %v608, %v1296
        %v1809 = vadd.f32 %v609, %v1297
        %v1810 = vadd.f32 %v610, %v1298
        %v1811 = vadd.f32 %v611, %v1299
        %v1812 = vadd.f32 %v612, %v1300
        %v1813 = vadd.f32 %v613, %v1301
        %v1814 = vadd.f32 %v614, %v1302
        %v1815 = vadd.f32 %v615, %v1303
        %v1816 = vadd.f32 %v616, %v1304
        %v1817 = vadd.f32 %v617, %v1305
        %v1818 = vadd.f32 %v618, %v1306
        %v1819 = vadd.f32 %v619, %v1307
        %v1820 = vadd.f32 %v620, %v1308
        %v1821 = vadd.f32 %v621, %v1309
        %v1822 = vadd.f32 %v622, %v1310
        %v1823 = vadd.f32 %v623, %v1311
        %v1824 = vadd.f32 %v624, %v1312
        %v1825 = vadd.f32 %v625, %v1313
        %v1826 = vadd.f32 %v626, %v1314
        %v1827 = vadd.f32 %v627, %v1315
        %v1828 = vadd.f32 %v628, %v1316
        %v1829 = vadd.f32 %v629, %v1317
        %v1830 = vadd.f32 %v630, %v1318
        %v1831 = vadd.f32 %v631, %v1319
        %v1832 = vadd.f32 %v632, %v1320
        %v1833 = vadd.f32 %v633, %v1321
        %v1834 = vadd.f32 %v634, %v1322
        %v1835 = vadd.f32 %v635, %v1323
        %v1836 = vadd.f32 %v636, %v1324
        %v1837 = vadd.f32 %v637, %v1325
        %v1838 = vadd.f32 %v638, %v1326
        %v1839 = vadd.f32 %v639, %v1327
        %v1840 = vadd.f32 %v640, %v1328
        %v1841 = vadd.f32 %v641, %v1329
        %v1842 = vadd.f32 %v642, %v1330
        %v1843 = vadd.f32 %v643, %v1331
        %v1844 = vadd.f32 %v644, %v1332
        %v1845 = vadd.f32 %v645, %v1333
        %v1846 = vadd.f32 %v646, %v1334
        %v1847 = vadd.f32 %v647, %v1335
        %v1848 = vadd.f32 %v648, %v1336
        %v1849 = vadd.f32 %v649, %v1337
        %v1850 = vadd.f32 %v650, %v1338
        %v1851 = vadd.f32 %v651, %v1339
        %v1852 = vadd.f32 %v652, %v1340
        %v1853 = vadd.f32 %v653, %v1341
        %v1854 = vadd.f32 %v654, %v1342
        %v1855 = vadd.f32 %v655, %v1343
        %v1856 = vadd.f32 %v656, %v1344
        %v1857 = vadd.f32 %v657, %v1345
        %v1858 = vadd.f32 %v658, %v1346
        %v1859 = vadd.f32 %v659, %v1347
        %v1860 = vadd.f32 %v660, %v1348
        %v1861 = vadd.f32 %v661, %v1349
        %v1862 = vadd.f32 %v662, %v1350
        %v1863 = vadd.f32 %v663, %v1351
        %v1864 = vadd.f32 %v664, %v1352
        %v1865 = vadd.f32 %v665, %v1353
        %v1866 = vadd.f32 %v666, %v1354
        %v1867 = vadd.f32 %v667, %v1355
        %v1868 = vadd.f32 %v668, %v1356
        %v1869 = vadd.f32 %v669, %v1357
        %v1870 = vadd.f32 %v670, %v1358
        %v1871 = vadd.f32 %v671, %v1359
        %v1872 = vadd.f32 %v672, %v1360
        %v1873 = vadd.f32 %v673, %v1361
        %v1874 = vadd.f32 %v674, %v1362
        %v1875 = vadd.f32 %v675, %v1363
        %v1876 = vadd.f32 %v676, %v1364
        %v1877 = vadd.f32 %v677, %v1365
        %v1878 = vadd.f32 %v678, %v1366
        %v1879 = vadd.f32 %v679, %v1367
        %v1880 = vadd.f32 %v680, %v1368
        %v1881 = vadd.f32 %v681, %v1369
        %v1882 = vadd.f32 %v682, %v1370
        %v1883 = vadd.f32 %v683, %v1371
        %v1884 = vadd.f32 %v684, %v1372
        %v1885 = vadd.f32 %v685, %v1373
        %v1886 = vadd.f32 %v686, %v1374
        %v1887 = vadd.f32 %v687, %v1375
        %v1888 = vadd.f32 %v688, %v1376
        %v1889 = vadd.f32 %v689, %v1377
        %v1890 = vadd.f32 %v690, %v1378
        %v1891 = vadd.f32 %v691, %v1379
        %v1892 = vadd.f32 %v692, %v1380
        %v1893 = vadd.f32 %v693, %v1381
        %v1894 = vadd.f32 %v694, %v1382
        %v1895 = vadd.f32 %v695, %v1383
        %v1896 = vadd.f32 %v696, %v1384
        %v1897 = vadd.f32 %v697, %v1385
        %v1898 = vadd.f32 %v698, %v1386
        %v1899 = vadd.f32 %v699, %v1387
        %v1900 = vadd.f32 %v700, %v1388
        %v1901 = vadd.f32 %v701, %v1389
        %v1902 = vadd.f32 %v702, %v1390
        %v1903 = vadd.f32 %v703, %v1391
        %v1904 = vadd.f32 %v704, %v1392
        %v1905 = vadd.f32 %v705, %v1393
        %v1906 = vadd.f32 %v706, %v1394
        %v1907 = vadd.f32 %v707, %v1395
        %v1908 = vadd.f32 %v708, %v1396
        %v1909 = vadd.f32 %v709, %v1397
        %v1910 = vadd.f32 %v710, %v1398
        %v1911 = vadd.f32 %v711, %v1399
        %v1912 = vadd.f32 %v712, %v1400
        %v1913 = vadd.f32 %v713, %v1401
        %v1914 = vadd.f32 %v714, %v1402
        %v1915 = vadd.f32 %v715, %v1403
        %v1916 = vadd.f32 %v716, %v1404
        %v1917 = vadd.f32 %v717, %v1405
        %v1918 = vadd.f32 %v718, %v1406
        %v1919 = vadd.f32 %v719, %v1407
        %v1920 = vadd.f32 %v720, %v1408
        %v1921 = vadd.f32 %v721, %v1409
        %v1922 = vadd.f32 %v722, %v1410
        %v1923 = vadd.f32 %v723, %v1411
        %v1924 = vadd.f32 %v724, %v1412
        %v1925 = vadd.f32 %v725, %v1413
        %v1926 = vadd.f32 %v726, %v1414
        %v1927 = vadd.f32 %v727, %v1415
        %v1928 = vadd.f32 %v728, %v1416
        %v1929 = vadd.f32 %v729, %v1417
        %v1930 = vadd.f32 %v730, %v1418
        %v1931 = vadd.f32 %v731, %v1419
        %v1932 = vadd.f32 %v732, %v1420
        %v1933 = vadd.f32 %v733, %v1421
        %v1934 = vadd.f32 %v734, %v1422
        %v1935 = vadd.f32 %v735, %v1423
        %v1936 = vadd.f32 %v736, %v1424
        %v1937 = vadd.f32 %v737, %v1425
        %v1938 = vadd.f32 %v738, %v1426
        %v1939 = vadd.f32 %v739, %v1427
        %v1940 = vadd.f32 %v740, %v1428
        %v1941 = vadd.f32 %v741, %v1429
        %v1942 = vadd.f32 %v742, %v1430
        %v1943 = vadd.f32 %v743, %v1431
        %v1944 = vadd.f32 %v744, %v1432
        %v1945 = vadd.f32 %v745, %v1433
        %v1946 = vadd.f32 %v746, %v1434
        %v1947 = vadd.f32 %v747, %v1435
        %v1948 = vadd.f32 %v748, %v1436
        %v1949 = vadd.f32 %v749, %v1437
        %v1950 = vadd.f32 %v750, %v1438
        %v1951 = vadd.f32 %v751, %v1439
        %v1952 = vadd.f32 %v752, %v1440
        %v1953 = vadd.f32 %v753, %v1441
        %v1954 = vadd.f32 %v754, %v1442
        %v1955 = vadd.f32 %v755, %v1443
        %v1956 = vadd.f32 %v756, %v1444
        %v1957 = vadd.f32 %v757, %v1445
        %v1958 = vadd.f32 %v758, %v1446
        %v1959 = vadd.f32 %v759, %v1447
        %v1960 = vadd.f32 %v760, %v1448
        %v1961 = vadd.f32 %v761, %v1449
        %v1962 = vadd.f32 %v762, %v1450
        %v1963 = vadd.f32 %v763, %v1451
        %v1964 = vadd.f32 %v764, %v1452
        %v1965 = vadd.f32 %v765, %v1453
        %v1966 = vadd.f32 %v766, %v1454
        %v1967 = vadd.f32 %v767, %v1455
        %v1968 = vadd.f32 %v768, %v1456
        %v1969 = vadd.f32 %v769, %v1457
        %v1970 = vadd.f32 %v770, %v1458
        %v1971 = vadd.f32 %v771, %v1459
        %v1972 = vadd.f32 %v772, %v1460
        %v1973 = vadd.f32 %v773, %v1461
        %v1974 = vadd.f32 %v774, %v1462
        %v1975 = vadd.f32 %v775, %v1463
        %v1976 = vadd.f32 %v776, %v1464
        %v1977 = vadd.f32 %v777, %v1465
        %v1978 = vadd.f32 %v778, %v1466
        %v1979 = vadd.f32 %v779, %v1467
        %v1980 = vadd.f32 %v780, %v1468
        %v1981 = vadd.f32 %v781, %v1469
        %v1982 = vadd.f32 %v782, %v1470
        %v1983 = vadd.f32 %v783, %v1471
        %v1984 = vadd.f32 %v784, %v1472
        %v1985 = vadd.f32 %v785, %v1473
        %v1986 = vadd.f32 %v786, %v1474
        %v1987 = vadd.f32 %v787, %v1475
        %v1988 = vadd.f32 %v788, %v1476
        %v1989 = vadd.f32 %v789, %v1477
        %v1990 = vadd.f32 %v790, %v1478
        %v1991 = vadd.f32 %v791, %v1479
        %v1992 = vadd.f32 %v792, %v1480
        %v1993 = vadd.f32 %v793, %v1481
        %v1994 = vadd.f32 %v794, %v1482
        %v1995 = vadd.f32 %v795, %v1483
        %v1996 = vadd.f32 %v796, %v1484
        %v1997 = vadd.f32 %v797, %v1485
        %v1998 = vadd.f32 %v798, %v1486
        %v1999 = vadd.f32 %v799, %v1487
        %v2000 = vadd.f32 %v800, %v1488
        %v2001 = vadd.f32 %v801, %v1489
        %v2002 = vadd.f32 %v802, %v1490
        %v2003 = vadd.f32 %v803, %v1491
        %v2004 = vadd.f32 %v804, %v1492
        %v2005 = vadd.f32 %v805, %v1493
        %v2006 = vadd.f32 %v806, %v1494
        %v2007 = vadd.f32 %v807, %v1495
        %v2008 = vadd.f32 %v808, %v1496
        %v2009 = vadd.f32 %v809, %v1497
        %v2010 = vadd.f32 %v810, %v1498
        %v2011 = vadd.f32 %v811, %v1499
        %v2012 = vadd.f32 %v812, %v1500
        %v2013 = vadd.f32 %v813, %v1501
        %v2014 = vadd.f32 %v814, %v1502
        %v2015 = vadd.f32 %v815, %v1503
        %v2016 = vadd.f32 %v816, %v1504
        %v2017 = vadd.f32 %v817, %v1505
        %v2018 = vadd.f32 %v818, %v1506
        %v2019 = vadd.f32 %v819, %v1507
        %v2020 = vadd.f32 %v820, %v1508
        %v2021 = vadd.f32 %v821, %v1509
        %v2022 = vadd.f32 %v822, %v1510
        %v2023 = vadd.f32 %v823, %v1511
        %v2024 = vadd.f32 %v824, %v1512
        %v2025 = vadd.f32 %v825, %v1513
        %v2026 = vadd.f32 %v826, %v1514
        %v2027 = vadd.f32 %v827, %v1515
        %v2028 = vadd.f32 %v828, %v1516
        %v2029 = vadd.f32 %v829, %v1517
        %v2030 = vadd.f32 %v830, %v1518
        %v2031 = vadd.f32 %v831, %v1519
        %v2032 = vadd.f32 %v832, %v1520
        %v2033 = vadd.f32 %v833, %v1521
        %v2034 = vadd.f32 %v834, %v1522
        %v2035 = vadd.f32 %v835, %v1523
        %v2036 = vadd.f32 %v836, %v1524
        %v2037 = vadd.f32 %v837, %v1525
        %v2038 = vadd.f32 %v838, %v1526
        %v2039 = vadd.f32 %v839, %v1527
        %v2040 = vadd.f32 %v840, %v1528
        %v2041 = vadd.f32 %v841, %v1529
        %v2042 = vadd.f32 %v842, %v1530
        %v2043 = vadd.f32 %v843, %v1531
        %v2044 = vadd.f32 %v844, %v1532
        %v2045 = vadd.f32 %v845, %v1533
        %v2046 = vadd.f32 %v846, %v1534
        %v2047 = vadd.f32 %v847, %v1535
        %v2048 = vadd.f32 %v848, %v1536
        %v2049 = vadd.f32 %v849, %v1537
        %v2050 = vadd.f32 %v850, %v1538
        %v2051 = vadd.f32 %v851, %v1539
        %v2052 = vadd.f32 %v852, %v1540
        %v2053 = vadd.f32 %v853, %v1541
        %v2054 = vadd.f32 %v854, %v1542
        %v2055 = vadd.f32 %v855, %v1543
        %v2056 = vadd.f32 %v856, %v1544
        %v2057 = vadd.f32 %v857, %v1545
        %v2058 = vadd.f32 %v858, %v1546
        %v2059 = vadd.f32 %v859, %v1547
        %v2060 = vadd.f32 %v860, %v1548
        %v2061 = vadd.f32 %v861, %v1549
        %v2062 = vadd.f32 %v862, %v1550
        %v2063 = vadd.f32 %v863, %v1551
        %v2064 = vadd.f32 %v864, %v1552
        %v2065 = vadd.f32 %v865, %v1553
        %v2066 = vadd.f32 %v866, %v1554
        %v2067 = vadd.f32 %v867, %v1555
        %v2068 = vadd.f32 %v868, %v1556
        %v2069 = vadd.f32 %v869, %v1557
        %v2070 = vadd.f32 %v870, %v1558
        %v2071 = vadd.f32 %v871, %v1559
        %v2072 = vadd.f32 %v872, %v1560
        %v2073 = vadd.f32 %v873, %v1561
        %v2074 = vadd.f32 %v874, %v1562
        %v2075 = vadd.f32 %v875, %v1563
        %v2076 = vadd.f32 %v876, %v1564
        %v2077 = vadd.f32 %v877, %v1565
        %v2078 = vadd.f32 %v878, %v1566
        %v2079 = vadd.f32 %v879, %v1567
        %v2080 = vadd.f32 %v880, %v1568
        %v2081 = vadd.f32 %v881, %v1569
        %v2082 = vadd.f32 %v882, %v1570
        %v2083 = vadd.f32 %v883, %v1571
        %v2084 = vadd.f32 %v884, %v1572
        %v2085 = vadd.f32 %v885, %v1573
        %v2086 = vadd.f32 %v886, %v1574
        %v2087 = vadd.f32 %v887, %v1575
        %v2088 = vadd.f32 %v888, %v1576
        %v2089 = vadd.f32 %v889, %v1577
        %v2090 = vadd.f32 %v890, %v1578
        %v2091 = vadd.f32 %v891, %v1579
        %v2092 = vadd.f32 %v892, %v1580
        %v2093 = vadd.f32 %v893, %v1581
        %v2094 = vadd.f32 %v894, %v1582
        %v2095 = vadd.f32 %v895, %v1583
        %v2096 = vadd.f32 %v896, %v1584
        %v2097 = vadd.f32 %v897, %v1585
        %v2098 = vadd.f32 %v898, %v1586
        %v2099 = vadd.f32 %v899, %v1587
        %v2100 = vadd.f32 %v900, %v1588
        %v2101 = vadd.f32 %v901, %v1589
        %v2102 = vadd.f32 %v902, %v1590
        %v2103 = vadd.f32 %v903, %v1591
        %v2104 = vadd.f32 %v904, %v1592
        %v2105 = vadd.f32 %v905, %v1593
        %v2106 = vadd.f32 %v906, %v1594
        %v2107 = vadd.f32 %v907, %v1595
        %v2108 = vadd.f32 %v908, %v1596
        %v2109 = vadd.f32 %v909, %v1597
        %v2110 = vadd.f32 %v910, %v1598
        %v2111 = vadd.f32 %v911, %v1599
        %v2112 = vadd.f32 %v912, %v1600
        %v2113 = vadd.f32 %v913, %v1601
        %v2114 = vadd.f32 %v914, %v1602
        %v2115 = vadd.f32 %v915, %v1603
        %v2116 = vadd.f32 %v916, %v1604
        %v2117 = vadd.f32 %v917, %v1605
        %v2118 = vadd.f32 %v918, %v1606
        %v2119 = vadd.f32 %v919, %v1607
        %v2120 = vadd.f32 %v920, %v1608
        %v2121 = vadd.f32 %v921, %v1609
        %v2122 = vadd.f32 %v922, %v1610
        %v2123 = vadd.f32 %v923, %v1611
        %v2124 = vadd.f32 %v924, %v1612
        %v2125 = vadd.f32 %v925, %v1613
        %v2126 = vadd.f32 %v926, %v1614
        %v2127 = vadd.f32 %v927, %v1615
        %v2128 = vadd.f32 %v928, %v1616
        %v2129 = vadd.f32 %v929, %v1617
        %v2130 = vadd.f32 %v930, %v1618
        %v2131 = vadd.f32 %v931, %v1619
        %v2132 = vadd.f32 %v932, %v1620
        %v2133 = vadd.f32 %v933, %v1621
        %v2134 = vadd.f32 %v934, %v1622
        %v2135 = vadd.f32 %v935, %v1623
        %v2136 = vadd.f32 %v936, %v1624
        %v2137 = vadd.f32 %v937, %v1625
        %v2138 = vadd.f32 %v938, %v1626
        %v2139 = vadd.f32 %v939, %v1627
        %v2140 = vadd.f32 %v940, %v1628
        %v2141 = vadd.f32 %v941, %v1629
        %v2142 = vadd.f32 %v942, %v1630
        %v2143 = vadd.f32 %v943, %v1631
        %v2144 = vadd.f32 %v944, %v1632
        %v2145 = vadd.f32 %v945, %v1633
        %v2146 = vadd.f32 %v946, %v1634
        %v2147 = vadd.f32 %v947, %v1635
        %v2148 = vadd.f32 %v948, %v1636
        %v2149 = vadd.f32 %v949, %v1637
        %v2150 = vadd.f32 %v950, %v1638
        %v2151 = vadd.f32 %v951, %v1639
        %v2152 = vadd.f32 %v952, %v1640
        %v2153 = vadd.f32 %v953, %v1641
        %v2154 = vadd.f32 %v954, %v1642
        %v2155 = vadd.f32 %v955, %v1643
        %v2156 = vadd.f32 %v956, %v1644
        %v2157 = vadd.f32 %v957, %v1645
        %2158 = vset.pattern.permute.xlu0 2
        %2159 = vperm.xlu0 %2158, %v190
        %v2160 = vpop.permute.xlu0 %2159
        %2162 = vset.pattern.permute.xlu0 2
        %2163 = vperm.xlu0 %2162, %v191
        %v2164 = vpop.permute.xlu0 %2163
        %2166 = vset.pattern.permute.xlu0 2
        %2167 = vperm.xlu0 %2166, %v192
        %v2168 = vpop.permute.xlu0 %2167
        %2170 = vset.pattern.permute.xlu0 2
        %2171 = vperm.xlu0 %2170, %v193
        %v2172 = vpop.permute.xlu0 %2171
        %2174 = vset.pattern.permute.xlu0 2
        %2175 = vperm.xlu0 %2174, %v194
        %v2176 = vpop.permute.xlu0 %2175
        %2178 = vset.pattern.permute.xlu0 2
        %2179 = vperm.xlu0 %2178, %v195
        %v2180 = vpop.permute.xlu0 %2179
        %2182 = vset.pattern.permute.xlu0 2
        %2183 = vperm.xlu0 %2182, %v196
        %v2184 = vpop.permute.xlu0 %2183
        %2186 = vset.pattern.permute.xlu0 2
        %2187 = vperm.xlu0 %2186, %v197
        %v2188 = vpop.permute.xlu0 %2187
        %2190 = vset.pattern.permute.xlu0 2
        %2191 = vperm.xlu0 %2190, %v198
        %v2192 = vpop.permute.xlu0 %2191
        %2194 = vset.pattern.permute.xlu0 2
        %2195 = vperm.xlu0 %2194, %v199
        %v2196 = vpop.permute.xlu0 %2195
        %2198 = vset.pattern.permute.xlu0 2
        %2199 = vperm.xlu0 %2198, %v200
        %v2200 = vpop.permute.xlu0 %2199
        %2202 = vset.pattern.permute.xlu0 2
        %2203 = vperm.xlu0 %2202, %v201
        %v2204 = vpop.permute.xlu0 %2203
        %2206 = vset.pattern.permute.xlu0 2
        %2207 = vperm.xlu0 %2206, %v202
        %v2208 = vpop.permute.xlu0 %2207
        %2210 = vset.pattern.permute.xlu0 2
        %2211 = vperm.xlu0 %2210, %v203
        %v2212 = vpop.permute.xlu0 %2211
        %2214 = vset.pattern.permute.xlu0 2
        %2215 = vperm.xlu0 %2214, %v204
        %v2216 = vpop.permute.xlu0 %2215
        %2218 = vset.pattern.permute.xlu0 2
        %2219 = vperm.xlu0 %2218, %v205
        %v2220 = vpop.permute.xlu0 %2219
        %2222 = vset.pattern.permute.xlu0 2
        %2223 = vperm.xlu0 %2222, %v206
        %v2224 = vpop.permute.xlu0 %2223
        %2226 = vset.pattern.permute.xlu0 2
        %2227 = vperm.xlu0 %2226, %v207
        %v2228 = vpop.permute.xlu0 %2227
        %2230 = vset.pattern.permute.xlu0 2
        %2231 = vperm.xlu0 %2230, %v208
        %v2232 = vpop.permute.xlu0 %2231
        %2234 = vset.pattern.permute.xlu0 2
        %2235 = vperm.xlu0 %2234, %v209
        %v2236 = vpop.permute.xlu0 %2235
        %2238 = vset.pattern.permute.xlu0 2
        %2239 = vperm.xlu0 %2238, %v210
        %v2240 = vpop.permute.xlu0 %2239
        %2242 = vset.pattern.permute.xlu0 2
        %2243 = vperm.xlu0 %2242, %v211
        %v2244 = vpop.permute.xlu0 %2243
        %2246 = vset.pattern.permute.xlu0 2
        %2247 = vperm.xlu0 %2246, %v212
        %v2248 = vpop.permute.xlu0 %2247
        %2250 = vset.pattern.permute.xlu0 2
        %2251 = vperm.xlu0 %2250, %v213
        %v2252 = vpop.permute.xlu0 %2251
        %2254 = vset.pattern.permute.xlu0 2
        %2255 = vperm.xlu0 %2254, %v214
        %v2256 = vpop.permute.xlu0 %2255
        %2258 = vset.pattern.permute.xlu0 2
        %2259 = vperm.xlu0 %2258, %v215
        %v2260 = vpop.permute.xlu0 %2259
        %2262 = vset.pattern.permute.xlu0 2
        %2263 = vperm.xlu0 %2262, %v216
        %v2264 = vpop.permute.xlu0 %2263
        %2266 = vset.pattern.permute.xlu0 2
        %2267 = vperm.xlu0 %2266, %v217
        %v2268 = vpop.permute.xlu0 %2267
        %2270 = vset.pattern.permute.xlu0 2
        %2271 = vperm.xlu0 %2270, %v218
        %v2272 = vpop.permute.xlu0 %2271
        %2274 = vset.pattern.permute.xlu0 2
        %2275 = vperm.xlu0 %2274, %v219
        %v2276 = vpop.permute.xlu0 %2275
        %2278 = vset.pattern.permute.xlu0 2
        %2279 = vperm.xlu0 %2278, %v220
        %v2280 = vpop.permute.xlu0 %2279
        %2282 = vset.pattern.permute.xlu0 2
        %2283 = vperm.xlu0 %2282, %v221
        %v2284 = vpop.permute.xlu0 %2283
        %v2286 = vperm.slane %v222, 2
        %v2287 = vperm.slane %v222, 6
        %v2288 = vperm.slane %v223, 2
        %v2289 = vperm.slane %v223, 6
        %v2290 = vperm.slane %v224, 2
        %v2291 = vperm.slane %v224, 6
        %v2292 = vperm.slane %v225, 2
        %v2293 = vperm.slane %v225, 6
        %v2294 = vperm.slane %v226, 2
        %v2295 = vperm.slane %v226, 6
        %v2296 = vperm.slane %v227, 2
        %v2297 = vperm.slane %v227, 6
        %v2298 = vperm.slane %v228, 2
        %v2299 = vperm.slane %v228, 6
        %v2300 = vperm.slane %v229, 2
        %v2301 = vperm.slane %v229, 6
        %v2318 = vperm.slane %v2286, 2
        %v2319 = vperm.slane %v2287, 2
        %v2320 = vperm.slane %v2288, 2
        %v2321 = vperm.slane %v2289, 2
        %v2322 = vperm.slane %v2290, 2
        %v2323 = vperm.slane %v2291, 2
        %v2324 = vperm.slane %v2292, 2
        %v2325 = vperm.slane %v2293, 2
        %v2326 = vperm.slane %v2294, 2
        %v2327 = vperm.slane %v2295, 2
        %v2328 = vperm.slane %v2296, 2
        %v2329 = vperm.slane %v2297, 2
        %v2330 = vperm.slane %v2298, 2
        %v2331 = vperm.slane %v2299, 2
        %v2332 = vperm.slane %v2300, 2
        %v2333 = vperm.slane %v2301, 2
        %v2334 = vmul.f32 %v2160, %v2318
        %v2335 = vmul.f32 %v2160, %v2319
        %v2336 = vmul.f32 %v2160, %v2320
        %v2337 = vmul.f32 %v2160, %v2321
        %v2338 = vmul.f32 %v2160, %v2322
        %v2339 = vmul.f32 %v2160, %v2323
        %v2340 = vmul.f32 %v2160, %v2324
        %v2341 = vmul.f32 %v2160, %v2325
        %v2342 = vmul.f32 %v2160, %v2326
        %v2343 = vmul.f32 %v2160, %v2327
        %v2344 = vmul.f32 %v2160, %v2328
        %v2345 = vmul.f32 %v2160, %v2329
        %v2346 = vmul.f32 %v2160, %v2330
        %v2347 = vmul.f32 %v2160, %v2331
        %v2348 = vmul.f32 %v2160, %v2332
        %v2349 = vmul.f32 %v2160, %v2333
        %v2350 = vmul.f32 %v2164, %v2318
        %v2351 = vmul.f32 %v2164, %v2319
        %v2352 = vmul.f32 %v2164, %v2320
        %v2353 = vmul.f32 %v2164, %v2321
        %v2354 = vmul.f32 %v2164, %v2322
        %v2355 = vmul.f32 %v2164, %v2323
        %v2356 = vmul.f32 %v2164, %v2324
        %v2357 = vmul.f32 %v2164, %v2325
        %v2358 = vmul.f32 %v2164, %v2326
        %v2359 = vmul.f32 %v2164, %v2327
        %v2360 = vmul.f32 %v2164, %v2328
        %v2361 = vmul.f32 %v2164, %v2329
        %v2362 = vmul.f32 %v2164, %v2330
        %v2363 = vmul.f32 %v2164, %v2331
        %v2364 = vmul.f32 %v2164, %v2332
        %v2365 = vmul.f32 %v2164, %v2333
        %v2366 = vmul.f32 %v2168, %v2318
        %v2367 = vmul.f32 %v2168, %v2319
        %v2368 = vmul.f32 %v2168, %v2320
        %v2369 = vmul.f32 %v2168, %v2321
        %v2370 = vmul.f32 %v2168, %v2322
        %v2371 = vmul.f32 %v2168, %v2323
        %v2372 = vmul.f32 %v2168, %v2324
        %v2373 = vmul.f32 %v2168, %v2325
        %v2374 = vmul.f32 %v2168, %v2326
        %v2375 = vmul.f32 %v2168, %v2327
        %v2376 = vmul.f32 %v2168, %v2328
        %v2377 = vmul.f32 %v2168, %v2329
        %v2378 = vmul.f32 %v2168, %v2330
        %v2379 = vmul.f32 %v2168, %v2331
        %v2380 = vmul.f32 %v2168, %v2332
        %v2381 = vmul.f32 %v2168, %v2333
        %v2382 = vmul.f32 %v2172, %v2318
        %v2383 = vmul.f32 %v2172, %v2319
        %v2384 = vmul.f32 %v2172, %v2320
        %v2385 = vmul.f32 %v2172, %v2321
        %v2386 = vmul.f32 %v2172, %v2322
        %v2387 = vmul.f32 %v2172, %v2323
        %v2388 = vmul.f32 %v2172, %v2324
        %v2389 = vmul.f32 %v2172, %v2325
        %v2390 = vmul.f32 %v2172, %v2326
        %v2391 = vmul.f32 %v2172, %v2327
        %v2392 = vmul.f32 %v2172, %v2328
        %v2393 = vmul.f32 %v2172, %v2329
        %v2394 = vmul.f32 %v2172, %v2330
        %v2395 = vmul.f32 %v2172, %v2331
        %v2396 = vmul.f32 %v2172, %v2332
        %v2397 = vmul.f32 %v2172, %v2333
        %v2398 = vmul.f32 %v2176, %v2318
        %v2399 = vmul.f32 %v2176, %v2319
        %v2400 = vmul.f32 %v2176, %v2320
        %v2401 = vmul.f32 %v2176, %v2321
        %v2402 = vmul.f32 %v2176, %v2322
        %v2403 = vmul.f32 %v2176, %v2323
        %v2404 = vmul.f32 %v2176, %v2324
        %v2405 = vmul.f32 %v2176, %v2325
        %v2406 = vmul.f32 %v2176, %v2326
        %v2407 = vmul.f32 %v2176, %v2327
        %v2408 = vmul.f32 %v2176, %v2328
        %v2409 = vmul.f32 %v2176, %v2329
        %v2410 = vmul.f32 %v2176, %v2330
        %v2411 = vmul.f32 %v2176, %v2331
        %v2412 = vmul.f32 %v2176, %v2332
        %v2413 = vmul.f32 %v2176, %v2333
        %v2414 = vmul.f32 %v2180, %v2318
        %v2415 = vmul.f32 %v2180, %v2319
        %v2416 = vmul.f32 %v2180, %v2320
        %v2417 = vmul.f32 %v2180, %v2321
        %v2418 = vmul.f32 %v2180, %v2322
        %v2419 = vmul.f32 %v2180, %v2323
        %v2420 = vmul.f32 %v2180, %v2324
        %v2421 = vmul.f32 %v2180, %v2325
        %v2422 = vmul.f32 %v2180, %v2326
        %v2423 = vmul.f32 %v2180, %v2327
        %v2424 = vmul.f32 %v2180, %v2328
        %v2425 = vmul.f32 %v2180, %v2329
        %v2426 = vmul.f32 %v2180, %v2330
        %v2427 = vmul.f32 %v2180, %v2331
        %v2428 = vmul.f32 %v2180, %v2332
        %v2429 = vmul.f32 %v2180, %v2333
        %v2430 = vmul.f32 %v2184, %v2318
        %v2431 = vmul.f32 %v2184, %v2319
        %v2432 = vmul.f32 %v2184, %v2320
        %v2433 = vmul.f32 %v2184, %v2321
        %v2434 = vmul.f32 %v2184, %v2322
        %v2435 = vmul.f32 %v2184, %v2323
        %v2436 = vmul.f32 %v2184, %v2324
        %v2437 = vmul.f32 %v2184, %v2325
        %v2438 = vmul.f32 %v2184, %v2326
        %v2439 = vmul.f32 %v2184, %v2327
        %v2440 = vmul.f32 %v2184, %v2328
        %v2441 = vmul.f32 %v2184, %v2329
        %v2442 = vmul.f32 %v2184, %v2330
        %v2443 = vmul.f32 %v2184, %v2331
        %v2444 = vmul.f32 %v2184, %v2332
        %v2445 = vmul.f32 %v2184, %v2333
        %v2446 = vmul.f32 %v2188, %v2318
        %v2447 = vmul.f32 %v2188, %v2319
        %v2448 = vmul.f32 %v2188, %v2320
        %v2449 = vmul.f32 %v2188, %v2321
        %v2450 = vmul.f32 %v2188, %v2322
        %v2451 = vmul.f32 %v2188, %v2323
        %v2452 = vmul.f32 %v2188, %v2324
        %v2453 = vmul.f32 %v2188, %v2325
        %v2454 = vmul.f32 %v2188, %v2326
        %v2455 = vmul.f32 %v2188, %v2327
        %v2456 = vmul.f32 %v2188, %v2328
        %v2457 = vmul.f32 %v2188, %v2329
        %v2458 = vmul.f32 %v2188, %v2330
        %v2459 = vmul.f32 %v2188, %v2331
        %v2460 = vmul.f32 %v2188, %v2332
        %v2461 = vmul.f32 %v2188, %v2333
        %v2462 = vmul.f32 %v2192, %v2318
        %v2463 = vmul.f32 %v2192, %v2319
        %v2464 = vmul.f32 %v2192, %v2320
        %v2465 = vmul.f32 %v2192, %v2321
        %v2466 = vmul.f32 %v2192, %v2322
        %v2467 = vmul.f32 %v2192, %v2323
        %v2468 = vmul.f32 %v2192, %v2324
        %v2469 = vmul.f32 %v2192, %v2325
        %v2470 = vmul.f32 %v2192, %v2326
        %v2471 = vmul.f32 %v2192, %v2327
        %v2472 = vmul.f32 %v2192, %v2328
        %v2473 = vmul.f32 %v2192, %v2329
        %v2474 = vmul.f32 %v2192, %v2330
        %v2475 = vmul.f32 %v2192, %v2331
        %v2476 = vmul.f32 %v2192, %v2332
        %v2477 = vmul.f32 %v2192, %v2333
        %v2478 = vmul.f32 %v2196, %v2318
        %v2479 = vmul.f32 %v2196, %v2319
        %v2480 = vmul.f32 %v2196, %v2320
        %v2481 = vmul.f32 %v2196, %v2321
        %v2482 = vmul.f32 %v2196, %v2322
        %v2483 = vmul.f32 %v2196, %v2323
        %v2484 = vmul.f32 %v2196, %v2324
        %v2485 = vmul.f32 %v2196, %v2325
        %v2486 = vmul.f32 %v2196, %v2326
        %v2487 = vmul.f32 %v2196, %v2327
        %v2488 = vmul.f32 %v2196, %v2328
        %v2489 = vmul.f32 %v2196, %v2329
        %v2490 = vmul.f32 %v2196, %v2330
        %v2491 = vmul.f32 %v2196, %v2331
        %v2492 = vmul.f32 %v2196, %v2332
        %v2493 = vmul.f32 %v2196, %v2333
        %v2494 = vmul.f32 %v2200, %v2318
        %v2495 = vmul.f32 %v2200, %v2319
        %v2496 = vmul.f32 %v2200, %v2320
        %v2497 = vmul.f32 %v2200, %v2321
        %v2498 = vmul.f32 %v2200, %v2322
        %v2499 = vmul.f32 %v2200, %v2323
        %v2500 = vmul.f32 %v2200, %v2324
        %v2501 = vmul.f32 %v2200, %v2325
        %v2502 = vmul.f32 %v2200, %v2326
        %v2503 = vmul.f32 %v2200, %v2327
        %v2504 = vmul.f32 %v2200, %v2328
        %v2505 = vmul.f32 %v2200, %v2329
        %v2506 = vmul.f32 %v2200, %v2330
        %v2507 = vmul.f32 %v2200, %v2331
        %v2508 = vmul.f32 %v2200, %v2332
        %v2509 = vmul.f32 %v2200, %v2333
        %v2510 = vmul.f32 %v2204, %v2318
        %v2511 = vmul.f32 %v2204, %v2319
        %v2512 = vmul.f32 %v2204, %v2320
        %v2513 = vmul.f32 %v2204, %v2321
        %v2514 = vmul.f32 %v2204, %v2322
        %v2515 = vmul.f32 %v2204, %v2323
        %v2516 = vmul.f32 %v2204, %v2324
        %v2517 = vmul.f32 %v2204, %v2325
        %v2518 = vmul.f32 %v2204, %v2326
        %v2519 = vmul.f32 %v2204, %v2327
        %v2520 = vmul.f32 %v2204, %v2328
        %v2521 = vmul.f32 %v2204, %v2329
        %v2522 = vmul.f32 %v2204, %v2330
        %v2523 = vmul.f32 %v2204, %v2331
        %v2524 = vmul.f32 %v2204, %v2332
        %v2525 = vmul.f32 %v2204, %v2333
        %v2526 = vmul.f32 %v2208, %v2318
        %v2527 = vmul.f32 %v2208, %v2319
        %v2528 = vmul.f32 %v2208, %v2320
        %v2529 = vmul.f32 %v2208, %v2321
        %v2530 = vmul.f32 %v2208, %v2322
        %v2531 = vmul.f32 %v2208, %v2323
        %v2532 = vmul.f32 %v2208, %v2324
        %v2533 = vmul.f32 %v2208, %v2325
        %v2534 = vmul.f32 %v2208, %v2326
        %v2535 = vmul.f32 %v2208, %v2327
        %v2536 = vmul.f32 %v2208, %v2328
        %v2537 = vmul.f32 %v2208, %v2329
        %v2538 = vmul.f32 %v2208, %v2330
        %v2539 = vmul.f32 %v2208, %v2331
        %v2540 = vmul.f32 %v2208, %v2332
        %v2541 = vmul.f32 %v2208, %v2333
        %v2542 = vmul.f32 %v2212, %v2318
        %v2543 = vmul.f32 %v2212, %v2319
        %v2544 = vmul.f32 %v2212, %v2320
        %v2545 = vmul.f32 %v2212, %v2321
        %v2546 = vmul.f32 %v2212, %v2322
        %v2547 = vmul.f32 %v2212, %v2323
        %v2548 = vmul.f32 %v2212, %v2324
        %v2549 = vmul.f32 %v2212, %v2325
        %v2550 = vmul.f32 %v2212, %v2326
        %v2551 = vmul.f32 %v2212, %v2327
        %v2552 = vmul.f32 %v2212, %v2328
        %v2553 = vmul.f32 %v2212, %v2329
        %v2554 = vmul.f32 %v2212, %v2330
        %v2555 = vmul.f32 %v2212, %v2331
        %v2556 = vmul.f32 %v2212, %v2332
        %v2557 = vmul.f32 %v2212, %v2333
        %v2558 = vmul.f32 %v2216, %v2318
        %v2559 = vmul.f32 %v2216, %v2319
        %v2560 = vmul.f32 %v2216, %v2320
        %v2561 = vmul.f32 %v2216, %v2321
        %v2562 = vmul.f32 %v2216, %v2322
        %v2563 = vmul.f32 %v2216, %v2323
        %v2564 = vmul.f32 %v2216, %v2324
        %v2565 = vmul.f32 %v2216, %v2325
        %v2566 = vmul.f32 %v2216, %v2326
        %v2567 = vmul.f32 %v2216, %v2327
        %v2568 = vmul.f32 %v2216, %v2328
        %v2569 = vmul.f32 %v2216, %v2329
        %v2570 = vmul.f32 %v2216, %v2330
        %v2571 = vmul.f32 %v2216, %v2331
        %v2572 = vmul.f32 %v2216, %v2332
        %v2573 = vmul.f32 %v2216, %v2333
        %v2574 = vmul.f32 %v2220, %v2318
        %v2575 = vmul.f32 %v2220, %v2319
        %v2576 = vmul.f32 %v2220, %v2320
        %v2577 = vmul.f32 %v2220, %v2321
        %v2578 = vmul.f32 %v2220, %v2322
        %v2579 = vmul.f32 %v2220, %v2323
        %v2580 = vmul.f32 %v2220, %v2324
        %v2581 = vmul.f32 %v2220, %v2325
        %v2582 = vmul.f32 %v2220, %v2326
        %v2583 = vmul.f32 %v2220, %v2327
        %v2584 = vmul.f32 %v2220, %v2328
        %v2585 = vmul.f32 %v2220, %v2329
        %v2586 = vmul.f32 %v2220, %v2330
        %v2587 = vmul.f32 %v2220, %v2331
        %v2588 = vmul.f32 %v2220, %v2332
        %v2589 = vmul.f32 %v2220, %v2333
        %v2590 = vmul.f32 %v2224, %v2318
        %v2591 = vmul.f32 %v2224, %v2319
        %v2592 = vmul.f32 %v2224, %v2320
        %v2593 = vmul.f32 %v2224, %v2321
        %v2594 = vmul.f32 %v2224, %v2322
        %v2595 = vmul.f32 %v2224, %v2323
        %v2596 = vmul.f32 %v2224, %v2324
        %v2597 = vmul.f32 %v2224, %v2325
        %v2598 = vmul.f32 %v2224, %v2326
        %v2599 = vmul.f32 %v2224, %v2327
        %v2600 = vmul.f32 %v2224, %v2328
        %v2601 = vmul.f32 %v2224, %v2329
        %v2602 = vmul.f32 %v2224, %v2330
        %v2603 = vmul.f32 %v2224, %v2331
        %v2604 = vmul.f32 %v2224, %v2332
        %v2605 = vmul.f32 %v2224, %v2333
        %v2606 = vmul.f32 %v2228, %v2318
        %v2607 = vmul.f32 %v2228, %v2319
        %v2608 = vmul.f32 %v2228, %v2320
        %v2609 = vmul.f32 %v2228, %v2321
        %v2610 = vmul.f32 %v2228, %v2322
        %v2611 = vmul.f32 %v2228, %v2323
        %v2612 = vmul.f32 %v2228, %v2324
        %v2613 = vmul.f32 %v2228, %v2325
        %v2614 = vmul.f32 %v2228, %v2326
        %v2615 = vmul.f32 %v2228, %v2327
        %v2616 = vmul.f32 %v2228, %v2328
        %v2617 = vmul.f32 %v2228, %v2329
        %v2618 = vmul.f32 %v2228, %v2330
        %v2619 = vmul.f32 %v2228, %v2331
        %v2620 = vmul.f32 %v2228, %v2332
        %v2621 = vmul.f32 %v2228, %v2333
        %v2622 = vmul.f32 %v2232, %v2318
        %v2623 = vmul.f32 %v2232, %v2319
        %v2624 = vmul.f32 %v2232, %v2320
        %v2625 = vmul.f32 %v2232, %v2321
        %v2626 = vmul.f32 %v2232, %v2322
        %v2627 = vmul.f32 %v2232, %v2323
        %v2628 = vmul.f32 %v2232, %v2324
        %v2629 = vmul.f32 %v2232, %v2325
        %v2630 = vmul.f32 %v2232, %v2326
        %v2631 = vmul.f32 %v2232, %v2327
        %v2632 = vmul.f32 %v2232, %v2328
        %v2633 = vmul.f32 %v2232, %v2329
        %v2634 = vmul.f32 %v2232, %v2330
        %v2635 = vmul.f32 %v2232, %v2331
        %v2636 = vmul.f32 %v2232, %v2332
        %v2637 = vmul.f32 %v2232, %v2333
        %v2638 = vmul.f32 %v2236, %v2318
        %v2639 = vmul.f32 %v2236, %v2319
        %v2640 = vmul.f32 %v2236, %v2320
        %v2641 = vmul.f32 %v2236, %v2321
        %v2642 = vmul.f32 %v2236, %v2322
        %v2643 = vmul.f32 %v2236, %v2323
        %v2644 = vmul.f32 %v2236, %v2324
        %v2645 = vmul.f32 %v2236, %v2325
        %v2646 = vmul.f32 %v2236, %v2326
        %v2647 = vmul.f32 %v2236, %v2327
        %v2648 = vmul.f32 %v2236, %v2328
        %v2649 = vmul.f32 %v2236, %v2329
        %v2650 = vmul.f32 %v2236, %v2330
        %v2651 = vmul.f32 %v2236, %v2331
        %v2652 = vmul.f32 %v2236, %v2332
        %v2653 = vmul.f32 %v2236, %v2333
        %v2654 = vmul.f32 %v2240, %v2318
        %v2655 = vmul.f32 %v2240, %v2319
        %v2656 = vmul.f32 %v2240, %v2320
        %v2657 = vmul.f32 %v2240, %v2321
        %v2658 = vmul.f32 %v2240, %v2322
        %v2659 = vmul.f32 %v2240, %v2323
        %v2660 = vmul.f32 %v2240, %v2324
        %v2661 = vmul.f32 %v2240, %v2325
        %v2662 = vmul.f32 %v2240, %v2326
        %v2663 = vmul.f32 %v2240, %v2327
        %v2664 = vmul.f32 %v2240, %v2328
        %v2665 = vmul.f32 %v2240, %v2329
        %v2666 = vmul.f32 %v2240, %v2330
        %v2667 = vmul.f32 %v2240, %v2331
        %v2668 = vmul.f32 %v2240, %v2332
        %v2669 = vmul.f32 %v2240, %v2333
        %v2670 = vmul.f32 %v2244, %v2318
        %v2671 = vmul.f32 %v2244, %v2319
        %v2672 = vmul.f32 %v2244, %v2320
        %v2673 = vmul.f32 %v2244, %v2321
        %v2674 = vmul.f32 %v2244, %v2322
        %v2675 = vmul.f32 %v2244, %v2323
        %v2676 = vmul.f32 %v2244, %v2324
        %v2677 = vmul.f32 %v2244, %v2325
        %v2678 = vmul.f32 %v2244, %v2326
        %v2679 = vmul.f32 %v2244, %v2327
        %v2680 = vmul.f32 %v2244, %v2328
        %v2681 = vmul.f32 %v2244, %v2329
        %v2682 = vmul.f32 %v2244, %v2330
        %v2683 = vmul.f32 %v2244, %v2331
        %v2684 = vmul.f32 %v2244, %v2332
        %v2685 = vmul.f32 %v2244, %v2333
        %v2686 = vmul.f32 %v2248, %v2318
        %v2687 = vmul.f32 %v2248, %v2319
        %v2688 = vmul.f32 %v2248, %v2320
        %v2689 = vmul.f32 %v2248, %v2321
        %v2690 = vmul.f32 %v2248, %v2322
        %v2691 = vmul.f32 %v2248, %v2323
        %v2692 = vmul.f32 %v2248, %v2324
        %v2693 = vmul.f32 %v2248, %v2325
        %v2694 = vmul.f32 %v2248, %v2326
        %v2695 = vmul.f32 %v2248, %v2327
        %v2696 = vmul.f32 %v2248, %v2328
        %v2697 = vmul.f32 %v2248, %v2329
        %v2698 = vmul.f32 %v2248, %v2330
        %v2699 = vmul.f32 %v2248, %v2331
        %v2700 = vmul.f32 %v2248, %v2332
        %v2701 = vmul.f32 %v2248, %v2333
        %v2702 = vmul.f32 %v2252, %v2318
        %v2703 = vmul.f32 %v2252, %v2319
        %v2704 = vmul.f32 %v2252, %v2320
        %v2705 = vmul.f32 %v2252, %v2321
        %v2706 = vmul.f32 %v2252, %v2322
        %v2707 = vmul.f32 %v2252, %v2323
        %v2708 = vmul.f32 %v2252, %v2324
        %v2709 = vmul.f32 %v2252, %v2325
        %v2710 = vmul.f32 %v2252, %v2326
        %v2711 = vmul.f32 %v2252, %v2327
        %v2712 = vmul.f32 %v2252, %v2328
        %v2713 = vmul.f32 %v2252, %v2329
        %v2714 = vmul.f32 %v2252, %v2330
        %v2715 = vmul.f32 %v2252, %v2331
        %v2716 = vmul.f32 %v2252, %v2332
        %v2717 = vmul.f32 %v2252, %v2333
        %v2718 = vmul.f32 %v2256, %v2318
        %v2719 = vmul.f32 %v2256, %v2319
        %v2720 = vmul.f32 %v2256, %v2320
        %v2721 = vmul.f32 %v2256, %v2321
        %v2722 = vmul.f32 %v2256, %v2322
        %v2723 = vmul.f32 %v2256, %v2323
        %v2724 = vmul.f32 %v2256, %v2324
        %v2725 = vmul.f32 %v2256, %v2325
        %v2726 = vmul.f32 %v2256, %v2326
        %v2727 = vmul.f32 %v2256, %v2327
        %v2728 = vmul.f32 %v2256, %v2328
        %v2729 = vmul.f32 %v2256, %v2329
        %v2730 = vmul.f32 %v2256, %v2330
        %v2731 = vmul.f32 %v2256, %v2331
        %v2732 = vmul.f32 %v2256, %v2332
        %v2733 = vmul.f32 %v2256, %v2333
        %v2734 = vmul.f32 %v2260, %v2318
        %v2735 = vmul.f32 %v2260, %v2319
        %v2736 = vmul.f32 %v2260, %v2320
        %v2737 = vmul.f32 %v2260, %v2321
        %v2738 = vmul.f32 %v2260, %v2322
        %v2739 = vmul.f32 %v2260, %v2323
        %v2740 = vmul.f32 %v2260, %v2324
        %v2741 = vmul.f32 %v2260, %v2325
        %v2742 = vmul.f32 %v2260, %v2326
        %v2743 = vmul.f32 %v2260, %v2327
        %v2744 = vmul.f32 %v2260, %v2328
        %v2745 = vmul.f32 %v2260, %v2329
        %v2746 = vmul.f32 %v2260, %v2330
        %v2747 = vmul.f32 %v2260, %v2331
        %v2748 = vmul.f32 %v2260, %v2332
        %v2749 = vmul.f32 %v2260, %v2333
        %v2750 = vmul.f32 %v2264, %v2318
        %v2751 = vmul.f32 %v2264, %v2319
        %v2752 = vmul.f32 %v2264, %v2320
        %v2753 = vmul.f32 %v2264, %v2321
        %v2754 = vmul.f32 %v2264, %v2322
        %v2755 = vmul.f32 %v2264, %v2323
        %v2756 = vmul.f32 %v2264, %v2324
        %v2757 = vmul.f32 %v2264, %v2325
        %v2758 = vmul.f32 %v2264, %v2326
        %v2759 = vmul.f32 %v2264, %v2327
        %v2760 = vmul.f32 %v2264, %v2328
        %v2761 = vmul.f32 %v2264, %v2329
        %v2762 = vmul.f32 %v2264, %v2330
        %v2763 = vmul.f32 %v2264, %v2331
        %v2764 = vmul.f32 %v2264, %v2332
        %v2765 = vmul.f32 %v2264, %v2333
        %v2766 = vmul.f32 %v2268, %v2318
        %v2767 = vmul.f32 %v2268, %v2319
        %v2768 = vmul.f32 %v2268, %v2320
        %v2769 = vmul.f32 %v2268, %v2321
        %v2770 = vmul.f32 %v2268, %v2322
        %v2771 = vmul.f32 %v2268, %v2323
        %v2772 = vmul.f32 %v2268, %v2324
        %v2773 = vmul.f32 %v2268, %v2325
        %v2774 = vmul.f32 %v2268, %v2326
        %v2775 = vmul.f32 %v2268, %v2327
        %v2776 = vmul.f32 %v2268, %v2328
        %v2777 = vmul.f32 %v2268, %v2329
        %v2778 = vmul.f32 %v2268, %v2330
        %v2779 = vmul.f32 %v2268, %v2331
        %v2780 = vmul.f32 %v2268, %v2332
        %v2781 = vmul.f32 %v2268, %v2333
        %v2782 = vmul.f32 %v2272, %v2318
        %v2783 = vmul.f32 %v2272, %v2319
        %v2784 = vmul.f32 %v2272, %v2320
        %v2785 = vmul.f32 %v2272, %v2321
        %v2786 = vmul.f32 %v2272, %v2322
        %v2787 = vmul.f32 %v2272, %v2323
        %v2788 = vmul.f32 %v2272, %v2324
        %v2789 = vmul.f32 %v2272, %v2325
        %v2790 = vmul.f32 %v2272, %v2326
        %v2791 = vmul.f32 %v2272, %v2327
        %v2792 = vmul.f32 %v2272, %v2328
        %v2793 = vmul.f32 %v2272, %v2329
        %v2794 = vmul.f32 %v2272, %v2330
        %v2795 = vmul.f32 %v2272, %v2331
        %v2796 = vmul.f32 %v2272, %v2332
        %v2797 = vmul.f32 %v2272, %v2333
        %v2798 = vmul.f32 %v2276, %v2318
        %v2799 = vmul.f32 %v2276, %v2319
        %v2800 = vmul.f32 %v2276, %v2320
        %v2801 = vmul.f32 %v2276, %v2321
        %v2802 = vmul.f32 %v2276, %v2322
        %v2803 = vmul.f32 %v2276, %v2323
        %v2804 = vmul.f32 %v2276, %v2324
        %v2805 = vmul.f32 %v2276, %v2325
        %v2806 = vmul.f32 %v2276, %v2326
        %v2807 = vmul.f32 %v2276, %v2327
        %v2808 = vmul.f32 %v2276, %v2328
        %v2809 = vmul.f32 %v2276, %v2329
        %v2810 = vmul.f32 %v2276, %v2330
        %v2811 = vmul.f32 %v2276, %v2331
        %v2812 = vmul.f32 %v2276, %v2332
        %v2813 = vmul.f32 %v2276, %v2333
        %v2814 = vmul.f32 %v2280, %v2318
        %v2815 = vmul.f32 %v2280, %v2319
        %v2816 = vmul.f32 %v2280, %v2320
        %v2817 = vmul.f32 %v2280, %v2321
        %v2818 = vmul.f32 %v2280, %v2322
        %v2819 = vmul.f32 %v2280, %v2323
        %v2820 = vmul.f32 %v2280, %v2324
        %v2821 = vmul.f32 %v2280, %v2325
        %v2822 = vmul.f32 %v2280, %v2326
        %v2823 = vmul.f32 %v2280, %v2327
        %v2824 = vmul.f32 %v2280, %v2328
        %v2825 = vmul.f32 %v2280, %v2329
        %v2826 = vmul.f32 %v2280, %v2330
        %v2827 = vmul.f32 %v2280, %v2331
        %v2828 = vmul.f32 %v2280, %v2332
        %v2829 = vmul.f32 %v2280, %v2333
        %v2830 = vmul.f32 %v2284, %v2318
        %v2831 = vmul.f32 %v2284, %v2319
        %v2832 = vmul.f32 %v2284, %v2320
        %v2833 = vmul.f32 %v2284, %v2321
        %v2834 = vmul.f32 %v2284, %v2322
        %v2835 = vmul.f32 %v2284, %v2323
        %v2836 = vmul.f32 %v2284, %v2324
        %v2837 = vmul.f32 %v2284, %v2325
        %v2838 = vmul.f32 %v2284, %v2326
        %v2839 = vmul.f32 %v2284, %v2327
        %v2840 = vmul.f32 %v2284, %v2328
        %v2841 = vmul.f32 %v2284, %v2329
        %v2842 = vmul.f32 %v2284, %v2330
        %v2843 = vmul.f32 %v2284, %v2331
        %v2844 = vmul.f32 %v2284, %v2332
        %v2845 = vmul.f32 %v2284, %v2333
        %v2846 = vadd.f32 %v1646, %v2334
        %v2847 = vadd.f32 %v1647, %v2335
        %v2848 = vadd.f32 %v1648, %v2336
        %v2849 = vadd.f32 %v1649, %v2337
        %v2850 = vadd.f32 %v1650, %v2338
        %v2851 = vadd.f32 %v1651, %v2339
        %v2852 = vadd.f32 %v1652, %v2340
        %v2853 = vadd.f32 %v1653, %v2341
        %v2854 = vadd.f32 %v1654, %v2342
        %v2855 = vadd.f32 %v1655, %v2343
        %v2856 = vadd.f32 %v1656, %v2344
        %v2857 = vadd.f32 %v1657, %v2345
        %v2858 = vadd.f32 %v1658, %v2346
        %v2859 = vadd.f32 %v1659, %v2347
        %v2860 = vadd.f32 %v1660, %v2348
        %v2861 = vadd.f32 %v1661, %v2349
        %v2862 = vadd.f32 %v1662, %v2350
        %v2863 = vadd.f32 %v1663, %v2351
        %v2864 = vadd.f32 %v1664, %v2352
        %v2865 = vadd.f32 %v1665, %v2353
        %v2866 = vadd.f32 %v1666, %v2354
        %v2867 = vadd.f32 %v1667, %v2355
        %v2868 = vadd.f32 %v1668, %v2356
        %v2869 = vadd.f32 %v1669, %v2357
        %v2870 = vadd.f32 %v1670, %v2358
        %v2871 = vadd.f32 %v1671, %v2359
        %v2872 = vadd.f32 %v1672, %v2360
        %v2873 = vadd.f32 %v1673, %v2361
        %v2874 = vadd.f32 %v1674, %v2362
        %v2875 = vadd.f32 %v1675, %v2363
        %v2876 = vadd.f32 %v1676, %v2364
        %v2877 = vadd.f32 %v1677, %v2365
        %v2878 = vadd.f32 %v1678, %v2366
        %v2879 = vadd.f32 %v1679, %v2367
        %v2880 = vadd.f32 %v1680, %v2368
        %v2881 = vadd.f32 %v1681, %v2369
        %v2882 = vadd.f32 %v1682, %v2370
        %v2883 = vadd.f32 %v1683, %v2371
        %v2884 = vadd.f32 %v1684, %v2372
        %v2885 = vadd.f32 %v1685, %v2373
        %v2886 = vadd.f32 %v1686, %v2374
        %v2887 = vadd.f32 %v1687, %v2375
        %v2888 = vadd.f32 %v1688, %v2376
        %v2889 = vadd.f32 %v1689, %v2377
        %v2890 = vadd.f32 %v1690, %v2378
        %v2891 = vadd.f32 %v1691, %v2379
        %v2892 = vadd.f32 %v1692, %v2380
        %v2893 = vadd.f32 %v1693, %v2381
        %v2894 = vadd.f32 %v1694, %v2382
        %v2895 = vadd.f32 %v1695, %v2383
        %v2896 = vadd.f32 %v1696, %v2384
        %v2897 = vadd.f32 %v1697, %v2385
        %v2898 = vadd.f32 %v1698, %v2386
        %v2899 = vadd.f32 %v1699, %v2387
        %v2900 = vadd.f32 %v1700, %v2388
        %v2901 = vadd.f32 %v1701, %v2389
        %v2902 = vadd.f32 %v1702, %v2390
        %v2903 = vadd.f32 %v1703, %v2391
        %v2904 = vadd.f32 %v1704, %v2392
        %v2905 = vadd.f32 %v1705, %v2393
        %v2906 = vadd.f32 %v1706, %v2394
        %v2907 = vadd.f32 %v1707, %v2395
        %v2908 = vadd.f32 %v1708, %v2396
        %v2909 = vadd.f32 %v1709, %v2397
        %v2910 = vadd.f32 %v1710, %v2398
        %v2911 = vadd.f32 %v1711, %v2399
        %v2912 = vadd.f32 %v1712, %v2400
        %v2913 = vadd.f32 %v1713, %v2401
        %v2914 = vadd.f32 %v1714, %v2402
        %v2915 = vadd.f32 %v1715, %v2403
        %v2916 = vadd.f32 %v1716, %v2404
        %v2917 = vadd.f32 %v1717, %v2405
        %v2918 = vadd.f32 %v1718, %v2406
        %v2919 = vadd.f32 %v1719, %v2407
        %v2920 = vadd.f32 %v1720, %v2408
        %v2921 = vadd.f32 %v1721, %v2409
        %v2922 = vadd.f32 %v1722, %v2410
        %v2923 = vadd.f32 %v1723, %v2411
        %v2924 = vadd.f32 %v1724, %v2412
        %v2925 = vadd.f32 %v1725, %v2413
        %v2926 = vadd.f32 %v1726, %v2414
        %v2927 = vadd.f32 %v1727, %v2415
        %v2928 = vadd.f32 %v1728, %v2416
        %v2929 = vadd.f32 %v1729, %v2417
        %v2930 = vadd.f32 %v1730, %v2418
        %v2931 = vadd.f32 %v1731, %v2419
        %v2932 = vadd.f32 %v1732, %v2420
        %v2933 = vadd.f32 %v1733, %v2421
        %v2934 = vadd.f32 %v1734, %v2422
        %v2935 = vadd.f32 %v1735, %v2423
        %v2936 = vadd.f32 %v1736, %v2424
        %v2937 = vadd.f32 %v1737, %v2425
        %v2938 = vadd.f32 %v1738, %v2426
        %v2939 = vadd.f32 %v1739, %v2427
        %v2940 = vadd.f32 %v1740, %v2428
        %v2941 = vadd.f32 %v1741, %v2429
        %v2942 = vadd.f32 %v1742, %v2430
        %v2943 = vadd.f32 %v1743, %v2431
        %v2944 = vadd.f32 %v1744, %v2432
        %v2945 = vadd.f32 %v1745, %v2433
        %v2946 = vadd.f32 %v1746, %v2434
        %v2947 = vadd.f32 %v1747, %v2435
        %v2948 = vadd.f32 %v1748, %v2436
        %v2949 = vadd.f32 %v1749, %v2437
        %v2950 = vadd.f32 %v1750, %v2438
        %v2951 = vadd.f32 %v1751, %v2439
        %v2952 = vadd.f32 %v1752, %v2440
        %v2953 = vadd.f32 %v1753, %v2441
        %v2954 = vadd.f32 %v1754, %v2442
        %v2955 = vadd.f32 %v1755, %v2443
        %v2956 = vadd.f32 %v1756, %v2444
        %v2957 = vadd.f32 %v1757, %v2445
        %v2958 = vadd.f32 %v1758, %v2446
        %v2959 = vadd.f32 %v1759, %v2447
        %v2960 = vadd.f32 %v1760, %v2448
        %v2961 = vadd.f32 %v1761, %v2449
        %v2962 = vadd.f32 %v1762, %v2450
        %v2963 = vadd.f32 %v1763, %v2451
        %v2964 = vadd.f32 %v1764, %v2452
        %v2965 = vadd.f32 %v1765, %v2453
        %v2966 = vadd.f32 %v1766, %v2454
        %v2967 = vadd.f32 %v1767, %v2455
        %v2968 = vadd.f32 %v1768, %v2456
        %v2969 = vadd.f32 %v1769, %v2457
        %v2970 = vadd.f32 %v1770, %v2458
        %v2971 = vadd.f32 %v1771, %v2459
        %v2972 = vadd.f32 %v1772, %v2460
        %v2973 = vadd.f32 %v1773, %v2461
        %v2974 = vadd.f32 %v1774, %v2462
        %v2975 = vadd.f32 %v1775, %v2463
        %v2976 = vadd.f32 %v1776, %v2464
        %v2977 = vadd.f32 %v1777, %v2465
        %v2978 = vadd.f32 %v1778, %v2466
        %v2979 = vadd.f32 %v1779, %v2467
        %v2980 = vadd.f32 %v1780, %v2468
        %v2981 = vadd.f32 %v1781, %v2469
        %v2982 = vadd.f32 %v1782, %v2470
        %v2983 = vadd.f32 %v1783, %v2471
        %v2984 = vadd.f32 %v1784, %v2472
        %v2985 = vadd.f32 %v1785, %v2473
        %v2986 = vadd.f32 %v1786, %v2474
        %v2987 = vadd.f32 %v1787, %v2475
        %v2988 = vadd.f32 %v1788, %v2476
        %v2989 = vadd.f32 %v1789, %v2477
        %v2990 = vadd.f32 %v1790, %v2478
        %v2991 = vadd.f32 %v1791, %v2479
        %v2992 = vadd.f32 %v1792, %v2480
        %v2993 = vadd.f32 %v1793, %v2481
        %v2994 = vadd.f32 %v1794, %v2482
        %v2995 = vadd.f32 %v1795, %v2483
        %v2996 = vadd.f32 %v1796, %v2484
        %v2997 = vadd.f32 %v1797, %v2485
        %v2998 = vadd.f32 %v1798, %v2486
        %v2999 = vadd.f32 %v1799, %v2487
        %v3000 = vadd.f32 %v1800, %v2488
        %v3001 = vadd.f32 %v1801, %v2489
        %v3002 = vadd.f32 %v1802, %v2490
        %v3003 = vadd.f32 %v1803, %v2491
        %v3004 = vadd.f32 %v1804, %v2492
        %v3005 = vadd.f32 %v1805, %v2493
        %v3006 = vadd.f32 %v1806, %v2494
        %v3007 = vadd.f32 %v1807, %v2495
        %v3008 = vadd.f32 %v1808, %v2496
        %v3009 = vadd.f32 %v1809, %v2497
        %v3010 = vadd.f32 %v1810, %v2498
        %v3011 = vadd.f32 %v1811, %v2499
        %v3012 = vadd.f32 %v1812, %v2500
        %v3013 = vadd.f32 %v1813, %v2501
        %v3014 = vadd.f32 %v1814, %v2502
        %v3015 = vadd.f32 %v1815, %v2503
        %v3016 = vadd.f32 %v1816, %v2504
        %v3017 = vadd.f32 %v1817, %v2505
        %v3018 = vadd.f32 %v1818, %v2506
        %v3019 = vadd.f32 %v1819, %v2507
        %v3020 = vadd.f32 %v1820, %v2508
        %v3021 = vadd.f32 %v1821, %v2509
        %v3022 = vadd.f32 %v1822, %v2510
        %v3023 = vadd.f32 %v1823, %v2511
        %v3024 = vadd.f32 %v1824, %v2512
        %v3025 = vadd.f32 %v1825, %v2513
        %v3026 = vadd.f32 %v1826, %v2514
        %v3027 = vadd.f32 %v1827, %v2515
        %v3028 = vadd.f32 %v1828, %v2516
        %v3029 = vadd.f32 %v1829, %v2517
        %v3030 = vadd.f32 %v1830, %v2518
        %v3031 = vadd.f32 %v1831, %v2519
        %v3032 = vadd.f32 %v1832, %v2520
        %v3033 = vadd.f32 %v1833, %v2521
        %v3034 = vadd.f32 %v1834, %v2522
        %v3035 = vadd.f32 %v1835, %v2523
        %v3036 = vadd.f32 %v1836, %v2524
        %v3037 = vadd.f32 %v1837, %v2525
        %v3038 = vadd.f32 %v1838, %v2526
        %v3039 = vadd.f32 %v1839, %v2527
        %v3040 = vadd.f32 %v1840, %v2528
        %v3041 = vadd.f32 %v1841, %v2529
        %v3042 = vadd.f32 %v1842, %v2530
        %v3043 = vadd.f32 %v1843, %v2531
        %v3044 = vadd.f32 %v1844, %v2532
        %v3045 = vadd.f32 %v1845, %v2533
        %v3046 = vadd.f32 %v1846, %v2534
        %v3047 = vadd.f32 %v1847, %v2535
        %v3048 = vadd.f32 %v1848, %v2536
        %v3049 = vadd.f32 %v1849, %v2537
        %v3050 = vadd.f32 %v1850, %v2538
        %v3051 = vadd.f32 %v1851, %v2539
        %v3052 = vadd.f32 %v1852, %v2540
        %v3053 = vadd.f32 %v1853, %v2541
        %v3054 = vadd.f32 %v1854, %v2542
        %v3055 = vadd.f32 %v1855, %v2543
        %v3056 = vadd.f32 %v1856, %v2544
        %v3057 = vadd.f32 %v1857, %v2545
        %v3058 = vadd.f32 %v1858, %v2546
        %v3059 = vadd.f32 %v1859, %v2547
        %v3060 = vadd.f32 %v1860, %v2548
        %v3061 = vadd.f32 %v1861, %v2549
        %v3062 = vadd.f32 %v1862, %v2550
        %v3063 = vadd.f32 %v1863, %v2551
        %v3064 = vadd.f32 %v1864, %v2552
        %v3065 = vadd.f32 %v1865, %v2553
        %v3066 = vadd.f32 %v1866, %v2554
        %v3067 = vadd.f32 %v1867, %v2555
        %v3068 = vadd.f32 %v1868, %v2556
        %v3069 = vadd.f32 %v1869, %v2557
        %v3070 = vadd.f32 %v1870, %v2558
        %v3071 = vadd.f32 %v1871, %v2559
        %v3072 = vadd.f32 %v1872, %v2560
        %v3073 = vadd.f32 %v1873, %v2561
        %v3074 = vadd.f32 %v1874, %v2562
        %v3075 = vadd.f32 %v1875, %v2563
        %v3076 = vadd.f32 %v1876, %v2564
        %v3077 = vadd.f32 %v1877, %v2565
        %v3078 = vadd.f32 %v1878, %v2566
        %v3079 = vadd.f32 %v1879, %v2567
        %v3080 = vadd.f32 %v1880, %v2568
        %v3081 = vadd.f32 %v1881, %v2569
        %v3082 = vadd.f32 %v1882, %v2570
        %v3083 = vadd.f32 %v1883, %v2571
        %v3084 = vadd.f32 %v1884, %v2572
        %v3085 = vadd.f32 %v1885, %v2573
        %v3086 = vadd.f32 %v1886, %v2574
        %v3087 = vadd.f32 %v1887, %v2575
        %v3088 = vadd.f32 %v1888, %v2576
        %v3089 = vadd.f32 %v1889, %v2577
        %v3090 = vadd.f32 %v1890, %v2578
        %v3091 = vadd.f32 %v1891, %v2579
        %v3092 = vadd.f32 %v1892, %v2580
        %v3093 = vadd.f32 %v1893, %v2581
        %v3094 = vadd.f32 %v1894, %v2582
        %v3095 = vadd.f32 %v1895, %v2583
        %v3096 = vadd.f32 %v1896, %v2584
        %v3097 = vadd.f32 %v1897, %v2585
        %v3098 = vadd.f32 %v1898, %v2586
        %v3099 = vadd.f32 %v1899, %v2587
        %v3100 = vadd.f32 %v1900, %v2588
        %v3101 = vadd.f32 %v1901, %v2589
        %v3102 = vadd.f32 %v1902, %v2590
        %v3103 = vadd.f32 %v1903, %v2591
        %v3104 = vadd.f32 %v1904, %v2592
        %v3105 = vadd.f32 %v1905, %v2593
        %v3106 = vadd.f32 %v1906, %v2594
        %v3107 = vadd.f32 %v1907, %v2595
        %v3108 = vadd.f32 %v1908, %v2596
        %v3109 = vadd.f32 %v1909, %v2597
        %v3110 = vadd.f32 %v1910, %v2598
        %v3111 = vadd.f32 %v1911, %v2599
        %v3112 = vadd.f32 %v1912, %v2600
        %v3113 = vadd.f32 %v1913, %v2601
        %v3114 = vadd.f32 %v1914, %v2602
        %v3115 = vadd.f32 %v1915, %v2603
        %v3116 = vadd.f32 %v1916, %v2604
        %v3117 = vadd.f32 %v1917, %v2605
        %v3118 = vadd.f32 %v1918, %v2606
        %v3119 = vadd.f32 %v1919, %v2607
        %v3120 = vadd.f32 %v1920, %v2608
        %v3121 = vadd.f32 %v1921, %v2609
        %v3122 = vadd.f32 %v1922, %v2610
        %v3123 = vadd.f32 %v1923, %v2611
        %v3124 = vadd.f32 %v1924, %v2612
        %v3125 = vadd.f32 %v1925, %v2613
        %v3126 = vadd.f32 %v1926, %v2614
        %v3127 = vadd.f32 %v1927, %v2615
        %v3128 = vadd.f32 %v1928, %v2616
        %v3129 = vadd.f32 %v1929, %v2617
        %v3130 = vadd.f32 %v1930, %v2618
        %v3131 = vadd.f32 %v1931, %v2619
        %v3132 = vadd.f32 %v1932, %v2620
        %v3133 = vadd.f32 %v1933, %v2621
        %v3134 = vadd.f32 %v1934, %v2622
        %v3135 = vadd.f32 %v1935, %v2623
        %v3136 = vadd.f32 %v1936, %v2624
        %v3137 = vadd.f32 %v1937, %v2625
        %v3138 = vadd.f32 %v1938, %v2626
        %v3139 = vadd.f32 %v1939, %v2627
        %v3140 = vadd.f32 %v1940, %v2628
        %v3141 = vadd.f32 %v1941, %v2629
        %v3142 = vadd.f32 %v1942, %v2630
        %v3143 = vadd.f32 %v1943, %v2631
        %v3144 = vadd.f32 %v1944, %v2632
        %v3145 = vadd.f32 %v1945, %v2633
        %v3146 = vadd.f32 %v1946, %v2634
        %v3147 = vadd.f32 %v1947, %v2635
        %v3148 = vadd.f32 %v1948, %v2636
        %v3149 = vadd.f32 %v1949, %v2637
        %v3150 = vadd.f32 %v1950, %v2638
        %v3151 = vadd.f32 %v1951, %v2639
        %v3152 = vadd.f32 %v1952, %v2640
        %v3153 = vadd.f32 %v1953, %v2641
        %v3154 = vadd.f32 %v1954, %v2642
        %v3155 = vadd.f32 %v1955, %v2643
        %v3156 = vadd.f32 %v1956, %v2644
        %v3157 = vadd.f32 %v1957, %v2645
        %v3158 = vadd.f32 %v1958, %v2646
        %v3159 = vadd.f32 %v1959, %v2647
        %v3160 = vadd.f32 %v1960, %v2648
        %v3161 = vadd.f32 %v1961, %v2649
        %v3162 = vadd.f32 %v1962, %v2650
        %v3163 = vadd.f32 %v1963, %v2651
        %v3164 = vadd.f32 %v1964, %v2652
        %v3165 = vadd.f32 %v1965, %v2653
        %v3166 = vadd.f32 %v1966, %v2654
        %v3167 = vadd.f32 %v1967, %v2655
        %v3168 = vadd.f32 %v1968, %v2656
        %v3169 = vadd.f32 %v1969, %v2657
        %v3170 = vadd.f32 %v1970, %v2658
        %v3171 = vadd.f32 %v1971, %v2659
        %v3172 = vadd.f32 %v1972, %v2660
        %v3173 = vadd.f32 %v1973, %v2661
        %v3174 = vadd.f32 %v1974, %v2662
        %v3175 = vadd.f32 %v1975, %v2663
        %v3176 = vadd.f32 %v1976, %v2664
        %v3177 = vadd.f32 %v1977, %v2665
        %v3178 = vadd.f32 %v1978, %v2666
        %v3179 = vadd.f32 %v1979, %v2667
        %v3180 = vadd.f32 %v1980, %v2668
        %v3181 = vadd.f32 %v1981, %v2669
        %v3182 = vadd.f32 %v1982, %v2670
        %v3183 = vadd.f32 %v1983, %v2671
        %v3184 = vadd.f32 %v1984, %v2672
        %v3185 = vadd.f32 %v1985, %v2673
        %v3186 = vadd.f32 %v1986, %v2674
        %v3187 = vadd.f32 %v1987, %v2675
        %v3188 = vadd.f32 %v1988, %v2676
        %v3189 = vadd.f32 %v1989, %v2677
        %v3190 = vadd.f32 %v1990, %v2678
        %v3191 = vadd.f32 %v1991, %v2679
        %v3192 = vadd.f32 %v1992, %v2680
        %v3193 = vadd.f32 %v1993, %v2681
        %v3194 = vadd.f32 %v1994, %v2682
        %v3195 = vadd.f32 %v1995, %v2683
        %v3196 = vadd.f32 %v1996, %v2684
        %v3197 = vadd.f32 %v1997, %v2685
        %v3198 = vadd.f32 %v1998, %v2686
        %v3199 = vadd.f32 %v1999, %v2687
        %v3200 = vadd.f32 %v2000, %v2688
        %v3201 = vadd.f32 %v2001, %v2689
        %v3202 = vadd.f32 %v2002, %v2690
        %v3203 = vadd.f32 %v2003, %v2691
        %v3204 = vadd.f32 %v2004, %v2692
        %v3205 = vadd.f32 %v2005, %v2693
        %v3206 = vadd.f32 %v2006, %v2694
        %v3207 = vadd.f32 %v2007, %v2695
        %v3208 = vadd.f32 %v2008, %v2696
        %v3209 = vadd.f32 %v2009, %v2697
        %v3210 = vadd.f32 %v2010, %v2698
        %v3211 = vadd.f32 %v2011, %v2699
        %v3212 = vadd.f32 %v2012, %v2700
        %v3213 = vadd.f32 %v2013, %v2701
        %v3214 = vadd.f32 %v2014, %v2702
        %v3215 = vadd.f32 %v2015, %v2703
        %v3216 = vadd.f32 %v2016, %v2704
        %v3217 = vadd.f32 %v2017, %v2705
        %v3218 = vadd.f32 %v2018, %v2706
        %v3219 = vadd.f32 %v2019, %v2707
        %v3220 = vadd.f32 %v2020, %v2708
        %v3221 = vadd.f32 %v2021, %v2709
        %v3222 = vadd.f32 %v2022, %v2710
        %v3223 = vadd.f32 %v2023, %v2711
        %v3224 = vadd.f32 %v2024, %v2712
        %v3225 = vadd.f32 %v2025, %v2713
        %v3226 = vadd.f32 %v2026, %v2714
        %v3227 = vadd.f32 %v2027, %v2715
        %v3228 = vadd.f32 %v2028, %v2716
        %v3229 = vadd.f32 %v2029, %v2717
        %v3230 = vadd.f32 %v2030, %v2718
        %v3231 = vadd.f32 %v2031, %v2719
        %v3232 = vadd.f32 %v2032, %v2720
        %v3233 = vadd.f32 %v2033, %v2721
        %v3234 = vadd.f32 %v2034, %v2722
        %v3235 = vadd.f32 %v2035, %v2723
        %v3236 = vadd.f32 %v2036, %v2724
        %v3237 = vadd.f32 %v2037, %v2725
        %v3238 = vadd.f32 %v2038, %v2726
        %v3239 = vadd.f32 %v2039, %v2727
        %v3240 = vadd.f32 %v2040, %v2728
        %v3241 = vadd.f32 %v2041, %v2729
        %v3242 = vadd.f32 %v2042, %v2730
        %v3243 = vadd.f32 %v2043, %v2731
        %v3244 = vadd.f32 %v2044, %v2732
        %v3245 = vadd.f32 %v2045, %v2733
        %v3246 = vadd.f32 %v2046, %v2734
        %v3247 = vadd.f32 %v2047, %v2735
        %v3248 = vadd.f32 %v2048, %v2736
        %v3249 = vadd.f32 %v2049, %v2737
        %v3250 = vadd.f32 %v2050, %v2738
        %v3251 = vadd.f32 %v2051, %v2739
        %v3252 = vadd.f32 %v2052, %v2740
        %v3253 = vadd.f32 %v2053, %v2741
        %v3254 = vadd.f32 %v2054, %v2742
        %v3255 = vadd.f32 %v2055, %v2743
        %v3256 = vadd.f32 %v2056, %v2744
        %v3257 = vadd.f32 %v2057, %v2745
        %v3258 = vadd.f32 %v2058, %v2746
        %v3259 = vadd.f32 %v2059, %v2747
        %v3260 = vadd.f32 %v2060, %v2748
        %v3261 = vadd.f32 %v2061, %v2749
        %v3262 = vadd.f32 %v2062, %v2750
        %v3263 = vadd.f32 %v2063, %v2751
        %v3264 = vadd.f32 %v2064, %v2752
        %v3265 = vadd.f32 %v2065, %v2753
        %v3266 = vadd.f32 %v2066, %v2754
        %v3267 = vadd.f32 %v2067, %v2755
        %v3268 = vadd.f32 %v2068, %v2756
        %v3269 = vadd.f32 %v2069, %v2757
        %v3270 = vadd.f32 %v2070, %v2758
        %v3271 = vadd.f32 %v2071, %v2759
        %v3272 = vadd.f32 %v2072, %v2760
        %v3273 = vadd.f32 %v2073, %v2761
        %v3274 = vadd.f32 %v2074, %v2762
        %v3275 = vadd.f32 %v2075, %v2763
        %v3276 = vadd.f32 %v2076, %v2764
        %v3277 = vadd.f32 %v2077, %v2765
        %v3278 = vadd.f32 %v2078, %v2766
        %v3279 = vadd.f32 %v2079, %v2767
        %v3280 = vadd.f32 %v2080, %v2768
        %v3281 = vadd.f32 %v2081, %v2769
        %v3282 = vadd.f32 %v2082, %v2770
        %v3283 = vadd.f32 %v2083, %v2771
        %v3284 = vadd.f32 %v2084, %v2772
        %v3285 = vadd.f32 %v2085, %v2773
        %v3286 = vadd.f32 %v2086, %v2774
        %v3287 = vadd.f32 %v2087, %v2775
        %v3288 = vadd.f32 %v2088, %v2776
        %v3289 = vadd.f32 %v2089, %v2777
        %v3290 = vadd.f32 %v2090, %v2778
        %v3291 = vadd.f32 %v2091, %v2779
        %v3292 = vadd.f32 %v2092, %v2780
        %v3293 = vadd.f32 %v2093, %v2781
        %v3294 = vadd.f32 %v2094, %v2782
        %v3295 = vadd.f32 %v2095, %v2783
        %v3296 = vadd.f32 %v2096, %v2784
        %v3297 = vadd.f32 %v2097, %v2785
        %v3298 = vadd.f32 %v2098, %v2786
        %v3299 = vadd.f32 %v2099, %v2787
        %v3300 = vadd.f32 %v2100, %v2788
        %v3301 = vadd.f32 %v2101, %v2789
        %v3302 = vadd.f32 %v2102, %v2790
        %v3303 = vadd.f32 %v2103, %v2791
        %v3304 = vadd.f32 %v2104, %v2792
        %v3305 = vadd.f32 %v2105, %v2793
        %v3306 = vadd.f32 %v2106, %v2794
        %v3307 = vadd.f32 %v2107, %v2795
        %v3308 = vadd.f32 %v2108, %v2796
        %v3309 = vadd.f32 %v2109, %v2797
        %v3310 = vadd.f32 %v2110, %v2798
        %v3311 = vadd.f32 %v2111, %v2799
        %v3312 = vadd.f32 %v2112, %v2800
        %v3313 = vadd.f32 %v2113, %v2801
        %v3314 = vadd.f32 %v2114, %v2802
        %v3315 = vadd.f32 %v2115, %v2803
        %v3316 = vadd.f32 %v2116, %v2804
        %v3317 = vadd.f32 %v2117, %v2805
        %v3318 = vadd.f32 %v2118, %v2806
        %v3319 = vadd.f32 %v2119, %v2807
        %v3320 = vadd.f32 %v2120, %v2808
        %v3321 = vadd.f32 %v2121, %v2809
        %v3322 = vadd.f32 %v2122, %v2810
        %v3323 = vadd.f32 %v2123, %v2811
        %v3324 = vadd.f32 %v2124, %v2812
        %v3325 = vadd.f32 %v2125, %v2813
        %v3326 = vadd.f32 %v2126, %v2814
        %v3327 = vadd.f32 %v2127, %v2815
        %v3328 = vadd.f32 %v2128, %v2816
        %v3329 = vadd.f32 %v2129, %v2817
        %v3330 = vadd.f32 %v2130, %v2818
        %v3331 = vadd.f32 %v2131, %v2819
        %v3332 = vadd.f32 %v2132, %v2820
        %v3333 = vadd.f32 %v2133, %v2821
        %v3334 = vadd.f32 %v2134, %v2822
        %v3335 = vadd.f32 %v2135, %v2823
        %v3336 = vadd.f32 %v2136, %v2824
        %v3337 = vadd.f32 %v2137, %v2825
        %v3338 = vadd.f32 %v2138, %v2826
        %v3339 = vadd.f32 %v2139, %v2827
        %v3340 = vadd.f32 %v2140, %v2828
        %v3341 = vadd.f32 %v2141, %v2829
        %v3342 = vadd.f32 %v2142, %v2830
        %v3343 = vadd.f32 %v2143, %v2831
        %v3344 = vadd.f32 %v2144, %v2832
        %v3345 = vadd.f32 %v2145, %v2833
        %v3346 = vadd.f32 %v2146, %v2834
        %v3347 = vadd.f32 %v2147, %v2835
        %v3348 = vadd.f32 %v2148, %v2836
        %v3349 = vadd.f32 %v2149, %v2837
        %v3350 = vadd.f32 %v2150, %v2838
        %v3351 = vadd.f32 %v2151, %v2839
        %v3352 = vadd.f32 %v2152, %v2840
        %v3353 = vadd.f32 %v2153, %v2841
        %v3354 = vadd.f32 %v2154, %v2842
        %v3355 = vadd.f32 %v2155, %v2843
        %v3356 = vadd.f32 %v2156, %v2844
        %v3357 = vadd.f32 %v2157, %v2845
        %3358 = vset.pattern.permute.xlu0 3
        %3359 = vperm.xlu0 %3358, %v190
        %v3360 = vpop.permute.xlu0 %3359
        %3362 = vset.pattern.permute.xlu0 3
        %3363 = vperm.xlu0 %3362, %v191
        %v3364 = vpop.permute.xlu0 %3363
        %3366 = vset.pattern.permute.xlu0 3
        %3367 = vperm.xlu0 %3366, %v192
        %v3368 = vpop.permute.xlu0 %3367
        %3370 = vset.pattern.permute.xlu0 3
        %3371 = vperm.xlu0 %3370, %v193
        %v3372 = vpop.permute.xlu0 %3371
        %3374 = vset.pattern.permute.xlu0 3
        %3375 = vperm.xlu0 %3374, %v194
        %v3376 = vpop.permute.xlu0 %3375
        %3378 = vset.pattern.permute.xlu0 3
        %3379 = vperm.xlu0 %3378, %v195
        %v3380 = vpop.permute.xlu0 %3379
        %3382 = vset.pattern.permute.xlu0 3
        %3383 = vperm.xlu0 %3382, %v196
        %v3384 = vpop.permute.xlu0 %3383
        %3386 = vset.pattern.permute.xlu0 3
        %3387 = vperm.xlu0 %3386, %v197
        %v3388 = vpop.permute.xlu0 %3387
        %3390 = vset.pattern.permute.xlu0 3
        %3391 = vperm.xlu0 %3390, %v198
        %v3392 = vpop.permute.xlu0 %3391
        %3394 = vset.pattern.permute.xlu0 3
        %3395 = vperm.xlu0 %3394, %v199
        %v3396 = vpop.permute.xlu0 %3395
        %3398 = vset.pattern.permute.xlu0 3
        %3399 = vperm.xlu0 %3398, %v200
        %v3400 = vpop.permute.xlu0 %3399
        %3402 = vset.pattern.permute.xlu0 3
        %3403 = vperm.xlu0 %3402, %v201
        %v3404 = vpop.permute.xlu0 %3403
        %3406 = vset.pattern.permute.xlu0 3
        %3407 = vperm.xlu0 %3406, %v202
        %v3408 = vpop.permute.xlu0 %3407
        %3410 = vset.pattern.permute.xlu0 3
        %3411 = vperm.xlu0 %3410, %v203
        %v3412 = vpop.permute.xlu0 %3411
        %3414 = vset.pattern.permute.xlu0 3
        %3415 = vperm.xlu0 %3414, %v204
        %v3416 = vpop.permute.xlu0 %3415
        %3418 = vset.pattern.permute.xlu0 3
        %3419 = vperm.xlu0 %3418, %v205
        %v3420 = vpop.permute.xlu0 %3419
        %3422 = vset.pattern.permute.xlu0 3
        %3423 = vperm.xlu0 %3422, %v206
        %v3424 = vpop.permute.xlu0 %3423
        %3426 = vset.pattern.permute.xlu0 3
        %3427 = vperm.xlu0 %3426, %v207
        %v3428 = vpop.permute.xlu0 %3427
        %3430 = vset.pattern.permute.xlu0 3
        %3431 = vperm.xlu0 %3430, %v208
        %v3432 = vpop.permute.xlu0 %3431
        %3434 = vset.pattern.permute.xlu0 3
        %3435 = vperm.xlu0 %3434, %v209
        %v3436 = vpop.permute.xlu0 %3435
        %3438 = vset.pattern.permute.xlu0 3
        %3439 = vperm.xlu0 %3438, %v210
        %v3440 = vpop.permute.xlu0 %3439
        %3442 = vset.pattern.permute.xlu0 3
        %3443 = vperm.xlu0 %3442, %v211
        %v3444 = vpop.permute.xlu0 %3443
        %3446 = vset.pattern.permute.xlu0 3
        %3447 = vperm.xlu0 %3446, %v212
        %v3448 = vpop.permute.xlu0 %3447
        %3450 = vset.pattern.permute.xlu0 3
        %3451 = vperm.xlu0 %3450, %v213
        %v3452 = vpop.permute.xlu0 %3451
        %3454 = vset.pattern.permute.xlu0 3
        %3455 = vperm.xlu0 %3454, %v214
        %v3456 = vpop.permute.xlu0 %3455
        %3458 = vset.pattern.permute.xlu0 3
        %3459 = vperm.xlu0 %3458, %v215
        %v3460 = vpop.permute.xlu0 %3459
        %3462 = vset.pattern.permute.xlu0 3
        %3463 = vperm.xlu0 %3462, %v216
        %v3464 = vpop.permute.xlu0 %3463
        %3466 = vset.pattern.permute.xlu0 3
        %3467 = vperm.xlu0 %3466, %v217
        %v3468 = vpop.permute.xlu0 %3467
        %3470 = vset.pattern.permute.xlu0 3
        %3471 = vperm.xlu0 %3470, %v218
        %v3472 = vpop.permute.xlu0 %3471
        %3474 = vset.pattern.permute.xlu0 3
        %3475 = vperm.xlu0 %3474, %v219
        %v3476 = vpop.permute.xlu0 %3475
        %3478 = vset.pattern.permute.xlu0 3
        %3479 = vperm.xlu0 %3478, %v220
        %v3480 = vpop.permute.xlu0 %3479
        %3482 = vset.pattern.permute.xlu0 3
        %3483 = vperm.xlu0 %3482, %v221
        %v3484 = vpop.permute.xlu0 %3483
        %v3486 = vperm.slane %v222, 3
        %v3487 = vperm.slane %v222, 7
        %v3488 = vperm.slane %v223, 3
        %v3489 = vperm.slane %v223, 7
        %v3490 = vperm.slane %v224, 3
        %v3491 = vperm.slane %v224, 7
        %v3492 = vperm.slane %v225, 3
        %v3493 = vperm.slane %v225, 7
        %v3494 = vperm.slane %v226, 3
        %v3495 = vperm.slane %v226, 7
        %v3496 = vperm.slane %v227, 3
        %v3497 = vperm.slane %v227, 7
        %v3498 = vperm.slane %v228, 3
        %v3499 = vperm.slane %v228, 7
        %v3500 = vperm.slane %v229, 3
        %v3501 = vperm.slane %v229, 7
        %v3518 = vperm.slane %v3486, 3
        %v3519 = vperm.slane %v3487, 3
        %v3520 = vperm.slane %v3488, 3
        %v3521 = vperm.slane %v3489, 3
        %v3522 = vperm.slane %v3490, 3
        %v3523 = vperm.slane %v3491, 3
        %v3524 = vperm.slane %v3492, 3
        %v3525 = vperm.slane %v3493, 3
        %v3526 = vperm.slane %v3494, 3
        %v3527 = vperm.slane %v3495, 3
        %v3528 = vperm.slane %v3496, 3
        %v3529 = vperm.slane %v3497, 3
        %v3530 = vperm.slane %v3498, 3
        %v3531 = vperm.slane %v3499, 3
        %v3532 = vperm.slane %v3500, 3
        %v3533 = vperm.slane %v3501, 3
        %v3534 = vmul.f32 %v3360, %v3518
        %v3535 = vmul.f32 %v3360, %v3519
        %v3536 = vmul.f32 %v3360, %v3520
        %v3537 = vmul.f32 %v3360, %v3521
        %v3538 = vmul.f32 %v3360, %v3522
        %v3539 = vmul.f32 %v3360, %v3523
        %v3540 = vmul.f32 %v3360, %v3524
        %v3541 = vmul.f32 %v3360, %v3525
        %v3542 = vmul.f32 %v3360, %v3526
        %v3543 = vmul.f32 %v3360, %v3527
        %v3544 = vmul.f32 %v3360, %v3528
        %v3545 = vmul.f32 %v3360, %v3529
        %v3546 = vmul.f32 %v3360, %v3530
        %v3547 = vmul.f32 %v3360, %v3531
        %v3548 = vmul.f32 %v3360, %v3532
        %v3549 = vmul.f32 %v3360, %v3533
        %v3550 = vmul.f32 %v3364, %v3518
        %v3551 = vmul.f32 %v3364, %v3519
        %v3552 = vmul.f32 %v3364, %v3520
        %v3553 = vmul.f32 %v3364, %v3521
        %v3554 = vmul.f32 %v3364, %v3522
        %v3555 = vmul.f32 %v3364, %v3523
        %v3556 = vmul.f32 %v3364, %v3524
        %v3557 = vmul.f32 %v3364, %v3525
        %v3558 = vmul.f32 %v3364, %v3526
        %v3559 = vmul.f32 %v3364, %v3527
        %v3560 = vmul.f32 %v3364, %v3528
        %v3561 = vmul.f32 %v3364, %v3529
        %v3562 = vmul.f32 %v3364, %v3530
        %v3563 = vmul.f32 %v3364, %v3531
        %v3564 = vmul.f32 %v3364, %v3532
        %v3565 = vmul.f32 %v3364, %v3533
        %v3566 = vmul.f32 %v3368, %v3518
        %v3567 = vmul.f32 %v3368, %v3519
        %v3568 = vmul.f32 %v3368, %v3520
        %v3569 = vmul.f32 %v3368, %v3521
        %v3570 = vmul.f32 %v3368, %v3522
        %v3571 = vmul.f32 %v3368, %v3523
        %v3572 = vmul.f32 %v3368, %v3524
        %v3573 = vmul.f32 %v3368, %v3525
        %v3574 = vmul.f32 %v3368, %v3526
        %v3575 = vmul.f32 %v3368, %v3527
        %v3576 = vmul.f32 %v3368, %v3528
        %v3577 = vmul.f32 %v3368, %v3529
        %v3578 = vmul.f32 %v3368, %v3530
        %v3579 = vmul.f32 %v3368, %v3531
        %v3580 = vmul.f32 %v3368, %v3532
        %v3581 = vmul.f32 %v3368, %v3533
        %v3582 = vmul.f32 %v3372, %v3518
        %v3583 = vmul.f32 %v3372, %v3519
        %v3584 = vmul.f32 %v3372, %v3520
        %v3585 = vmul.f32 %v3372, %v3521
        %v3586 = vmul.f32 %v3372, %v3522
        %v3587 = vmul.f32 %v3372, %v3523
        %v3588 = vmul.f32 %v3372, %v3524
        %v3589 = vmul.f32 %v3372, %v3525
        %v3590 = vmul.f32 %v3372, %v3526
        %v3591 = vmul.f32 %v3372, %v3527
        %v3592 = vmul.f32 %v3372, %v3528
        %v3593 = vmul.f32 %v3372, %v3529
        %v3594 = vmul.f32 %v3372, %v3530
        %v3595 = vmul.f32 %v3372, %v3531
        %v3596 = vmul.f32 %v3372, %v3532
        %v3597 = vmul.f32 %v3372, %v3533
        %v3598 = vmul.f32 %v3376, %v3518
        %v3599 = vmul.f32 %v3376, %v3519
        %v3600 = vmul.f32 %v3376, %v3520
        %v3601 = vmul.f32 %v3376, %v3521
        %v3602 = vmul.f32 %v3376, %v3522
        %v3603 = vmul.f32 %v3376, %v3523
        %v3604 = vmul.f32 %v3376, %v3524
        %v3605 = vmul.f32 %v3376, %v3525
        %v3606 = vmul.f32 %v3376, %v3526
        %v3607 = vmul.f32 %v3376, %v3527
        %v3608 = vmul.f32 %v3376, %v3528
        %v3609 = vmul.f32 %v3376, %v3529
        %v3610 = vmul.f32 %v3376, %v3530
        %v3611 = vmul.f32 %v3376, %v3531
        %v3612 = vmul.f32 %v3376, %v3532
        %v3613 = vmul.f32 %v3376, %v3533
        %v3614 = vmul.f32 %v3380, %v3518
        %v3615 = vmul.f32 %v3380, %v3519
        %v3616 = vmul.f32 %v3380, %v3520
        %v3617 = vmul.f32 %v3380, %v3521
        %v3618 = vmul.f32 %v3380, %v3522
        %v3619 = vmul.f32 %v3380, %v3523
        %v3620 = vmul.f32 %v3380, %v3524
        %v3621 = vmul.f32 %v3380, %v3525
        %v3622 = vmul.f32 %v3380, %v3526
        %v3623 = vmul.f32 %v3380, %v3527
        %v3624 = vmul.f32 %v3380, %v3528
        %v3625 = vmul.f32 %v3380, %v3529
        %v3626 = vmul.f32 %v3380, %v3530
        %v3627 = vmul.f32 %v3380, %v3531
        %v3628 = vmul.f32 %v3380, %v3532
        %v3629 = vmul.f32 %v3380, %v3533
        %v3630 = vmul.f32 %v3384, %v3518
        %v3631 = vmul.f32 %v3384, %v3519
        %v3632 = vmul.f32 %v3384, %v3520
        %v3633 = vmul.f32 %v3384, %v3521
        %v3634 = vmul.f32 %v3384, %v3522
        %v3635 = vmul.f32 %v3384, %v3523
        %v3636 = vmul.f32 %v3384, %v3524
        %v3637 = vmul.f32 %v3384, %v3525
        %v3638 = vmul.f32 %v3384, %v3526
        %v3639 = vmul.f32 %v3384, %v3527
        %v3640 = vmul.f32 %v3384, %v3528
        %v3641 = vmul.f32 %v3384, %v3529
        %v3642 = vmul.f32 %v3384, %v3530
        %v3643 = vmul.f32 %v3384, %v3531
        %v3644 = vmul.f32 %v3384, %v3532
        %v3645 = vmul.f32 %v3384, %v3533
        %v3646 = vmul.f32 %v3388, %v3518
        %v3647 = vmul.f32 %v3388, %v3519
        %v3648 = vmul.f32 %v3388, %v3520
        %v3649 = vmul.f32 %v3388, %v3521
        %v3650 = vmul.f32 %v3388, %v3522
        %v3651 = vmul.f32 %v3388, %v3523
        %v3652 = vmul.f32 %v3388, %v3524
        %v3653 = vmul.f32 %v3388, %v3525
        %v3654 = vmul.f32 %v3388, %v3526
        %v3655 = vmul.f32 %v3388, %v3527
        %v3656 = vmul.f32 %v3388, %v3528
        %v3657 = vmul.f32 %v3388, %v3529
        %v3658 = vmul.f32 %v3388, %v3530
        %v3659 = vmul.f32 %v3388, %v3531
        %v3660 = vmul.f32 %v3388, %v3532
        %v3661 = vmul.f32 %v3388, %v3533
        %v3662 = vmul.f32 %v3392, %v3518
        %v3663 = vmul.f32 %v3392, %v3519
        %v3664 = vmul.f32 %v3392, %v3520
        %v3665 = vmul.f32 %v3392, %v3521
        %v3666 = vmul.f32 %v3392, %v3522
        %v3667 = vmul.f32 %v3392, %v3523
        %v3668 = vmul.f32 %v3392, %v3524
        %v3669 = vmul.f32 %v3392, %v3525
        %v3670 = vmul.f32 %v3392, %v3526
        %v3671 = vmul.f32 %v3392, %v3527
        %v3672 = vmul.f32 %v3392, %v3528
        %v3673 = vmul.f32 %v3392, %v3529
        %v3674 = vmul.f32 %v3392, %v3530
        %v3675 = vmul.f32 %v3392, %v3531
        %v3676 = vmul.f32 %v3392, %v3532
        %v3677 = vmul.f32 %v3392, %v3533
        %v3678 = vmul.f32 %v3396, %v3518
        %v3679 = vmul.f32 %v3396, %v3519
        %v3680 = vmul.f32 %v3396, %v3520
        %v3681 = vmul.f32 %v3396, %v3521
        %v3682 = vmul.f32 %v3396, %v3522
        %v3683 = vmul.f32 %v3396, %v3523
        %v3684 = vmul.f32 %v3396, %v3524
        %v3685 = vmul.f32 %v3396, %v3525
        %v3686 = vmul.f32 %v3396, %v3526
        %v3687 = vmul.f32 %v3396, %v3527
        %v3688 = vmul.f32 %v3396, %v3528
        %v3689 = vmul.f32 %v3396, %v3529
        %v3690 = vmul.f32 %v3396, %v3530
        %v3691 = vmul.f32 %v3396, %v3531
        %v3692 = vmul.f32 %v3396, %v3532
        %v3693 = vmul.f32 %v3396, %v3533
        %v3694 = vmul.f32 %v3400, %v3518
        %v3695 = vmul.f32 %v3400, %v3519
        %v3696 = vmul.f32 %v3400, %v3520
        %v3697 = vmul.f32 %v3400, %v3521
        %v3698 = vmul.f32 %v3400, %v3522
        %v3699 = vmul.f32 %v3400, %v3523
        %v3700 = vmul.f32 %v3400, %v3524
        %v3701 = vmul.f32 %v3400, %v3525
        %v3702 = vmul.f32 %v3400, %v3526
        %v3703 = vmul.f32 %v3400, %v3527
        %v3704 = vmul.f32 %v3400, %v3528
        %v3705 = vmul.f32 %v3400, %v3529
        %v3706 = vmul.f32 %v3400, %v3530
        %v3707 = vmul.f32 %v3400, %v3531
        %v3708 = vmul.f32 %v3400, %v3532
        %v3709 = vmul.f32 %v3400, %v3533
        %v3710 = vmul.f32 %v3404, %v3518
        %v3711 = vmul.f32 %v3404, %v3519
        %v3712 = vmul.f32 %v3404, %v3520
        %v3713 = vmul.f32 %v3404, %v3521
        %v3714 = vmul.f32 %v3404, %v3522
        %v3715 = vmul.f32 %v3404, %v3523
        %v3716 = vmul.f32 %v3404, %v3524
        %v3717 = vmul.f32 %v3404, %v3525
        %v3718 = vmul.f32 %v3404, %v3526
        %v3719 = vmul.f32 %v3404, %v3527
        %v3720 = vmul.f32 %v3404, %v3528
        %v3721 = vmul.f32 %v3404, %v3529
        %v3722 = vmul.f32 %v3404, %v3530
        %v3723 = vmul.f32 %v3404, %v3531
        %v3724 = vmul.f32 %v3404, %v3532
        %v3725 = vmul.f32 %v3404, %v3533
        %v3726 = vmul.f32 %v3408, %v3518
        %v3727 = vmul.f32 %v3408, %v3519
        %v3728 = vmul.f32 %v3408, %v3520
        %v3729 = vmul.f32 %v3408, %v3521
        %v3730 = vmul.f32 %v3408, %v3522
        %v3731 = vmul.f32 %v3408, %v3523
        %v3732 = vmul.f32 %v3408, %v3524
        %v3733 = vmul.f32 %v3408, %v3525
        %v3734 = vmul.f32 %v3408, %v3526
        %v3735 = vmul.f32 %v3408, %v3527
        %v3736 = vmul.f32 %v3408, %v3528
        %v3737 = vmul.f32 %v3408, %v3529
        %v3738 = vmul.f32 %v3408, %v3530
        %v3739 = vmul.f32 %v3408, %v3531
        %v3740 = vmul.f32 %v3408, %v3532
        %v3741 = vmul.f32 %v3408, %v3533
        %v3742 = vmul.f32 %v3412, %v3518
        %v3743 = vmul.f32 %v3412, %v3519
        %v3744 = vmul.f32 %v3412, %v3520
        %v3745 = vmul.f32 %v3412, %v3521
        %v3746 = vmul.f32 %v3412, %v3522
        %v3747 = vmul.f32 %v3412, %v3523
        %v3748 = vmul.f32 %v3412, %v3524
        %v3749 = vmul.f32 %v3412, %v3525
        %v3750 = vmul.f32 %v3412, %v3526
        %v3751 = vmul.f32 %v3412, %v3527
        %v3752 = vmul.f32 %v3412, %v3528
        %v3753 = vmul.f32 %v3412, %v3529
        %v3754 = vmul.f32 %v3412, %v3530
        %v3755 = vmul.f32 %v3412, %v3531
        %v3756 = vmul.f32 %v3412, %v3532
        %v3757 = vmul.f32 %v3412, %v3533
        %v3758 = vmul.f32 %v3416, %v3518
        %v3759 = vmul.f32 %v3416, %v3519
        %v3760 = vmul.f32 %v3416, %v3520
        %v3761 = vmul.f32 %v3416, %v3521
        %v3762 = vmul.f32 %v3416, %v3522
        %v3763 = vmul.f32 %v3416, %v3523
        %v3764 = vmul.f32 %v3416, %v3524
        %v3765 = vmul.f32 %v3416, %v3525
        %v3766 = vmul.f32 %v3416, %v3526
        %v3767 = vmul.f32 %v3416, %v3527
        %v3768 = vmul.f32 %v3416, %v3528
        %v3769 = vmul.f32 %v3416, %v3529
        %v3770 = vmul.f32 %v3416, %v3530
        %v3771 = vmul.f32 %v3416, %v3531
        %v3772 = vmul.f32 %v3416, %v3532
        %v3773 = vmul.f32 %v3416, %v3533
        %v3774 = vmul.f32 %v3420, %v3518
        %v3775 = vmul.f32 %v3420, %v3519
        %v3776 = vmul.f32 %v3420, %v3520
        %v3777 = vmul.f32 %v3420, %v3521
        %v3778 = vmul.f32 %v3420, %v3522
        %v3779 = vmul.f32 %v3420, %v3523
        %v3780 = vmul.f32 %v3420, %v3524
        %v3781 = vmul.f32 %v3420, %v3525
        %v3782 = vmul.f32 %v3420, %v3526
        %v3783 = vmul.f32 %v3420, %v3527
        %v3784 = vmul.f32 %v3420, %v3528
        %v3785 = vmul.f32 %v3420, %v3529
        %v3786 = vmul.f32 %v3420, %v3530
        %v3787 = vmul.f32 %v3420, %v3531
        %v3788 = vmul.f32 %v3420, %v3532
        %v3789 = vmul.f32 %v3420, %v3533
        %v3790 = vmul.f32 %v3424, %v3518
        %v3791 = vmul.f32 %v3424, %v3519
        %v3792 = vmul.f32 %v3424, %v3520
        %v3793 = vmul.f32 %v3424, %v3521
        %v3794 = vmul.f32 %v3424, %v3522
        %v3795 = vmul.f32 %v3424, %v3523
        %v3796 = vmul.f32 %v3424, %v3524
        %v3797 = vmul.f32 %v3424, %v3525
        %v3798 = vmul.f32 %v3424, %v3526
        %v3799 = vmul.f32 %v3424, %v3527
        %v3800 = vmul.f32 %v3424, %v3528
        %v3801 = vmul.f32 %v3424, %v3529
        %v3802 = vmul.f32 %v3424, %v3530
        %v3803 = vmul.f32 %v3424, %v3531
        %v3804 = vmul.f32 %v3424, %v3532
        %v3805 = vmul.f32 %v3424, %v3533
        %v3806 = vmul.f32 %v3428, %v3518
        %v3807 = vmul.f32 %v3428, %v3519
        %v3808 = vmul.f32 %v3428, %v3520
        %v3809 = vmul.f32 %v3428, %v3521
        %v3810 = vmul.f32 %v3428, %v3522
        %v3811 = vmul.f32 %v3428, %v3523
        %v3812 = vmul.f32 %v3428, %v3524
        %v3813 = vmul.f32 %v3428, %v3525
        %v3814 = vmul.f32 %v3428, %v3526
        %v3815 = vmul.f32 %v3428, %v3527
        %v3816 = vmul.f32 %v3428, %v3528
        %v3817 = vmul.f32 %v3428, %v3529
        %v3818 = vmul.f32 %v3428, %v3530
        %v3819 = vmul.f32 %v3428, %v3531
        %v3820 = vmul.f32 %v3428, %v3532
        %v3821 = vmul.f32 %v3428, %v3533
        %v3822 = vmul.f32 %v3432, %v3518
        %v3823 = vmul.f32 %v3432, %v3519
        %v3824 = vmul.f32 %v3432, %v3520
        %v3825 = vmul.f32 %v3432, %v3521
        %v3826 = vmul.f32 %v3432, %v3522
        %v3827 = vmul.f32 %v3432, %v3523
        %v3828 = vmul.f32 %v3432, %v3524
        %v3829 = vmul.f32 %v3432, %v3525
        %v3830 = vmul.f32 %v3432, %v3526
        %v3831 = vmul.f32 %v3432, %v3527
        %v3832 = vmul.f32 %v3432, %v3528
        %v3833 = vmul.f32 %v3432, %v3529
        %v3834 = vmul.f32 %v3432, %v3530
        %v3835 = vmul.f32 %v3432, %v3531
        %v3836 = vmul.f32 %v3432, %v3532
        %v3837 = vmul.f32 %v3432, %v3533
        %v3838 = vmul.f32 %v3436, %v3518
        %v3839 = vmul.f32 %v3436, %v3519
        %v3840 = vmul.f32 %v3436, %v3520
        %v3841 = vmul.f32 %v3436, %v3521
        %v3842 = vmul.f32 %v3436, %v3522
        %v3843 = vmul.f32 %v3436, %v3523
        %v3844 = vmul.f32 %v3436, %v3524
        %v3845 = vmul.f32 %v3436, %v3525
        %v3846 = vmul.f32 %v3436, %v3526
        %v3847 = vmul.f32 %v3436, %v3527
        %v3848 = vmul.f32 %v3436, %v3528
        %v3849 = vmul.f32 %v3436, %v3529
        %v3850 = vmul.f32 %v3436, %v3530
        %v3851 = vmul.f32 %v3436, %v3531
        %v3852 = vmul.f32 %v3436, %v3532
        %v3853 = vmul.f32 %v3436, %v3533
        %v3854 = vmul.f32 %v3440, %v3518
        %v3855 = vmul.f32 %v3440, %v3519
        %v3856 = vmul.f32 %v3440, %v3520
        %v3857 = vmul.f32 %v3440, %v3521
        %v3858 = vmul.f32 %v3440, %v3522
        %v3859 = vmul.f32 %v3440, %v3523
        %v3860 = vmul.f32 %v3440, %v3524
        %v3861 = vmul.f32 %v3440, %v3525
        %v3862 = vmul.f32 %v3440, %v3526
        %v3863 = vmul.f32 %v3440, %v3527
        %v3864 = vmul.f32 %v3440, %v3528
        %v3865 = vmul.f32 %v3440, %v3529
        %v3866 = vmul.f32 %v3440, %v3530
        %v3867 = vmul.f32 %v3440, %v3531
        %v3868 = vmul.f32 %v3440, %v3532
        %v3869 = vmul.f32 %v3440, %v3533
        %v3870 = vmul.f32 %v3444, %v3518
        %v3871 = vmul.f32 %v3444, %v3519
        %v3872 = vmul.f32 %v3444, %v3520
        %v3873 = vmul.f32 %v3444, %v3521
        %v3874 = vmul.f32 %v3444, %v3522
        %v3875 = vmul.f32 %v3444, %v3523
        %v3876 = vmul.f32 %v3444, %v3524
        %v3877 = vmul.f32 %v3444, %v3525
        %v3878 = vmul.f32 %v3444, %v3526
        %v3879 = vmul.f32 %v3444, %v3527
        %v3880 = vmul.f32 %v3444, %v3528
        %v3881 = vmul.f32 %v3444, %v3529
        %v3882 = vmul.f32 %v3444, %v3530
        %v3883 = vmul.f32 %v3444, %v3531
        %v3884 = vmul.f32 %v3444, %v3532
        %v3885 = vmul.f32 %v3444, %v3533
        %v3886 = vmul.f32 %v3448, %v3518
        %v3887 = vmul.f32 %v3448, %v3519
        %v3888 = vmul.f32 %v3448, %v3520
        %v3889 = vmul.f32 %v3448, %v3521
        %v3890 = vmul.f32 %v3448, %v3522
        %v3891 = vmul.f32 %v3448, %v3523
        %v3892 = vmul.f32 %v3448, %v3524
        %v3893 = vmul.f32 %v3448, %v3525
        %v3894 = vmul.f32 %v3448, %v3526
        %v3895 = vmul.f32 %v3448, %v3527
        %v3896 = vmul.f32 %v3448, %v3528
        %v3897 = vmul.f32 %v3448, %v3529
        %v3898 = vmul.f32 %v3448, %v3530
        %v3899 = vmul.f32 %v3448, %v3531
        %v3900 = vmul.f32 %v3448, %v3532
        %v3901 = vmul.f32 %v3448, %v3533
        %v3902 = vmul.f32 %v3452, %v3518
        %v3903 = vmul.f32 %v3452, %v3519
        %v3904 = vmul.f32 %v3452, %v3520
        %v3905 = vmul.f32 %v3452, %v3521
        %v3906 = vmul.f32 %v3452, %v3522
        %v3907 = vmul.f32 %v3452, %v3523
        %v3908 = vmul.f32 %v3452, %v3524
        %v3909 = vmul.f32 %v3452, %v3525
        %v3910 = vmul.f32 %v3452, %v3526
        %v3911 = vmul.f32 %v3452, %v3527
        %v3912 = vmul.f32 %v3452, %v3528
        %v3913 = vmul.f32 %v3452, %v3529
        %v3914 = vmul.f32 %v3452, %v3530
        %v3915 = vmul.f32 %v3452, %v3531
        %v3916 = vmul.f32 %v3452, %v3532
        %v3917 = vmul.f32 %v3452, %v3533
        %v3918 = vmul.f32 %v3456, %v3518
        %v3919 = vmul.f32 %v3456, %v3519
        %v3920 = vmul.f32 %v3456, %v3520
        %v3921 = vmul.f32 %v3456, %v3521
        %v3922 = vmul.f32 %v3456, %v3522
        %v3923 = vmul.f32 %v3456, %v3523
        %v3924 = vmul.f32 %v3456, %v3524
        %v3925 = vmul.f32 %v3456, %v3525
        %v3926 = vmul.f32 %v3456, %v3526
        %v3927 = vmul.f32 %v3456, %v3527
        %v3928 = vmul.f32 %v3456, %v3528
        %v3929 = vmul.f32 %v3456, %v3529
        %v3930 = vmul.f32 %v3456, %v3530
        %v3931 = vmul.f32 %v3456, %v3531
        %v3932 = vmul.f32 %v3456, %v3532
        %v3933 = vmul.f32 %v3456, %v3533
        %v3934 = vmul.f32 %v3460, %v3518
        %v3935 = vmul.f32 %v3460, %v3519
        %v3936 = vmul.f32 %v3460, %v3520
        %v3937 = vmul.f32 %v3460, %v3521
        %v3938 = vmul.f32 %v3460, %v3522
        %v3939 = vmul.f32 %v3460, %v3523
        %v3940 = vmul.f32 %v3460, %v3524
        %v3941 = vmul.f32 %v3460, %v3525
        %v3942 = vmul.f32 %v3460, %v3526
        %v3943 = vmul.f32 %v3460, %v3527
        %v3944 = vmul.f32 %v3460, %v3528
        %v3945 = vmul.f32 %v3460, %v3529
        %v3946 = vmul.f32 %v3460, %v3530
        %v3947 = vmul.f32 %v3460, %v3531
        %v3948 = vmul.f32 %v3460, %v3532
        %v3949 = vmul.f32 %v3460, %v3533
        %v3950 = vmul.f32 %v3464, %v3518
        %v3951 = vmul.f32 %v3464, %v3519
        %v3952 = vmul.f32 %v3464, %v3520
        %v3953 = vmul.f32 %v3464, %v3521
        %v3954 = vmul.f32 %v3464, %v3522
        %v3955 = vmul.f32 %v3464, %v3523
        %v3956 = vmul.f32 %v3464, %v3524
        %v3957 = vmul.f32 %v3464, %v3525
        %v3958 = vmul.f32 %v3464, %v3526
        %v3959 = vmul.f32 %v3464, %v3527
        %v3960 = vmul.f32 %v3464, %v3528
        %v3961 = vmul.f32 %v3464, %v3529
        %v3962 = vmul.f32 %v3464, %v3530
        %v3963 = vmul.f32 %v3464, %v3531
        %v3964 = vmul.f32 %v3464, %v3532
        %v3965 = vmul.f32 %v3464, %v3533
        %v3966 = vmul.f32 %v3468, %v3518
        %v3967 = vmul.f32 %v3468, %v3519
        %v3968 = vmul.f32 %v3468, %v3520
        %v3969 = vmul.f32 %v3468, %v3521
        %v3970 = vmul.f32 %v3468, %v3522
        %v3971 = vmul.f32 %v3468, %v3523
        %v3972 = vmul.f32 %v3468, %v3524
        %v3973 = vmul.f32 %v3468, %v3525
        %v3974 = vmul.f32 %v3468, %v3526
        %v3975 = vmul.f32 %v3468, %v3527
        %v3976 = vmul.f32 %v3468, %v3528
        %v3977 = vmul.f32 %v3468, %v3529
        %v3978 = vmul.f32 %v3468, %v3530
        %v3979 = vmul.f32 %v3468, %v3531
        %v3980 = vmul.f32 %v3468, %v3532
        %v3981 = vmul.f32 %v3468, %v3533
        %v3982 = vmul.f32 %v3472, %v3518
        %v3983 = vmul.f32 %v3472, %v3519
        %v3984 = vmul.f32 %v3472, %v3520
        %v3985 = vmul.f32 %v3472, %v3521
        %v3986 = vmul.f32 %v3472, %v3522
        %v3987 = vmul.f32 %v3472, %v3523
        %v3988 = vmul.f32 %v3472, %v3524
        %v3989 = vmul.f32 %v3472, %v3525
        %v3990 = vmul.f32 %v3472, %v3526
        %v3991 = vmul.f32 %v3472, %v3527
        %v3992 = vmul.f32 %v3472, %v3528
        %v3993 = vmul.f32 %v3472, %v3529
        %v3994 = vmul.f32 %v3472, %v3530
        %v3995 = vmul.f32 %v3472, %v3531
        %v3996 = vmul.f32 %v3472, %v3532
        %v3997 = vmul.f32 %v3472, %v3533
        %v3998 = vmul.f32 %v3476, %v3518
        %v3999 = vmul.f32 %v3476, %v3519
        %v4000 = vmul.f32 %v3476, %v3520
        %v4001 = vmul.f32 %v3476, %v3521
        %v4002 = vmul.f32 %v3476, %v3522
        %v4003 = vmul.f32 %v3476, %v3523
        %v4004 = vmul.f32 %v3476, %v3524
        %v4005 = vmul.f32 %v3476, %v3525
        %v4006 = vmul.f32 %v3476, %v3526
        %v4007 = vmul.f32 %v3476, %v3527
        %v4008 = vmul.f32 %v3476, %v3528
        %v4009 = vmul.f32 %v3476, %v3529
        %v4010 = vmul.f32 %v3476, %v3530
        %v4011 = vmul.f32 %v3476, %v3531
        %v4012 = vmul.f32 %v3476, %v3532
        %v4013 = vmul.f32 %v3476, %v3533
        %v4014 = vmul.f32 %v3480, %v3518
        %v4015 = vmul.f32 %v3480, %v3519
        %v4016 = vmul.f32 %v3480, %v3520
        %v4017 = vmul.f32 %v3480, %v3521
        %v4018 = vmul.f32 %v3480, %v3522
        %v4019 = vmul.f32 %v3480, %v3523
        %v4020 = vmul.f32 %v3480, %v3524
        %v4021 = vmul.f32 %v3480, %v3525
        %v4022 = vmul.f32 %v3480, %v3526
        %v4023 = vmul.f32 %v3480, %v3527
        %v4024 = vmul.f32 %v3480, %v3528
        %v4025 = vmul.f32 %v3480, %v3529
        %v4026 = vmul.f32 %v3480, %v3530
        %v4027 = vmul.f32 %v3480, %v3531
        %v4028 = vmul.f32 %v3480, %v3532
        %v4029 = vmul.f32 %v3480, %v3533
        %v4030 = vmul.f32 %v3484, %v3518
        %v4031 = vmul.f32 %v3484, %v3519
        %v4032 = vmul.f32 %v3484, %v3520
        %v4033 = vmul.f32 %v3484, %v3521
        %v4034 = vmul.f32 %v3484, %v3522
        %v4035 = vmul.f32 %v3484, %v3523
        %v4036 = vmul.f32 %v3484, %v3524
        %v4037 = vmul.f32 %v3484, %v3525
        %v4038 = vmul.f32 %v3484, %v3526
        %v4039 = vmul.f32 %v3484, %v3527
        %v4040 = vmul.f32 %v3484, %v3528
        %v4041 = vmul.f32 %v3484, %v3529
        %v4042 = vmul.f32 %v3484, %v3530
        %v4043 = vmul.f32 %v3484, %v3531
        %v4044 = vmul.f32 %v3484, %v3532
        %v4045 = vmul.f32 %v3484, %v3533
        %v4046 = vadd.f32 %v2846, %v3534
        %v4047 = vadd.f32 %v2847, %v3535
        %v4048 = vadd.f32 %v2848, %v3536
        %v4049 = vadd.f32 %v2849, %v3537
        %v4050 = vadd.f32 %v2850, %v3538
        %v4051 = vadd.f32 %v2851, %v3539
        %v4052 = vadd.f32 %v2852, %v3540
        %v4053 = vadd.f32 %v2853, %v3541
        %v4054 = vadd.f32 %v2854, %v3542
        %v4055 = vadd.f32 %v2855, %v3543
        %v4056 = vadd.f32 %v2856, %v3544
        %v4057 = vadd.f32 %v2857, %v3545
        %v4058 = vadd.f32 %v2858, %v3546
        %v4059 = vadd.f32 %v2859, %v3547
        %v4060 = vadd.f32 %v2860, %v3548
        %v4061 = vadd.f32 %v2861, %v3549
        %v4062 = vadd.f32 %v2862, %v3550
        %v4063 = vadd.f32 %v2863, %v3551
        %v4064 = vadd.f32 %v2864, %v3552
        %v4065 = vadd.f32 %v2865, %v3553
        %v4066 = vadd.f32 %v2866, %v3554
        %v4067 = vadd.f32 %v2867, %v3555
        %v4068 = vadd.f32 %v2868, %v3556
        %v4069 = vadd.f32 %v2869, %v3557
        %v4070 = vadd.f32 %v2870, %v3558
        %v4071 = vadd.f32 %v2871, %v3559
        %v4072 = vadd.f32 %v2872, %v3560
        %v4073 = vadd.f32 %v2873, %v3561
        %v4074 = vadd.f32 %v2874, %v3562
        %v4075 = vadd.f32 %v2875, %v3563
        %v4076 = vadd.f32 %v2876, %v3564
        %v4077 = vadd.f32 %v2877, %v3565
        %v4078 = vadd.f32 %v2878, %v3566
        %v4079 = vadd.f32 %v2879, %v3567
        %v4080 = vadd.f32 %v2880, %v3568
        %v4081 = vadd.f32 %v2881, %v3569
        %v4082 = vadd.f32 %v2882, %v3570
        %v4083 = vadd.f32 %v2883, %v3571
        %v4084 = vadd.f32 %v2884, %v3572
        %v4085 = vadd.f32 %v2885, %v3573
        %v4086 = vadd.f32 %v2886, %v3574
        %v4087 = vadd.f32 %v2887, %v3575
        %v4088 = vadd.f32 %v2888, %v3576
        %v4089 = vadd.f32 %v2889, %v3577
        %v4090 = vadd.f32 %v2890, %v3578
        %v4091 = vadd.f32 %v2891, %v3579
        %v4092 = vadd.f32 %v2892, %v3580
        %v4093 = vadd.f32 %v2893, %v3581
        %v4094 = vadd.f32 %v2894, %v3582
        %v4095 = vadd.f32 %v2895, %v3583
        %v4096 = vadd.f32 %v2896, %v3584
        %v4097 = vadd.f32 %v2897, %v3585
        %v4098 = vadd.f32 %v2898, %v3586
        %v4099 = vadd.f32 %v2899, %v3587
        %v4100 = vadd.f32 %v2900, %v3588
        %v4101 = vadd.f32 %v2901, %v3589
        %v4102 = vadd.f32 %v2902, %v3590
        %v4103 = vadd.f32 %v2903, %v3591
        %v4104 = vadd.f32 %v2904, %v3592
        %v4105 = vadd.f32 %v2905, %v3593
        %v4106 = vadd.f32 %v2906, %v3594
        %v4107 = vadd.f32 %v2907, %v3595
        %v4108 = vadd.f32 %v2908, %v3596
        %v4109 = vadd.f32 %v2909, %v3597
        %v4110 = vadd.f32 %v2910, %v3598
        %v4111 = vadd.f32 %v2911, %v3599
        %v4112 = vadd.f32 %v2912, %v3600
        %v4113 = vadd.f32 %v2913, %v3601
        %v4114 = vadd.f32 %v2914, %v3602
        %v4115 = vadd.f32 %v2915, %v3603
        %v4116 = vadd.f32 %v2916, %v3604
        %v4117 = vadd.f32 %v2917, %v3605
        %v4118 = vadd.f32 %v2918, %v3606
        %v4119 = vadd.f32 %v2919, %v3607
        %v4120 = vadd.f32 %v2920, %v3608
        %v4121 = vadd.f32 %v2921, %v3609
        %v4122 = vadd.f32 %v2922, %v3610
        %v4123 = vadd.f32 %v2923, %v3611
        %v4124 = vadd.f32 %v2924, %v3612
        %v4125 = vadd.f32 %v2925, %v3613
        %v4126 = vadd.f32 %v2926, %v3614
        %v4127 = vadd.f32 %v2927, %v3615
        %v4128 = vadd.f32 %v2928, %v3616
        %v4129 = vadd.f32 %v2929, %v3617
        %v4130 = vadd.f32 %v2930, %v3618
        %v4131 = vadd.f32 %v2931, %v3619
        %v4132 = vadd.f32 %v2932, %v3620
        %v4133 = vadd.f32 %v2933, %v3621
        %v4134 = vadd.f32 %v2934, %v3622
        %v4135 = vadd.f32 %v2935, %v3623
        %v4136 = vadd.f32 %v2936, %v3624
        %v4137 = vadd.f32 %v2937, %v3625
        %v4138 = vadd.f32 %v2938, %v3626
        %v4139 = vadd.f32 %v2939, %v3627
        %v4140 = vadd.f32 %v2940, %v3628
        %v4141 = vadd.f32 %v2941, %v3629
        %v4142 = vadd.f32 %v2942, %v3630
        %v4143 = vadd.f32 %v2943, %v3631
        %v4144 = vadd.f32 %v2944, %v3632
        %v4145 = vadd.f32 %v2945, %v3633
        %v4146 = vadd.f32 %v2946, %v3634
        %v4147 = vadd.f32 %v2947, %v3635
        %v4148 = vadd.f32 %v2948, %v3636
        %v4149 = vadd.f32 %v2949, %v3637
        %v4150 = vadd.f32 %v2950, %v3638
        %v4151 = vadd.f32 %v2951, %v3639
        %v4152 = vadd.f32 %v2952, %v3640
        %v4153 = vadd.f32 %v2953, %v3641
        %v4154 = vadd.f32 %v2954, %v3642
        %v4155 = vadd.f32 %v2955, %v3643
        %v4156 = vadd.f32 %v2956, %v3644
        %v4157 = vadd.f32 %v2957, %v3645
        %v4158 = vadd.f32 %v2958, %v3646
        %v4159 = vadd.f32 %v2959, %v3647
        %v4160 = vadd.f32 %v2960, %v3648
        %v4161 = vadd.f32 %v2961, %v3649
        %v4162 = vadd.f32 %v2962, %v3650
        %v4163 = vadd.f32 %v2963, %v3651
        %v4164 = vadd.f32 %v2964, %v3652
        %v4165 = vadd.f32 %v2965, %v3653
        %v4166 = vadd.f32 %v2966, %v3654
        %v4167 = vadd.f32 %v2967, %v3655
        %v4168 = vadd.f32 %v2968, %v3656
        %v4169 = vadd.f32 %v2969, %v3657
        %v4170 = vadd.f32 %v2970, %v3658
        %v4171 = vadd.f32 %v2971, %v3659
        %v4172 = vadd.f32 %v2972, %v3660
        %v4173 = vadd.f32 %v2973, %v3661
        %v4174 = vadd.f32 %v2974, %v3662
        %v4175 = vadd.f32 %v2975, %v3663
        %v4176 = vadd.f32 %v2976, %v3664
        %v4177 = vadd.f32 %v2977, %v3665
        %v4178 = vadd.f32 %v2978, %v3666
        %v4179 = vadd.f32 %v2979, %v3667
        %v4180 = vadd.f32 %v2980, %v3668
        %v4181 = vadd.f32 %v2981, %v3669
        %v4182 = vadd.f32 %v2982, %v3670
        %v4183 = vadd.f32 %v2983, %v3671
        %v4184 = vadd.f32 %v2984, %v3672
        %v4185 = vadd.f32 %v2985, %v3673
        %v4186 = vadd.f32 %v2986, %v3674
        %v4187 = vadd.f32 %v2987, %v3675
        %v4188 = vadd.f32 %v2988, %v3676
        %v4189 = vadd.f32 %v2989, %v3677
        %v4190 = vadd.f32 %v2990, %v3678
        %v4191 = vadd.f32 %v2991, %v3679
        %v4192 = vadd.f32 %v2992, %v3680
        %v4193 = vadd.f32 %v2993, %v3681
        %v4194 = vadd.f32 %v2994, %v3682
        %v4195 = vadd.f32 %v2995, %v3683
        %v4196 = vadd.f32 %v2996, %v3684
        %v4197 = vadd.f32 %v2997, %v3685
        %v4198 = vadd.f32 %v2998, %v3686
        %v4199 = vadd.f32 %v2999, %v3687
        %v4200 = vadd.f32 %v3000, %v3688
        %v4201 = vadd.f32 %v3001, %v3689
        %v4202 = vadd.f32 %v3002, %v3690
        %v4203 = vadd.f32 %v3003, %v3691
        %v4204 = vadd.f32 %v3004, %v3692
        %v4205 = vadd.f32 %v3005, %v3693
        %v4206 = vadd.f32 %v3006, %v3694
        %v4207 = vadd.f32 %v3007, %v3695
        %v4208 = vadd.f32 %v3008, %v3696
        %v4209 = vadd.f32 %v3009, %v3697
        %v4210 = vadd.f32 %v3010, %v3698
        %v4211 = vadd.f32 %v3011, %v3699
        %v4212 = vadd.f32 %v3012, %v3700
        %v4213 = vadd.f32 %v3013, %v3701
        %v4214 = vadd.f32 %v3014, %v3702
        %v4215 = vadd.f32 %v3015, %v3703
        %v4216 = vadd.f32 %v3016, %v3704
        %v4217 = vadd.f32 %v3017, %v3705
        %v4218 = vadd.f32 %v3018, %v3706
        %v4219 = vadd.f32 %v3019, %v3707
        %v4220 = vadd.f32 %v3020, %v3708
        %v4221 = vadd.f32 %v3021, %v3709
        %v4222 = vadd.f32 %v3022, %v3710
        %v4223 = vadd.f32 %v3023, %v3711
        %v4224 = vadd.f32 %v3024, %v3712
        %v4225 = vadd.f32 %v3025, %v3713
        %v4226 = vadd.f32 %v3026, %v3714
        %v4227 = vadd.f32 %v3027, %v3715
        %v4228 = vadd.f32 %v3028, %v3716
        %v4229 = vadd.f32 %v3029, %v3717
        %v4230 = vadd.f32 %v3030, %v3718
        %v4231 = vadd.f32 %v3031, %v3719
        %v4232 = vadd.f32 %v3032, %v3720
        %v4233 = vadd.f32 %v3033, %v3721
        %v4234 = vadd.f32 %v3034, %v3722
        %v4235 = vadd.f32 %v3035, %v3723
        %v4236 = vadd.f32 %v3036, %v3724
        %v4237 = vadd.f32 %v3037, %v3725
        %v4238 = vadd.f32 %v3038, %v3726
        %v4239 = vadd.f32 %v3039, %v3727
        %v4240 = vadd.f32 %v3040, %v3728
        %v4241 = vadd.f32 %v3041, %v3729
        %v4242 = vadd.f32 %v3042, %v3730
        %v4243 = vadd.f32 %v3043, %v3731
        %v4244 = vadd.f32 %v3044, %v3732
        %v4245 = vadd.f32 %v3045, %v3733
        %v4246 = vadd.f32 %v3046, %v3734
        %v4247 = vadd.f32 %v3047, %v3735
        %v4248 = vadd.f32 %v3048, %v3736
        %v4249 = vadd.f32 %v3049, %v3737
        %v4250 = vadd.f32 %v3050, %v3738
        %v4251 = vadd.f32 %v3051, %v3739
        %v4252 = vadd.f32 %v3052, %v3740
        %v4253 = vadd.f32 %v3053, %v3741
        %v4254 = vadd.f32 %v3054, %v3742
        %v4255 = vadd.f32 %v3055, %v3743
        %v4256 = vadd.f32 %v3056, %v3744
        %v4257 = vadd.f32 %v3057, %v3745
        %v4258 = vadd.f32 %v3058, %v3746
        %v4259 = vadd.f32 %v3059, %v3747
        %v4260 = vadd.f32 %v3060, %v3748
        %v4261 = vadd.f32 %v3061, %v3749
        %v4262 = vadd.f32 %v3062, %v3750
        %v4263 = vadd.f32 %v3063, %v3751
        %v4264 = vadd.f32 %v3064, %v3752
        %v4265 = vadd.f32 %v3065, %v3753
        %v4266 = vadd.f32 %v3066, %v3754
        %v4267 = vadd.f32 %v3067, %v3755
        %v4268 = vadd.f32 %v3068, %v3756
        %v4269 = vadd.f32 %v3069, %v3757
        %v4270 = vadd.f32 %v3070, %v3758
        %v4271 = vadd.f32 %v3071, %v3759
        %v4272 = vadd.f32 %v3072, %v3760
        %v4273 = vadd.f32 %v3073, %v3761
        %v4274 = vadd.f32 %v3074, %v3762
        %v4275 = vadd.f32 %v3075, %v3763
        %v4276 = vadd.f32 %v3076, %v3764
        %v4277 = vadd.f32 %v3077, %v3765
        %v4278 = vadd.f32 %v3078, %v3766
        %v4279 = vadd.f32 %v3079, %v3767
        %v4280 = vadd.f32 %v3080, %v3768
        %v4281 = vadd.f32 %v3081, %v3769
        %v4282 = vadd.f32 %v3082, %v3770
        %v4283 = vadd.f32 %v3083, %v3771
        %v4284 = vadd.f32 %v3084, %v3772
        %v4285 = vadd.f32 %v3085, %v3773
        %v4286 = vadd.f32 %v3086, %v3774
        %v4287 = vadd.f32 %v3087, %v3775
        %v4288 = vadd.f32 %v3088, %v3776
        %v4289 = vadd.f32 %v3089, %v3777
        %v4290 = vadd.f32 %v3090, %v3778
        %v4291 = vadd.f32 %v3091, %v3779
        %v4292 = vadd.f32 %v3092, %v3780
        %v4293 = vadd.f32 %v3093, %v3781
        %v4294 = vadd.f32 %v3094, %v3782
        %v4295 = vadd.f32 %v3095, %v3783
        %v4296 = vadd.f32 %v3096, %v3784
        %v4297 = vadd.f32 %v3097, %v3785
        %v4298 = vadd.f32 %v3098, %v3786
        %v4299 = vadd.f32 %v3099, %v3787
        %v4300 = vadd.f32 %v3100, %v3788
        %v4301 = vadd.f32 %v3101, %v3789
        %v4302 = vadd.f32 %v3102, %v3790
        %v4303 = vadd.f32 %v3103, %v3791
        %v4304 = vadd.f32 %v3104, %v3792
        %v4305 = vadd.f32 %v3105, %v3793
        %v4306 = vadd.f32 %v3106, %v3794
        %v4307 = vadd.f32 %v3107, %v3795
        %v4308 = vadd.f32 %v3108, %v3796
        %v4309 = vadd.f32 %v3109, %v3797
        %v4310 = vadd.f32 %v3110, %v3798
        %v4311 = vadd.f32 %v3111, %v3799
        %v4312 = vadd.f32 %v3112, %v3800
        %v4313 = vadd.f32 %v3113, %v3801
        %v4314 = vadd.f32 %v3114, %v3802
        %v4315 = vadd.f32 %v3115, %v3803
        %v4316 = vadd.f32 %v3116, %v3804
        %v4317 = vadd.f32 %v3117, %v3805
        %v4318 = vadd.f32 %v3118, %v3806
        %v4319 = vadd.f32 %v3119, %v3807
        %v4320 = vadd.f32 %v3120, %v3808
        %v4321 = vadd.f32 %v3121, %v3809
        %v4322 = vadd.f32 %v3122, %v3810
        %v4323 = vadd.f32 %v3123, %v3811
        %v4324 = vadd.f32 %v3124, %v3812
        %v4325 = vadd.f32 %v3125, %v3813
        %v4326 = vadd.f32 %v3126, %v3814
        %v4327 = vadd.f32 %v3127, %v3815
        %v4328 = vadd.f32 %v3128, %v3816
        %v4329 = vadd.f32 %v3129, %v3817
        %v4330 = vadd.f32 %v3130, %v3818
        %v4331 = vadd.f32 %v3131, %v3819
        %v4332 = vadd.f32 %v3132, %v3820
        %v4333 = vadd.f32 %v3133, %v3821
        %v4334 = vadd.f32 %v3134, %v3822
        %v4335 = vadd.f32 %v3135, %v3823
        %v4336 = vadd.f32 %v3136, %v3824
        %v4337 = vadd.f32 %v3137, %v3825
        %v4338 = vadd.f32 %v3138, %v3826
        %v4339 = vadd.f32 %v3139, %v3827
        %v4340 = vadd.f32 %v3140, %v3828
        %v4341 = vadd.f32 %v3141, %v3829
        %v4342 = vadd.f32 %v3142, %v3830
        %v4343 = vadd.f32 %v3143, %v3831
        %v4344 = vadd.f32 %v3144, %v3832
        %v4345 = vadd.f32 %v3145, %v3833
        %v4346 = vadd.f32 %v3146, %v3834
        %v4347 = vadd.f32 %v3147, %v3835
        %v4348 = vadd.f32 %v3148, %v3836
        %v4349 = vadd.f32 %v3149, %v3837
        %v4350 = vadd.f32 %v3150, %v3838
        %v4351 = vadd.f32 %v3151, %v3839
        %v4352 = vadd.f32 %v3152, %v3840
        %v4353 = vadd.f32 %v3153, %v3841
        %v4354 = vadd.f32 %v3154, %v3842
        %v4355 = vadd.f32 %v3155, %v3843
        %v4356 = vadd.f32 %v3156, %v3844
        %v4357 = vadd.f32 %v3157, %v3845
        %v4358 = vadd.f32 %v3158, %v3846
        %v4359 = vadd.f32 %v3159, %v3847
        %v4360 = vadd.f32 %v3160, %v3848
        %v4361 = vadd.f32 %v3161, %v3849
        %v4362 = vadd.f32 %v3162, %v3850
        %v4363 = vadd.f32 %v3163, %v3851
        %v4364 = vadd.f32 %v3164, %v3852
        %v4365 = vadd.f32 %v3165, %v3853
        %v4366 = vadd.f32 %v3166, %v3854
        %v4367 = vadd.f32 %v3167, %v3855
        %v4368 = vadd.f32 %v3168, %v3856
        %v4369 = vadd.f32 %v3169, %v3857
        %v4370 = vadd.f32 %v3170, %v3858
        %v4371 = vadd.f32 %v3171, %v3859
        %v4372 = vadd.f32 %v3172, %v3860
        %v4373 = vadd.f32 %v3173, %v3861
        %v4374 = vadd.f32 %v3174, %v3862
        %v4375 = vadd.f32 %v3175, %v3863
        %v4376 = vadd.f32 %v3176, %v3864
        %v4377 = vadd.f32 %v3177, %v3865
        %v4378 = vadd.f32 %v3178, %v3866
        %v4379 = vadd.f32 %v3179, %v3867
        %v4380 = vadd.f32 %v3180, %v3868
        %v4381 = vadd.f32 %v3181, %v3869
        %v4382 = vadd.f32 %v3182, %v3870
        %v4383 = vadd.f32 %v3183, %v3871
        %v4384 = vadd.f32 %v3184, %v3872
        %v4385 = vadd.f32 %v3185, %v3873
        %v4386 = vadd.f32 %v3186, %v3874
        %v4387 = vadd.f32 %v3187, %v3875
        %v4388 = vadd.f32 %v3188, %v3876
        %v4389 = vadd.f32 %v3189, %v3877
        %v4390 = vadd.f32 %v3190, %v3878
        %v4391 = vadd.f32 %v3191, %v3879
        %v4392 = vadd.f32 %v3192, %v3880
        %v4393 = vadd.f32 %v3193, %v3881
        %v4394 = vadd.f32 %v3194, %v3882
        %v4395 = vadd.f32 %v3195, %v3883
        %v4396 = vadd.f32 %v3196, %v3884
        %v4397 = vadd.f32 %v3197, %v3885
        %v4398 = vadd.f32 %v3198, %v3886
        %v4399 = vadd.f32 %v3199, %v3887
        %v4400 = vadd.f32 %v3200, %v3888
        %v4401 = vadd.f32 %v3201, %v3889
        %v4402 = vadd.f32 %v3202, %v3890
        %v4403 = vadd.f32 %v3203, %v3891
        %v4404 = vadd.f32 %v3204, %v3892
        %v4405 = vadd.f32 %v3205, %v3893
        %v4406 = vadd.f32 %v3206, %v3894
        %v4407 = vadd.f32 %v3207, %v3895
        %v4408 = vadd.f32 %v3208, %v3896
        %v4409 = vadd.f32 %v3209, %v3897
        %v4410 = vadd.f32 %v3210, %v3898
        %v4411 = vadd.f32 %v3211, %v3899
        %v4412 = vadd.f32 %v3212, %v3900
        %v4413 = vadd.f32 %v3213, %v3901
        %v4414 = vadd.f32 %v3214, %v3902
        %v4415 = vadd.f32 %v3215, %v3903
        %v4416 = vadd.f32 %v3216, %v3904
        %v4417 = vadd.f32 %v3217, %v3905
        %v4418 = vadd.f32 %v3218, %v3906
        %v4419 = vadd.f32 %v3219, %v3907
        %v4420 = vadd.f32 %v3220, %v3908
        %v4421 = vadd.f32 %v3221, %v3909
        %v4422 = vadd.f32 %v3222, %v3910
        %v4423 = vadd.f32 %v3223, %v3911
        %v4424 = vadd.f32 %v3224, %v3912
        %v4425 = vadd.f32 %v3225, %v3913
        %v4426 = vadd.f32 %v3226, %v3914
        %v4427 = vadd.f32 %v3227, %v3915
        %v4428 = vadd.f32 %v3228, %v3916
        %v4429 = vadd.f32 %v3229, %v3917
        %v4430 = vadd.f32 %v3230, %v3918
        %v4431 = vadd.f32 %v3231, %v3919
        %v4432 = vadd.f32 %v3232, %v3920
        %v4433 = vadd.f32 %v3233, %v3921
        %v4434 = vadd.f32 %v3234, %v3922
        %v4435 = vadd.f32 %v3235, %v3923
        %v4436 = vadd.f32 %v3236, %v3924
        %v4437 = vadd.f32 %v3237, %v3925
        %v4438 = vadd.f32 %v3238, %v3926
        %v4439 = vadd.f32 %v3239, %v3927
        %v4440 = vadd.f32 %v3240, %v3928
        %v4441 = vadd.f32 %v3241, %v3929
        %v4442 = vadd.f32 %v3242, %v3930
        %v4443 = vadd.f32 %v3243, %v3931
        %v4444 = vadd.f32 %v3244, %v3932
        %v4445 = vadd.f32 %v3245, %v3933
        %v4446 = vadd.f32 %v3246, %v3934
        %v4447 = vadd.f32 %v3247, %v3935
        %v4448 = vadd.f32 %v3248, %v3936
        %v4449 = vadd.f32 %v3249, %v3937
        %v4450 = vadd.f32 %v3250, %v3938
        %v4451 = vadd.f32 %v3251, %v3939
        %v4452 = vadd.f32 %v3252, %v3940
        %v4453 = vadd.f32 %v3253, %v3941
        %v4454 = vadd.f32 %v3254, %v3942
        %v4455 = vadd.f32 %v3255, %v3943
        %v4456 = vadd.f32 %v3256, %v3944
        %v4457 = vadd.f32 %v3257, %v3945
        %v4458 = vadd.f32 %v3258, %v3946
        %v4459 = vadd.f32 %v3259, %v3947
        %v4460 = vadd.f32 %v3260, %v3948
        %v4461 = vadd.f32 %v3261, %v3949
        %v4462 = vadd.f32 %v3262, %v3950
        %v4463 = vadd.f32 %v3263, %v3951
        %v4464 = vadd.f32 %v3264, %v3952
        %v4465 = vadd.f32 %v3265, %v3953
        %v4466 = vadd.f32 %v3266, %v3954
        %v4467 = vadd.f32 %v3267, %v3955
        %v4468 = vadd.f32 %v3268, %v3956
        %v4469 = vadd.f32 %v3269, %v3957
        %v4470 = vadd.f32 %v3270, %v3958
        %v4471 = vadd.f32 %v3271, %v3959
        %v4472 = vadd.f32 %v3272, %v3960
        %v4473 = vadd.f32 %v3273, %v3961
        %v4474 = vadd.f32 %v3274, %v3962
        %v4475 = vadd.f32 %v3275, %v3963
        %v4476 = vadd.f32 %v3276, %v3964
        %v4477 = vadd.f32 %v3277, %v3965
        %v4478 = vadd.f32 %v3278, %v3966
        %v4479 = vadd.f32 %v3279, %v3967
        %v4480 = vadd.f32 %v3280, %v3968
        %v4481 = vadd.f32 %v3281, %v3969
        %v4482 = vadd.f32 %v3282, %v3970
        %v4483 = vadd.f32 %v3283, %v3971
        %v4484 = vadd.f32 %v3284, %v3972
        %v4485 = vadd.f32 %v3285, %v3973
        %v4486 = vadd.f32 %v3286, %v3974
        %v4487 = vadd.f32 %v3287, %v3975
        %v4488 = vadd.f32 %v3288, %v3976
        %v4489 = vadd.f32 %v3289, %v3977
        %v4490 = vadd.f32 %v3290, %v3978
        %v4491 = vadd.f32 %v3291, %v3979
        %v4492 = vadd.f32 %v3292, %v3980
        %v4493 = vadd.f32 %v3293, %v3981
        %v4494 = vadd.f32 %v3294, %v3982
        %v4495 = vadd.f32 %v3295, %v3983
        %v4496 = vadd.f32 %v3296, %v3984
        %v4497 = vadd.f32 %v3297, %v3985
        %v4498 = vadd.f32 %v3298, %v3986
        %v4499 = vadd.f32 %v3299, %v3987
        %v4500 = vadd.f32 %v3300, %v3988
        %v4501 = vadd.f32 %v3301, %v3989
        %v4502 = vadd.f32 %v3302, %v3990
        %v4503 = vadd.f32 %v3303, %v3991
        %v4504 = vadd.f32 %v3304, %v3992
        %v4505 = vadd.f32 %v3305, %v3993
        %v4506 = vadd.f32 %v3306, %v3994
        %v4507 = vadd.f32 %v3307, %v3995
        %v4508 = vadd.f32 %v3308, %v3996
        %v4509 = vadd.f32 %v3309, %v3997
        %v4510 = vadd.f32 %v3310, %v3998
        %v4511 = vadd.f32 %v3311, %v3999
        %v4512 = vadd.f32 %v3312, %v4000
        %v4513 = vadd.f32 %v3313, %v4001
        %v4514 = vadd.f32 %v3314, %v4002
        %v4515 = vadd.f32 %v3315, %v4003
        %v4516 = vadd.f32 %v3316, %v4004
        %v4517 = vadd.f32 %v3317, %v4005
        %v4518 = vadd.f32 %v3318, %v4006
        %v4519 = vadd.f32 %v3319, %v4007
        %v4520 = vadd.f32 %v3320, %v4008
        %v4521 = vadd.f32 %v3321, %v4009
        %v4522 = vadd.f32 %v3322, %v4010
        %v4523 = vadd.f32 %v3323, %v4011
        %v4524 = vadd.f32 %v3324, %v4012
        %v4525 = vadd.f32 %v3325, %v4013
        %v4526 = vadd.f32 %v3326, %v4014
        %v4527 = vadd.f32 %v3327, %v4015
        %v4528 = vadd.f32 %v3328, %v4016
        %v4529 = vadd.f32 %v3329, %v4017
        %v4530 = vadd.f32 %v3330, %v4018
        %v4531 = vadd.f32 %v3331, %v4019
        %v4532 = vadd.f32 %v3332, %v4020
        %v4533 = vadd.f32 %v3333, %v4021
        %v4534 = vadd.f32 %v3334, %v4022
        %v4535 = vadd.f32 %v3335, %v4023
        %v4536 = vadd.f32 %v3336, %v4024
        %v4537 = vadd.f32 %v3337, %v4025
        %v4538 = vadd.f32 %v3338, %v4026
        %v4539 = vadd.f32 %v3339, %v4027
        %v4540 = vadd.f32 %v3340, %v4028
        %v4541 = vadd.f32 %v3341, %v4029
        %v4542 = vadd.f32 %v3342, %v4030
        %v4543 = vadd.f32 %v3343, %v4031
        %v4544 = vadd.f32 %v3344, %v4032
        %v4545 = vadd.f32 %v3345, %v4033
        %v4546 = vadd.f32 %v3346, %v4034
        %v4547 = vadd.f32 %v3347, %v4035
        %v4548 = vadd.f32 %v3348, %v4036
        %v4549 = vadd.f32 %v3349, %v4037
        %v4550 = vadd.f32 %v3350, %v4038
        %v4551 = vadd.f32 %v3351, %v4039
        %v4552 = vadd.f32 %v3352, %v4040
        %v4553 = vadd.f32 %v3353, %v4041
        %v4554 = vadd.f32 %v3354, %v4042
        %v4555 = vadd.f32 %v3355, %v4043
        %v4556 = vadd.f32 %v3356, %v4044
        %v4557 = vadd.f32 %v3357, %v4045
        %v4558 = vmax.f32 %v4046, 1e-06
        %v4559 = vmax.f32 %v4047, 1e-06
        %v4560 = vmax.f32 %v4048, 1e-06
        %v4561 = vmax.f32 %v4049, 1e-06
        %v4562 = vmax.f32 %v4050, 1e-06
        %v4563 = vmax.f32 %v4051, 1e-06
        %v4564 = vmax.f32 %v4052, 1e-06
        %v4565 = vmax.f32 %v4053, 1e-06
        %v4566 = vmax.f32 %v4054, 1e-06
        %v4567 = vmax.f32 %v4055, 1e-06
        %v4568 = vmax.f32 %v4056, 1e-06
        %v4569 = vmax.f32 %v4057, 1e-06
        %v4570 = vmax.f32 %v4058, 1e-06
        %v4571 = vmax.f32 %v4059, 1e-06
        %v4572 = vmax.f32 %v4060, 1e-06
        %v4573 = vmax.f32 %v4061, 1e-06
        %v4574 = vmax.f32 %v4062, 1e-06
        %v4575 = vmax.f32 %v4063, 1e-06
        %v4576 = vmax.f32 %v4064, 1e-06
        %v4577 = vmax.f32 %v4065, 1e-06
        %v4578 = vmax.f32 %v4066, 1e-06
        %v4579 = vmax.f32 %v4067, 1e-06
        %v4580 = vmax.f32 %v4068, 1e-06
        %v4581 = vmax.f32 %v4069, 1e-06
        %v4582 = vmax.f32 %v4070, 1e-06
        %v4583 = vmax.f32 %v4071, 1e-06
        %v4584 = vmax.f32 %v4072, 1e-06
        %v4585 = vmax.f32 %v4073, 1e-06
        %v4586 = vmax.f32 %v4074, 1e-06
        %v4587 = vmax.f32 %v4075, 1e-06
        %v4588 = vmax.f32 %v4076, 1e-06
        %v4589 = vmax.f32 %v4077, 1e-06
        %v4590 = vmax.f32 %v4078, 1e-06
        %v4591 = vmax.f32 %v4079, 1e-06
        %v4592 = vmax.f32 %v4080, 1e-06
        %v4593 = vmax.f32 %v4081, 1e-06
        %v4594 = vmax.f32 %v4082, 1e-06
        %v4595 = vmax.f32 %v4083, 1e-06
        %v4596 = vmax.f32 %v4084, 1e-06
        %v4597 = vmax.f32 %v4085, 1e-06
        %v4598 = vmax.f32 %v4086, 1e-06
        %v4599 = vmax.f32 %v4087, 1e-06
        %v4600 = vmax.f32 %v4088, 1e-06
        %v4601 = vmax.f32 %v4089, 1e-06
        %v4602 = vmax.f32 %v4090, 1e-06
        %v4603 = vmax.f32 %v4091, 1e-06
        %v4604 = vmax.f32 %v4092, 1e-06
        %v4605 = vmax.f32 %v4093, 1e-06
        %v4606 = vmax.f32 %v4094, 1e-06
        %v4607 = vmax.f32 %v4095, 1e-06
        %v4608 = vmax.f32 %v4096, 1e-06
        %v4609 = vmax.f32 %v4097, 1e-06
        %v4610 = vmax.f32 %v4098, 1e-06
        %v4611 = vmax.f32 %v4099, 1e-06
        %v4612 = vmax.f32 %v4100, 1e-06
        %v4613 = vmax.f32 %v4101, 1e-06
        %v4614 = vmax.f32 %v4102, 1e-06
        %v4615 = vmax.f32 %v4103, 1e-06
        %v4616 = vmax.f32 %v4104, 1e-06
        %v4617 = vmax.f32 %v4105, 1e-06
        %v4618 = vmax.f32 %v4106, 1e-06
        %v4619 = vmax.f32 %v4107, 1e-06
        %v4620 = vmax.f32 %v4108, 1e-06
        %v4621 = vmax.f32 %v4109, 1e-06
        %v4622 = vmax.f32 %v4110, 1e-06
        %v4623 = vmax.f32 %v4111, 1e-06
        %v4624 = vmax.f32 %v4112, 1e-06
        %v4625 = vmax.f32 %v4113, 1e-06
        %v4626 = vmax.f32 %v4114, 1e-06
        %v4627 = vmax.f32 %v4115, 1e-06
        %v4628 = vmax.f32 %v4116, 1e-06
        %v4629 = vmax.f32 %v4117, 1e-06
        %v4630 = vmax.f32 %v4118, 1e-06
        %v4631 = vmax.f32 %v4119, 1e-06
        %v4632 = vmax.f32 %v4120, 1e-06
        %v4633 = vmax.f32 %v4121, 1e-06
        %v4634 = vmax.f32 %v4122, 1e-06
        %v4635 = vmax.f32 %v4123, 1e-06
        %v4636 = vmax.f32 %v4124, 1e-06
        %v4637 = vmax.f32 %v4125, 1e-06
        %v4638 = vmax.f32 %v4126, 1e-06
        %v4639 = vmax.f32 %v4127, 1e-06
        %v4640 = vmax.f32 %v4128, 1e-06
        %v4641 = vmax.f32 %v4129, 1e-06
        %v4642 = vmax.f32 %v4130, 1e-06
        %v4643 = vmax.f32 %v4131, 1e-06
        %v4644 = vmax.f32 %v4132, 1e-06
        %v4645 = vmax.f32 %v4133, 1e-06
        %v4646 = vmax.f32 %v4134, 1e-06
        %v4647 = vmax.f32 %v4135, 1e-06
        %v4648 = vmax.f32 %v4136, 1e-06
        %v4649 = vmax.f32 %v4137, 1e-06
        %v4650 = vmax.f32 %v4138, 1e-06
        %v4651 = vmax.f32 %v4139, 1e-06
        %v4652 = vmax.f32 %v4140, 1e-06
        %v4653 = vmax.f32 %v4141, 1e-06
        %v4654 = vmax.f32 %v4142, 1e-06
        %v4655 = vmax.f32 %v4143, 1e-06
        %v4656 = vmax.f32 %v4144, 1e-06
        %v4657 = vmax.f32 %v4145, 1e-06
        %v4658 = vmax.f32 %v4146, 1e-06
        %v4659 = vmax.f32 %v4147, 1e-06
        %v4660 = vmax.f32 %v4148, 1e-06
        %v4661 = vmax.f32 %v4149, 1e-06
        %v4662 = vmax.f32 %v4150, 1e-06
        %v4663 = vmax.f32 %v4151, 1e-06
        %v4664 = vmax.f32 %v4152, 1e-06
        %v4665 = vmax.f32 %v4153, 1e-06
        %v4666 = vmax.f32 %v4154, 1e-06
        %v4667 = vmax.f32 %v4155, 1e-06
        %v4668 = vmax.f32 %v4156, 1e-06
        %v4669 = vmax.f32 %v4157, 1e-06
        %v4670 = vmax.f32 %v4158, 1e-06
        %v4671 = vmax.f32 %v4159, 1e-06
        %v4672 = vmax.f32 %v4160, 1e-06
        %v4673 = vmax.f32 %v4161, 1e-06
        %v4674 = vmax.f32 %v4162, 1e-06
        %v4675 = vmax.f32 %v4163, 1e-06
        %v4676 = vmax.f32 %v4164, 1e-06
        %v4677 = vmax.f32 %v4165, 1e-06
        %v4678 = vmax.f32 %v4166, 1e-06
        %v4679 = vmax.f32 %v4167, 1e-06
        %v4680 = vmax.f32 %v4168, 1e-06
        %v4681 = vmax.f32 %v4169, 1e-06
        %v4682 = vmax.f32 %v4170, 1e-06
        %v4683 = vmax.f32 %v4171, 1e-06
        %v4684 = vmax.f32 %v4172, 1e-06
        %v4685 = vmax.f32 %v4173, 1e-06
        %v4686 = vmax.f32 %v4174, 1e-06
        %v4687 = vmax.f32 %v4175, 1e-06
        %v4688 = vmax.f32 %v4176, 1e-06
        %v4689 = vmax.f32 %v4177, 1e-06
        %v4690 = vmax.f32 %v4178, 1e-06
        %v4691 = vmax.f32 %v4179, 1e-06
        %v4692 = vmax.f32 %v4180, 1e-06
        %v4693 = vmax.f32 %v4181, 1e-06
        %v4694 = vmax.f32 %v4182, 1e-06
        %v4695 = vmax.f32 %v4183, 1e-06
        %v4696 = vmax.f32 %v4184, 1e-06
        %v4697 = vmax.f32 %v4185, 1e-06
        %v4698 = vmax.f32 %v4186, 1e-06
        %v4699 = vmax.f32 %v4187, 1e-06
        %v4700 = vmax.f32 %v4188, 1e-06
        %v4701 = vmax.f32 %v4189, 1e-06
        %v4702 = vmax.f32 %v4190, 1e-06
        %v4703 = vmax.f32 %v4191, 1e-06
        %v4704 = vmax.f32 %v4192, 1e-06
        %v4705 = vmax.f32 %v4193, 1e-06
        %v4706 = vmax.f32 %v4194, 1e-06
        %v4707 = vmax.f32 %v4195, 1e-06
        %v4708 = vmax.f32 %v4196, 1e-06
        %v4709 = vmax.f32 %v4197, 1e-06
        %v4710 = vmax.f32 %v4198, 1e-06
        %v4711 = vmax.f32 %v4199, 1e-06
        %v4712 = vmax.f32 %v4200, 1e-06
        %v4713 = vmax.f32 %v4201, 1e-06
        %v4714 = vmax.f32 %v4202, 1e-06
        %v4715 = vmax.f32 %v4203, 1e-06
        %v4716 = vmax.f32 %v4204, 1e-06
        %v4717 = vmax.f32 %v4205, 1e-06
        %v4718 = vmax.f32 %v4206, 1e-06
        %v4719 = vmax.f32 %v4207, 1e-06
        %v4720 = vmax.f32 %v4208, 1e-06
        %v4721 = vmax.f32 %v4209, 1e-06
        %v4722 = vmax.f32 %v4210, 1e-06
        %v4723 = vmax.f32 %v4211, 1e-06
        %v4724 = vmax.f32 %v4212, 1e-06
        %v4725 = vmax.f32 %v4213, 1e-06
        %v4726 = vmax.f32 %v4214, 1e-06
        %v4727 = vmax.f32 %v4215, 1e-06
        %v4728 = vmax.f32 %v4216, 1e-06
        %v4729 = vmax.f32 %v4217, 1e-06
        %v4730 = vmax.f32 %v4218, 1e-06
        %v4731 = vmax.f32 %v4219, 1e-06
        %v4732 = vmax.f32 %v4220, 1e-06
        %v4733 = vmax.f32 %v4221, 1e-06
        %v4734 = vmax.f32 %v4222, 1e-06
        %v4735 = vmax.f32 %v4223, 1e-06
        %v4736 = vmax.f32 %v4224, 1e-06
        %v4737 = vmax.f32 %v4225, 1e-06
        %v4738 = vmax.f32 %v4226, 1e-06
        %v4739 = vmax.f32 %v4227, 1e-06
        %v4740 = vmax.f32 %v4228, 1e-06
        %v4741 = vmax.f32 %v4229, 1e-06
        %v4742 = vmax.f32 %v4230, 1e-06
        %v4743 = vmax.f32 %v4231, 1e-06
        %v4744 = vmax.f32 %v4232, 1e-06
        %v4745 = vmax.f32 %v4233, 1e-06
        %v4746 = vmax.f32 %v4234, 1e-06
        %v4747 = vmax.f32 %v4235, 1e-06
        %v4748 = vmax.f32 %v4236, 1e-06
        %v4749 = vmax.f32 %v4237, 1e-06
        %v4750 = vmax.f32 %v4238, 1e-06
        %v4751 = vmax.f32 %v4239, 1e-06
        %v4752 = vmax.f32 %v4240, 1e-06
        %v4753 = vmax.f32 %v4241, 1e-06
        %v4754 = vmax.f32 %v4242, 1e-06
        %v4755 = vmax.f32 %v4243, 1e-06
        %v4756 = vmax.f32 %v4244, 1e-06
        %v4757 = vmax.f32 %v4245, 1e-06
        %v4758 = vmax.f32 %v4246, 1e-06
        %v4759 = vmax.f32 %v4247, 1e-06
        %v4760 = vmax.f32 %v4248, 1e-06
        %v4761 = vmax.f32 %v4249, 1e-06
        %v4762 = vmax.f32 %v4250, 1e-06
        %v4763 = vmax.f32 %v4251, 1e-06
        %v4764 = vmax.f32 %v4252, 1e-06
        %v4765 = vmax.f32 %v4253, 1e-06
        %v4766 = vmax.f32 %v4254, 1e-06
        %v4767 = vmax.f32 %v4255, 1e-06
        %v4768 = vmax.f32 %v4256, 1e-06
        %v4769 = vmax.f32 %v4257, 1e-06
        %v4770 = vmax.f32 %v4258, 1e-06
        %v4771 = vmax.f32 %v4259, 1e-06
        %v4772 = vmax.f32 %v4260, 1e-06
        %v4773 = vmax.f32 %v4261, 1e-06
        %v4774 = vmax.f32 %v4262, 1e-06
        %v4775 = vmax.f32 %v4263, 1e-06
        %v4776 = vmax.f32 %v4264, 1e-06
        %v4777 = vmax.f32 %v4265, 1e-06
        %v4778 = vmax.f32 %v4266, 1e-06
        %v4779 = vmax.f32 %v4267, 1e-06
        %v4780 = vmax.f32 %v4268, 1e-06
        %v4781 = vmax.f32 %v4269, 1e-06
        %v4782 = vmax.f32 %v4270, 1e-06
        %v4783 = vmax.f32 %v4271, 1e-06
        %v4784 = vmax.f32 %v4272, 1e-06
        %v4785 = vmax.f32 %v4273, 1e-06
        %v4786 = vmax.f32 %v4274, 1e-06
        %v4787 = vmax.f32 %v4275, 1e-06
        %v4788 = vmax.f32 %v4276, 1e-06
        %v4789 = vmax.f32 %v4277, 1e-06
        %v4790 = vmax.f32 %v4278, 1e-06
        %v4791 = vmax.f32 %v4279, 1e-06
        %v4792 = vmax.f32 %v4280, 1e-06
        %v4793 = vmax.f32 %v4281, 1e-06
        %v4794 = vmax.f32 %v4282, 1e-06
        %v4795 = vmax.f32 %v4283, 1e-06
        %v4796 = vmax.f32 %v4284, 1e-06
        %v4797 = vmax.f32 %v4285, 1e-06
        %v4798 = vmax.f32 %v4286, 1e-06
        %v4799 = vmax.f32 %v4287, 1e-06
        %v4800 = vmax.f32 %v4288, 1e-06
        %v4801 = vmax.f32 %v4289, 1e-06
        %v4802 = vmax.f32 %v4290, 1e-06
        %v4803 = vmax.f32 %v4291, 1e-06
        %v4804 = vmax.f32 %v4292, 1e-06
        %v4805 = vmax.f32 %v4293, 1e-06
        %v4806 = vmax.f32 %v4294, 1e-06
        %v4807 = vmax.f32 %v4295, 1e-06
        %v4808 = vmax.f32 %v4296, 1e-06
        %v4809 = vmax.f32 %v4297, 1e-06
        %v4810 = vmax.f32 %v4298, 1e-06
        %v4811 = vmax.f32 %v4299, 1e-06
        %v4812 = vmax.f32 %v4300, 1e-06
        %v4813 = vmax.f32 %v4301, 1e-06
        %v4814 = vmax.f32 %v4302, 1e-06
        %v4815 = vmax.f32 %v4303, 1e-06
        %v4816 = vmax.f32 %v4304, 1e-06
        %v4817 = vmax.f32 %v4305, 1e-06
        %v4818 = vmax.f32 %v4306, 1e-06
        %v4819 = vmax.f32 %v4307, 1e-06
        %v4820 = vmax.f32 %v4308, 1e-06
        %v4821 = vmax.f32 %v4309, 1e-06
        %v4822 = vmax.f32 %v4310, 1e-06
        %v4823 = vmax.f32 %v4311, 1e-06
        %v4824 = vmax.f32 %v4312, 1e-06
        %v4825 = vmax.f32 %v4313, 1e-06
        %v4826 = vmax.f32 %v4314, 1e-06
        %v4827 = vmax.f32 %v4315, 1e-06
        %v4828 = vmax.f32 %v4316, 1e-06
        %v4829 = vmax.f32 %v4317, 1e-06
        %v4830 = vmax.f32 %v4318, 1e-06
        %v4831 = vmax.f32 %v4319, 1e-06
        %v4832 = vmax.f32 %v4320, 1e-06
        %v4833 = vmax.f32 %v4321, 1e-06
        %v4834 = vmax.f32 %v4322, 1e-06
        %v4835 = vmax.f32 %v4323, 1e-06
        %v4836 = vmax.f32 %v4324, 1e-06
        %v4837 = vmax.f32 %v4325, 1e-06
        %v4838 = vmax.f32 %v4326, 1e-06
        %v4839 = vmax.f32 %v4327, 1e-06
        %v4840 = vmax.f32 %v4328, 1e-06
        %v4841 = vmax.f32 %v4329, 1e-06
        %v4842 = vmax.f32 %v4330, 1e-06
        %v4843 = vmax.f32 %v4331, 1e-06
        %v4844 = vmax.f32 %v4332, 1e-06
        %v4845 = vmax.f32 %v4333, 1e-06
        %v4846 = vmax.f32 %v4334, 1e-06
        %v4847 = vmax.f32 %v4335, 1e-06
        %v4848 = vmax.f32 %v4336, 1e-06
        %v4849 = vmax.f32 %v4337, 1e-06
        %v4850 = vmax.f32 %v4338, 1e-06
        %v4851 = vmax.f32 %v4339, 1e-06
        %v4852 = vmax.f32 %v4340, 1e-06
        %v4853 = vmax.f32 %v4341, 1e-06
        %v4854 = vmax.f32 %v4342, 1e-06
        %v4855 = vmax.f32 %v4343, 1e-06
        %v4856 = vmax.f32 %v4344, 1e-06
        %v4857 = vmax.f32 %v4345, 1e-06
        %v4858 = vmax.f32 %v4346, 1e-06
        %v4859 = vmax.f32 %v4347, 1e-06
        %v4860 = vmax.f32 %v4348, 1e-06
        %v4861 = vmax.f32 %v4349, 1e-06
        %v4862 = vmax.f32 %v4350, 1e-06
        %v4863 = vmax.f32 %v4351, 1e-06
        %v4864 = vmax.f32 %v4352, 1e-06
        %v4865 = vmax.f32 %v4353, 1e-06
        %v4866 = vmax.f32 %v4354, 1e-06
        %v4867 = vmax.f32 %v4355, 1e-06
        %v4868 = vmax.f32 %v4356, 1e-06
        %v4869 = vmax.f32 %v4357, 1e-06
        %v4870 = vmax.f32 %v4358, 1e-06
        %v4871 = vmax.f32 %v4359, 1e-06
        %v4872 = vmax.f32 %v4360, 1e-06
        %v4873 = vmax.f32 %v4361, 1e-06
        %v4874 = vmax.f32 %v4362, 1e-06
        %v4875 = vmax.f32 %v4363, 1e-06
        %v4876 = vmax.f32 %v4364, 1e-06
        %v4877 = vmax.f32 %v4365, 1e-06
        %v4878 = vmax.f32 %v4366, 1e-06
        %v4879 = vmax.f32 %v4367, 1e-06
        %v4880 = vmax.f32 %v4368, 1e-06
        %v4881 = vmax.f32 %v4369, 1e-06
        %v4882 = vmax.f32 %v4370, 1e-06
        %v4883 = vmax.f32 %v4371, 1e-06
        %v4884 = vmax.f32 %v4372, 1e-06
        %v4885 = vmax.f32 %v4373, 1e-06
        %v4886 = vmax.f32 %v4374, 1e-06
        %v4887 = vmax.f32 %v4375, 1e-06
        %v4888 = vmax.f32 %v4376, 1e-06
        %v4889 = vmax.f32 %v4377, 1e-06
        %v4890 = vmax.f32 %v4378, 1e-06
        %v4891 = vmax.f32 %v4379, 1e-06
        %v4892 = vmax.f32 %v4380, 1e-06
        %v4893 = vmax.f32 %v4381, 1e-06
        %v4894 = vmax.f32 %v4382, 1e-06
        %v4895 = vmax.f32 %v4383, 1e-06
        %v4896 = vmax.f32 %v4384, 1e-06
        %v4897 = vmax.f32 %v4385, 1e-06
        %v4898 = vmax.f32 %v4386, 1e-06
        %v4899 = vmax.f32 %v4387, 1e-06
        %v4900 = vmax.f32 %v4388, 1e-06
        %v4901 = vmax.f32 %v4389, 1e-06
        %v4902 = vmax.f32 %v4390, 1e-06
        %v4903 = vmax.f32 %v4391, 1e-06
        %v4904 = vmax.f32 %v4392, 1e-06
        %v4905 = vmax.f32 %v4393, 1e-06
        %v4906 = vmax.f32 %v4394, 1e-06
        %v4907 = vmax.f32 %v4395, 1e-06
        %v4908 = vmax.f32 %v4396, 1e-06
        %v4909 = vmax.f32 %v4397, 1e-06
        %v4910 = vmax.f32 %v4398, 1e-06
        %v4911 = vmax.f32 %v4399, 1e-06
        %v4912 = vmax.f32 %v4400, 1e-06
        %v4913 = vmax.f32 %v4401, 1e-06
        %v4914 = vmax.f32 %v4402, 1e-06
        %v4915 = vmax.f32 %v4403, 1e-06
        %v4916 = vmax.f32 %v4404, 1e-06
        %v4917 = vmax.f32 %v4405, 1e-06
        %v4918 = vmax.f32 %v4406, 1e-06
        %v4919 = vmax.f32 %v4407, 1e-06
        %v4920 = vmax.f32 %v4408, 1e-06
        %v4921 = vmax.f32 %v4409, 1e-06
        %v4922 = vmax.f32 %v4410, 1e-06
        %v4923 = vmax.f32 %v4411, 1e-06
        %v4924 = vmax.f32 %v4412, 1e-06
        %v4925 = vmax.f32 %v4413, 1e-06
        %v4926 = vmax.f32 %v4414, 1e-06
        %v4927 = vmax.f32 %v4415, 1e-06
        %v4928 = vmax.f32 %v4416, 1e-06
        %v4929 = vmax.f32 %v4417, 1e-06
        %v4930 = vmax.f32 %v4418, 1e-06
        %v4931 = vmax.f32 %v4419, 1e-06
        %v4932 = vmax.f32 %v4420, 1e-06
        %v4933 = vmax.f32 %v4421, 1e-06
        %v4934 = vmax.f32 %v4422, 1e-06
        %v4935 = vmax.f32 %v4423, 1e-06
        %v4936 = vmax.f32 %v4424, 1e-06
        %v4937 = vmax.f32 %v4425, 1e-06
        %v4938 = vmax.f32 %v4426, 1e-06
        %v4939 = vmax.f32 %v4427, 1e-06
        %v4940 = vmax.f32 %v4428, 1e-06
        %v4941 = vmax.f32 %v4429, 1e-06
        %v4942 = vmax.f32 %v4430, 1e-06
        %v4943 = vmax.f32 %v4431, 1e-06
        %v4944 = vmax.f32 %v4432, 1e-06
        %v4945 = vmax.f32 %v4433, 1e-06
        %v4946 = vmax.f32 %v4434, 1e-06
        %v4947 = vmax.f32 %v4435, 1e-06
        %v4948 = vmax.f32 %v4436, 1e-06
        %v4949 = vmax.f32 %v4437, 1e-06
        %v4950 = vmax.f32 %v4438, 1e-06
        %v4951 = vmax.f32 %v4439, 1e-06
        %v4952 = vmax.f32 %v4440, 1e-06
        %v4953 = vmax.f32 %v4441, 1e-06
        %v4954 = vmax.f32 %v4442, 1e-06
        %v4955 = vmax.f32 %v4443, 1e-06
        %v4956 = vmax.f32 %v4444, 1e-06
        %v4957 = vmax.f32 %v4445, 1e-06
        %v4958 = vmax.f32 %v4446, 1e-06
        %v4959 = vmax.f32 %v4447, 1e-06
        %v4960 = vmax.f32 %v4448, 1e-06
        %v4961 = vmax.f32 %v4449, 1e-06
        %v4962 = vmax.f32 %v4450, 1e-06
        %v4963 = vmax.f32 %v4451, 1e-06
        %v4964 = vmax.f32 %v4452, 1e-06
        %v4965 = vmax.f32 %v4453, 1e-06
        %v4966 = vmax.f32 %v4454, 1e-06
        %v4967 = vmax.f32 %v4455, 1e-06
        %v4968 = vmax.f32 %v4456, 1e-06
        %v4969 = vmax.f32 %v4457, 1e-06
        %v4970 = vmax.f32 %v4458, 1e-06
        %v4971 = vmax.f32 %v4459, 1e-06
        %v4972 = vmax.f32 %v4460, 1e-06
        %v4973 = vmax.f32 %v4461, 1e-06
        %v4974 = vmax.f32 %v4462, 1e-06
        %v4975 = vmax.f32 %v4463, 1e-06
        %v4976 = vmax.f32 %v4464, 1e-06
        %v4977 = vmax.f32 %v4465, 1e-06
        %v4978 = vmax.f32 %v4466, 1e-06
        %v4979 = vmax.f32 %v4467, 1e-06
        %v4980 = vmax.f32 %v4468, 1e-06
        %v4981 = vmax.f32 %v4469, 1e-06
        %v4982 = vmax.f32 %v4470, 1e-06
        %v4983 = vmax.f32 %v4471, 1e-06
        %v4984 = vmax.f32 %v4472, 1e-06
        %v4985 = vmax.f32 %v4473, 1e-06
        %v4986 = vmax.f32 %v4474, 1e-06
        %v4987 = vmax.f32 %v4475, 1e-06
        %v4988 = vmax.f32 %v4476, 1e-06
        %v4989 = vmax.f32 %v4477, 1e-06
        %v4990 = vmax.f32 %v4478, 1e-06
        %v4991 = vmax.f32 %v4479, 1e-06
        %v4992 = vmax.f32 %v4480, 1e-06
        %v4993 = vmax.f32 %v4481, 1e-06
        %v4994 = vmax.f32 %v4482, 1e-06
        %v4995 = vmax.f32 %v4483, 1e-06
        %v4996 = vmax.f32 %v4484, 1e-06
        %v4997 = vmax.f32 %v4485, 1e-06
        %v4998 = vmax.f32 %v4486, 1e-06
        %v4999 = vmax.f32 %v4487, 1e-06
        %v5000 = vmax.f32 %v4488, 1e-06
        %v5001 = vmax.f32 %v4489, 1e-06
        %v5002 = vmax.f32 %v4490, 1e-06
        %v5003 = vmax.f32 %v4491, 1e-06
        %v5004 = vmax.f32 %v4492, 1e-06
        %v5005 = vmax.f32 %v4493, 1e-06
        %v5006 = vmax.f32 %v4494, 1e-06
        %v5007 = vmax.f32 %v4495, 1e-06
        %v5008 = vmax.f32 %v4496, 1e-06
        %v5009 = vmax.f32 %v4497, 1e-06
        %v5010 = vmax.f32 %v4498, 1e-06
        %v5011 = vmax.f32 %v4499, 1e-06
        %v5012 = vmax.f32 %v4500, 1e-06
        %v5013 = vmax.f32 %v4501, 1e-06
        %v5014 = vmax.f32 %v4502, 1e-06
        %v5015 = vmax.f32 %v4503, 1e-06
        %v5016 = vmax.f32 %v4504, 1e-06
        %v5017 = vmax.f32 %v4505, 1e-06
        %v5018 = vmax.f32 %v4506, 1e-06
        %v5019 = vmax.f32 %v4507, 1e-06
        %v5020 = vmax.f32 %v4508, 1e-06
        %v5021 = vmax.f32 %v4509, 1e-06
        %v5022 = vmax.f32 %v4510, 1e-06
        %v5023 = vmax.f32 %v4511, 1e-06
        %v5024 = vmax.f32 %v4512, 1e-06
        %v5025 = vmax.f32 %v4513, 1e-06
        %v5026 = vmax.f32 %v4514, 1e-06
        %v5027 = vmax.f32 %v4515, 1e-06
        %v5028 = vmax.f32 %v4516, 1e-06
        %v5029 = vmax.f32 %v4517, 1e-06
        %v5030 = vmax.f32 %v4518, 1e-06
        %v5031 = vmax.f32 %v4519, 1e-06
        %v5032 = vmax.f32 %v4520, 1e-06
        %v5033 = vmax.f32 %v4521, 1e-06
        %v5034 = vmax.f32 %v4522, 1e-06
        %v5035 = vmax.f32 %v4523, 1e-06
        %v5036 = vmax.f32 %v4524, 1e-06
        %v5037 = vmax.f32 %v4525, 1e-06
        %v5038 = vmax.f32 %v4526, 1e-06
        %v5039 = vmax.f32 %v4527, 1e-06
        %v5040 = vmax.f32 %v4528, 1e-06
        %v5041 = vmax.f32 %v4529, 1e-06
        %v5042 = vmax.f32 %v4530, 1e-06
        %v5043 = vmax.f32 %v4531, 1e-06
        %v5044 = vmax.f32 %v4532, 1e-06
        %v5045 = vmax.f32 %v4533, 1e-06
        %v5046 = vmax.f32 %v4534, 1e-06
        %v5047 = vmax.f32 %v4535, 1e-06
        %v5048 = vmax.f32 %v4536, 1e-06
        %v5049 = vmax.f32 %v4537, 1e-06
        %v5050 = vmax.f32 %v4538, 1e-06
        %v5051 = vmax.f32 %v4539, 1e-06
        %v5052 = vmax.f32 %v4540, 1e-06
        %v5053 = vmax.f32 %v4541, 1e-06
        %v5054 = vmax.f32 %v4542, 1e-06
        %v5055 = vmax.f32 %v4543, 1e-06
        %v5056 = vmax.f32 %v4544, 1e-06
        %v5057 = vmax.f32 %v4545, 1e-06
        %v5058 = vmax.f32 %v4546, 1e-06
        %v5059 = vmax.f32 %v4547, 1e-06
        %v5060 = vmax.f32 %v4548, 1e-06
        %v5061 = vmax.f32 %v4549, 1e-06
        %v5062 = vmax.f32 %v4550, 1e-06
        %v5063 = vmax.f32 %v4551, 1e-06
        %v5064 = vmax.f32 %v4552, 1e-06
        %v5065 = vmax.f32 %v4553, 1e-06
        %v5066 = vmax.f32 %v4554, 1e-06
        %v5067 = vmax.f32 %v4555, 1e-06
        %v5068 = vmax.f32 %v4556, 1e-06
        %v5069 = vmax.f32 %v4557, 1e-06
        %v5070 = vmul.f32 %v4558, %v4558
        %v5071 = vmul.f32 %v4559, %v4559
        %v5072 = vmul.f32 %v4560, %v4560
        %v5073 = vmul.f32 %v4561, %v4561
        %v5074 = vmul.f32 %v4562, %v4562
        %v5075 = vmul.f32 %v4563, %v4563
        %v5076 = vmul.f32 %v4564, %v4564
        %v5077 = vmul.f32 %v4565, %v4565
        %v5078 = vmul.f32 %v4566, %v4566
        %v5079 = vmul.f32 %v4567, %v4567
        %v5080 = vmul.f32 %v4568, %v4568
        %v5081 = vmul.f32 %v4569, %v4569
        %v5082 = vmul.f32 %v4570, %v4570
        %v5083 = vmul.f32 %v4571, %v4571
        %v5084 = vmul.f32 %v4572, %v4572
        %v5085 = vmul.f32 %v4573, %v4573
        %v5086 = vmul.f32 %v4574, %v4574
        %v5087 = vmul.f32 %v4575, %v4575
        %v5088 = vmul.f32 %v4576, %v4576
        %v5089 = vmul.f32 %v4577, %v4577
        %v5090 = vmul.f32 %v4578, %v4578
        %v5091 = vmul.f32 %v4579, %v4579
        %v5092 = vmul.f32 %v4580, %v4580
        %v5093 = vmul.f32 %v4581, %v4581
        %v5094 = vmul.f32 %v4582, %v4582
        %v5095 = vmul.f32 %v4583, %v4583
        %v5096 = vmul.f32 %v4584, %v4584
        %v5097 = vmul.f32 %v4585, %v4585
        %v5098 = vmul.f32 %v4586, %v4586
        %v5099 = vmul.f32 %v4587, %v4587
        %v5100 = vmul.f32 %v4588, %v4588
        %v5101 = vmul.f32 %v4589, %v4589
        %v5102 = vmul.f32 %v4590, %v4590
        %v5103 = vmul.f32 %v4591, %v4591
        %v5104 = vmul.f32 %v4592, %v4592
        %v5105 = vmul.f32 %v4593, %v4593
        %v5106 = vmul.f32 %v4594, %v4594
        %v5107 = vmul.f32 %v4595, %v4595
        %v5108 = vmul.f32 %v4596, %v4596
        %v5109 = vmul.f32 %v4597, %v4597
        %v5110 = vmul.f32 %v4598, %v4598
        %v5111 = vmul.f32 %v4599, %v4599
        %v5112 = vmul.f32 %v4600, %v4600
        %v5113 = vmul.f32 %v4601, %v4601
        %v5114 = vmul.f32 %v4602, %v4602
        %v5115 = vmul.f32 %v4603, %v4603
        %v5116 = vmul.f32 %v4604, %v4604
        %v5117 = vmul.f32 %v4605, %v4605
        %v5118 = vmul.f32 %v4606, %v4606
        %v5119 = vmul.f32 %v4607, %v4607
        %v5120 = vmul.f32 %v4608, %v4608
        %v5121 = vmul.f32 %v4609, %v4609
        %v5122 = vmul.f32 %v4610, %v4610
        %v5123 = vmul.f32 %v4611, %v4611
        %v5124 = vmul.f32 %v4612, %v4612
        %v5125 = vmul.f32 %v4613, %v4613
        %v5126 = vmul.f32 %v4614, %v4614
        %v5127 = vmul.f32 %v4615, %v4615
        %v5128 = vmul.f32 %v4616, %v4616
        %v5129 = vmul.f32 %v4617, %v4617
        %v5130 = vmul.f32 %v4618, %v4618
        %v5131 = vmul.f32 %v4619, %v4619
        %v5132 = vmul.f32 %v4620, %v4620
        %v5133 = vmul.f32 %v4621, %v4621
        %v5134 = vmul.f32 %v4622, %v4622
        %v5135 = vmul.f32 %v4623, %v4623
        %v5136 = vmul.f32 %v4624, %v4624
        %v5137 = vmul.f32 %v4625, %v4625
        %v5138 = vmul.f32 %v4626, %v4626
        %v5139 = vmul.f32 %v4627, %v4627
        %v5140 = vmul.f32 %v4628, %v4628
        %v5141 = vmul.f32 %v4629, %v4629
        %v5142 = vmul.f32 %v4630, %v4630
        %v5143 = vmul.f32 %v4631, %v4631
        %v5144 = vmul.f32 %v4632, %v4632
        %v5145 = vmul.f32 %v4633, %v4633
        %v5146 = vmul.f32 %v4634, %v4634
        %v5147 = vmul.f32 %v4635, %v4635
        %v5148 = vmul.f32 %v4636, %v4636
        %v5149 = vmul.f32 %v4637, %v4637
        %v5150 = vmul.f32 %v4638, %v4638
        %v5151 = vmul.f32 %v4639, %v4639
        %v5152 = vmul.f32 %v4640, %v4640
        %v5153 = vmul.f32 %v4641, %v4641
        %v5154 = vmul.f32 %v4642, %v4642
        %v5155 = vmul.f32 %v4643, %v4643
        %v5156 = vmul.f32 %v4644, %v4644
        %v5157 = vmul.f32 %v4645, %v4645
        %v5158 = vmul.f32 %v4646, %v4646
        %v5159 = vmul.f32 %v4647, %v4647
        %v5160 = vmul.f32 %v4648, %v4648
        %v5161 = vmul.f32 %v4649, %v4649
        %v5162 = vmul.f32 %v4650, %v4650
        %v5163 = vmul.f32 %v4651, %v4651
        %v5164 = vmul.f32 %v4652, %v4652
        %v5165 = vmul.f32 %v4653, %v4653
        %v5166 = vmul.f32 %v4654, %v4654
        %v5167 = vmul.f32 %v4655, %v4655
        %v5168 = vmul.f32 %v4656, %v4656
        %v5169 = vmul.f32 %v4657, %v4657
        %v5170 = vmul.f32 %v4658, %v4658
        %v5171 = vmul.f32 %v4659, %v4659
        %v5172 = vmul.f32 %v4660, %v4660
        %v5173 = vmul.f32 %v4661, %v4661
        %v5174 = vmul.f32 %v4662, %v4662
        %v5175 = vmul.f32 %v4663, %v4663
        %v5176 = vmul.f32 %v4664, %v4664
        %v5177 = vmul.f32 %v4665, %v4665
        %v5178 = vmul.f32 %v4666, %v4666
        %v5179 = vmul.f32 %v4667, %v4667
        %v5180 = vmul.f32 %v4668, %v4668
        %v5181 = vmul.f32 %v4669, %v4669
        %v5182 = vmul.f32 %v4670, %v4670
        %v5183 = vmul.f32 %v4671, %v4671
        %v5184 = vmul.f32 %v4672, %v4672
        %v5185 = vmul.f32 %v4673, %v4673
        %v5186 = vmul.f32 %v4674, %v4674
        %v5187 = vmul.f32 %v4675, %v4675
        %v5188 = vmul.f32 %v4676, %v4676
        %v5189 = vmul.f32 %v4677, %v4677
        %v5190 = vmul.f32 %v4678, %v4678
        %v5191 = vmul.f32 %v4679, %v4679
        %v5192 = vmul.f32 %v4680, %v4680
        %v5193 = vmul.f32 %v4681, %v4681
        %v5194 = vmul.f32 %v4682, %v4682
        %v5195 = vmul.f32 %v4683, %v4683
        %v5196 = vmul.f32 %v4684, %v4684
        %v5197 = vmul.f32 %v4685, %v4685
        %v5198 = vmul.f32 %v4686, %v4686
        %v5199 = vmul.f32 %v4687, %v4687
        %v5200 = vmul.f32 %v4688, %v4688
        %v5201 = vmul.f32 %v4689, %v4689
        %v5202 = vmul.f32 %v4690, %v4690
        %v5203 = vmul.f32 %v4691, %v4691
        %v5204 = vmul.f32 %v4692, %v4692
        %v5205 = vmul.f32 %v4693, %v4693
        %v5206 = vmul.f32 %v4694, %v4694
        %v5207 = vmul.f32 %v4695, %v4695
        %v5208 = vmul.f32 %v4696, %v4696
        %v5209 = vmul.f32 %v4697, %v4697
        %v5210 = vmul.f32 %v4698, %v4698
        %v5211 = vmul.f32 %v4699, %v4699
        %v5212 = vmul.f32 %v4700, %v4700
        %v5213 = vmul.f32 %v4701, %v4701
        %v5214 = vmul.f32 %v4702, %v4702
        %v5215 = vmul.f32 %v4703, %v4703
        %v5216 = vmul.f32 %v4704, %v4704
        %v5217 = vmul.f32 %v4705, %v4705
        %v5218 = vmul.f32 %v4706, %v4706
        %v5219 = vmul.f32 %v4707, %v4707
        %v5220 = vmul.f32 %v4708, %v4708
        %v5221 = vmul.f32 %v4709, %v4709
        %v5222 = vmul.f32 %v4710, %v4710
        %v5223 = vmul.f32 %v4711, %v4711
        %v5224 = vmul.f32 %v4712, %v4712
        %v5225 = vmul.f32 %v4713, %v4713
        %v5226 = vmul.f32 %v4714, %v4714
        %v5227 = vmul.f32 %v4715, %v4715
        %v5228 = vmul.f32 %v4716, %v4716
        %v5229 = vmul.f32 %v4717, %v4717
        %v5230 = vmul.f32 %v4718, %v4718
        %v5231 = vmul.f32 %v4719, %v4719
        %v5232 = vmul.f32 %v4720, %v4720
        %v5233 = vmul.f32 %v4721, %v4721
        %v5234 = vmul.f32 %v4722, %v4722
        %v5235 = vmul.f32 %v4723, %v4723
        %v5236 = vmul.f32 %v4724, %v4724
        %v5237 = vmul.f32 %v4725, %v4725
        %v5238 = vmul.f32 %v4726, %v4726
        %v5239 = vmul.f32 %v4727, %v4727
        %v5240 = vmul.f32 %v4728, %v4728
        %v5241 = vmul.f32 %v4729, %v4729
        %v5242 = vmul.f32 %v4730, %v4730
        %v5243 = vmul.f32 %v4731, %v4731
        %v5244 = vmul.f32 %v4732, %v4732
        %v5245 = vmul.f32 %v4733, %v4733
        %v5246 = vmul.f32 %v4734, %v4734
        %v5247 = vmul.f32 %v4735, %v4735
        %v5248 = vmul.f32 %v4736, %v4736
        %v5249 = vmul.f32 %v4737, %v4737
        %v5250 = vmul.f32 %v4738, %v4738
        %v5251 = vmul.f32 %v4739, %v4739
        %v5252 = vmul.f32 %v4740, %v4740
        %v5253 = vmul.f32 %v4741, %v4741
        %v5254 = vmul.f32 %v4742, %v4742
        %v5255 = vmul.f32 %v4743, %v4743
        %v5256 = vmul.f32 %v4744, %v4744
        %v5257 = vmul.f32 %v4745, %v4745
        %v5258 = vmul.f32 %v4746, %v4746
        %v5259 = vmul.f32 %v4747, %v4747
        %v5260 = vmul.f32 %v4748, %v4748
        %v5261 = vmul.f32 %v4749, %v4749
        %v5262 = vmul.f32 %v4750, %v4750
        %v5263 = vmul.f32 %v4751, %v4751
        %v5264 = vmul.f32 %v4752, %v4752
        %v5265 = vmul.f32 %v4753, %v4753
        %v5266 = vmul.f32 %v4754, %v4754
        %v5267 = vmul.f32 %v4755, %v4755
        %v5268 = vmul.f32 %v4756, %v4756
        %v5269 = vmul.f32 %v4757, %v4757
        %v5270 = vmul.f32 %v4758, %v4758
        %v5271 = vmul.f32 %v4759, %v4759
        %v5272 = vmul.f32 %v4760, %v4760
        %v5273 = vmul.f32 %v4761, %v4761
        %v5274 = vmul.f32 %v4762, %v4762
        %v5275 = vmul.f32 %v4763, %v4763
        %v5276 = vmul.f32 %v4764, %v4764
        %v5277 = vmul.f32 %v4765, %v4765
        %v5278 = vmul.f32 %v4766, %v4766
        %v5279 = vmul.f32 %v4767, %v4767
        %v5280 = vmul.f32 %v4768, %v4768
        %v5281 = vmul.f32 %v4769, %v4769
        %v5282 = vmul.f32 %v4770, %v4770
        %v5283 = vmul.f32 %v4771, %v4771
        %v5284 = vmul.f32 %v4772, %v4772
        %v5285 = vmul.f32 %v4773, %v4773
        %v5286 = vmul.f32 %v4774, %v4774
        %v5287 = vmul.f32 %v4775, %v4775
        %v5288 = vmul.f32 %v4776, %v4776
        %v5289 = vmul.f32 %v4777, %v4777
        %v5290 = vmul.f32 %v4778, %v4778
        %v5291 = vmul.f32 %v4779, %v4779
        %v5292 = vmul.f32 %v4780, %v4780
        %v5293 = vmul.f32 %v4781, %v4781
        %v5294 = vmul.f32 %v4782, %v4782
        %v5295 = vmul.f32 %v4783, %v4783
        %v5296 = vmul.f32 %v4784, %v4784
        %v5297 = vmul.f32 %v4785, %v4785
        %v5298 = vmul.f32 %v4786, %v4786
        %v5299 = vmul.f32 %v4787, %v4787
        %v5300 = vmul.f32 %v4788, %v4788
        %v5301 = vmul.f32 %v4789, %v4789
        %v5302 = vmul.f32 %v4790, %v4790
        %v5303 = vmul.f32 %v4791, %v4791
        %v5304 = vmul.f32 %v4792, %v4792
        %v5305 = vmul.f32 %v4793, %v4793
        %v5306 = vmul.f32 %v4794, %v4794
        %v5307 = vmul.f32 %v4795, %v4795
        %v5308 = vmul.f32 %v4796, %v4796
        %v5309 = vmul.f32 %v4797, %v4797
        %v5310 = vmul.f32 %v4798, %v4798
        %v5311 = vmul.f32 %v4799, %v4799
        %v5312 = vmul.f32 %v4800, %v4800
        %v5313 = vmul.f32 %v4801, %v4801
        %v5314 = vmul.f32 %v4802, %v4802
        %v5315 = vmul.f32 %v4803, %v4803
        %v5316 = vmul.f32 %v4804, %v4804
        %v5317 = vmul.f32 %v4805, %v4805
        %v5318 = vmul.f32 %v4806, %v4806
        %v5319 = vmul.f32 %v4807, %v4807
        %v5320 = vmul.f32 %v4808, %v4808
        %v5321 = vmul.f32 %v4809, %v4809
        %v5322 = vmul.f32 %v4810, %v4810
        %v5323 = vmul.f32 %v4811, %v4811
        %v5324 = vmul.f32 %v4812, %v4812
        %v5325 = vmul.f32 %v4813, %v4813
        %v5326 = vmul.f32 %v4814, %v4814
        %v5327 = vmul.f32 %v4815, %v4815
        %v5328 = vmul.f32 %v4816, %v4816
        %v5329 = vmul.f32 %v4817, %v4817
        %v5330 = vmul.f32 %v4818, %v4818
        %v5331 = vmul.f32 %v4819, %v4819
        %v5332 = vmul.f32 %v4820, %v4820
        %v5333 = vmul.f32 %v4821, %v4821
        %v5334 = vmul.f32 %v4822, %v4822
        %v5335 = vmul.f32 %v4823, %v4823
        %v5336 = vmul.f32 %v4824, %v4824
        %v5337 = vmul.f32 %v4825, %v4825
        %v5338 = vmul.f32 %v4826, %v4826
        %v5339 = vmul.f32 %v4827, %v4827
        %v5340 = vmul.f32 %v4828, %v4828
        %v5341 = vmul.f32 %v4829, %v4829
        %v5342 = vmul.f32 %v4830, %v4830
        %v5343 = vmul.f32 %v4831, %v4831
        %v5344 = vmul.f32 %v4832, %v4832
        %v5345 = vmul.f32 %v4833, %v4833
        %v5346 = vmul.f32 %v4834, %v4834
        %v5347 = vmul.f32 %v4835, %v4835
        %v5348 = vmul.f32 %v4836, %v4836
        %v5349 = vmul.f32 %v4837, %v4837
        %v5350 = vmul.f32 %v4838, %v4838
        %v5351 = vmul.f32 %v4839, %v4839
        %v5352 = vmul.f32 %v4840, %v4840
        %v5353 = vmul.f32 %v4841, %v4841
        %v5354 = vmul.f32 %v4842, %v4842
        %v5355 = vmul.f32 %v4843, %v4843
        %v5356 = vmul.f32 %v4844, %v4844
        %v5357 = vmul.f32 %v4845, %v4845
        %v5358 = vmul.f32 %v4846, %v4846
        %v5359 = vmul.f32 %v4847, %v4847
        %v5360 = vmul.f32 %v4848, %v4848
        %v5361 = vmul.f32 %v4849, %v4849
        %v5362 = vmul.f32 %v4850, %v4850
        %v5363 = vmul.f32 %v4851, %v4851
        %v5364 = vmul.f32 %v4852, %v4852
        %v5365 = vmul.f32 %v4853, %v4853
        %v5366 = vmul.f32 %v4854, %v4854
        %v5367 = vmul.f32 %v4855, %v4855
        %v5368 = vmul.f32 %v4856, %v4856
        %v5369 = vmul.f32 %v4857, %v4857
        %v5370 = vmul.f32 %v4858, %v4858
        %v5371 = vmul.f32 %v4859, %v4859
        %v5372 = vmul.f32 %v4860, %v4860
        %v5373 = vmul.f32 %v4861, %v4861
        %v5374 = vmul.f32 %v4862, %v4862
        %v5375 = vmul.f32 %v4863, %v4863
        %v5376 = vmul.f32 %v4864, %v4864
        %v5377 = vmul.f32 %v4865, %v4865
        %v5378 = vmul.f32 %v4866, %v4866
        %v5379 = vmul.f32 %v4867, %v4867
        %v5380 = vmul.f32 %v4868, %v4868
        %v5381 = vmul.f32 %v4869, %v4869
        %v5382 = vmul.f32 %v4870, %v4870
        %v5383 = vmul.f32 %v4871, %v4871
        %v5384 = vmul.f32 %v4872, %v4872
        %v5385 = vmul.f32 %v4873, %v4873
        %v5386 = vmul.f32 %v4874, %v4874
        %v5387 = vmul.f32 %v4875, %v4875
        %v5388 = vmul.f32 %v4876, %v4876
        %v5389 = vmul.f32 %v4877, %v4877
        %v5390 = vmul.f32 %v4878, %v4878
        %v5391 = vmul.f32 %v4879, %v4879
        %v5392 = vmul.f32 %v4880, %v4880
        %v5393 = vmul.f32 %v4881, %v4881
        %v5394 = vmul.f32 %v4882, %v4882
        %v5395 = vmul.f32 %v4883, %v4883
        %v5396 = vmul.f32 %v4884, %v4884
        %v5397 = vmul.f32 %v4885, %v4885
        %v5398 = vmul.f32 %v4886, %v4886
        %v5399 = vmul.f32 %v4887, %v4887
        %v5400 = vmul.f32 %v4888, %v4888
        %v5401 = vmul.f32 %v4889, %v4889
        %v5402 = vmul.f32 %v4890, %v4890
        %v5403 = vmul.f32 %v4891, %v4891
        %v5404 = vmul.f32 %v4892, %v4892
        %v5405 = vmul.f32 %v4893, %v4893
        %v5406 = vmul.f32 %v4894, %v4894
        %v5407 = vmul.f32 %v4895, %v4895
        %v5408 = vmul.f32 %v4896, %v4896
        %v5409 = vmul.f32 %v4897, %v4897
        %v5410 = vmul.f32 %v4898, %v4898
        %v5411 = vmul.f32 %v4899, %v4899
        %v5412 = vmul.f32 %v4900, %v4900
        %v5413 = vmul.f32 %v4901, %v4901
        %v5414 = vmul.f32 %v4902, %v4902
        %v5415 = vmul.f32 %v4903, %v4903
        %v5416 = vmul.f32 %v4904, %v4904
        %v5417 = vmul.f32 %v4905, %v4905
        %v5418 = vmul.f32 %v4906, %v4906
        %v5419 = vmul.f32 %v4907, %v4907
        %v5420 = vmul.f32 %v4908, %v4908
        %v5421 = vmul.f32 %v4909, %v4909
        %v5422 = vmul.f32 %v4910, %v4910
        %v5423 = vmul.f32 %v4911, %v4911
        %v5424 = vmul.f32 %v4912, %v4912
        %v5425 = vmul.f32 %v4913, %v4913
        %v5426 = vmul.f32 %v4914, %v4914
        %v5427 = vmul.f32 %v4915, %v4915
        %v5428 = vmul.f32 %v4916, %v4916
        %v5429 = vmul.f32 %v4917, %v4917
        %v5430 = vmul.f32 %v4918, %v4918
        %v5431 = vmul.f32 %v4919, %v4919
        %v5432 = vmul.f32 %v4920, %v4920
        %v5433 = vmul.f32 %v4921, %v4921
        %v5434 = vmul.f32 %v4922, %v4922
        %v5435 = vmul.f32 %v4923, %v4923
        %v5436 = vmul.f32 %v4924, %v4924
        %v5437 = vmul.f32 %v4925, %v4925
        %v5438 = vmul.f32 %v4926, %v4926
        %v5439 = vmul.f32 %v4927, %v4927
        %v5440 = vmul.f32 %v4928, %v4928
        %v5441 = vmul.f32 %v4929, %v4929
        %v5442 = vmul.f32 %v4930, %v4930
        %v5443 = vmul.f32 %v4931, %v4931
        %v5444 = vmul.f32 %v4932, %v4932
        %v5445 = vmul.f32 %v4933, %v4933
        %v5446 = vmul.f32 %v4934, %v4934
        %v5447 = vmul.f32 %v4935, %v4935
        %v5448 = vmul.f32 %v4936, %v4936
        %v5449 = vmul.f32 %v4937, %v4937
        %v5450 = vmul.f32 %v4938, %v4938
        %v5451 = vmul.f32 %v4939, %v4939
        %v5452 = vmul.f32 %v4940, %v4940
        %v5453 = vmul.f32 %v4941, %v4941
        %v5454 = vmul.f32 %v4942, %v4942
        %v5455 = vmul.f32 %v4943, %v4943
        %v5456 = vmul.f32 %v4944, %v4944
        %v5457 = vmul.f32 %v4945, %v4945
        %v5458 = vmul.f32 %v4946, %v4946
        %v5459 = vmul.f32 %v4947, %v4947
        %v5460 = vmul.f32 %v4948, %v4948
        %v5461 = vmul.f32 %v4949, %v4949
        %v5462 = vmul.f32 %v4950, %v4950
        %v5463 = vmul.f32 %v4951, %v4951
        %v5464 = vmul.f32 %v4952, %v4952
        %v5465 = vmul.f32 %v4953, %v4953
        %v5466 = vmul.f32 %v4954, %v4954
        %v5467 = vmul.f32 %v4955, %v4955
        %v5468 = vmul.f32 %v4956, %v4956
        %v5469 = vmul.f32 %v4957, %v4957
        %v5470 = vmul.f32 %v4958, %v4958
        %v5471 = vmul.f32 %v4959, %v4959
        %v5472 = vmul.f32 %v4960, %v4960
        %v5473 = vmul.f32 %v4961, %v4961
        %v5474 = vmul.f32 %v4962, %v4962
        %v5475 = vmul.f32 %v4963, %v4963
        %v5476 = vmul.f32 %v4964, %v4964
        %v5477 = vmul.f32 %v4965, %v4965
        %v5478 = vmul.f32 %v4966, %v4966
        %v5479 = vmul.f32 %v4967, %v4967
        %v5480 = vmul.f32 %v4968, %v4968
        %v5481 = vmul.f32 %v4969, %v4969
        %v5482 = vmul.f32 %v4970, %v4970
        %v5483 = vmul.f32 %v4971, %v4971
        %v5484 = vmul.f32 %v4972, %v4972
        %v5485 = vmul.f32 %v4973, %v4973
        %v5486 = vmul.f32 %v4974, %v4974
        %v5487 = vmul.f32 %v4975, %v4975
        %v5488 = vmul.f32 %v4976, %v4976
        %v5489 = vmul.f32 %v4977, %v4977
        %v5490 = vmul.f32 %v4978, %v4978
        %v5491 = vmul.f32 %v4979, %v4979
        %v5492 = vmul.f32 %v4980, %v4980
        %v5493 = vmul.f32 %v4981, %v4981
        %v5494 = vmul.f32 %v4982, %v4982
        %v5495 = vmul.f32 %v4983, %v4983
        %v5496 = vmul.f32 %v4984, %v4984
        %v5497 = vmul.f32 %v4985, %v4985
        %v5498 = vmul.f32 %v4986, %v4986
        %v5499 = vmul.f32 %v4987, %v4987
        %v5500 = vmul.f32 %v4988, %v4988
        %v5501 = vmul.f32 %v4989, %v4989
        %v5502 = vmul.f32 %v4990, %v4990
        %v5503 = vmul.f32 %v4991, %v4991
        %v5504 = vmul.f32 %v4992, %v4992
        %v5505 = vmul.f32 %v4993, %v4993
        %v5506 = vmul.f32 %v4994, %v4994
        %v5507 = vmul.f32 %v4995, %v4995
        %v5508 = vmul.f32 %v4996, %v4996
        %v5509 = vmul.f32 %v4997, %v4997
        %v5510 = vmul.f32 %v4998, %v4998
        %v5511 = vmul.f32 %v4999, %v4999
        %v5512 = vmul.f32 %v5000, %v5000
        %v5513 = vmul.f32 %v5001, %v5001
        %v5514 = vmul.f32 %v5002, %v5002
        %v5515 = vmul.f32 %v5003, %v5003
        %v5516 = vmul.f32 %v5004, %v5004
        %v5517 = vmul.f32 %v5005, %v5005
        %v5518 = vmul.f32 %v5006, %v5006
        %v5519 = vmul.f32 %v5007, %v5007
        %v5520 = vmul.f32 %v5008, %v5008
        %v5521 = vmul.f32 %v5009, %v5009
        %v5522 = vmul.f32 %v5010, %v5010
        %v5523 = vmul.f32 %v5011, %v5011
        %v5524 = vmul.f32 %v5012, %v5012
        %v5525 = vmul.f32 %v5013, %v5013
        %v5526 = vmul.f32 %v5014, %v5014
        %v5527 = vmul.f32 %v5015, %v5015
        %v5528 = vmul.f32 %v5016, %v5016
        %v5529 = vmul.f32 %v5017, %v5017
        %v5530 = vmul.f32 %v5018, %v5018
        %v5531 = vmul.f32 %v5019, %v5019
        %v5532 = vmul.f32 %v5020, %v5020
        %v5533 = vmul.f32 %v5021, %v5021
        %v5534 = vmul.f32 %v5022, %v5022
        %v5535 = vmul.f32 %v5023, %v5023
        %v5536 = vmul.f32 %v5024, %v5024
        %v5537 = vmul.f32 %v5025, %v5025
        %v5538 = vmul.f32 %v5026, %v5026
        %v5539 = vmul.f32 %v5027, %v5027
        %v5540 = vmul.f32 %v5028, %v5028
        %v5541 = vmul.f32 %v5029, %v5029
        %v5542 = vmul.f32 %v5030, %v5030
        %v5543 = vmul.f32 %v5031, %v5031
        %v5544 = vmul.f32 %v5032, %v5032
        %v5545 = vmul.f32 %v5033, %v5033
        %v5546 = vmul.f32 %v5034, %v5034
        %v5547 = vmul.f32 %v5035, %v5035
        %v5548 = vmul.f32 %v5036, %v5036
        %v5549 = vmul.f32 %v5037, %v5037
        %v5550 = vmul.f32 %v5038, %v5038
        %v5551 = vmul.f32 %v5039, %v5039
        %v5552 = vmul.f32 %v5040, %v5040
        %v5553 = vmul.f32 %v5041, %v5041
        %v5554 = vmul.f32 %v5042, %v5042
        %v5555 = vmul.f32 %v5043, %v5043
        %v5556 = vmul.f32 %v5044, %v5044
        %v5557 = vmul.f32 %v5045, %v5045
        %v5558 = vmul.f32 %v5046, %v5046
        %v5559 = vmul.f32 %v5047, %v5047
        %v5560 = vmul.f32 %v5048, %v5048
        %v5561 = vmul.f32 %v5049, %v5049
        %v5562 = vmul.f32 %v5050, %v5050
        %v5563 = vmul.f32 %v5051, %v5051
        %v5564 = vmul.f32 %v5052, %v5052
        %v5565 = vmul.f32 %v5053, %v5053
        %v5566 = vmul.f32 %v5054, %v5054
        %v5567 = vmul.f32 %v5055, %v5055
        %v5568 = vmul.f32 %v5056, %v5056
        %v5569 = vmul.f32 %v5057, %v5057
        %v5570 = vmul.f32 %v5058, %v5058
        %v5571 = vmul.f32 %v5059, %v5059
        %v5572 = vmul.f32 %v5060, %v5060
        %v5573 = vmul.f32 %v5061, %v5061
        %v5574 = vmul.f32 %v5062, %v5062
        %v5575 = vmul.f32 %v5063, %v5063
        %v5576 = vmul.f32 %v5064, %v5064
        %v5577 = vmul.f32 %v5065, %v5065
        %v5578 = vmul.f32 %v5066, %v5066
        %v5579 = vmul.f32 %v5067, %v5067
        %v5580 = vmul.f32 %v5068, %v5068
        %v5581 = vmul.f32 %v5069, %v5069
        %v5582 = vmul.f32 %v5070, %v4558
        %v5583 = vmul.f32 %v5071, %v4559
        %v5584 = vmul.f32 %v5072, %v4560
        %v5585 = vmul.f32 %v5073, %v4561
        %v5586 = vmul.f32 %v5074, %v4562
        %v5587 = vmul.f32 %v5075, %v4563
        %v5588 = vmul.f32 %v5076, %v4564
        %v5589 = vmul.f32 %v5077, %v4565
        %v5590 = vmul.f32 %v5078, %v4566
        %v5591 = vmul.f32 %v5079, %v4567
        %v5592 = vmul.f32 %v5080, %v4568
        %v5593 = vmul.f32 %v5081, %v4569
        %v5594 = vmul.f32 %v5082, %v4570
        %v5595 = vmul.f32 %v5083, %v4571
        %v5596 = vmul.f32 %v5084, %v4572
        %v5597 = vmul.f32 %v5085, %v4573
        %v5598 = vmul.f32 %v5086, %v4574
        %v5599 = vmul.f32 %v5087, %v4575
        %v5600 = vmul.f32 %v5088, %v4576
        %v5601 = vmul.f32 %v5089, %v4577
        %v5602 = vmul.f32 %v5090, %v4578
        %v5603 = vmul.f32 %v5091, %v4579
        %v5604 = vmul.f32 %v5092, %v4580
        %v5605 = vmul.f32 %v5093, %v4581
        %v5606 = vmul.f32 %v5094, %v4582
        %v5607 = vmul.f32 %v5095, %v4583
        %v5608 = vmul.f32 %v5096, %v4584
        %v5609 = vmul.f32 %v5097, %v4585
        %v5610 = vmul.f32 %v5098, %v4586
        %v5611 = vmul.f32 %v5099, %v4587
        %v5612 = vmul.f32 %v5100, %v4588
        %v5613 = vmul.f32 %v5101, %v4589
        %v5614 = vmul.f32 %v5102, %v4590
        %v5615 = vmul.f32 %v5103, %v4591
        %v5616 = vmul.f32 %v5104, %v4592
        %v5617 = vmul.f32 %v5105, %v4593
        %v5618 = vmul.f32 %v5106, %v4594
        %v5619 = vmul.f32 %v5107, %v4595
        %v5620 = vmul.f32 %v5108, %v4596
        %v5621 = vmul.f32 %v5109, %v4597
        %v5622 = vmul.f32 %v5110, %v4598
        %v5623 = vmul.f32 %v5111, %v4599
        %v5624 = vmul.f32 %v5112, %v4600
        %v5625 = vmul.f32 %v5113, %v4601
        %v5626 = vmul.f32 %v5114, %v4602
        %v5627 = vmul.f32 %v5115, %v4603
        %v5628 = vmul.f32 %v5116, %v4604
        %v5629 = vmul.f32 %v5117, %v4605
        %v5630 = vmul.f32 %v5118, %v4606
        %v5631 = vmul.f32 %v5119, %v4607
        %v5632 = vmul.f32 %v5120, %v4608
        %v5633 = vmul.f32 %v5121, %v4609
        %v5634 = vmul.f32 %v5122, %v4610
        %v5635 = vmul.f32 %v5123, %v4611
        %v5636 = vmul.f32 %v5124, %v4612
        %v5637 = vmul.f32 %v5125, %v4613
        %v5638 = vmul.f32 %v5126, %v4614
        %v5639 = vmul.f32 %v5127, %v4615
        %v5640 = vmul.f32 %v5128, %v4616
        %v5641 = vmul.f32 %v5129, %v4617
        %v5642 = vmul.f32 %v5130, %v4618
        %v5643 = vmul.f32 %v5131, %v4619
        %v5644 = vmul.f32 %v5132, %v4620
        %v5645 = vmul.f32 %v5133, %v4621
        %v5646 = vmul.f32 %v5134, %v4622
        %v5647 = vmul.f32 %v5135, %v4623
        %v5648 = vmul.f32 %v5136, %v4624
        %v5649 = vmul.f32 %v5137, %v4625
        %v5650 = vmul.f32 %v5138, %v4626
        %v5651 = vmul.f32 %v5139, %v4627
        %v5652 = vmul.f32 %v5140, %v4628
        %v5653 = vmul.f32 %v5141, %v4629
        %v5654 = vmul.f32 %v5142, %v4630
        %v5655 = vmul.f32 %v5143, %v4631
        %v5656 = vmul.f32 %v5144, %v4632
        %v5657 = vmul.f32 %v5145, %v4633
        %v5658 = vmul.f32 %v5146, %v4634
        %v5659 = vmul.f32 %v5147, %v4635
        %v5660 = vmul.f32 %v5148, %v4636
        %v5661 = vmul.f32 %v5149, %v4637
        %v5662 = vmul.f32 %v5150, %v4638
        %v5663 = vmul.f32 %v5151, %v4639
        %v5664 = vmul.f32 %v5152, %v4640
        %v5665 = vmul.f32 %v5153, %v4641
        %v5666 = vmul.f32 %v5154, %v4642
        %v5667 = vmul.f32 %v5155, %v4643
        %v5668 = vmul.f32 %v5156, %v4644
        %v5669 = vmul.f32 %v5157, %v4645
        %v5670 = vmul.f32 %v5158, %v4646
        %v5671 = vmul.f32 %v5159, %v4647
        %v5672 = vmul.f32 %v5160, %v4648
        %v5673 = vmul.f32 %v5161, %v4649
        %v5674 = vmul.f32 %v5162, %v4650
        %v5675 = vmul.f32 %v5163, %v4651
        %v5676 = vmul.f32 %v5164, %v4652
        %v5677 = vmul.f32 %v5165, %v4653
        %v5678 = vmul.f32 %v5166, %v4654
        %v5679 = vmul.f32 %v5167, %v4655
        %v5680 = vmul.f32 %v5168, %v4656
        %v5681 = vmul.f32 %v5169, %v4657
        %v5682 = vmul.f32 %v5170, %v4658
        %v5683 = vmul.f32 %v5171, %v4659
        %v5684 = vmul.f32 %v5172, %v4660
        %v5685 = vmul.f32 %v5173, %v4661
        %v5686 = vmul.f32 %v5174, %v4662
        %v5687 = vmul.f32 %v5175, %v4663
        %v5688 = vmul.f32 %v5176, %v4664
        %v5689 = vmul.f32 %v5177, %v4665
        %v5690 = vmul.f32 %v5178, %v4666
        %v5691 = vmul.f32 %v5179, %v4667
        %v5692 = vmul.f32 %v5180, %v4668
        %v5693 = vmul.f32 %v5181, %v4669
        %v5694 = vmul.f32 %v5182, %v4670
        %v5695 = vmul.f32 %v5183, %v4671
        %v5696 = vmul.f32 %v5184, %v4672
        %v5697 = vmul.f32 %v5185, %v4673
        %v5698 = vmul.f32 %v5186, %v4674
        %v5699 = vmul.f32 %v5187, %v4675
        %v5700 = vmul.f32 %v5188, %v4676
        %v5701 = vmul.f32 %v5189, %v4677
        %v5702 = vmul.f32 %v5190, %v4678
        %v5703 = vmul.f32 %v5191, %v4679
        %v5704 = vmul.f32 %v5192, %v4680
        %v5705 = vmul.f32 %v5193, %v4681
        %v5706 = vmul.f32 %v5194, %v4682
        %v5707 = vmul.f32 %v5195, %v4683
        %v5708 = vmul.f32 %v5196, %v4684
        %v5709 = vmul.f32 %v5197, %v4685
        %v5710 = vmul.f32 %v5198, %v4686
        %v5711 = vmul.f32 %v5199, %v4687
        %v5712 = vmul.f32 %v5200, %v4688
        %v5713 = vmul.f32 %v5201, %v4689
        %v5714 = vmul.f32 %v5202, %v4690
        %v5715 = vmul.f32 %v5203, %v4691
        %v5716 = vmul.f32 %v5204, %v4692
        %v5717 = vmul.f32 %v5205, %v4693
        %v5718 = vmul.f32 %v5206, %v4694
        %v5719 = vmul.f32 %v5207, %v4695
        %v5720 = vmul.f32 %v5208, %v4696
        %v5721 = vmul.f32 %v5209, %v4697
        %v5722 = vmul.f32 %v5210, %v4698
        %v5723 = vmul.f32 %v5211, %v4699
        %v5724 = vmul.f32 %v5212, %v4700
        %v5725 = vmul.f32 %v5213, %v4701
        %v5726 = vmul.f32 %v5214, %v4702
        %v5727 = vmul.f32 %v5215, %v4703
        %v5728 = vmul.f32 %v5216, %v4704
        %v5729 = vmul.f32 %v5217, %v4705
        %v5730 = vmul.f32 %v5218, %v4706
        %v5731 = vmul.f32 %v5219, %v4707
        %v5732 = vmul.f32 %v5220, %v4708
        %v5733 = vmul.f32 %v5221, %v4709
        %v5734 = vmul.f32 %v5222, %v4710
        %v5735 = vmul.f32 %v5223, %v4711
        %v5736 = vmul.f32 %v5224, %v4712
        %v5737 = vmul.f32 %v5225, %v4713
        %v5738 = vmul.f32 %v5226, %v4714
        %v5739 = vmul.f32 %v5227, %v4715
        %v5740 = vmul.f32 %v5228, %v4716
        %v5741 = vmul.f32 %v5229, %v4717
        %v5742 = vmul.f32 %v5230, %v4718
        %v5743 = vmul.f32 %v5231, %v4719
        %v5744 = vmul.f32 %v5232, %v4720
        %v5745 = vmul.f32 %v5233, %v4721
        %v5746 = vmul.f32 %v5234, %v4722
        %v5747 = vmul.f32 %v5235, %v4723
        %v5748 = vmul.f32 %v5236, %v4724
        %v5749 = vmul.f32 %v5237, %v4725
        %v5750 = vmul.f32 %v5238, %v4726
        %v5751 = vmul.f32 %v5239, %v4727
        %v5752 = vmul.f32 %v5240, %v4728
        %v5753 = vmul.f32 %v5241, %v4729
        %v5754 = vmul.f32 %v5242, %v4730
        %v5755 = vmul.f32 %v5243, %v4731
        %v5756 = vmul.f32 %v5244, %v4732
        %v5757 = vmul.f32 %v5245, %v4733
        %v5758 = vmul.f32 %v5246, %v4734
        %v5759 = vmul.f32 %v5247, %v4735
        %v5760 = vmul.f32 %v5248, %v4736
        %v5761 = vmul.f32 %v5249, %v4737
        %v5762 = vmul.f32 %v5250, %v4738
        %v5763 = vmul.f32 %v5251, %v4739
        %v5764 = vmul.f32 %v5252, %v4740
        %v5765 = vmul.f32 %v5253, %v4741
        %v5766 = vmul.f32 %v5254, %v4742
        %v5767 = vmul.f32 %v5255, %v4743
        %v5768 = vmul.f32 %v5256, %v4744
        %v5769 = vmul.f32 %v5257, %v4745
        %v5770 = vmul.f32 %v5258, %v4746
        %v5771 = vmul.f32 %v5259, %v4747
        %v5772 = vmul.f32 %v5260, %v4748
        %v5773 = vmul.f32 %v5261, %v4749
        %v5774 = vmul.f32 %v5262, %v4750
        %v5775 = vmul.f32 %v5263, %v4751
        %v5776 = vmul.f32 %v5264, %v4752
        %v5777 = vmul.f32 %v5265, %v4753
        %v5778 = vmul.f32 %v5266, %v4754
        %v5779 = vmul.f32 %v5267, %v4755
        %v5780 = vmul.f32 %v5268, %v4756
        %v5781 = vmul.f32 %v5269, %v4757
        %v5782 = vmul.f32 %v5270, %v4758
        %v5783 = vmul.f32 %v5271, %v4759
        %v5784 = vmul.f32 %v5272, %v4760
        %v5785 = vmul.f32 %v5273, %v4761
        %v5786 = vmul.f32 %v5274, %v4762
        %v5787 = vmul.f32 %v5275, %v4763
        %v5788 = vmul.f32 %v5276, %v4764
        %v5789 = vmul.f32 %v5277, %v4765
        %v5790 = vmul.f32 %v5278, %v4766
        %v5791 = vmul.f32 %v5279, %v4767
        %v5792 = vmul.f32 %v5280, %v4768
        %v5793 = vmul.f32 %v5281, %v4769
        %v5794 = vmul.f32 %v5282, %v4770
        %v5795 = vmul.f32 %v5283, %v4771
        %v5796 = vmul.f32 %v5284, %v4772
        %v5797 = vmul.f32 %v5285, %v4773
        %v5798 = vmul.f32 %v5286, %v4774
        %v5799 = vmul.f32 %v5287, %v4775
        %v5800 = vmul.f32 %v5288, %v4776
        %v5801 = vmul.f32 %v5289, %v4777
        %v5802 = vmul.f32 %v5290, %v4778
        %v5803 = vmul.f32 %v5291, %v4779
        %v5804 = vmul.f32 %v5292, %v4780
        %v5805 = vmul.f32 %v5293, %v4781
        %v5806 = vmul.f32 %v5294, %v4782
        %v5807 = vmul.f32 %v5295, %v4783
        %v5808 = vmul.f32 %v5296, %v4784
        %v5809 = vmul.f32 %v5297, %v4785
        %v5810 = vmul.f32 %v5298, %v4786
        %v5811 = vmul.f32 %v5299, %v4787
        %v5812 = vmul.f32 %v5300, %v4788
        %v5813 = vmul.f32 %v5301, %v4789
        %v5814 = vmul.f32 %v5302, %v4790
        %v5815 = vmul.f32 %v5303, %v4791
        %v5816 = vmul.f32 %v5304, %v4792
        %v5817 = vmul.f32 %v5305, %v4793
        %v5818 = vmul.f32 %v5306, %v4794
        %v5819 = vmul.f32 %v5307, %v4795
        %v5820 = vmul.f32 %v5308, %v4796
        %v5821 = vmul.f32 %v5309, %v4797
        %v5822 = vmul.f32 %v5310, %v4798
        %v5823 = vmul.f32 %v5311, %v4799
        %v5824 = vmul.f32 %v5312, %v4800
        %v5825 = vmul.f32 %v5313, %v4801
        %v5826 = vmul.f32 %v5314, %v4802
        %v5827 = vmul.f32 %v5315, %v4803
        %v5828 = vmul.f32 %v5316, %v4804
        %v5829 = vmul.f32 %v5317, %v4805
        %v5830 = vmul.f32 %v5318, %v4806
        %v5831 = vmul.f32 %v5319, %v4807
        %v5832 = vmul.f32 %v5320, %v4808
        %v5833 = vmul.f32 %v5321, %v4809
        %v5834 = vmul.f32 %v5322, %v4810
        %v5835 = vmul.f32 %v5323, %v4811
        %v5836 = vmul.f32 %v5324, %v4812
        %v5837 = vmul.f32 %v5325, %v4813
        %v5838 = vmul.f32 %v5326, %v4814
        %v5839 = vmul.f32 %v5327, %v4815
        %v5840 = vmul.f32 %v5328, %v4816
        %v5841 = vmul.f32 %v5329, %v4817
        %v5842 = vmul.f32 %v5330, %v4818
        %v5843 = vmul.f32 %v5331, %v4819
        %v5844 = vmul.f32 %v5332, %v4820
        %v5845 = vmul.f32 %v5333, %v4821
        %v5846 = vmul.f32 %v5334, %v4822
        %v5847 = vmul.f32 %v5335, %v4823
        %v5848 = vmul.f32 %v5336, %v4824
        %v5849 = vmul.f32 %v5337, %v4825
        %v5850 = vmul.f32 %v5338, %v4826
        %v5851 = vmul.f32 %v5339, %v4827
        %v5852 = vmul.f32 %v5340, %v4828
        %v5853 = vmul.f32 %v5341, %v4829
        %v5854 = vmul.f32 %v5342, %v4830
        %v5855 = vmul.f32 %v5343, %v4831
        %v5856 = vmul.f32 %v5344, %v4832
        %v5857 = vmul.f32 %v5345, %v4833
        %v5858 = vmul.f32 %v5346, %v4834
        %v5859 = vmul.f32 %v5347, %v4835
        %v5860 = vmul.f32 %v5348, %v4836
        %v5861 = vmul.f32 %v5349, %v4837
        %v5862 = vmul.f32 %v5350, %v4838
        %v5863 = vmul.f32 %v5351, %v4839
        %v5864 = vmul.f32 %v5352, %v4840
        %v5865 = vmul.f32 %v5353, %v4841
        %v5866 = vmul.f32 %v5354, %v4842
        %v5867 = vmul.f32 %v5355, %v4843
        %v5868 = vmul.f32 %v5356, %v4844
        %v5869 = vmul.f32 %v5357, %v4845
        %v5870 = vmul.f32 %v5358, %v4846
        %v5871 = vmul.f32 %v5359, %v4847
        %v5872 = vmul.f32 %v5360, %v4848
        %v5873 = vmul.f32 %v5361, %v4849
        %v5874 = vmul.f32 %v5362, %v4850
        %v5875 = vmul.f32 %v5363, %v4851
        %v5876 = vmul.f32 %v5364, %v4852
        %v5877 = vmul.f32 %v5365, %v4853
        %v5878 = vmul.f32 %v5366, %v4854
        %v5879 = vmul.f32 %v5367, %v4855
        %v5880 = vmul.f32 %v5368, %v4856
        %v5881 = vmul.f32 %v5369, %v4857
        %v5882 = vmul.f32 %v5370, %v4858
        %v5883 = vmul.f32 %v5371, %v4859
        %v5884 = vmul.f32 %v5372, %v4860
        %v5885 = vmul.f32 %v5373, %v4861
        %v5886 = vmul.f32 %v5374, %v4862
        %v5887 = vmul.f32 %v5375, %v4863
        %v5888 = vmul.f32 %v5376, %v4864
        %v5889 = vmul.f32 %v5377, %v4865
        %v5890 = vmul.f32 %v5378, %v4866
        %v5891 = vmul.f32 %v5379, %v4867
        %v5892 = vmul.f32 %v5380, %v4868
        %v5893 = vmul.f32 %v5381, %v4869
        %v5894 = vmul.f32 %v5382, %v4870
        %v5895 = vmul.f32 %v5383, %v4871
        %v5896 = vmul.f32 %v5384, %v4872
        %v5897 = vmul.f32 %v5385, %v4873
        %v5898 = vmul.f32 %v5386, %v4874
        %v5899 = vmul.f32 %v5387, %v4875
        %v5900 = vmul.f32 %v5388, %v4876
        %v5901 = vmul.f32 %v5389, %v4877
        %v5902 = vmul.f32 %v5390, %v4878
        %v5903 = vmul.f32 %v5391, %v4879
        %v5904 = vmul.f32 %v5392, %v4880
        %v5905 = vmul.f32 %v5393, %v4881
        %v5906 = vmul.f32 %v5394, %v4882
        %v5907 = vmul.f32 %v5395, %v4883
        %v5908 = vmul.f32 %v5396, %v4884
        %v5909 = vmul.f32 %v5397, %v4885
        %v5910 = vmul.f32 %v5398, %v4886
        %v5911 = vmul.f32 %v5399, %v4887
        %v5912 = vmul.f32 %v5400, %v4888
        %v5913 = vmul.f32 %v5401, %v4889
        %v5914 = vmul.f32 %v5402, %v4890
        %v5915 = vmul.f32 %v5403, %v4891
        %v5916 = vmul.f32 %v5404, %v4892
        %v5917 = vmul.f32 %v5405, %v4893
        %v5918 = vmul.f32 %v5406, %v4894
        %v5919 = vmul.f32 %v5407, %v4895
        %v5920 = vmul.f32 %v5408, %v4896
        %v5921 = vmul.f32 %v5409, %v4897
        %v5922 = vmul.f32 %v5410, %v4898
        %v5923 = vmul.f32 %v5411, %v4899
        %v5924 = vmul.f32 %v5412, %v4900
        %v5925 = vmul.f32 %v5413, %v4901
        %v5926 = vmul.f32 %v5414, %v4902
        %v5927 = vmul.f32 %v5415, %v4903
        %v5928 = vmul.f32 %v5416, %v4904
        %v5929 = vmul.f32 %v5417, %v4905
        %v5930 = vmul.f32 %v5418, %v4906
        %v5931 = vmul.f32 %v5419, %v4907
        %v5932 = vmul.f32 %v5420, %v4908
        %v5933 = vmul.f32 %v5421, %v4909
        %v5934 = vmul.f32 %v5422, %v4910
        %v5935 = vmul.f32 %v5423, %v4911
        %v5936 = vmul.f32 %v5424, %v4912
        %v5937 = vmul.f32 %v5425, %v4913
        %v5938 = vmul.f32 %v5426, %v4914
        %v5939 = vmul.f32 %v5427, %v4915
        %v5940 = vmul.f32 %v5428, %v4916
        %v5941 = vmul.f32 %v5429, %v4917
        %v5942 = vmul.f32 %v5430, %v4918
        %v5943 = vmul.f32 %v5431, %v4919
        %v5944 = vmul.f32 %v5432, %v4920
        %v5945 = vmul.f32 %v5433, %v4921
        %v5946 = vmul.f32 %v5434, %v4922
        %v5947 = vmul.f32 %v5435, %v4923
        %v5948 = vmul.f32 %v5436, %v4924
        %v5949 = vmul.f32 %v5437, %v4925
        %v5950 = vmul.f32 %v5438, %v4926
        %v5951 = vmul.f32 %v5439, %v4927
        %v5952 = vmul.f32 %v5440, %v4928
        %v5953 = vmul.f32 %v5441, %v4929
        %v5954 = vmul.f32 %v5442, %v4930
        %v5955 = vmul.f32 %v5443, %v4931
        %v5956 = vmul.f32 %v5444, %v4932
        %v5957 = vmul.f32 %v5445, %v4933
        %v5958 = vmul.f32 %v5446, %v4934
        %v5959 = vmul.f32 %v5447, %v4935
        %v5960 = vmul.f32 %v5448, %v4936
        %v5961 = vmul.f32 %v5449, %v4937
        %v5962 = vmul.f32 %v5450, %v4938
        %v5963 = vmul.f32 %v5451, %v4939
        %v5964 = vmul.f32 %v5452, %v4940
        %v5965 = vmul.f32 %v5453, %v4941
        %v5966 = vmul.f32 %v5454, %v4942
        %v5967 = vmul.f32 %v5455, %v4943
        %v5968 = vmul.f32 %v5456, %v4944
        %v5969 = vmul.f32 %v5457, %v4945
        %v5970 = vmul.f32 %v5458, %v4946
        %v5971 = vmul.f32 %v5459, %v4947
        %v5972 = vmul.f32 %v5460, %v4948
        %v5973 = vmul.f32 %v5461, %v4949
        %v5974 = vmul.f32 %v5462, %v4950
        %v5975 = vmul.f32 %v5463, %v4951
        %v5976 = vmul.f32 %v5464, %v4952
        %v5977 = vmul.f32 %v5465, %v4953
        %v5978 = vmul.f32 %v5466, %v4954
        %v5979 = vmul.f32 %v5467, %v4955
        %v5980 = vmul.f32 %v5468, %v4956
        %v5981 = vmul.f32 %v5469, %v4957
        %v5982 = vmul.f32 %v5470, %v4958
        %v5983 = vmul.f32 %v5471, %v4959
        %v5984 = vmul.f32 %v5472, %v4960
        %v5985 = vmul.f32 %v5473, %v4961
        %v5986 = vmul.f32 %v5474, %v4962
        %v5987 = vmul.f32 %v5475, %v4963
        %v5988 = vmul.f32 %v5476, %v4964
        %v5989 = vmul.f32 %v5477, %v4965
        %v5990 = vmul.f32 %v5478, %v4966
        %v5991 = vmul.f32 %v5479, %v4967
        %v5992 = vmul.f32 %v5480, %v4968
        %v5993 = vmul.f32 %v5481, %v4969
        %v5994 = vmul.f32 %v5482, %v4970
        %v5995 = vmul.f32 %v5483, %v4971
        %v5996 = vmul.f32 %v5484, %v4972
        %v5997 = vmul.f32 %v5485, %v4973
        %v5998 = vmul.f32 %v5486, %v4974
        %v5999 = vmul.f32 %v5487, %v4975
        %v6000 = vmul.f32 %v5488, %v4976
        %v6001 = vmul.f32 %v5489, %v4977
        %v6002 = vmul.f32 %v5490, %v4978
        %v6003 = vmul.f32 %v5491, %v4979
        %v6004 = vmul.f32 %v5492, %v4980
        %v6005 = vmul.f32 %v5493, %v4981
        %v6006 = vmul.f32 %v5494, %v4982
        %v6007 = vmul.f32 %v5495, %v4983
        %v6008 = vmul.f32 %v5496, %v4984
        %v6009 = vmul.f32 %v5497, %v4985
        %v6010 = vmul.f32 %v5498, %v4986
        %v6011 = vmul.f32 %v5499, %v4987
        %v6012 = vmul.f32 %v5500, %v4988
        %v6013 = vmul.f32 %v5501, %v4989
        %v6014 = vmul.f32 %v5502, %v4990
        %v6015 = vmul.f32 %v5503, %v4991
        %v6016 = vmul.f32 %v5504, %v4992
        %v6017 = vmul.f32 %v5505, %v4993
        %v6018 = vmul.f32 %v5506, %v4994
        %v6019 = vmul.f32 %v5507, %v4995
        %v6020 = vmul.f32 %v5508, %v4996
        %v6021 = vmul.f32 %v5509, %v4997
        %v6022 = vmul.f32 %v5510, %v4998
        %v6023 = vmul.f32 %v5511, %v4999
        %v6024 = vmul.f32 %v5512, %v5000
        %v6025 = vmul.f32 %v5513, %v5001
        %v6026 = vmul.f32 %v5514, %v5002
        %v6027 = vmul.f32 %v5515, %v5003
        %v6028 = vmul.f32 %v5516, %v5004
        %v6029 = vmul.f32 %v5517, %v5005
        %v6030 = vmul.f32 %v5518, %v5006
        %v6031 = vmul.f32 %v5519, %v5007
        %v6032 = vmul.f32 %v5520, %v5008
        %v6033 = vmul.f32 %v5521, %v5009
        %v6034 = vmul.f32 %v5522, %v5010
        %v6035 = vmul.f32 %v5523, %v5011
        %v6036 = vmul.f32 %v5524, %v5012
        %v6037 = vmul.f32 %v5525, %v5013
        %v6038 = vmul.f32 %v5526, %v5014
        %v6039 = vmul.f32 %v5527, %v5015
        %v6040 = vmul.f32 %v5528, %v5016
        %v6041 = vmul.f32 %v5529, %v5017
        %v6042 = vmul.f32 %v5530, %v5018
        %v6043 = vmul.f32 %v5531, %v5019
        %v6044 = vmul.f32 %v5532, %v5020
        %v6045 = vmul.f32 %v5533, %v5021
        %v6046 = vmul.f32 %v5534, %v5022
        %v6047 = vmul.f32 %v5535, %v5023
        %v6048 = vmul.f32 %v5536, %v5024
        %v6049 = vmul.f32 %v5537, %v5025
        %v6050 = vmul.f32 %v5538, %v5026
        %v6051 = vmul.f32 %v5539, %v5027
        %v6052 = vmul.f32 %v5540, %v5028
        %v6053 = vmul.f32 %v5541, %v5029
        %v6054 = vmul.f32 %v5542, %v5030
        %v6055 = vmul.f32 %v5543, %v5031
        %v6056 = vmul.f32 %v5544, %v5032
        %v6057 = vmul.f32 %v5545, %v5033
        %v6058 = vmul.f32 %v5546, %v5034
        %v6059 = vmul.f32 %v5547, %v5035
        %v6060 = vmul.f32 %v5548, %v5036
        %v6061 = vmul.f32 %v5549, %v5037
        %v6062 = vmul.f32 %v5550, %v5038
        %v6063 = vmul.f32 %v5551, %v5039
        %v6064 = vmul.f32 %v5552, %v5040
        %v6065 = vmul.f32 %v5553, %v5041
        %v6066 = vmul.f32 %v5554, %v5042
        %v6067 = vmul.f32 %v5555, %v5043
        %v6068 = vmul.f32 %v5556, %v5044
        %v6069 = vmul.f32 %v5557, %v5045
        %v6070 = vmul.f32 %v5558, %v5046
        %v6071 = vmul.f32 %v5559, %v5047
        %v6072 = vmul.f32 %v5560, %v5048
        %v6073 = vmul.f32 %v5561, %v5049
        %v6074 = vmul.f32 %v5562, %v5050
        %v6075 = vmul.f32 %v5563, %v5051
        %v6076 = vmul.f32 %v5564, %v5052
        %v6077 = vmul.f32 %v5565, %v5053
        %v6078 = vmul.f32 %v5566, %v5054
        %v6079 = vmul.f32 %v5567, %v5055
        %v6080 = vmul.f32 %v5568, %v5056
        %v6081 = vmul.f32 %v5569, %v5057
        %v6082 = vmul.f32 %v5570, %v5058
        %v6083 = vmul.f32 %v5571, %v5059
        %v6084 = vmul.f32 %v5572, %v5060
        %v6085 = vmul.f32 %v5573, %v5061
        %v6086 = vmul.f32 %v5574, %v5062
        %v6087 = vmul.f32 %v5575, %v5063
        %v6088 = vmul.f32 %v5576, %v5064
        %v6089 = vmul.f32 %v5577, %v5065
        %v6090 = vmul.f32 %v5578, %v5066
        %v6091 = vmul.f32 %v5579, %v5067
        %v6092 = vmul.f32 %v5580, %v5068
        %v6093 = vmul.f32 %v5581, %v5069
        %v6094 = vld [vmem:[#allocation2] sm:$0xff]
        %v6095 = vld [vmem:[#allocation2 + $0x8] sm:$0xff]
        %v6096 = vld [vmem:[#allocation2 + $0x10] sm:$0xff]
        %v6097 = vld [vmem:[#allocation2 + $0x18] sm:$0xff]
        %v6098 = vld [vmem:[#allocation2 + $0x20] sm:$0xff]
        %v6099 = vld [vmem:[#allocation2 + $0x28] sm:$0xff]
        %v6100 = vld [vmem:[#allocation2 + $0x30] sm:$0xff]
        %v6101 = vld [vmem:[#allocation2 + $0x38] sm:$0xff]
        %v6102 = vld [vmem:[#allocation2 + $0x40] sm:$0xff]
        %v6103 = vld [vmem:[#allocation2 + $0x48] sm:$0xff]
        %v6104 = vld [vmem:[#allocation2 + $0x50] sm:$0xff]
        %v6105 = vld [vmem:[#allocation2 + $0x58] sm:$0xff]
        %v6106 = vld [vmem:[#allocation2 + $0x60] sm:$0xff]
        %v6107 = vld [vmem:[#allocation2 + $0x68] sm:$0xff]
        %v6108 = vld [vmem:[#allocation2 + $0x70] sm:$0xff]
        %v6109 = vld [vmem:[#allocation2 + $0x78] sm:$0xff]
        %v6110 = vadd.f32 %v5582, %v5598
        %v6111 = vadd.f32 %v6110, %v5614
        %v6112 = vadd.f32 %v6111, %v5630
        %v6113 = vadd.f32 %v6112, %v5646
        %v6114 = vadd.f32 %v6113, %v5662
        %v6115 = vadd.f32 %v6114, %v5678
        %v6116 = vadd.f32 %v6115, %v5694
        %v6117 = vadd.f32 %v6116, %v5710
        %v6118 = vadd.f32 %v6117, %v5726
        %v6119 = vadd.f32 %v6118, %v5742
        %v6120 = vadd.f32 %v6119, %v5758
        %v6121 = vadd.f32 %v6120, %v5774
        %v6122 = vadd.f32 %v6121, %v5790
        %v6123 = vadd.f32 %v6122, %v5806
        %v6124 = vadd.f32 %v6123, %v5822
        %v6125 = vadd.f32 %v6124, %v5838
        %v6126 = vadd.f32 %v6125, %v5854
        %v6127 = vadd.f32 %v6126, %v5870
        %v6128 = vadd.f32 %v6127, %v5886
        %v6129 = vadd.f32 %v6128, %v5902
        %v6130 = vadd.f32 %v6129, %v5918
        %v6131 = vadd.f32 %v6130, %v5934
        %v6132 = vadd.f32 %v6131, %v5950
        %v6133 = vadd.f32 %v6132, %v5966
        %v6134 = vadd.f32 %v6133, %v5982
        %v6135 = vadd.f32 %v6134, %v5998
        %v6136 = vadd.f32 %v6135, %v6014
        %v6137 = vadd.f32 %v6136, %v6030
        %v6138 = vadd.f32 %v6137, %v6046
        %v6139 = vadd.f32 %v6138, %v6062
        %v6140 = vadd.f32 %v6139, %v6078
        %v6141 = vadd.f32 %v5583, %v5599
        %v6142 = vadd.f32 %v6141, %v5615
        %v6143 = vadd.f32 %v6142, %v5631
        %v6144 = vadd.f32 %v6143, %v5647
        %v6145 = vadd.f32 %v6144, %v5663
        %v6146 = vadd.f32 %v6145, %v5679
        %v6147 = vadd.f32 %v6146, %v5695
        %v6148 = vadd.f32 %v6147, %v5711
        %v6149 = vadd.f32 %v6148, %v5727
        %v6150 = vadd.f32 %v6149, %v5743
        %v6151 = vadd.f32 %v6150, %v5759
        %v6152 = vadd.f32 %v6151, %v5775
        %v6153 = vadd.f32 %v6152, %v5791
        %v6154 = vadd.f32 %v6153, %v5807
        %v6155 = vadd.f32 %v6154, %v5823
        %v6156 = vadd.f32 %v6155, %v5839
        %v6157 = vadd.f32 %v6156, %v5855
        %v6158 = vadd.f32 %v6157, %v5871
        %v6159 = vadd.f32 %v6158, %v5887
        %v6160 = vadd.f32 %v6159, %v5903
        %v6161 = vadd.f32 %v6160, %v5919
        %v6162 = vadd.f32 %v6161, %v5935
        %v6163 = vadd.f32 %v6162, %v5951
        %v6164 = vadd.f32 %v6163, %v5967
        %v6165 = vadd.f32 %v6164, %v5983
        %v6166 = vadd.f32 %v6165, %v5999
        %v6167 = vadd.f32 %v6166, %v6015
        %v6168 = vadd.f32 %v6167, %v6031
        %v6169 = vadd.f32 %v6168, %v6047
        %v6170 = vadd.f32 %v6169, %v6063
        %v6171 = vadd.f32 %v6170, %v6079
        %v6172 = vadd.f32 %v5584, %v5600
        %v6173 = vadd.f32 %v6172, %v5616
        %v6174 = vadd.f32 %v6173, %v5632
        %v6175 = vadd.f32 %v6174, %v5648
        %v6176 = vadd.f32 %v6175, %v5664
        %v6177 = vadd.f32 %v6176, %v5680
        %v6178 = vadd.f32 %v6177, %v5696
        %v6179 = vadd.f32 %v6178, %v5712
        %v6180 = vadd.f32 %v6179, %v5728
        %v6181 = vadd.f32 %v6180, %v5744
        %v6182 = vadd.f32 %v6181, %v5760
        %v6183 = vadd.f32 %v6182, %v5776
        %v6184 = vadd.f32 %v6183, %v5792
        %v6185 = vadd.f32 %v6184, %v5808
        %v6186 = vadd.f32 %v6185, %v5824
        %v6187 = vadd.f32 %v6186, %v5840
        %v6188 = vadd.f32 %v6187, %v5856
        %v6189 = vadd.f32 %v6188, %v5872
        %v6190 = vadd.f32 %v6189, %v5888
        %v6191 = vadd.f32 %v6190, %v5904
        %v6192 = vadd.f32 %v6191, %v5920
        %v6193 = vadd.f32 %v6192, %v5936
        %v6194 = vadd.f32 %v6193, %v5952
        %v6195 = vadd.f32 %v6194, %v5968
        %v6196 = vadd.f32 %v6195, %v5984
        %v6197 = vadd.f32 %v6196, %v6000
        %v6198 = vadd.f32 %v6197, %v6016
        %v6199 = vadd.f32 %v6198, %v6032
        %v6200 = vadd.f32 %v6199, %v6048
        %v6201 = vadd.f32 %v6200, %v6064
        %v6202 = vadd.f32 %v6201, %v6080
        %v6203 = vadd.f32 %v5585, %v5601
        %v6204 = vadd.f32 %v6203, %v5617
        %v6205 = vadd.f32 %v6204, %v5633
        %v6206 = vadd.f32 %v6205, %v5649
        %v6207 = vadd.f32 %v6206, %v5665
        %v6208 = vadd.f32 %v6207, %v5681
        %v6209 = vadd.f32 %v6208, %v5697
        %v6210 = vadd.f32 %v6209, %v5713
        %v6211 = vadd.f32 %v6210, %v5729
        %v6212 = vadd.f32 %v6211, %v5745
        %v6213 = vadd.f32 %v6212, %v5761
        %v6214 = vadd.f32 %v6213, %v5777
        %v6215 = vadd.f32 %v6214, %v5793
        %v6216 = vadd.f32 %v6215, %v5809
        %v6217 = vadd.f32 %v6216, %v5825
        %v6218 = vadd.f32 %v6217, %v5841
        %v6219 = vadd.f32 %v6218, %v5857
        %v6220 = vadd.f32 %v6219, %v5873
        %v6221 = vadd.f32 %v6220, %v5889
        %v6222 = vadd.f32 %v6221, %v5905
        %v6223 = vadd.f32 %v6222, %v5921
        %v6224 = vadd.f32 %v6223, %v5937
        %v6225 = vadd.f32 %v6224, %v5953
        %v6226 = vadd.f32 %v6225, %v5969
        %v6227 = vadd.f32 %v6226, %v5985
        %v6228 = vadd.f32 %v6227, %v6001
        %v6229 = vadd.f32 %v6228, %v6017
        %v6230 = vadd.f32 %v6229, %v6033
        %v6231 = vadd.f32 %v6230, %v6049
        %v6232 = vadd.f32 %v6231, %v6065
        %v6233 = vadd.f32 %v6232, %v6081
        %v6234 = vadd.f32 %v5586, %v5602
        %v6235 = vadd.f32 %v6234, %v5618
        %v6236 = vadd.f32 %v6235, %v5634
        %v6237 = vadd.f32 %v6236, %v5650
        %v6238 = vadd.f32 %v6237, %v5666
        %v6239 = vadd.f32 %v6238, %v5682
        %v6240 = vadd.f32 %v6239, %v5698
        %v6241 = vadd.f32 %v6240, %v5714
        %v6242 = vadd.f32 %v6241, %v5730
        %v6243 = vadd.f32 %v6242, %v5746
        %v6244 = vadd.f32 %v6243, %v5762
        %v6245 = vadd.f32 %v6244, %v5778
        %v6246 = vadd.f32 %v6245, %v5794
        %v6247 = vadd.f32 %v6246, %v5810
        %v6248 = vadd.f32 %v6247, %v5826
        %v6249 = vadd.f32 %v6248, %v5842
        %v6250 = vadd.f32 %v6249, %v5858
        %v6251 = vadd.f32 %v6250, %v5874
        %v6252 = vadd.f32 %v6251, %v5890
        %v6253 = vadd.f32 %v6252, %v5906
        %v6254 = vadd.f32 %v6253, %v5922
        %v6255 = vadd.f32 %v6254, %v5938
        %v6256 = vadd.f32 %v6255, %v5954
        %v6257 = vadd.f32 %v6256, %v5970
        %v6258 = vadd.f32 %v6257, %v5986
        %v6259 = vadd.f32 %v6258, %v6002
        %v6260 = vadd.f32 %v6259, %v6018
        %v6261 = vadd.f32 %v6260, %v6034
        %v6262 = vadd.f32 %v6261, %v6050
        %v6263 = vadd.f32 %v6262, %v6066
        %v6264 = vadd.f32 %v6263, %v6082
        %v6265 = vadd.f32 %v5587, %v5603
        %v6266 = vadd.f32 %v6265, %v5619
        %v6267 = vadd.f32 %v6266, %v5635
        %v6268 = vadd.f32 %v6267, %v5651
        %v6269 = vadd.f32 %v6268, %v5667
        %v6270 = vadd.f32 %v6269, %v5683
        %v6271 = vadd.f32 %v6270, %v5699
        %v6272 = vadd.f32 %v6271, %v5715
        %v6273 = vadd.f32 %v6272, %v5731
        %v6274 = vadd.f32 %v6273, %v5747
        %v6275 = vadd.f32 %v6274, %v5763
        %v6276 = vadd.f32 %v6275, %v5779
        %v6277 = vadd.f32 %v6276, %v5795
        %v6278 = vadd.f32 %v6277, %v5811
        %v6279 = vadd.f32 %v6278, %v5827
        %v6280 = vadd.f32 %v6279, %v5843
        %v6281 = vadd.f32 %v6280, %v5859
        %v6282 = vadd.f32 %v6281, %v5875
        %v6283 = vadd.f32 %v6282, %v5891
        %v6284 = vadd.f32 %v6283, %v5907
        %v6285 = vadd.f32 %v6284, %v5923
        %v6286 = vadd.f32 %v6285, %v5939
        %v6287 = vadd.f32 %v6286, %v5955
        %v6288 = vadd.f32 %v6287, %v5971
        %v6289 = vadd.f32 %v6288, %v5987
        %v6290 = vadd.f32 %v6289, %v6003
        %v6291 = vadd.f32 %v6290, %v6019
        %v6292 = vadd.f32 %v6291, %v6035
        %v6293 = vadd.f32 %v6292, %v6051
        %v6294 = vadd.f32 %v6293, %v6067
        %v6295 = vadd.f32 %v6294, %v6083
        %v6296 = vadd.f32 %v5588, %v5604
        %v6297 = vadd.f32 %v6296, %v5620
        %v6298 = vadd.f32 %v6297, %v5636
        %v6299 = vadd.f32 %v6298, %v5652
        %v6300 = vadd.f32 %v6299, %v5668
        %v6301 = vadd.f32 %v6300, %v5684
        %v6302 = vadd.f32 %v6301, %v5700
        %v6303 = vadd.f32 %v6302, %v5716
        %v6304 = vadd.f32 %v6303, %v5732
        %v6305 = vadd.f32 %v6304, %v5748
        %v6306 = vadd.f32 %v6305, %v5764
        %v6307 = vadd.f32 %v6306, %v5780
        %v6308 = vadd.f32 %v6307, %v5796
        %v6309 = vadd.f32 %v6308, %v5812
        %v6310 = vadd.f32 %v6309, %v5828
        %v6311 = vadd.f32 %v6310, %v5844
        %v6312 = vadd.f32 %v6311, %v5860
        %v6313 = vadd.f32 %v6312, %v5876
        %v6314 = vadd.f32 %v6313, %v5892
        %v6315 = vadd.f32 %v6314, %v5908
        %v6316 = vadd.f32 %v6315, %v5924
        %v6317 = vadd.f32 %v6316, %v5940
        %v6318 = vadd.f32 %v6317, %v5956
        %v6319 = vadd.f32 %v6318, %v5972
        %v6320 = vadd.f32 %v6319, %v5988
        %v6321 = vadd.f32 %v6320, %v6004
        %v6322 = vadd.f32 %v6321, %v6020
        %v6323 = vadd.f32 %v6322, %v6036
        %v6324 = vadd.f32 %v6323, %v6052
        %v6325 = vadd.f32 %v6324, %v6068
        %v6326 = vadd.f32 %v6325, %v6084
        %v6327 = vadd.f32 %v5589, %v5605
        %v6328 = vadd.f32 %v6327, %v5621
        %v6329 = vadd.f32 %v6328, %v5637
        %v6330 = vadd.f32 %v6329, %v5653
        %v6331 = vadd.f32 %v6330, %v5669
        %v6332 = vadd.f32 %v6331, %v5685
        %v6333 = vadd.f32 %v6332, %v5701
        %v6334 = vadd.f32 %v6333, %v5717
        %v6335 = vadd.f32 %v6334, %v5733
        %v6336 = vadd.f32 %v6335, %v5749
        %v6337 = vadd.f32 %v6336, %v5765
        %v6338 = vadd.f32 %v6337, %v5781
        %v6339 = vadd.f32 %v6338, %v5797
        %v6340 = vadd.f32 %v6339, %v5813
        %v6341 = vadd.f32 %v6340, %v5829
        %v6342 = vadd.f32 %v6341, %v5845
        %v6343 = vadd.f32 %v6342, %v5861
        %v6344 = vadd.f32 %v6343, %v5877
        %v6345 = vadd.f32 %v6344, %v5893
        %v6346 = vadd.f32 %v6345, %v5909
        %v6347 = vadd.f32 %v6346, %v5925
        %v6348 = vadd.f32 %v6347, %v5941
        %v6349 = vadd.f32 %v6348, %v5957
        %v6350 = vadd.f32 %v6349, %v5973
        %v6351 = vadd.f32 %v6350, %v5989
        %v6352 = vadd.f32 %v6351, %v6005
        %v6353 = vadd.f32 %v6352, %v6021
        %v6354 = vadd.f32 %v6353, %v6037
        %v6355 = vadd.f32 %v6354, %v6053
        %v6356 = vadd.f32 %v6355, %v6069
        %v6357 = vadd.f32 %v6356, %v6085
        %v6358 = vadd.f32 %v5590, %v5606
        %v6359 = vadd.f32 %v6358, %v5622
        %v6360 = vadd.f32 %v6359, %v5638
        %v6361 = vadd.f32 %v6360, %v5654
        %v6362 = vadd.f32 %v6361, %v5670
        %v6363 = vadd.f32 %v6362, %v5686
        %v6364 = vadd.f32 %v6363, %v5702
        %v6365 = vadd.f32 %v6364, %v5718
        %v6366 = vadd.f32 %v6365, %v5734
        %v6367 = vadd.f32 %v6366, %v5750
        %v6368 = vadd.f32 %v6367, %v5766
        %v6369 = vadd.f32 %v6368, %v5782
        %v6370 = vadd.f32 %v6369, %v5798
        %v6371 = vadd.f32 %v6370, %v5814
        %v6372 = vadd.f32 %v6371, %v5830
        %v6373 = vadd.f32 %v6372, %v5846
        %v6374 = vadd.f32 %v6373, %v5862
        %v6375 = vadd.f32 %v6374, %v5878
        %v6376 = vadd.f32 %v6375, %v5894
        %v6377 = vadd.f32 %v6376, %v5910
        %v6378 = vadd.f32 %v6377, %v5926
        %v6379 = vadd.f32 %v6378, %v5942
        %v6380 = vadd.f32 %v6379, %v5958
        %v6381 = vadd.f32 %v6380, %v5974
        %v6382 = vadd.f32 %v6381, %v5990
        %v6383 = vadd.f32 %v6382, %v6006
        %v6384 = vadd.f32 %v6383, %v6022
        %v6385 = vadd.f32 %v6384, %v6038
        %v6386 = vadd.f32 %v6385, %v6054
        %v6387 = vadd.f32 %v6386, %v6070
        %v6388 = vadd.f32 %v6387, %v6086
        %v6389 = vadd.f32 %v5591, %v5607
        %v6390 = vadd.f32 %v6389, %v5623
        %v6391 = vadd.f32 %v6390, %v5639
        %v6392 = vadd.f32 %v6391, %v5655
        %v6393 = vadd.f32 %v6392, %v5671
        %v6394 = vadd.f32 %v6393, %v5687
        %v6395 = vadd.f32 %v6394, %v5703
        %v6396 = vadd.f32 %v6395, %v5719
        %v6397 = vadd.f32 %v6396, %v5735
        %v6398 = vadd.f32 %v6397, %v5751
        %v6399 = vadd.f32 %v6398, %v5767
        %v6400 = vadd.f32 %v6399, %v5783
        %v6401 = vadd.f32 %v6400, %v5799
        %v6402 = vadd.f32 %v6401, %v5815
        %v6403 = vadd.f32 %v6402, %v5831
        %v6404 = vadd.f32 %v6403, %v5847
        %v6405 = vadd.f32 %v6404, %v5863
        %v6406 = vadd.f32 %v6405, %v5879
        %v6407 = vadd.f32 %v6406, %v5895
        %v6408 = vadd.f32 %v6407, %v5911
        %v6409 = vadd.f32 %v6408, %v5927
        %v6410 = vadd.f32 %v6409, %v5943
        %v6411 = vadd.f32 %v6410, %v5959
        %v6412 = vadd.f32 %v6411, %v5975
        %v6413 = vadd.f32 %v6412, %v5991
        %v6414 = vadd.f32 %v6413, %v6007
        %v6415 = vadd.f32 %v6414, %v6023
        %v6416 = vadd.f32 %v6415, %v6039
        %v6417 = vadd.f32 %v6416, %v6055
        %v6418 = vadd.f32 %v6417, %v6071
        %v6419 = vadd.f32 %v6418, %v6087
        %v6420 = vadd.f32 %v5592, %v5608
        %v6421 = vadd.f32 %v6420, %v5624
        %v6422 = vadd.f32 %v6421, %v5640
        %v6423 = vadd.f32 %v6422, %v5656
        %v6424 = vadd.f32 %v6423, %v5672
        %v6425 = vadd.f32 %v6424, %v5688
        %v6426 = vadd.f32 %v6425, %v5704
        %v6427 = vadd.f32 %v6426, %v5720
        %v6428 = vadd.f32 %v6427, %v5736
        %v6429 = vadd.f32 %v6428, %v5752
        %v6430 = vadd.f32 %v6429, %v5768
        %v6431 = vadd.f32 %v6430, %v5784
        %v6432 = vadd.f32 %v6431, %v5800
        %v6433 = vadd.f32 %v6432, %v5816
        %v6434 = vadd.f32 %v6433, %v5832
        %v6435 = vadd.f32 %v6434, %v5848
        %v6436 = vadd.f32 %v6435, %v5864
        %v6437 = vadd.f32 %v6436, %v5880
        %v6438 = vadd.f32 %v6437, %v5896
        %v6439 = vadd.f32 %v6438, %v5912
        %v6440 = vadd.f32 %v6439, %v5928
        %v6441 = vadd.f32 %v6440, %v5944
        %v6442 = vadd.f32 %v6441, %v5960
        %v6443 = vadd.f32 %v6442, %v5976
        %v6444 = vadd.f32 %v6443, %v5992
        %v6445 = vadd.f32 %v6444, %v6008
        %v6446 = vadd.f32 %v6445, %v6024
        %v6447 = vadd.f32 %v6446, %v6040
        %v6448 = vadd.f32 %v6447, %v6056
        %v6449 = vadd.f32 %v6448, %v6072
        %v6450 = vadd.f32 %v6449, %v6088
        %v6451 = vadd.f32 %v5593, %v5609
        %v6452 = vadd.f32 %v6451, %v5625
        %v6453 = vadd.f32 %v6452, %v5641
        %v6454 = vadd.f32 %v6453, %v5657
        %v6455 = vadd.f32 %v6454, %v5673
        %v6456 = vadd.f32 %v6455, %v5689
        %v6457 = vadd.f32 %v6456, %v5705
        %v6458 = vadd.f32 %v6457, %v5721
        %v6459 = vadd.f32 %v6458, %v5737
        %v6460 = vadd.f32 %v6459, %v5753
        %v6461 = vadd.f32 %v6460, %v5769
        %v6462 = vadd.f32 %v6461, %v5785
        %v6463 = vadd.f32 %v6462, %v5801
        %v6464 = vadd.f32 %v6463, %v5817
        %v6465 = vadd.f32 %v6464, %v5833
        %v6466 = vadd.f32 %v6465, %v5849
        %v6467 = vadd.f32 %v6466, %v5865
        %v6468 = vadd.f32 %v6467, %v5881
        %v6469 = vadd.f32 %v6468, %v5897
        %v6470 = vadd.f32 %v6469, %v5913
        %v6471 = vadd.f32 %v6470, %v5929
        %v6472 = vadd.f32 %v6471, %v5945
        %v6473 = vadd.f32 %v6472, %v5961
        %v6474 = vadd.f32 %v6473, %v5977
        %v6475 = vadd.f32 %v6474, %v5993
        %v6476 = vadd.f32 %v6475, %v6009
        %v6477 = vadd.f32 %v6476, %v6025
        %v6478 = vadd.f32 %v6477, %v6041
        %v6479 = vadd.f32 %v6478, %v6057
        %v6480 = vadd.f32 %v6479, %v6073
        %v6481 = vadd.f32 %v6480, %v6089
        %v6482 = vadd.f32 %v5594, %v5610
        %v6483 = vadd.f32 %v6482, %v5626
        %v6484 = vadd.f32 %v6483, %v5642
        %v6485 = vadd.f32 %v6484, %v5658
        %v6486 = vadd.f32 %v6485, %v5674
        %v6487 = vadd.f32 %v6486, %v5690
        %v6488 = vadd.f32 %v6487, %v5706
        %v6489 = vadd.f32 %v6488, %v5722
        %v6490 = vadd.f32 %v6489, %v5738
        %v6491 = vadd.f32 %v6490, %v5754
        %v6492 = vadd.f32 %v6491, %v5770
        %v6493 = vadd.f32 %v6492, %v5786
        %v6494 = vadd.f32 %v6493, %v5802
        %v6495 = vadd.f32 %v6494, %v5818
        %v6496 = vadd.f32 %v6495, %v5834
        %v6497 = vadd.f32 %v6496, %v5850
        %v6498 = vadd.f32 %v6497, %v5866
        %v6499 = vadd.f32 %v6498, %v5882
        %v6500 = vadd.f32 %v6499, %v5898
        %v6501 = vadd.f32 %v6500, %v5914
        %v6502 = vadd.f32 %v6501, %v5930
        %v6503 = vadd.f32 %v6502, %v5946
        %v6504 = vadd.f32 %v6503, %v5962
        %v6505 = vadd.f32 %v6504, %v5978
        %v6506 = vadd.f32 %v6505, %v5994
        %v6507 = vadd.f32 %v6506, %v6010
        %v6508 = vadd.f32 %v6507, %v6026
        %v6509 = vadd.f32 %v6508, %v6042
        %v6510 = vadd.f32 %v6509, %v6058
        %v6511 = vadd.f32 %v6510, %v6074
        %v6512 = vadd.f32 %v6511, %v6090
        %v6513 = vadd.f32 %v5595, %v5611
        %v6514 = vadd.f32 %v6513, %v5627
        %v6515 = vadd.f32 %v6514, %v5643
        %v6516 = vadd.f32 %v6515, %v5659
        %v6517 = vadd.f32 %v6516, %v5675
        %v6518 = vadd.f32 %v6517, %v5691
        %v6519 = vadd.f32 %v6518, %v5707
        %v6520 = vadd.f32 %v6519, %v5723
        %v6521 = vadd.f32 %v6520, %v5739
        %v6522 = vadd.f32 %v6521, %v5755
        %v6523 = vadd.f32 %v6522, %v5771
        %v6524 = vadd.f32 %v6523, %v5787
        %v6525 = vadd.f32 %v6524, %v5803
        %v6526 = vadd.f32 %v6525, %v5819
        %v6527 = vadd.f32 %v6526, %v5835
        %v6528 = vadd.f32 %v6527, %v5851
        %v6529 = vadd.f32 %v6528, %v5867
        %v6530 = vadd.f32 %v6529, %v5883
        %v6531 = vadd.f32 %v6530, %v5899
        %v6532 = vadd.f32 %v6531, %v5915
        %v6533 = vadd.f32 %v6532, %v5931
        %v6534 = vadd.f32 %v6533, %v5947
        %v6535 = vadd.f32 %v6534, %v5963
        %v6536 = vadd.f32 %v6535, %v5979
        %v6537 = vadd.f32 %v6536, %v5995
        %v6538 = vadd.f32 %v6537, %v6011
        %v6539 = vadd.f32 %v6538, %v6027
        %v6540 = vadd.f32 %v6539, %v6043
        %v6541 = vadd.f32 %v6540, %v6059
        %v6542 = vadd.f32 %v6541, %v6075
        %v6543 = vadd.f32 %v6542, %v6091
        %v6544 = vadd.f32 %v5596, %v5612
        %v6545 = vadd.f32 %v6544, %v5628
        %v6546 = vadd.f32 %v6545, %v5644
        %v6547 = vadd.f32 %v6546, %v5660
        %v6548 = vadd.f32 %v6547, %v5676
        %v6549 = vadd.f32 %v6548, %v5692
        %v6550 = vadd.f32 %v6549, %v5708
        %v6551 = vadd.f32 %v6550, %v5724
        %v6552 = vadd.f32 %v6551, %v5740
        %v6553 = vadd.f32 %v6552, %v5756
        %v6554 = vadd.f32 %v6553, %v5772
        %v6555 = vadd.f32 %v6554, %v5788
        %v6556 = vadd.f32 %v6555, %v5804
        %v6557 = vadd.f32 %v6556, %v5820
        %v6558 = vadd.f32 %v6557, %v5836
        %v6559 = vadd.f32 %v6558, %v5852
        %v6560 = vadd.f32 %v6559, %v5868
        %v6561 = vadd.f32 %v6560, %v5884
        %v6562 = vadd.f32 %v6561, %v5900
        %v6563 = vadd.f32 %v6562, %v5916
        %v6564 = vadd.f32 %v6563, %v5932
        %v6565 = vadd.f32 %v6564, %v5948
        %v6566 = vadd.f32 %v6565, %v5964
        %v6567 = vadd.f32 %v6566, %v5980
        %v6568 = vadd.f32 %v6567, %v5996
        %v6569 = vadd.f32 %v6568, %v6012
        %v6570 = vadd.f32 %v6569, %v6028
        %v6571 = vadd.f32 %v6570, %v6044
        %v6572 = vadd.f32 %v6571, %v6060
        %v6573 = vadd.f32 %v6572, %v6076
        %v6574 = vadd.f32 %v6573, %v6092
        %v6575 = vadd.f32 %v5597, %v5613
        %v6576 = vadd.f32 %v6575, %v5629
        %v6577 = vadd.f32 %v6576, %v5645
        %v6578 = vadd.f32 %v6577, %v5661
        %v6579 = vadd.f32 %v6578, %v5677
        %v6580 = vadd.f32 %v6579, %v5693
        %v6581 = vadd.f32 %v6580, %v5709
        %v6582 = vadd.f32 %v6581, %v5725
        %v6583 = vadd.f32 %v6582, %v5741
        %v6584 = vadd.f32 %v6583, %v5757
        %v6585 = vadd.f32 %v6584, %v5773
        %v6586 = vadd.f32 %v6585, %v5789
        %v6587 = vadd.f32 %v6586, %v5805
        %v6588 = vadd.f32 %v6587, %v5821
        %v6589 = vadd.f32 %v6588, %v5837
        %v6590 = vadd.f32 %v6589, %v5853
        %v6591 = vadd.f32 %v6590, %v5869
        %v6592 = vadd.f32 %v6591, %v5885
        %v6593 = vadd.f32 %v6592, %v5901
        %v6594 = vadd.f32 %v6593, %v5917
        %v6595 = vadd.f32 %v6594, %v5933
        %v6596 = vadd.f32 %v6595, %v5949
        %v6597 = vadd.f32 %v6596, %v5965
        %v6598 = vadd.f32 %v6597, %v5981
        %v6599 = vadd.f32 %v6598, %v5997
        %v6600 = vadd.f32 %v6599, %v6013
        %v6601 = vadd.f32 %v6600, %v6029
        %v6602 = vadd.f32 %v6601, %v6045
        %v6603 = vadd.f32 %v6602, %v6061
        %v6604 = vadd.f32 %v6603, %v6077
        %v6605 = vadd.f32 %v6604, %v6093
        %v6606 = vadd.f32 %v6094, %v6140
        %v6607 = vadd.f32 %v6095, %v6171
        %v6608 = vadd.f32 %v6096, %v6202
        %v6609 = vadd.f32 %v6097, %v6233
        %v6610 = vadd.f32 %v6098, %v6264
        %v6611 = vadd.f32 %v6099, %v6295
        %v6612 = vadd.f32 %v6100, %v6326
        %v6613 = vadd.f32 %v6101, %v6357
        %v6614 = vadd.f32 %v6102, %v6388
        %v6615 = vadd.f32 %v6103, %v6419
        %v6616 = vadd.f32 %v6104, %v6450
        %v6617 = vadd.f32 %v6105, %v6481
        %v6618 = vadd.f32 %v6106, %v6512
        %v6619 = vadd.f32 %v6107, %v6543
        %v6620 = vadd.f32 %v6108, %v6574
        %v6621 = vadd.f32 %v6109, %v6605
        %6622 = vst [vmem:[#allocation2] sm:$0xff] %v6606
        %6623 = vst [vmem:[#allocation2 + $0x8] sm:$0xff] %v6607
        %6624 = vst [vmem:[#allocation2 + $0x10] sm:$0xff] %v6608
        %6625 = vst [vmem:[#allocation2 + $0x18] sm:$0xff] %v6609
        %6626 = vst [vmem:[#allocation2 + $0x20] sm:$0xff] %v6610
        %6627 = vst [vmem:[#allocation2 + $0x28] sm:$0xff] %v6611
        %6628 = vst [vmem:[#allocation2 + $0x30] sm:$0xff] %v6612
        %6629 = vst [vmem:[#allocation2 + $0x38] sm:$0xff] %v6613
        %6630 = vst [vmem:[#allocation2 + $0x40] sm:$0xff] %v6614
        %6631 = vst [vmem:[#allocation2 + $0x48] sm:$0xff] %v6615
        %6632 = vst [vmem:[#allocation2 + $0x50] sm:$0xff] %v6616
        %6633 = vst [vmem:[#allocation2 + $0x58] sm:$0xff] %v6617
        %6634 = vst [vmem:[#allocation2 + $0x60] sm:$0xff] %v6618
        %6635 = vst [vmem:[#allocation2 + $0x68] sm:$0xff] %v6619
        %6636 = vst [vmem:[#allocation2 + $0x70] sm:$0xff] %v6620
        %6637 = vst [vmem:[#allocation2 + $0x78] sm:$0xff] %v6621
        // Predicated region
        $region33: #{tpu_custom_call.1} parent=27 // pred_check
          %p6638 = pneg %p170
        $region34: #{tpu_custom_call.1} parent=27 // pred_check_branch
          %6640 = sbr.rel (%p6638) target = $region36
        $region35: #{tpu_custom_call.1} parent=27 // pred_region
          %v6641 = vld [vmem:[#allocation2] sm:$0xff]
          %v6642 = vld [vmem:[#allocation2 + $0x8] sm:$0xff]
          %v6643 = vld [vmem:[#allocation2 + $0x10] sm:$0xff]
          %v6644 = vld [vmem:[#allocation2 + $0x18] sm:$0xff]
          %v6645 = vld [vmem:[#allocation2 + $0x20] sm:$0xff]
          %v6646 = vld [vmem:[#allocation2 + $0x28] sm:$0xff]
          %v6647 = vld [vmem:[#allocation2 + $0x30] sm:$0xff]
          %v6648 = vld [vmem:[#allocation2 + $0x38] sm:$0xff]
          %v6649 = vld [vmem:[#allocation2 + $0x40] sm:$0xff]
          %v6650 = vld [vmem:[#allocation2 + $0x48] sm:$0xff]
          %v6651 = vld [vmem:[#allocation2 + $0x50] sm:$0xff]
          %v6652 = vld [vmem:[#allocation2 + $0x58] sm:$0xff]
          %v6653 = vld [vmem:[#allocation2 + $0x60] sm:$0xff]
          %v6654 = vld [vmem:[#allocation2 + $0x68] sm:$0xff]
          %v6655 = vld [vmem:[#allocation2 + $0x70] sm:$0xff]
          %v6656 = vld [vmem:[#allocation2 + $0x78] sm:$0xff]
          %v6657 = vrot.slane %v6641, 4
          %v6658 = vadd.f32 %v6641, %v6657
          %v6659 = vrot.slane %v6658, 2
          %v6660 = vadd.f32 %v6658, %v6659
          %v6661 = vrot.slane %v6660, 1
          %v6662 = vadd.f32 %v6660, %v6661
          %v6663 = vrot.slane %v6642, 4
          %v6664 = vadd.f32 %v6642, %v6663
          %v6665 = vrot.slane %v6664, 2
          %v6666 = vadd.f32 %v6664, %v6665
          %v6667 = vrot.slane %v6666, 1
          %v6668 = vadd.f32 %v6666, %v6667
          %v6669 = vrot.slane %v6643, 4
          %v6670 = vadd.f32 %v6643, %v6669
          %v6671 = vrot.slane %v6670, 2
          %v6672 = vadd.f32 %v6670, %v6671
          %v6673 = vrot.slane %v6672, 1
          %v6674 = vadd.f32 %v6672, %v6673
          %v6675 = vrot.slane %v6644, 4
          %v6676 = vadd.f32 %v6644, %v6675
          %v6677 = vrot.slane %v6676, 2
          %v6678 = vadd.f32 %v6676, %v6677
          %v6679 = vrot.slane %v6678, 1
          %v6680 = vadd.f32 %v6678, %v6679
          %v6681 = vrot.slane %v6645, 4
          %v6682 = vadd.f32 %v6645, %v6681
          %v6683 = vrot.slane %v6682, 2
          %v6684 = vadd.f32 %v6682, %v6683
          %v6685 = vrot.slane %v6684, 1
          %v6686 = vadd.f32 %v6684, %v6685
          %v6687 = vrot.slane %v6646, 4
          %v6688 = vadd.f32 %v6646, %v6687
          %v6689 = vrot.slane %v6688, 2
          %v6690 = vadd.f32 %v6688, %v6689
          %v6691 = vrot.slane %v6690, 1
          %v6692 = vadd.f32 %v6690, %v6691
          %v6693 = vrot.slane %v6647, 4
          %v6694 = vadd.f32 %v6647, %v6693
          %v6695 = vrot.slane %v6694, 2
          %v6696 = vadd.f32 %v6694, %v6695
          %v6697 = vrot.slane %v6696, 1
          %v6698 = vadd.f32 %v6696, %v6697
          %v6699 = vrot.slane %v6648, 4
          %v6700 = vadd.f32 %v6648, %v6699
          %v6701 = vrot.slane %v6700, 2
          %v6702 = vadd.f32 %v6700, %v6701
          %v6703 = vrot.slane %v6702, 1
          %v6704 = vadd.f32 %v6702, %v6703
          %v6705 = vrot.slane %v6649, 4
          %v6706 = vadd.f32 %v6649, %v6705
          %v6707 = vrot.slane %v6706, 2
          %v6708 = vadd.f32 %v6706, %v6707
          %v6709 = vrot.slane %v6708, 1
          %v6710 = vadd.f32 %v6708, %v6709
          %v6711 = vrot.slane %v6650, 4
          %v6712 = vadd.f32 %v6650, %v6711
          %v6713 = vrot.slane %v6712, 2
          %v6714 = vadd.f32 %v6712, %v6713
          %v6715 = vrot.slane %v6714, 1
          %v6716 = vadd.f32 %v6714, %v6715
          %v6717 = vrot.slane %v6651, 4
          %v6718 = vadd.f32 %v6651, %v6717
          %v6719 = vrot.slane %v6718, 2
          %v6720 = vadd.f32 %v6718, %v6719
          %v6721 = vrot.slane %v6720, 1
          %v6722 = vadd.f32 %v6720, %v6721
          %v6723 = vrot.slane %v6652, 4
          %v6724 = vadd.f32 %v6652, %v6723
          %v6725 = vrot.slane %v6724, 2
          %v6726 = vadd.f32 %v6724, %v6725
          %v6727 = vrot.slane %v6726, 1
          %v6728 = vadd.f32 %v6726, %v6727
          %v6729 = vrot.slane %v6653, 4
          %v6730 = vadd.f32 %v6653, %v6729
          %v6731 = vrot.slane %v6730, 2
          %v6732 = vadd.f32 %v6730, %v6731
          %v6733 = vrot.slane %v6732, 1
          %v6734 = vadd.f32 %v6732, %v6733
          %v6735 = vrot.slane %v6654, 4
          %v6736 = vadd.f32 %v6654, %v6735
          %v6737 = vrot.slane %v6736, 2
          %v6738 = vadd.f32 %v6736, %v6737
          %v6739 = vrot.slane %v6738, 1
          %v6740 = vadd.f32 %v6738, %v6739
          %v6741 = vrot.slane %v6655, 4
          %v6742 = vadd.f32 %v6655, %v6741
          %v6743 = vrot.slane %v6742, 2
          %v6744 = vadd.f32 %v6742, %v6743
          %v6745 = vrot.slane %v6744, 1
          %v6746 = vadd.f32 %v6744, %v6745
          %v6747 = vrot.slane %v6656, 4
          %v6748 = vadd.f32 %v6656, %v6747
          %v6749 = vrot.slane %v6748, 2
          %v6750 = vadd.f32 %v6748, %v6749
          %v6751 = vrot.slane %v6750, 1
          %v6752 = vadd.f32 %v6750, %v6751
          %v6753 = vmul.f32 %v6662, 0.00390625
          %v6754 = vmul.f32 %v6668, 0.00390625
          %v6755 = vmul.f32 %v6674, 0.00390625
          %v6756 = vmul.f32 %v6680, 0.00390625
          %v6757 = vmul.f32 %v6686, 0.00390625
          %v6758 = vmul.f32 %v6692, 0.00390625
          %v6759 = vmul.f32 %v6698, 0.00390625
          %v6760 = vmul.f32 %v6704, 0.00390625
          %v6761 = vmul.f32 %v6710, 0.00390625
          %v6762 = vmul.f32 %v6716, 0.00390625
          %v6763 = vmul.f32 %v6722, 0.00390625
          %v6764 = vmul.f32 %v6728, 0.00390625
          %v6765 = vmul.f32 %v6734, 0.00390625
          %v6766 = vmul.f32 %v6740, 0.00390625
          %v6767 = vmul.f32 %v6746, 0.00390625
          %v6768 = vmul.f32 %v6752, 0.00390625
          %v6769 = vlog2.pop %v6753
          %v6770 = vmul.f32 %v6769, 0.6931472
          %v6771 = vlog2.pop %v6754
          %v6772 = vmul.f32 %v6771, 0.6931472
          %v6773 = vlog2.pop %v6755
          %v6774 = vmul.f32 %v6773, 0.6931472
          %v6775 = vlog2.pop %v6756
          %v6776 = vmul.f32 %v6775, 0.6931472
          %v6777 = vlog2.pop %v6757
          %v6778 = vmul.f32 %v6777, 0.6931472
          %v6779 = vlog2.pop %v6758
          %v6780 = vmul.f32 %v6779, 0.6931472
          %v6781 = vlog2.pop %v6759
          %v6782 = vmul.f32 %v6781, 0.6931472
          %v6783 = vlog2.pop %v6760
          %v6784 = vmul.f32 %v6783, 0.6931472
          %v6785 = vlog2.pop %v6761
          %v6786 = vmul.f32 %v6785, 0.6931472
          %v6787 = vlog2.pop %v6762
          %v6788 = vmul.f32 %v6787, 0.6931472
          %v6789 = vlog2.pop %v6763
          %v6790 = vmul.f32 %v6789, 0.6931472
          %v6791 = vlog2.pop %v6764
          %v6792 = vmul.f32 %v6791, 0.6931472
          %v6793 = vlog2.pop %v6765
          %v6794 = vmul.f32 %v6793, 0.6931472
          %v6795 = vlog2.pop %v6766
          %v6796 = vmul.f32 %v6795, 0.6931472
          %v6797 = vlog2.pop %v6767
          %v6798 = vmul.f32 %v6797, 0.6931472
          %v6799 = vlog2.pop %v6768
          %v6800 = vmul.f32 %v6799, 0.6931472
          %v6801 = vmul.f32 %v6770, 0.33333334
          %v6802 = vmul.f32 %v6772, 0.33333334
          %v6803 = vmul.f32 %v6774, 0.33333334
          %v6804 = vmul.f32 %v6776, 0.33333334
          %v6805 = vmul.f32 %v6778, 0.33333334
          %v6806 = vmul.f32 %v6780, 0.33333334
          %v6807 = vmul.f32 %v6782, 0.33333334
          %v6808 = vmul.f32 %v6784, 0.33333334
          %v6809 = vmul.f32 %v6786, 0.33333334
          %v6810 = vmul.f32 %v6788, 0.33333334
          %v6811 = vmul.f32 %v6790, 0.33333334
          %v6812 = vmul.f32 %v6792, 0.33333334
          %v6813 = vmul.f32 %v6794, 0.33333334
          %v6814 = vmul.f32 %v6796, 0.33333334
          %v6815 = vmul.f32 %v6798, 0.33333334
          %v6816 = vmul.f32 %v6800, 0.33333334
          %v6817 = vmul.f32 %v6801, 1.442695
          %v6818 = vpow.pop %v6817
          %v6819 = vmul.f32 %v6802, 1.442695
          %v6820 = vpow.pop %v6819
          %v6821 = vmul.f32 %v6803, 1.442695
          %v6822 = vpow.pop %v6821
          %v6823 = vmul.f32 %v6804, 1.442695
          %v6824 = vpow.pop %v6823
          %v6825 = vmul.f32 %v6805, 1.442695
          %v6826 = vpow.pop %v6825
          %v6827 = vmul.f32 %v6806, 1.442695
          %v6828 = vpow.pop %v6827
          %v6829 = vmul.f32 %v6807, 1.442695
          %v6830 = vpow.pop %v6829
          %v6831 = vmul.f32 %v6808, 1.442695
          %v6832 = vpow.pop %v6831
          %v6833 = vmul.f32 %v6809, 1.442695
          %v6834 = vpow.pop %v6833
          %v6835 = vmul.f32 %v6810, 1.442695
          %v6836 = vpow.pop %v6835
          %v6837 = vmul.f32 %v6811, 1.442695
          %v6838 = vpow.pop %v6837
          %v6839 = vmul.f32 %v6812, 1.442695
          %v6840 = vpow.pop %v6839
          %v6841 = vmul.f32 %v6813, 1.442695
          %v6842 = vpow.pop %v6841
          %v6843 = vmul.f32 %v6814, 1.442695
          %v6844 = vpow.pop %v6843
          %v6845 = vmul.f32 %v6815, 1.442695
          %v6846 = vpow.pop %v6845
          %v6847 = vmul.f32 %v6816, 1.442695
          %v6848 = vpow.pop %v6847
          %v6865 = vrot.slane %v6820, 7
          %v6866 = vrot.slane %v6822, 6
          %v6867 = vrot.slane %v6824, 5
          %v6868 = vrot.slane %v6826, 4
          %v6869 = vrot.slane %v6828, 3
          %v6870 = vrot.slane %v6830, 2
          %v6871 = vrot.slane %v6832, 1
          %v6872 = vrot.slane %v6836, 7
          %v6873 = vrot.slane %v6838, 6
          %v6874 = vrot.slane %v6840, 5
          %v6875 = vrot.slane %v6842, 4
          %v6876 = vrot.slane %v6844, 3
          %v6877 = vrot.slane %v6846, 2
          %v6878 = vrot.slane %v6848, 1
          %vm6879 = vcmask 1040384
          %v6880 = vsel %vm6879, %v6818, %v6865
          %vm6881 = vcmask 1042434
          %v6882 = vsel %vm6881, %v6866, %v6867
          %vm6883 = vcmask 1041408
          %v6884 = vsel %vm6883, %v6880, %v6882
          %vm6885 = vcmask 1044484
          %v6886 = vsel %vm6885, %v6868, %v6869
          %vm6887 = vcmask 1046534
          %v6888 = vsel %vm6887, %v6870, %v6871
          %vm6889 = vcmask 1045508
          %v6890 = vsel %vm6889, %v6886, %v6888
          %vm6891 = vcmask 1043456
          %v6892 = vsel %vm6891, %v6884, %v6890
          %v6893 = vsel %vm6879, %v6834, %v6872
          %v6894 = vsel %vm6881, %v6873, %v6874
          %v6895 = vsel %vm6883, %v6893, %v6894
          %v6896 = vsel %vm6885, %v6875, %v6876
          %v6897 = vsel %vm6887, %v6877, %v6878
          %v6898 = vsel %vm6889, %v6896, %v6897
          %v6899 = vsel %vm6891, %v6895, %v6898
          %6902 = vst [vmem:[%s159] sm:$0xff] %v6892
          %6903 = vst [vmem:[%s159 + $0x8] sm:$0xff] %v6899
        $region36: #{tpu_custom_call.1} parent=27 // pred_fallthru
          _
        %s6904 = sand.u32 %s85, 1
        %s6905 = scalar_lea.sflag [#allocation4], %s6904
        %s6906 = sand.u32 %s85, 1
        %s6907 = smul.addr %s6906, 16
        %s6908 = scalar_lea.vmem [#allocation3], %s6907
        // Predicated region
        $region37: #{tpu_custom_call.1} parent=27 // pred_check
          %p6909 = pneg %p95
        $region38: #{tpu_custom_call.1} parent=27 // pred_check_branch
          %6911 = sbr.rel (%p6909) target = $region40
        $region39: #{tpu_custom_call.1} parent=27 // pred_region
          %6913 = vsyncadd %s6905, 0
          %s6914 = smul.addr %s20, 16
          %s6915 = scalar_lea.hbm %s2, %s6914
          %s6917 = sshll.u32 %s6908, 4
          %s6918 = int_to_ptr.vmem [resolvable:$true] %s6917
          %s6919 = sshll.u32 %s6915, 4
          %s6920 = int_to_ptr.hbm [resolvable:$true] %s6919
          %6922 = dma.vmem_to_hbm [thread:$0]  %s6918, 256, %s6920, %s6905
        $region40: #{tpu_custom_call.1} parent=27 // pred_fallthru
          _
      $region28: #{tpu_custom_call.1} parent=5 // pred_fallthru
        _
      %p6923 = scmp.le.s32.totalorder 2, %s11
      // Predicated region
      $region41: #{tpu_custom_call.1} parent=5 // pred_check
        %p6924 = pneg %p6923
      $region42: #{tpu_custom_call.1} parent=5 // pred_check_branch
        %6926 = sbr.rel (%p6924) target = $region44
      $region43: #{tpu_custom_call.1} parent=5 // pred_region
        %s6927 = ssub.s32 %s11, 2
        // Predicated region
        $region45: #{tpu_custom_call.1} parent=43 // pred_check
          %p6928 = pneg %p101
        $region46: #{tpu_custom_call.1} parent=43 // pred_check_branch
          %6930 = sbr.rel (%p6928) target = $region48
        $region47: #{tpu_custom_call.1} parent=43 // pred_region
          %s6931 = sand.u32 %s86, 1
          %s6932 = scalar_lea.sflag [#allocation4], %s6931
          %s6933 = sand.u32 %s86, 1
          %s6934 = smul.addr %s6933, 16
          %s6935 = scalar_lea.vmem [#allocation3], %s6934
          %6937 = dma.done %s6932, 256
        $region48: #{tpu_custom_call.1} parent=43 // pred_fallthru
          _
      $region44: #{tpu_custom_call.1} parent=5 // pred_fallthru
        _
    $region6: #{tpu_custom_call.1} parent=1 // loop_footer
      %s15 = sadd.s32 1, %s11
    $region7: #{tpu_custom_call.1} parent=1 // loop_footer_branch
      %10 = sbr.rel target = $region3
    $region8: #{tpu_custom_call.1} parent=1 // loop_exit
      _
    %6938 = vsyncpa [#allocation4], 1
    %s6939 = scalar_lea.sflag [#allocation4], 1
    %6940 = vsyncpa %s6939, 1

</llo_original>
